<compile_context>
chip_gen: v7x
topology: tpu7x:2x2x1
jax: 0.10.0
libtpu: 0.0.40
codegen_flags: <defaults>
</compile_context>

<pallas_src>
import jax
import jax.numpy as jnp
from jax import lax
from jax.experimental import pallas as pl
from jax.experimental.pallas import tpu as pltpu

EPS = 1e-5
_PW = 8          # W-side halo width; keeps the halo concat sublane-aligned
_NEG = -3.0e38   # -inf stand-in for max-pool halo (representable in bf16)


# ----------------------------------------------------------------------------
# Fused InceptionC Pallas kernel
# ----------------------------------------------------------------------------
def _make_inception_kernel(H, W, cin, o11, o21, o22, o31, o32, o42):
  HW = H * W
  f32 = jnp.float32
  bf16 = jnp.bfloat16
  c_tot = o11 + 2 * o22 + 2 * o32 + o42

  def pad_w(a, value):
    # (h, W, c) -> (h, W + 2*_PW, c); 8-wide pieces keep the concat aligned.
    h, _, c = a.shape
    z = jnp.full((h, _PW, c), value, a.dtype)
    return jnp.concatenate([z, a, z], axis=1)

  def pad_h(a, value):
    # (H, w, c) -> (H + 2, w, c); axis 0 is an untiled leading dim -> cheap.
    _, w, c = a.shape
    z = jnp.full((1, w, c), value, a.dtype)
    return jnp.concatenate([z, a, z], axis=0)

  def bn_relu(acc, sb_ref):
    # acc: (HW, Cout) f32; sb_ref: (2, Cout) f32 = [scale; bias]
    return jnp.maximum(acc * sb_ref[0:1, :] + sb_ref[1:2, :], 0.0)

  def conv(lhs_bf16, w_ref, sb_ref):
    # ONE matmul per conv: bf16 operands, f32 MXU accumulation, f32 epilogue.
    acc = jnp.dot(lhs_bf16, w_ref[...], preferred_element_type=f32)
    return bn_relu(acc, sb_ref)

  # --- K-stacked im2col-style LHS builders (bf16 in, bf16 out) --------------
  def lhs_1x3(a):
    # taps kw=0,1,2  ->  [x[:, w-1], x[:, w], x[:, w+1]] stacked on channels.
    c = a.shape[-1]
    ap = pad_w(a, 0.0)
    taps = [ap[:, _PW - 1 + k:_PW - 1 + k + W, :] for k in range(3)]
    return jnp.concatenate(taps, axis=-1).reshape(HW, 3 * c)

  def lhs_3x1(a):
    c = a.shape[-1]
    ap = pad_h(a, 0.0)
    taps = [ap[k:k + H] for k in range(3)]
    return jnp.concatenate(taps, axis=-1).reshape(HW, 3 * c)

  def lhs_3x3(a):
    # taps (kh, kw) row-major, matching the (9*cin, cout) weight reshape.
    c = a.shape[-1]
    ap = pad_w(pad_h(a, 0.0), 0.0)
    taps = [ap[kh:kh + H, _PW - 1 + kw:_PW - 1 + kw + W, :]
            for kh in range(3) for kw in range(3)]
    return jnp.concatenate(taps, axis=-1).reshape(HW, 9 * c)

  def kernel(x_ref, wa_ref, sba_ref, w21_ref, sb21_ref, w22_ref, sb22_ref,
             w3b_ref, sb3b_ref, w31_ref, sb31_ref, w32_ref, sb32_ref,
             w4_ref, sb4_ref, o_ref):
    x = x_ref[0]                                         # (H, W, cin) bf16

    # --- branch1 / branch2-head / branch3-head: one fused 1x1-conv matmul --
    ya = conv(x.reshape(HW, cin), wa_ref, sba_ref)       # (HW, o11+o21+o31)
    y1 = ya[:, 0:o11]                                    # branch1 output (f32)
    x2 = ya[:, o11:o11 + o21].astype(bf16).reshape(H, W, o21)
    x3 = ya[:, o11 + o21:].astype(bf16).reshape(H, W, o31)

    # --- branch2 tail: 1x3 and 3x1 on the shared x2 (one matmul each) ------
    y2a = conv(lhs_1x3(x2), w21_ref, sb21_ref)
    y2b = conv(lhs_3x1(x2), w22_ref, sb22_ref)

    # --- branch3 tail: 3x3, then 1x3 and 3x1 on the shared result ----------
    x3 = conv(lhs_3x3(x3), w3b_ref, sb3b_ref).astype(bf16).reshape(H, W, o32)
    y3a = conv(lhs_1x3(x3), w31_ref, sb31_ref)
    y3b = conv(lhs_3x1(x3), w32_ref, sb32_ref)

    # --- branch4: separable 3x3/s1/p1 max-pool (bf16) + 1x1 conv -----------
    xw = pad_w(x, _NEG)
    rmax = jnp.maximum(jnp.maximum(xw[:, _PW - 1:_PW - 1 + W, :],
                                   xw[:, _PW:_PW + W, :]),
                       xw[:, _PW + 1:_PW + 1 + W, :])
    xh = pad_h(rmax, _NEG)
    pooled = jnp.maximum(jnp.maximum(xh[0:H], xh[1:H + 1]), xh[2:H + 2])
    y4 = conv(pooled.reshape(HW, cin), w4_ref, sb4_ref)

    # --- single lane-dense output store (torch.cat order: b1,b21,b22,b31,b32,b4)
    out = jnp.concatenate([y1, y2a, y2b, y3a, y3b, y4], axis=-1)
    o_ref[0] = out.reshape(H, W, c_tot)

  return kernel


# ----------------------------------------------------------------------------
# Wrapper: weight folding / fusing + pallas_call
# ----------------------------------------------------------------------------
def _fold_bn(q):
  return jnp.stack([q["scale"], q["bias"]]).astype(jnp.float32)   # (2, cout)


def _prep_weight_args(p):
  bf16 = jnp.bfloat16

  def w1x1(q):
    w = q["w"]
    return w.reshape(w.shape[2], w.shape[3]).astype(bf16)          # (cin, cout)

  def wk(q):
    # Stack the kh*kw spatial taps along the contraction dim:
    # (kh, kw, cin, cout) -> (kh*kw*cin, cout), taps in (kh, kw) row-major
    # order, matching the in-kernel LHS tap order.
    w = q["w"]
    kh, kw, ci, co = w.shape
    return w.reshape(kh * kw * ci, co).astype(bf16)

  # branch1 / branch2-head / branch3-head 1x1 convs fused along Cout.
  wa = jnp.concatenate([w1x1(p["b1"]), w1x1(p["b2"]), w1x1(p["b3a"])], axis=1)
  sba = jnp.concatenate([_fold_bn(p["b1"]), _fold_bn(p["b2"]),
                         _fold_bn(p["b3a"])], axis=1)

  return [
      wa, sba,
      wk(p["b21"]), _fold_bn(p["b21"]),
      wk(p["b22"]), _fold_bn(p["b22"]),
      wk(p["b3b"]), _fold_bn(p["b3b"]),
      wk(p["b31"]), _fold_bn(p["b31"]),
      wk(p["b32"]), _fold_bn(p["b32"]),
      w1x1(p["b4"]), _fold_bn(p["b4"]),
  ]


def inception_c_pallas(x_nchw, params):
  # Cast to bf16 BEFORE the layout transpose so the transpose moves half the
  # bytes; NCHW -> NHWC puts channels on lanes.
  x = jnp.transpose(x_nchw.astype(jnp.bfloat16), (0, 2, 3, 1))
  N, H, W, cin = x.shape
  o11 = params["b1"]["scale"].shape[0]
  o21 = params["b2"]["scale"].shape[0]
  o22 = params["b21"]["scale"].shape[0]
  o31 = params["b3a"]["scale"].shape[0]
  o32 = params["b3b"]["scale"].shape[0]
  o42 = params["b4"]["scale"].shape[0]
  c_tot = o11 + 2 * o22 + 2 * o32 + o42

  kernel = _make_inception_kernel(H, W, cin, o11, o21, o22, o31, o32, o42)
  w_args = _prep_weight_args(params)

  def _full_spec(a):
    nd = a.ndim
    def imap(n):
      return (0,) * nd
    return pl.BlockSpec(a.shape, imap)

  # Advisory cost estimate so XLA schedules the surrounding ops sensibly.
  flops = 2 * N * H * W * (cin * (o11 + o21 + o31 + o42)
                           + 2 * 3 * o21 * o22
                           + 9 * o31 * o32
                           + 2 * 3 * o32 * o32)
  bytes_accessed = (int(x.size) * 2 + N * H * W * c_tot * 4
                    + sum(int(a.size) * a.dtype.itemsize for a in w_args))

  out = pl.pallas_call(
      kernel,
      out_shape=jax.ShapeDtypeStruct((N, H, W, c_tot), jnp.float32),
      grid=(N,),
      in_specs=[pl.BlockSpec((1, H, W, cin), lambda n: (n, 0, 0, 0))]
               + [_full_spec(a) for a in w_args],
      out_specs=pl.BlockSpec((1, H, W, c_tot), lambda n: (n, 0, 0, 0)),
      compiler_params=pltpu.CompilerParams(
          dimension_semantics=("parallel",),
          vmem_limit_bytes=64 * 1024 * 1024),
      cost_estimate=pl.CostEstimate(flops=flops, transcendentals=0,
                                    bytes_accessed=int(bytes_accessed)),
  )(x, *w_args)
  return jnp.transpose(out, (0, 3, 1, 2))      # NHWC -> NCHW


# ----------------------------------------------------------------------------
# Parameter construction (deterministic, synthetic)
# ----------------------------------------------------------------------------
def make_conv_bn(key, kh, kw, cin, cout):
  k1, k2, k3, k4, k5, k6 = jax.random.split(key, 6)
  w = jax.random.normal(k1, (kh, kw, cin, cout), jnp.float32) * 0.1
  b = jax.random.normal(k2, (cout,), jnp.float32) * 0.1
  gamma = jax.random.uniform(k3, (cout,), jnp.float32, minval=0.5, maxval=1.5)
  beta = jax.random.normal(k4, (cout,), jnp.float32) * 0.1
  mean = jax.random.normal(k5, (cout,), jnp.float32) * 0.1
  var = jax.random.uniform(k6, (cout,), jnp.float32, minval=0.5, maxval=1.5)
  scale = gamma / jnp.sqrt(var + EPS)
  bias = beta + (b - mean) * scale
  return {"w": w, "scale": scale, "bias": bias}


def make_inception_c_params(key, in_chan, o11, o21, o22, o31, o32, o42):
  ks = jax.random.split(key, 9)
  return {
      "b1":  make_conv_bn(ks[0], 1, 1, in_chan, o11),
      "b2":  make_conv_bn(ks[1], 1, 1, in_chan, o21),
      "b21": make_conv_bn(ks[2], 1, 3, o21, o22),
      "b22": make_conv_bn(ks[3], 3, 1, o21, o22),
      "b3a": make_conv_bn(ks[4], 1, 1, in_chan, o31),
      "b3b": make_conv_bn(ks[5], 3, 3, o31, o32),
      "b31": make_conv_bn(ks[6], 1, 3, o32, o32),
      "b32": make_conv_bn(ks[7], 3, 1, o32, o32),
      "b4":  make_conv_bn(ks[8], 1, 1, in_chan, o42),
  }


# ----------------------------------------------------------------------------
# Pure-JAX reference (same bf16 matmul-operand policy as the kernel)
# ----------------------------------------------------------------------------
def _ref_conv(x, q, pad):
  y = lax.conv_general_dilated(
      x.astype(jnp.bfloat16), q["w"].astype(jnp.bfloat16),
      window_strides=(1, 1),
      padding=[(pad[0], pad[0]), (pad[1], pad[1])],
      dimension_numbers=("NHWC", "HWIO", "NHWC"),
      preferred_element_type=jnp.float32)
  return jnp.maximum(y * q["scale"] + q["bias"], 0.0)


def _ref_pool(x):
  return lax.reduce_window(x, -jnp.inf, lax.max, (1, 3, 3, 1), (1, 1, 1, 1),
                           ((0, 0), (1, 1), (1, 1), (0, 0)))


def inception_c_reference(x_nchw, p):
  x = jnp.transpose(x_nchw, (0, 2, 3, 1))
  x1 = _ref_conv(x, p["b1"], (0, 0))
  x2 = _ref_conv(x, p["b2"], (0, 0))
  x2a = _ref_conv(x2, p["b21"], (0, 1))
  x2b = _ref_conv(x2, p["b22"], (1, 0))
  x3 = _ref_conv(x, p["b3a"], (0, 0))
  x3 = _ref_conv(x3, p["b3b"], (1, 1))
  x3a = _ref_conv(x3, p["b31"], (0, 1))
  x3b = _ref_conv(x3, p["b32"], (1, 0))
  x4 = _ref_conv(_ref_pool(x), p["b4"], (0, 0))
  out = jnp.concatenate([x1, x2a, x2b, x3a, x3b, x4], axis=-1)
  return jnp.transpose(out, (0, 3, 1, 2))


# ----------------------------------------------------------------------------
if __name__ == "__main__":
  key = jax.random.PRNGKey(0)
  kx, kp = jax.random.split(key)

  # small shapes consistent with the module's forward
  N, in_chan, H, W = 2, 4, 16, 16
  o11, o21, o22, o31, o32, o42 = 8, 8, 8, 8, 8, 8

  x = jax.random.normal(kx, (N, in_chan, H, W), jnp.float32)
  params = make_inception_c_params(kp, in_chan, o11, o21, o22, o31, o32, o42)

  out = jax.block_until_ready(inception_c_pallas(x, params))
  ref = jax.block_until_ready(inception_c_reference(x, params))

  expected_c = o11 + 2 * o22 + 2 * o32 + o42
  assert out.shape == (N, expected_c, H, W), out.shape
  # bf16 matmul operands (same rounding in kernel and reference); tolerance
  # covers f32 accumulation-order differences cascading through the chained
  # branch-2 / branch-3 convolutions.
  err = float(jnp.max(jnp.abs(out - ref)))
  assert jnp.allclose(out, ref, rtol=2e-3, atol=2e-3), err

  print("KERNEL_OK")
</pallas_src>

<mosaic_0001>
module attributes {stable_mosaic.version = 11 : i64} {
  func.func @kernel(%arg0: i32, %arg1: memref<1x16x16x4xbf16, #tpu.memory_space<vmem>>, %arg2: memref<4x24xbf16, #tpu.memory_space<vmem>>, %arg3: memref<2x24xf32, #tpu.memory_space<vmem>>, %arg4: memref<24x8xbf16, #tpu.memory_space<vmem>>, %arg5: memref<2x8xf32, #tpu.memory_space<vmem>>, %arg6: memref<24x8xbf16, #tpu.memory_space<vmem>>, %arg7: memref<2x8xf32, #tpu.memory_space<vmem>>, %arg8: memref<72x8xbf16, #tpu.memory_space<vmem>>, %arg9: memref<2x8xf32, #tpu.memory_space<vmem>>, %arg10: memref<24x8xbf16, #tpu.memory_space<vmem>>, %arg11: memref<2x8xf32, #tpu.memory_space<vmem>>, %arg12: memref<24x8xbf16, #tpu.memory_space<vmem>>, %arg13: memref<2x8xf32, #tpu.memory_space<vmem>>, %arg14: memref<4x8xbf16, #tpu.memory_space<vmem>>, %arg15: memref<2x8xf32, #tpu.memory_space<vmem>>, %arg16: memref<1x16x16x48xf32, #tpu.memory_space<vmem>>) attributes {dimension_semantics = [#tpu.dimension_semantics<parallel>], iteration_bounds = array<i64: 2>, scalar_prefetch = 0 : i64, scratch_operands = 0 : i64, tpu.core_type = #tpu.core_type<tc>, window_params = [{transform_indices = @transform_0, window_bounds = array<i64: 1, 16, 16, 4>}, {pipeline_mode = #tpu.pipeline_mode<synchronous>, transform_indices = @transform_1, window_bounds = array<i64: 4, 24>}, {pipeline_mode = #tpu.pipeline_mode<synchronous>, transform_indices = @transform_2, window_bounds = array<i64: 2, 24>}, {pipeline_mode = #tpu.pipeline_mode<synchronous>, transform_indices = @transform_3, window_bounds = array<i64: 24, 8>}, {pipeline_mode = #tpu.pipeline_mode<synchronous>, transform_indices = @transform_4, window_bounds = array<i64: 2, 8>}, {pipeline_mode = #tpu.pipeline_mode<synchronous>, transform_indices = @transform_5, window_bounds = array<i64: 24, 8>}, {pipeline_mode = #tpu.pipeline_mode<synchronous>, transform_indices = @transform_6, window_bounds = array<i64: 2, 8>}, {pipeline_mode = #tpu.pipeline_mode<synchronous>, transform_indices = @transform_7, window_bounds = array<i64: 72, 8>}, {pipeline_mode = #tpu.pipeline_mode<synchronous>, transform_indices = @transform_8, window_bounds = array<i64: 2, 8>}, {pipeline_mode = #tpu.pipeline_mode<synchronous>, transform_indices = @transform_9, window_bounds = array<i64: 24, 8>}, {pipeline_mode = #tpu.pipeline_mode<synchronous>, transform_indices = @transform_10, window_bounds = array<i64: 2, 8>}, {pipeline_mode = #tpu.pipeline_mode<synchronous>, transform_indices = @transform_11, window_bounds = array<i64: 24, 8>}, {pipeline_mode = #tpu.pipeline_mode<synchronous>, transform_indices = @transform_12, window_bounds = array<i64: 2, 8>}, {pipeline_mode = #tpu.pipeline_mode<synchronous>, transform_indices = @transform_13, window_bounds = array<i64: 4, 8>}, {pipeline_mode = #tpu.pipeline_mode<synchronous>, transform_indices = @transform_14, window_bounds = array<i64: 2, 8>}, {transform_indices = @transform_15, window_bounds = array<i64: 1, 16, 16, 48>}]} {
    %c0 = arith.constant 0 : index
    %c0_0 = arith.constant 0 : index
    %c0_1 = arith.constant 0 : index
    %c0_2 = arith.constant 0 : index
    %0 = vector.load %arg1[%c0, %c0_0, %c0_1, %c0_2] : memref<1x16x16x4xbf16, #tpu.memory_space<vmem>>, vector<1x16x16x4xbf16>
    %1 = vector.shape_cast %0 : vector<1x16x16x4xbf16> to vector<16x16x4xbf16>
    %2 = vector.shape_cast %1 : vector<16x16x4xbf16> to vector<256x4xbf16>
    %c0_3 = arith.constant 0 : index
    %c0_4 = arith.constant 0 : index
    %3 = vector.load %arg2[%c0_3, %c0_4] : memref<4x24xbf16, #tpu.memory_space<vmem>>, vector<4x24xbf16>
    %cst = arith.constant dense<0.000000e+00> : vector<256x24xf32>
    %4 = tpu.matmul %2, %3, %cst {dimension_numbers = #tpu.dot_dimension_numbers<[1], [0], [0], [1], [0, 0, 1, 1], [], []>} : vector<256x4xbf16>, vector<4x24xbf16>, vector<256x24xf32> -> vector<256x24xf32>
    %c0_5 = arith.constant 0 : index
    %c0_6 = arith.constant 0 : index
    %5 = vector.load %arg3[%c0_5, %c0_6] : memref<2x24xf32, #tpu.memory_space<vmem>>, vector<1x24xf32>
    %6 = vector.broadcast %5 : vector<1x24xf32> to vector<256x24xf32>
    %7 = arith.mulf %4, %6 : vector<256x24xf32>
    %c1 = arith.constant 1 : index
    %c0_7 = arith.constant 0 : index
    %8 = vector.load %arg3[%c1, %c0_7] : memref<2x24xf32, #tpu.memory_space<vmem>>, vector<1x24xf32>
    %9 = vector.broadcast %8 : vector<1x24xf32> to vector<256x24xf32>
    %10 = arith.addf %7, %9 : vector<256x24xf32>
    %cst_8 = arith.constant 0.000000e+00 : f32
    %11 = vector.broadcast %cst_8 : f32 to vector<256x24xf32>
    %12 = arith.maximumf %10, %11 : vector<256x24xf32>
    %13 = vector.extract_strided_slice %12 {offsets = [0, 0], sizes = [256, 8], strides = [1, 1]} : vector<256x24xf32> to vector<256x8xf32>
    %14 = vector.extract_strided_slice %12 {offsets = [0, 8], sizes = [256, 8], strides = [1, 1]} : vector<256x24xf32> to vector<256x8xf32>
    %15 = arith.truncf %14 : vector<256x8xf32> to vector<256x8xbf16>
    %16 = vector.shape_cast %15 : vector<256x8xbf16> to vector<16x16x8xbf16>
    %17 = vector.extract_strided_slice %12 {offsets = [0, 16], sizes = [256, 8], strides = [1, 1]} : vector<256x24xf32> to vector<256x8xf32>
    %18 = arith.truncf %17 : vector<256x8xf32> to vector<256x8xbf16>
    %19 = vector.shape_cast %18 : vector<256x8xbf16> to vector<16x16x8xbf16>
    %cst_9 = arith.constant 0.000000e+00 : bf16
    %20 = vector.broadcast %cst_9 : bf16 to vector<16x8x8xbf16>
    %21 = tpu.concatenate %20, %16, %20 in 1 : vector<16x8x8xbf16>, vector<16x16x8xbf16>, vector<16x8x8xbf16> -> vector<16x32x8xbf16>
    %22 = vector.extract_strided_slice %21 {offsets = [0, 7, 0], sizes = [16, 16, 8], strides = [1, 1, 1]} : vector<16x32x8xbf16> to vector<16x16x8xbf16>
    %23 = vector.extract_strided_slice %21 {offsets = [0, 8, 0], sizes = [16, 16, 8], strides = [1, 1, 1]} : vector<16x32x8xbf16> to vector<16x16x8xbf16>
    %24 = vector.extract_strided_slice %21 {offsets = [0, 9, 0], sizes = [16, 16, 8], strides = [1, 1, 1]} : vector<16x32x8xbf16> to vector<16x16x8xbf16>
    %25 = tpu.concatenate %22, %23, %24 in 2 : vector<16x16x8xbf16>, vector<16x16x8xbf16>, vector<16x16x8xbf16> -> vector<16x16x24xbf16>
    %26 = vector.shape_cast %25 : vector<16x16x24xbf16> to vector<256x24xbf16>
    %c0_10 = arith.constant 0 : index
    %c0_11 = arith.constant 0 : index
    %27 = vector.load %arg4[%c0_10, %c0_11] : memref<24x8xbf16, #tpu.memory_space<vmem>>, vector<24x8xbf16>
    %cst_12 = arith.constant dense<0.000000e+00> : vector<256x8xf32>
    %28 = tpu.matmul %26, %27, %cst_12 {dimension_numbers = #tpu.dot_dimension_numbers<[1], [0], [0], [1], [0, 0, 1, 1], [], []>} : vector<256x24xbf16>, vector<24x8xbf16>, vector<256x8xf32> -> vector<256x8xf32>
    %c0_13 = arith.constant 0 : index
    %c0_14 = arith.constant 0 : index
    %29 = vector.load %arg5[%c0_13, %c0_14] : memref<2x8xf32, #tpu.memory_space<vmem>>, vector<1x8xf32>
    %30 = vector.broadcast %29 : vector<1x8xf32> to vector<256x8xf32>
    %31 = arith.mulf %28, %30 : vector<256x8xf32>
    %c1_15 = arith.constant 1 : index
    %c0_16 = arith.constant 0 : index
    %32 = vector.load %arg5[%c1_15, %c0_16] : memref<2x8xf32, #tpu.memory_space<vmem>>, vector<1x8xf32>
    %33 = vector.broadcast %32 : vector<1x8xf32> to vector<256x8xf32>
    %34 = arith.addf %31, %33 : vector<256x8xf32>
    %cst_17 = arith.constant 0.000000e+00 : f32
    %35 = vector.broadcast %cst_17 : f32 to vector<256x8xf32>
    %36 = arith.maximumf %34, %35 : vector<256x8xf32>
    %cst_18 = arith.constant 0.000000e+00 : bf16
    %37 = vector.broadcast %cst_18 : bf16 to vector<1x16x8xbf16>
    %38 = tpu.concatenate %37, %16, %37 in 0 : vector<1x16x8xbf16>, vector<16x16x8xbf16>, vector<1x16x8xbf16> -> vector<18x16x8xbf16>
    %39 = vector.extract_strided_slice %38 {offsets = [0, 0, 0], sizes = [16, 16, 8], strides = [1, 1, 1]} : vector<18x16x8xbf16> to vector<16x16x8xbf16>
    %40 = vector.extract_strided_slice %38 {offsets = [1, 0, 0], sizes = [16, 16, 8], strides = [1, 1, 1]} : vector<18x16x8xbf16> to vector<16x16x8xbf16>
    %41 = vector.extract_strided_slice %38 {offsets = [2, 0, 0], sizes = [16, 16, 8], strides = [1, 1, 1]} : vector<18x16x8xbf16> to vector<16x16x8xbf16>
    %42 = tpu.concatenate %39, %40, %41 in 2 : vector<16x16x8xbf16>, vector<16x16x8xbf16>, vector<16x16x8xbf16> -> vector<16x16x24xbf16>
    %43 = vector.shape_cast %42 : vector<16x16x24xbf16> to vector<256x24xbf16>
    %c0_19 = arith.constant 0 : index
    %c0_20 = arith.constant 0 : index
    %44 = vector.load %arg6[%c0_19, %c0_20] : memref<24x8xbf16, #tpu.memory_space<vmem>>, vector<24x8xbf16>
    %cst_21 = arith.constant dense<0.000000e+00> : vector<256x8xf32>
    %45 = tpu.matmul %43, %44, %cst_21 {dimension_numbers = #tpu.dot_dimension_numbers<[1], [0], [0], [1], [0, 0, 1, 1], [], []>} : vector<256x24xbf16>, vector<24x8xbf16>, vector<256x8xf32> -> vector<256x8xf32>
    %c0_22 = arith.constant 0 : index
    %c0_23 = arith.constant 0 : index
    %46 = vector.load %arg7[%c0_22, %c0_23] : memref<2x8xf32, #tpu.memory_space<vmem>>, vector<1x8xf32>
    %47 = vector.broadcast %46 : vector<1x8xf32> to vector<256x8xf32>
    %48 = arith.mulf %45, %47 : vector<256x8xf32>
    %c1_24 = arith.constant 1 : index
    %c0_25 = arith.constant 0 : index
    %49 = vector.load %arg7[%c1_24, %c0_25] : memref<2x8xf32, #tpu.memory_space<vmem>>, vector<1x8xf32>
    %50 = vector.broadcast %49 : vector<1x8xf32> to vector<256x8xf32>
    %51 = arith.addf %48, %50 : vector<256x8xf32>
    %cst_26 = arith.constant 0.000000e+00 : f32
    %52 = vector.broadcast %cst_26 : f32 to vector<256x8xf32>
    %53 = arith.maximumf %51, %52 : vector<256x8xf32>
    %cst_27 = arith.constant 0.000000e+00 : bf16
    %54 = vector.broadcast %cst_27 : bf16 to vector<1x16x8xbf16>
    %55 = tpu.concatenate %54, %19, %54 in 0 : vector<1x16x8xbf16>, vector<16x16x8xbf16>, vector<1x16x8xbf16> -> vector<18x16x8xbf16>
    %cst_28 = arith.constant 0.000000e+00 : bf16
    %56 = vector.broadcast %cst_28 : bf16 to vector<18x8x8xbf16>
    %57 = tpu.concatenate %56, %55, %56 in 1 : vector<18x8x8xbf16>, vector<18x16x8xbf16>, vector<18x8x8xbf16> -> vector<18x32x8xbf16>
    %58 = vector.extract_strided_slice %57 {offsets = [0, 7, 0], sizes = [16, 16, 8], strides = [1, 1, 1]} : vector<18x32x8xbf16> to vector<16x16x8xbf16>
    %59 = vector.extract_strided_slice %57 {offsets = [0, 8, 0], sizes = [16, 16, 8], strides = [1, 1, 1]} : vector<18x32x8xbf16> to vector<16x16x8xbf16>
    %60 = vector.extract_strided_slice %57 {offsets = [0, 9, 0], sizes = [16, 16, 8], strides = [1, 1, 1]} : vector<18x32x8xbf16> to vector<16x16x8xbf16>
    %61 = vector.extract_strided_slice %57 {offsets = [1, 7, 0], sizes = [16, 16, 8], strides = [1, 1, 1]} : vector<18x32x8xbf16> to vector<16x16x8xbf16>
    %62 = vector.extract_strided_slice %57 {offsets = [1, 8, 0], sizes = [16, 16, 8], strides = [1, 1, 1]} : vector<18x32x8xbf16> to vector<16x16x8xbf16>
    %63 = vector.extract_strided_slice %57 {offsets = [1, 9, 0], sizes = [16, 16, 8], strides = [1, 1, 1]} : vector<18x32x8xbf16> to vector<16x16x8xbf16>
    %64 = vector.extract_strided_slice %57 {offsets = [2, 7, 0], sizes = [16, 16, 8], strides = [1, 1, 1]} : vector<18x32x8xbf16> to vector<16x16x8xbf16>
    %65 = vector.extract_strided_slice %57 {offsets = [2, 8, 0], sizes = [16, 16, 8], strides = [1, 1, 1]} : vector<18x32x8xbf16> to vector<16x16x8xbf16>
    %66 = vector.extract_strided_slice %57 {offsets = [2, 9, 0], sizes = [16, 16, 8], strides = [1, 1, 1]} : vector<18x32x8xbf16> to vector<16x16x8xbf16>
    %67 = tpu.concatenate %58, %59, %60, %61, %62, %63, %64, %65, %66 in 2 : vector<16x16x8xbf16>, vector<16x16x8xbf16>, vector<16x16x8xbf16>, vector<16x16x8xbf16>, vector<16x16x8xbf16>, vector<16x16x8xbf16>, vector<16x16x8xbf16>, vector<16x16x8xbf16>, vector<16x16x8xbf16> -> vector<16x16x72xbf16>
    %68 = vector.shape_cast %67 : vector<16x16x72xbf16> to vector<256x72xbf16>
    %c0_29 = arith.constant 0 : index
    %c0_30 = arith.constant 0 : index
    %69 = vector.load %arg8[%c0_29, %c0_30] : memref<72x8xbf16, #tpu.memory_space<vmem>>, vector<72x8xbf16>
    %cst_31 = arith.constant dense<0.000000e+00> : vector<256x8xf32>
    %70 = tpu.matmul %68, %69, %cst_31 {dimension_numbers = #tpu.dot_dimension_numbers<[1], [0], [0], [1], [0, 0, 1, 1], [], []>} : vector<256x72xbf16>, vector<72x8xbf16>, vector<256x8xf32> -> vector<256x8xf32>
    %c0_32 = arith.constant 0 : index
    %c0_33 = arith.constant 0 : index
    %71 = vector.load %arg9[%c0_32, %c0_33] : memref<2x8xf32, #tpu.memory_space<vmem>>, vector<1x8xf32>
    %72 = vector.broadcast %71 : vector<1x8xf32> to vector<256x8xf32>
    %73 = arith.mulf %70, %72 : vector<256x8xf32>
    %c1_34 = arith.constant 1 : index
    %c0_35 = arith.constant 0 : index
    %74 = vector.load %arg9[%c1_34, %c0_35] : memref<2x8xf32, #tpu.memory_space<vmem>>, vector<1x8xf32>
    %75 = vector.broadcast %74 : vector<1x8xf32> to vector<256x8xf32>
    %76 = arith.addf %73, %75 : vector<256x8xf32>
    %cst_36 = arith.constant 0.000000e+00 : f32
    %77 = vector.broadcast %cst_36 : f32 to vector<256x8xf32>
    %78 = arith.maximumf %76, %77 : vector<256x8xf32>
    %79 = arith.truncf %78 : vector<256x8xf32> to vector<256x8xbf16>
    %80 = vector.shape_cast %79 : vector<256x8xbf16> to vector<16x16x8xbf16>
    %cst_37 = arith.constant 0.000000e+00 : bf16
    %81 = vector.broadcast %cst_37 : bf16 to vector<16x8x8xbf16>
    %82 = tpu.concatenate %81, %80, %81 in 1 : vector<16x8x8xbf16>, vector<16x16x8xbf16>, vector<16x8x8xbf16> -> vector<16x32x8xbf16>
    %83 = vector.extract_strided_slice %82 {offsets = [0, 7, 0], sizes = [16, 16, 8], strides = [1, 1, 1]} : vector<16x32x8xbf16> to vector<16x16x8xbf16>
    %84 = vector.extract_strided_slice %82 {offsets = [0, 8, 0], sizes = [16, 16, 8], strides = [1, 1, 1]} : vector<16x32x8xbf16> to vector<16x16x8xbf16>
    %85 = vector.extract_strided_slice %82 {offsets = [0, 9, 0], sizes = [16, 16, 8], strides = [1, 1, 1]} : vector<16x32x8xbf16> to vector<16x16x8xbf16>
    %86 = tpu.concatenate %83, %84, %85 in 2 : vector<16x16x8xbf16>, vector<16x16x8xbf16>, vector<16x16x8xbf16> -> vector<16x16x24xbf16>
    %87 = vector.shape_cast %86 : vector<16x16x24xbf16> to vector<256x24xbf16>
    %c0_38 = arith.constant 0 : index
    %c0_39 = arith.constant 0 : index
    %88 = vector.load %arg10[%c0_38, %c0_39] : memref<24x8xbf16, #tpu.memory_space<vmem>>, vector<24x8xbf16>
    %cst_40 = arith.constant dense<0.000000e+00> : vector<256x8xf32>
    %89 = tpu.matmul %87, %88, %cst_40 {dimension_numbers = #tpu.dot_dimension_numbers<[1], [0], [0], [1], [0, 0, 1, 1], [], []>} : vector<256x24xbf16>, vector<24x8xbf16>, vector<256x8xf32> -> vector<256x8xf32>
    %c0_41 = arith.constant 0 : index
    %c0_42 = arith.constant 0 : index
    %90 = vector.load %arg11[%c0_41, %c0_42] : memref<2x8xf32, #tpu.memory_space<vmem>>, vector<1x8xf32>
    %91 = vector.broadcast %90 : vector<1x8xf32> to vector<256x8xf32>
    %92 = arith.mulf %89, %91 : vector<256x8xf32>
    %c1_43 = arith.constant 1 : index
    %c0_44 = arith.constant 0 : index
    %93 = vector.load %arg11[%c1_43, %c0_44] : memref<2x8xf32, #tpu.memory_space<vmem>>, vector<1x8xf32>
    %94 = vector.broadcast %93 : vector<1x8xf32> to vector<256x8xf32>
    %95 = arith.addf %92, %94 : vector<256x8xf32>
    %cst_45 = arith.constant 0.000000e+00 : f32
    %96 = vector.broadcast %cst_45 : f32 to vector<256x8xf32>
    %97 = arith.maximumf %95, %96 : vector<256x8xf32>
    %cst_46 = arith.constant 0.000000e+00 : bf16
    %98 = vector.broadcast %cst_46 : bf16 to vector<1x16x8xbf16>
    %99 = tpu.concatenate %98, %80, %98 in 0 : vector<1x16x8xbf16>, vector<16x16x8xbf16>, vector<1x16x8xbf16> -> vector<18x16x8xbf16>
    %100 = vector.extract_strided_slice %99 {offsets = [0, 0, 0], sizes = [16, 16, 8], strides = [1, 1, 1]} : vector<18x16x8xbf16> to vector<16x16x8xbf16>
    %101 = vector.extract_strided_slice %99 {offsets = [1, 0, 0], sizes = [16, 16, 8], strides = [1, 1, 1]} : vector<18x16x8xbf16> to vector<16x16x8xbf16>
    %102 = vector.extract_strided_slice %99 {offsets = [2, 0, 0], sizes = [16, 16, 8], strides = [1, 1, 1]} : vector<18x16x8xbf16> to vector<16x16x8xbf16>
    %103 = tpu.concatenate %100, %101, %102 in 2 : vector<16x16x8xbf16>, vector<16x16x8xbf16>, vector<16x16x8xbf16> -> vector<16x16x24xbf16>
    %104 = vector.shape_cast %103 : vector<16x16x24xbf16> to vector<256x24xbf16>
    %c0_47 = arith.constant 0 : index
    %c0_48 = arith.constant 0 : index
    %105 = vector.load %arg12[%c0_47, %c0_48] : memref<24x8xbf16, #tpu.memory_space<vmem>>, vector<24x8xbf16>
    %cst_49 = arith.constant dense<0.000000e+00> : vector<256x8xf32>
    %106 = tpu.matmul %104, %105, %cst_49 {dimension_numbers = #tpu.dot_dimension_numbers<[1], [0], [0], [1], [0, 0, 1, 1], [], []>} : vector<256x24xbf16>, vector<24x8xbf16>, vector<256x8xf32> -> vector<256x8xf32>
    %c0_50 = arith.constant 0 : index
    %c0_51 = arith.constant 0 : index
    %107 = vector.load %arg13[%c0_50, %c0_51] : memref<2x8xf32, #tpu.memory_space<vmem>>, vector<1x8xf32>
    %108 = vector.broadcast %107 : vector<1x8xf32> to vector<256x8xf32>
    %109 = arith.mulf %106, %108 : vector<256x8xf32>
    %c1_52 = arith.constant 1 : index
    %c0_53 = arith.constant 0 : index
    %110 = vector.load %arg13[%c1_52, %c0_53] : memref<2x8xf32, #tpu.memory_space<vmem>>, vector<1x8xf32>
    %111 = vector.broadcast %110 : vector<1x8xf32> to vector<256x8xf32>
    %112 = arith.addf %109, %111 : vector<256x8xf32>
    %cst_54 = arith.constant 0.000000e+00 : f32
    %113 = vector.broadcast %cst_54 : f32 to vector<256x8xf32>
    %114 = arith.maximumf %112, %113 : vector<256x8xf32>
    %cst_55 = arith.constant -3.004060e+38 : bf16
    %115 = vector.broadcast %cst_55 : bf16 to vector<16x8x4xbf16>
    %116 = tpu.concatenate %115, %1, %115 in 1 : vector<16x8x4xbf16>, vector<16x16x4xbf16>, vector<16x8x4xbf16> -> vector<16x32x4xbf16>
    %117 = vector.extract_strided_slice %116 {offsets = [0, 7, 0], sizes = [16, 16, 4], strides = [1, 1, 1]} : vector<16x32x4xbf16> to vector<16x16x4xbf16>
    %118 = vector.extract_strided_slice %116 {offsets = [0, 8, 0], sizes = [16, 16, 4], strides = [1, 1, 1]} : vector<16x32x4xbf16> to vector<16x16x4xbf16>
    %119 = arith.maximumf %117, %118 : vector<16x16x4xbf16>
    %120 = vector.extract_strided_slice %116 {offsets = [0, 9, 0], sizes = [16, 16, 4], strides = [1, 1, 1]} : vector<16x32x4xbf16> to vector<16x16x4xbf16>
    %121 = arith.maximumf %119, %120 : vector<16x16x4xbf16>
    %cst_56 = arith.constant -3.004060e+38 : bf16
    %122 = vector.broadcast %cst_56 : bf16 to vector<1x16x4xbf16>
    %123 = tpu.concatenate %122, %121, %122 in 0 : vector<1x16x4xbf16>, vector<16x16x4xbf16>, vector<1x16x4xbf16> -> vector<18x16x4xbf16>
    %124 = vector.extract_strided_slice %123 {offsets = [0, 0, 0], sizes = [16, 16, 4], strides = [1, 1, 1]} : vector<18x16x4xbf16> to vector<16x16x4xbf16>
    %125 = vector.extract_strided_slice %123 {offsets = [1, 0, 0], sizes = [16, 16, 4], strides = [1, 1, 1]} : vector<18x16x4xbf16> to vector<16x16x4xbf16>
    %126 = arith.maximumf %124, %125 : vector<16x16x4xbf16>
    %127 = vector.extract_strided_slice %123 {offsets = [2, 0, 0], sizes = [16, 16, 4], strides = [1, 1, 1]} : vector<18x16x4xbf16> to vector<16x16x4xbf16>
    %128 = arith.maximumf %126, %127 : vector<16x16x4xbf16>
    %129 = vector.shape_cast %128 : vector<16x16x4xbf16> to vector<256x4xbf16>
    %c0_57 = arith.constant 0 : index
    %c0_58 = arith.constant 0 : index
    %130 = vector.load %arg14[%c0_57, %c0_58] : memref<4x8xbf16, #tpu.memory_space<vmem>>, vector<4x8xbf16>
    %cst_59 = arith.constant dense<0.000000e+00> : vector<256x8xf32>
    %131 = tpu.matmul %129, %130, %cst_59 {dimension_numbers = #tpu.dot_dimension_numbers<[1], [0], [0], [1], [0, 0, 1, 1], [], []>} : vector<256x4xbf16>, vector<4x8xbf16>, vector<256x8xf32> -> vector<256x8xf32>
    %c0_60 = arith.constant 0 : index
    %c0_61 = arith.constant 0 : index
    %132 = vector.load %arg15[%c0_60, %c0_61] : memref<2x8xf32, #tpu.memory_space<vmem>>, vector<1x8xf32>
    %133 = vector.broadcast %132 : vector<1x8xf32> to vector<256x8xf32>
    %134 = arith.mulf %131, %133 : vector<256x8xf32>
    %c1_62 = arith.constant 1 : index
    %c0_63 = arith.constant 0 : index
    %135 = vector.load %arg15[%c1_62, %c0_63] : memref<2x8xf32, #tpu.memory_space<vmem>>, vector<1x8xf32>
    %136 = vector.broadcast %135 : vector<1x8xf32> to vector<256x8xf32>
    %137 = arith.addf %134, %136 : vector<256x8xf32>
    %cst_64 = arith.constant 0.000000e+00 : f32
    %138 = vector.broadcast %cst_64 : f32 to vector<256x8xf32>
    %139 = arith.maximumf %137, %138 : vector<256x8xf32>
    %140 = tpu.concatenate %13, %36, %53, %97, %114, %139 in 1 : vector<256x8xf32>, vector<256x8xf32>, vector<256x8xf32>, vector<256x8xf32>, vector<256x8xf32>, vector<256x8xf32> -> vector<256x48xf32>
    %141 = vector.shape_cast %140 : vector<256x48xf32> to vector<16x16x48xf32>
    %c0_65 = arith.constant 0 : index
    %c0_66 = arith.constant 0 : index
    %c0_67 = arith.constant 0 : index
    %c0_68 = arith.constant 0 : index
    %142 = vector.load %arg16[%c0_65, %c0_66, %c0_67, %c0_68] : memref<1x16x16x48xf32, #tpu.memory_space<vmem>>, vector<1x16x16x48xf32>
    %143 = vector.shape_cast %142 : vector<1x16x16x48xf32> to vector<16x16x48xf32>
    %144 = vector.shape_cast %141 : vector<16x16x48xf32> to vector<1x16x16x48xf32>
    tpu.vector_store %arg16[%c0_65, %c0_66, %c0_67, %c0_68], %144 {strides = array<i32>} : memref<1x16x16x48xf32, #tpu.memory_space<vmem>>, vector<1x16x16x48xf32>,
    return
  }
  func.func @transform_0(%arg0: i32) -> (i32, i32, i32, i32) {
    %c0_i32 = arith.constant 0 : i32
    %c0_i32_0 = arith.constant 0 : i32
    %c0_i32_1 = arith.constant 0 : i32
    %c0_i32_2 = arith.constant 0 : i32
    return %arg0, %c0_i32, %c0_i32_0, %c0_i32_1 : i32, i32, i32, i32
  }
  func.func @transform_1(%arg0: i32) -> (i32, i32) {
    %c0_i32 = arith.constant 0 : i32
    %c0_i32_0 = arith.constant 0 : i32
    %c0_i32_1 = arith.constant 0 : i32
    return %c0_i32, %c0_i32_0 : i32, i32
  }
  func.func @transform_2(%arg0: i32) -> (i32, i32) {
    %c0_i32 = arith.constant 0 : i32
    %c0_i32_0 = arith.constant 0 : i32
    %c0_i32_1 = arith.constant 0 : i32
    return %c0_i32, %c0_i32_0 : i32, i32
  }
  func.func @transform_3(%arg0: i32) -> (i32, i32) {
    %c0_i32 = arith.constant 0 : i32
    %c0_i32_0 = arith.constant 0 : i32
    %c0_i32_1 = arith.constant 0 : i32
    return %c0_i32, %c0_i32_0 : i32, i32
  }
  func.func @transform_4(%arg0: i32) -> (i32, i32) {
    %c0_i32 = arith.constant 0 : i32
    %c0_i32_0 = arith.constant 0 : i32
    %c0_i32_1 = arith.constant 0 : i32
    return %c0_i32, %c0_i32_0 : i32, i32
  }
  func.func @transform_5(%arg0: i32) -> (i32, i32) {
    %c0_i32 = arith.constant 0 : i32
    %c0_i32_0 = arith.constant 0 : i32
    %c0_i32_1 = arith.constant 0 : i32
    return %c0_i32, %c0_i32_0 : i32, i32
  }
  func.func @transform_6(%arg0: i32) -> (i32, i32) {
    %c0_i32 = arith.constant 0 : i32
    %c0_i32_0 = arith.constant 0 : i32
    %c0_i32_1 = arith.constant 0 : i32
    return %c0_i32, %c0_i32_0 : i32, i32
  }
  func.func @transform_7(%arg0: i32) -> (i32, i32) {
    %c0_i32 = arith.constant 0 : i32
    %c0_i32_0 = arith.constant 0 : i32
    %c0_i32_1 = arith.constant 0 : i32
    return %c0_i32, %c0_i32_0 : i32, i32
  }
  func.func @transform_8(%arg0: i32) -> (i32, i32) {
    %c0_i32 = arith.constant 0 : i32
    %c0_i32_0 = arith.constant 0 : i32
    %c0_i32_1 = arith.constant 0 : i32
    return %c0_i32, %c0_i32_0 : i32, i32
  }
  func.func @transform_9(%arg0: i32) -> (i32, i32) {
    %c0_i32 = arith.constant 0 : i32
    %c0_i32_0 = arith.constant 0 : i32
    %c0_i32_1 = arith.constant 0 : i32
    return %c0_i32, %c0_i32_0 : i32, i32
  }
  func.func @transform_10(%arg0: i32) -> (i32, i32) {
    %c0_i32 = arith.constant 0 : i32
    %c0_i32_0 = arith.constant 0 : i32
    %c0_i32_1 = arith.constant 0 : i32
    return %c0_i32, %c0_i32_0 : i32, i32
  }
  func.func @transform_11(%arg0: i32) -> (i32, i32) {
    %c0_i32 = arith.constant 0 : i32
    %c0_i32_0 = arith.constant 0 : i32
    %c0_i32_1 = arith.constant 0 : i32
    return %c0_i32, %c0_i32_0 : i32, i32
  }
  func.func @transform_12(%arg0: i32) -> (i32, i32) {
    %c0_i32 = arith.constant 0 : i32
    %c0_i32_0 = arith.constant 0 : i32
    %c0_i32_1 = arith.constant 0 : i32
    return %c0_i32, %c0_i32_0 : i32, i32
  }
  func.func @transform_13(%arg0: i32) -> (i32, i32) {
    %c0_i32 = arith.constant 0 : i32
    %c0_i32_0 = arith.constant 0 : i32
    %c0_i32_1 = arith.constant 0 : i32
    return %c0_i32, %c0_i32_0 : i32, i32
  }
  func.func @transform_14(%arg0: i32) -> (i32, i32) {
    %c0_i32 = arith.constant 0 : i32
    %c0_i32_0 = arith.constant 0 : i32
    %c0_i32_1 = arith.constant 0 : i32
    return %c0_i32, %c0_i32_0 : i32, i32
  }
  func.func @transform_15(%arg0: i32) -> (i32, i32, i32, i32) {
    %c0_i32 = arith.constant 0 : i32
    %c0_i32_0 = arith.constant 0 : i32
    %c0_i32_1 = arith.constant 0 : i32
    %c0_i32_2 = arith.constant 0 : i32
    return %arg0, %c0_i32, %c0_i32_0, %c0_i32_1 : i32, i32, i32, i32
  }
}

</mosaic_0001>

<llo_original>
// kernel: tpu_custom_call.1
$region0: #{tpu_custom_call.1}
  #allocation0 [shape = 'u32[]', space=smem, size = 0x4, offset = 0x4, fixed_abs, tag = 'smem constant byte address 0x4 - core index']
  #allocation1 [shape = 'u32[144,128]{1,0:T(1,128)}', space=vmem, size = 0x12000, scoped, tag = 'internal scratch']
  %s0 = inlined_call_operand.hbm [shape: bf16[2,16,16,4], index: 0, kind: input, shape index: {}]
  %s1 = inlined_call_operand.hbm [shape: bf16[4,24], index: 1, kind: input, shape index: {}]
  %s2 = inlined_call_operand.hbm [shape: f32[2,24], index: 2, kind: input, shape index: {}]
  %s3 = inlined_call_operand.hbm [shape: bf16[24,8], index: 3, kind: input, shape index: {}]
  %s4 = inlined_call_operand.hbm [shape: f32[2,8], index: 4, kind: input, shape index: {}]
  %s5 = inlined_call_operand.hbm [shape: bf16[24,8], index: 5, kind: input, shape index: {}]
  %s6 = inlined_call_operand.hbm [shape: f32[2,8], index: 6, kind: input, shape index: {}]
  %s7 = inlined_call_operand.hbm [shape: bf16[72,8], index: 7, kind: input, shape index: {}]
  %s8 = inlined_call_operand.hbm [shape: f32[2,8], index: 8, kind: input, shape index: {}]
  %s9 = inlined_call_operand.hbm [shape: bf16[24,8], index: 9, kind: input, shape index: {}]
  %s10 = inlined_call_operand.hbm [shape: f32[2,8], index: 10, kind: input, shape index: {}]
  %s11 = inlined_call_operand.hbm [shape: bf16[24,8], index: 11, kind: input, shape index: {}]
  %s12 = inlined_call_operand.hbm [shape: f32[2,8], index: 12, kind: input, shape index: {}]
  %s13 = inlined_call_operand.hbm [shape: bf16[4,8], index: 13, kind: input, shape index: {}]
  %s14 = inlined_call_operand.hbm [shape: f32[2,8], index: 14, kind: input, shape index: {}]
  %s15 = inlined_call_operand.hbm [shape: f32[2,16,16,48], index: 15, kind: output, shape index: {}]
  %s16 = sld [smem:[#allocation0]]
  $region153: #{tpu_custom_call.1} parent=0
    _
  %s18 = ssub.s32 1, %s16
  %s19 = scalar_select 0, %s18, %s16
  $region1: #{tpu_custom_call.1} parent=0
    #allocation2 [shape = 'u8[131072]{0}', space=vmem, size = 0x20000, scoped, tag = 'input window, operand 0']
    #allocation3 [shape = 's32[2]{0}', space=sflag, size = 0x8, scoped, tag = 'scoped memory for tpu_custom_call.1']
    #allocation4 [shape = 's32[2]{0}', space=sflag, size = 0x8, scoped, tag = 'scoped memory for tpu_custom_call.1']
    #allocation5 [shape = 'u8[1024]{0}', space=vmem, size = 0x400, scoped, tag = 'input window, operand 1, single buffered']
    #allocation6 [shape = 's32[1]{0}', space=sflag, size = 0x4, scoped, tag = 'scoped memory for tpu_custom_call.1']
    #allocation7 [shape = 'u8[1024]{0}', space=vmem, size = 0x400, scoped, tag = 'input window, operand 2, single buffered']
    #allocation8 [shape = 'u8[6144]{0}', space=vmem, size = 0x1800, scoped, tag = 'input window, operand 3, single buffered']
    #allocation9 [shape = 's32[1]{0}', space=sflag, size = 0x4, scoped, tag = 'scoped memory for tpu_custom_call.1']
    #allocation10 [shape = 'u8[1024]{0}', space=vmem, size = 0x400, scoped, tag = 'input window, operand 4, single buffered']
    #allocation11 [shape = 'u8[6144]{0}', space=vmem, size = 0x1800, scoped, tag = 'input window, operand 5, single buffered']
    #allocation12 [shape = 's32[1]{0}', space=sflag, size = 0x4, scoped, tag = 'scoped memory for tpu_custom_call.1']
    #allocation13 [shape = 'u8[1024]{0}', space=vmem, size = 0x400, scoped, tag = 'input window, operand 6, single buffered']
    #allocation14 [shape = 'u8[18432]{0}', space=vmem, size = 0x4800, scoped, tag = 'input window, operand 7, single buffered']
    #allocation15 [shape = 's32[1]{0}', space=sflag, size = 0x4, scoped, tag = 'scoped memory for tpu_custom_call.1']
    #allocation16 [shape = 'u8[1024]{0}', space=vmem, size = 0x400, scoped, tag = 'input window, operand 8, single buffered']
    #allocation17 [shape = 'u8[6144]{0}', space=vmem, size = 0x1800, scoped, tag = 'input window, operand 9, single buffered']
    #allocation18 [shape = 's32[1]{0}', space=sflag, size = 0x4, scoped, tag = 'scoped memory for tpu_custom_call.1']
    #allocation19 [shape = 'u8[1024]{0}', space=vmem, size = 0x400, scoped, tag = 'input window, operand 10, single buffered']
    #allocation20 [shape = 'u8[6144]{0}', space=vmem, size = 0x1800, scoped, tag = 'input window, operand 11, single buffered']
    #allocation21 [shape = 's32[1]{0}', space=sflag, size = 0x4, scoped, tag = 'scoped memory for tpu_custom_call.1']
    #allocation22 [shape = 'u8[1024]{0}', space=vmem, size = 0x400, scoped, tag = 'input window, operand 12, single buffered']
    #allocation23 [shape = 'u8[1024]{0}', space=vmem, size = 0x400, scoped, tag = 'input window, operand 13, single buffered']
    #allocation24 [shape = 's32[1]{0}', space=sflag, size = 0x4, scoped, tag = 'scoped memory for tpu_custom_call.1']
    #allocation25 [shape = 'u8[1024]{0}', space=vmem, size = 0x400, scoped, tag = 'input window, operand 14, single buffered']
    #allocation26 [shape = 'u8[262144]{0}', space=vmem, size = 0x40000, scoped, tag = 'output window, operand 0']
    %20 = vsyncpa [#allocation3], 0
    %s21 = scalar_lea.sflag [#allocation3], 1
    %22 = vsyncpa %s21, 0
    %23 = vsyncpa [#allocation6], 0
    %24 = vsyncpa [#allocation9], 0
    %25 = vsyncpa [#allocation12], 0
    %26 = vsyncpa [#allocation15], 0
    %27 = vsyncpa [#allocation18], 0
    %28 = vsyncpa [#allocation21], 0
    %29 = vsyncpa [#allocation24], 0
    %30 = vsyncpa [#allocation4], 0
    %s31 = scalar_lea.sflag [#allocation4], 1
    %32 = vsyncpa %s31, 0
    loop: start=0, step=1, limit=4
    $region2: #{tpu_custom_call.1} parent=1 // loop_pre_header
      _
    $region3: #{tpu_custom_call.1} parent=1 // loop_header
      %s34 = sphi 0, %s38
      %p35 = scmp.ge.s32.totalorder %s34, 4
      %s44 = sphi 0, %s46
      %s47 = sphi 0, %s44
      %s48 = sphi 0, %s47
      %s64 = sphi 0, %s48
      %s68 = sphi 0, %s68
      %s70 = sphi 0, %s68
      %s71 = sphi 0, %s70
      %s85 = sphi 0, %s71
      %s89 = sphi 0, %s89
      %s91 = sphi 0, %s89
      %s92 = sphi 0, %s91
      %s106 = sphi 0, %s92
      %s110 = sphi 0, %s110
      %s112 = sphi 0, %s110
      %s113 = sphi 0, %s112
      %s127 = sphi 0, %s113
      %s131 = sphi 0, %s131
      %s133 = sphi 0, %s131
      %s134 = sphi 0, %s133
      %s148 = sphi 0, %s134
      %s152 = sphi 0, %s152
      %s154 = sphi 0, %s152
      %s155 = sphi 0, %s154
      %s169 = sphi 0, %s155
      %s173 = sphi 0, %s173
      %s175 = sphi 0, %s173
      %s176 = sphi 0, %s175
      %s190 = sphi 0, %s176
      %s194 = sphi 0, %s194
      %s196 = sphi 0, %s194
      %s197 = sphi 0, %s196
      %s211 = sphi 0, %s197
      %s215 = sphi 0, %s215
      %s217 = sphi 0, %s215
      %s218 = sphi 0, %s217
      %s232 = sphi 0, %s218
      %s236 = sphi 0, %s236
      %s238 = sphi 0, %s236
      %s239 = sphi 0, %s238
      %s253 = sphi 0, %s239
      %s257 = sphi 0, %s257
      %s259 = sphi 0, %s257
      %s260 = sphi 0, %s259
      %s274 = sphi 0, %s260
      %s278 = sphi 0, %s278
      %s280 = sphi 0, %s278
      %s281 = sphi 0, %s280
      %s295 = sphi 0, %s281
      %s299 = sphi 0, %s299
      %s301 = sphi 0, %s299
      %s302 = sphi 0, %s301
      %s316 = sphi 0, %s302
      %s320 = sphi 0, %s320
      %s322 = sphi 0, %s320
      %s323 = sphi 0, %s322
      %s337 = sphi 0, %s323
      %s341 = sphi 0, %s341
      %s343 = sphi 0, %s341
      %s344 = sphi 0, %s343
      %s358 = sphi 0, %s344
      %s364 = sphi 0, %s366
      %s367 = sphi 0, %s364
      %s368 = sphi 0, %s367
      %s384 = sphi 0, %s368
    $region4: #{tpu_custom_call.1} parent=1 // loop_header_branch
      %37 = sbr.rel (%p35) target = $region8
    $region5: #{tpu_custom_call.1} parent=1 // loop_body
      %s39 = ssub.s32 %s34, 1
      %s40 = ssub.s32 %s34, 2
      %s41 = sadd.s32 %s34, 1
      %s42 = ssub.s32 %s34, %s41
      %p43 = scmp.eq.s32.totalorder %s42, 0
      %s45 = sadd.s32 %s44, 1
      %s46 = scalar_select %p43, %s44, %s45
      %p49 = pneg %p43
      %p50 = scmp.eq.s32.totalorder %s34, 1
      %p51 = por %p49, %p50
      %p52 = scmp.ne.s32.totalorder %s44, %s47
      %p53 = scmp.eq.s32.totalorder %s34, 0
      %p54 = por %p52, %p53
      %p55 = scmp.ne.s32.totalorder %s44, %s47
      %p56 = scmp.eq.s32.totalorder %s39, 1
      %p57 = por %p55, %p56
      %p58 = scmp.ne.s32.totalorder %s47, %s48
      %p59 = scmp.eq.s32.totalorder %s39, 0
      %p60 = por %p58, %p59
      %p61 = scmp.ne.s32.totalorder %s47, %s48
      %p62 = scmp.eq.s32.totalorder %s40, 1
      %p63 = por %p61, %p62
      %p65 = scmp.ne.s32.totalorder %s48, %s64
      %p66 = scmp.eq.s32.totalorder %s40, 0
      %p67 = por %p65, %p66
      %s69 = sadd.s32 %s68, 1
      %p72 = scmp.eq.s32.totalorder %s34, 1
      %p73 = scmp.ne.s32.totalorder %s68, %s70
      %p74 = scmp.eq.s32.totalorder %s34, 0
      %p75 = por %p73, %p74
      %p76 = scmp.ne.s32.totalorder %s68, %s70
      %p77 = scmp.eq.s32.totalorder %s39, 1
      %p78 = por %p76, %p77
      %p79 = scmp.ne.s32.totalorder %s70, %s71
      %p80 = scmp.eq.s32.totalorder %s39, 0
      %p81 = por %p79, %p80
      %p82 = scmp.ne.s32.totalorder %s70, %s71
      %p83 = scmp.eq.s32.totalorder %s40, 1
      %p84 = por %p82, %p83
      %p86 = scmp.ne.s32.totalorder %s71, %s85
      %p87 = scmp.eq.s32.totalorder %s40, 0
      %p88 = por %p86, %p87
      %s90 = sadd.s32 %s89, 1
      %p93 = scmp.eq.s32.totalorder %s34, 1
      %p94 = scmp.ne.s32.totalorder %s89, %s91
      %p95 = scmp.eq.s32.totalorder %s34, 0
      %p96 = por %p94, %p95
      %p97 = scmp.ne.s32.totalorder %s89, %s91
      %p98 = scmp.eq.s32.totalorder %s39, 1
      %p99 = por %p97, %p98
      %p100 = scmp.ne.s32.totalorder %s91, %s92
      %p101 = scmp.eq.s32.totalorder %s39, 0
      %p102 = por %p100, %p101
      %p103 = scmp.ne.s32.totalorder %s91, %s92
      %p104 = scmp.eq.s32.totalorder %s40, 1
      %p105 = por %p103, %p104
      %p107 = scmp.ne.s32.totalorder %s92, %s106
      %p108 = scmp.eq.s32.totalorder %s40, 0
      %p109 = por %p107, %p108
      %s111 = sadd.s32 %s110, 1
      %p114 = scmp.eq.s32.totalorder %s34, 1
      %p115 = scmp.ne.s32.totalorder %s110, %s112
      %p116 = scmp.eq.s32.totalorder %s34, 0
      %p117 = por %p115, %p116
      %p118 = scmp.ne.s32.totalorder %s110, %s112
      %p119 = scmp.eq.s32.totalorder %s39, 1
      %p120 = por %p118, %p119
      %p121 = scmp.ne.s32.totalorder %s112, %s113
      %p122 = scmp.eq.s32.totalorder %s39, 0
      %p123 = por %p121, %p122
      %p124 = scmp.ne.s32.totalorder %s112, %s113
      %p125 = scmp.eq.s32.totalorder %s40, 1
      %p126 = por %p124, %p125
      %p128 = scmp.ne.s32.totalorder %s113, %s127
      %p129 = scmp.eq.s32.totalorder %s40, 0
      %p130 = por %p128, %p129
      %s132 = sadd.s32 %s131, 1
      %p135 = scmp.eq.s32.totalorder %s34, 1
      %p136 = scmp.ne.s32.totalorder %s131, %s133
      %p137 = scmp.eq.s32.totalorder %s34, 0
      %p138 = por %p136, %p137
      %p139 = scmp.ne.s32.totalorder %s131, %s133
      %p140 = scmp.eq.s32.totalorder %s39, 1
      %p141 = por %p139, %p140
      %p142 = scmp.ne.s32.totalorder %s133, %s134
      %p143 = scmp.eq.s32.totalorder %s39, 0
      %p144 = por %p142, %p143
      %p145 = scmp.ne.s32.totalorder %s133, %s134
      %p146 = scmp.eq.s32.totalorder %s40, 1
      %p147 = por %p145, %p146
      %p149 = scmp.ne.s32.totalorder %s134, %s148
      %p150 = scmp.eq.s32.totalorder %s40, 0
      %p151 = por %p149, %p150
      %s153 = sadd.s32 %s152, 1
      %p156 = scmp.eq.s32.totalorder %s34, 1
      %p157 = scmp.ne.s32.totalorder %s152, %s154
      %p158 = scmp.eq.s32.totalorder %s34, 0
      %p159 = por %p157, %p158
      %p160 = scmp.ne.s32.totalorder %s152, %s154
      %p161 = scmp.eq.s32.totalorder %s39, 1
      %p162 = por %p160, %p161
      %p163 = scmp.ne.s32.totalorder %s154, %s155
      %p164 = scmp.eq.s32.totalorder %s39, 0
      %p165 = por %p163, %p164
      %p166 = scmp.ne.s32.totalorder %s154, %s155
      %p167 = scmp.eq.s32.totalorder %s40, 1
      %p168 = por %p166, %p167
      %p170 = scmp.ne.s32.totalorder %s155, %s169
      %p171 = scmp.eq.s32.totalorder %s40, 0
      %p172 = por %p170, %p171
      %s174 = sadd.s32 %s173, 1
      %p177 = scmp.eq.s32.totalorder %s34, 1
      %p178 = scmp.ne.s32.totalorder %s173, %s175
      %p179 = scmp.eq.s32.totalorder %s34, 0
      %p180 = por %p178, %p179
      %p181 = scmp.ne.s32.totalorder %s173, %s175
      %p182 = scmp.eq.s32.totalorder %s39, 1
      %p183 = por %p181, %p182
      %p184 = scmp.ne.s32.totalorder %s175, %s176
      %p185 = scmp.eq.s32.totalorder %s39, 0
      %p186 = por %p184, %p185
      %p187 = scmp.ne.s32.totalorder %s175, %s176
      %p188 = scmp.eq.s32.totalorder %s40, 1
      %p189 = por %p187, %p188
      %p191 = scmp.ne.s32.totalorder %s176, %s190
      %p192 = scmp.eq.s32.totalorder %s40, 0
      %p193 = por %p191, %p192
      %s195 = sadd.s32 %s194, 1
      %p198 = scmp.eq.s32.totalorder %s34, 1
      %p199 = scmp.ne.s32.totalorder %s194, %s196
      %p200 = scmp.eq.s32.totalorder %s34, 0
      %p201 = por %p199, %p200
      %p202 = scmp.ne.s32.totalorder %s194, %s196
      %p203 = scmp.eq.s32.totalorder %s39, 1
      %p204 = por %p202, %p203
      %p205 = scmp.ne.s32.totalorder %s196, %s197
      %p206 = scmp.eq.s32.totalorder %s39, 0
      %p207 = por %p205, %p206
      %p208 = scmp.ne.s32.totalorder %s196, %s197
      %p209 = scmp.eq.s32.totalorder %s40, 1
      %p210 = por %p208, %p209
      %p212 = scmp.ne.s32.totalorder %s197, %s211
      %p213 = scmp.eq.s32.totalorder %s40, 0
      %p214 = por %p212, %p213
      %s216 = sadd.s32 %s215, 1
      %p219 = scmp.eq.s32.totalorder %s34, 1
      %p220 = scmp.ne.s32.totalorder %s215, %s217
      %p221 = scmp.eq.s32.totalorder %s34, 0
      %p222 = por %p220, %p221
      %p223 = scmp.ne.s32.totalorder %s215, %s217
      %p224 = scmp.eq.s32.totalorder %s39, 1
      %p225 = por %p223, %p224
      %p226 = scmp.ne.s32.totalorder %s217, %s218
      %p227 = scmp.eq.s32.totalorder %s39, 0
      %p228 = por %p226, %p227
      %p229 = scmp.ne.s32.totalorder %s217, %s218
      %p230 = scmp.eq.s32.totalorder %s40, 1
      %p231 = por %p229, %p230
      %p233 = scmp.ne.s32.totalorder %s218, %s232
      %p234 = scmp.eq.s32.totalorder %s40, 0
      %p235 = por %p233, %p234
      %s237 = sadd.s32 %s236, 1
      %p240 = scmp.eq.s32.totalorder %s34, 1
      %p241 = scmp.ne.s32.totalorder %s236, %s238
      %p242 = scmp.eq.s32.totalorder %s34, 0
      %p243 = por %p241, %p242
      %p244 = scmp.ne.s32.totalorder %s236, %s238
      %p245 = scmp.eq.s32.totalorder %s39, 1
      %p246 = por %p244, %p245
      %p247 = scmp.ne.s32.totalorder %s238, %s239
      %p248 = scmp.eq.s32.totalorder %s39, 0
      %p249 = por %p247, %p248
      %p250 = scmp.ne.s32.totalorder %s238, %s239
      %p251 = scmp.eq.s32.totalorder %s40, 1
      %p252 = por %p250, %p251
      %p254 = scmp.ne.s32.totalorder %s239, %s253
      %p255 = scmp.eq.s32.totalorder %s40, 0
      %p256 = por %p254, %p255
      %s258 = sadd.s32 %s257, 1
      %p261 = scmp.eq.s32.totalorder %s34, 1
      %p262 = scmp.ne.s32.totalorder %s257, %s259
      %p263 = scmp.eq.s32.totalorder %s34, 0
      %p264 = por %p262, %p263
      %p265 = scmp.ne.s32.totalorder %s257, %s259
      %p266 = scmp.eq.s32.totalorder %s39, 1
      %p267 = por %p265, %p266
      %p268 = scmp.ne.s32.totalorder %s259, %s260
      %p269 = scmp.eq.s32.totalorder %s39, 0
      %p270 = por %p268, %p269
      %p271 = scmp.ne.s32.totalorder %s259, %s260
      %p272 = scmp.eq.s32.totalorder %s40, 1
      %p273 = por %p271, %p272
      %p275 = scmp.ne.s32.totalorder %s260, %s274
      %p276 = scmp.eq.s32.totalorder %s40, 0
      %p277 = por %p275, %p276
      %s279 = sadd.s32 %s278, 1
      %p282 = scmp.eq.s32.totalorder %s34, 1
      %p283 = scmp.ne.s32.totalorder %s278, %s280
      %p284 = scmp.eq.s32.totalorder %s34, 0
      %p285 = por %p283, %p284
      %p286 = scmp.ne.s32.totalorder %s278, %s280
      %p287 = scmp.eq.s32.totalorder %s39, 1
      %p288 = por %p286, %p287
      %p289 = scmp.ne.s32.totalorder %s280, %s281
      %p290 = scmp.eq.s32.totalorder %s39, 0
      %p291 = por %p289, %p290
      %p292 = scmp.ne.s32.totalorder %s280, %s281
      %p293 = scmp.eq.s32.totalorder %s40, 1
      %p294 = por %p292, %p293
      %p296 = scmp.ne.s32.totalorder %s281, %s295
      %p297 = scmp.eq.s32.totalorder %s40, 0
      %p298 = por %p296, %p297
      %s300 = sadd.s32 %s299, 1
      %p303 = scmp.eq.s32.totalorder %s34, 1
      %p304 = scmp.ne.s32.totalorder %s299, %s301
      %p305 = scmp.eq.s32.totalorder %s34, 0
      %p306 = por %p304, %p305
      %p307 = scmp.ne.s32.totalorder %s299, %s301
      %p308 = scmp.eq.s32.totalorder %s39, 1
      %p309 = por %p307, %p308
      %p310 = scmp.ne.s32.totalorder %s301, %s302
      %p311 = scmp.eq.s32.totalorder %s39, 0
      %p312 = por %p310, %p311
      %p313 = scmp.ne.s32.totalorder %s301, %s302
      %p314 = scmp.eq.s32.totalorder %s40, 1
      %p315 = por %p313, %p314
      %p317 = scmp.ne.s32.totalorder %s302, %s316
      %p318 = scmp.eq.s32.totalorder %s40, 0
      %p319 = por %p317, %p318
      %s321 = sadd.s32 %s320, 1
      %p324 = scmp.eq.s32.totalorder %s34, 1
      %p325 = scmp.ne.s32.totalorder %s320, %s322
      %p326 = scmp.eq.s32.totalorder %s34, 0
      %p327 = por %p325, %p326
      %p328 = scmp.ne.s32.totalorder %s320, %s322
      %p329 = scmp.eq.s32.totalorder %s39, 1
      %p330 = por %p328, %p329
      %p331 = scmp.ne.s32.totalorder %s322, %s323
      %p332 = scmp.eq.s32.totalorder %s39, 0
      %p333 = por %p331, %p332
      %p334 = scmp.ne.s32.totalorder %s322, %s323
      %p335 = scmp.eq.s32.totalorder %s40, 1
      %p336 = por %p334, %p335
      %p338 = scmp.ne.s32.totalorder %s323, %s337
      %p339 = scmp.eq.s32.totalorder %s40, 0
      %p340 = por %p338, %p339
      %s342 = sadd.s32 %s341, 1
      %p345 = scmp.eq.s32.totalorder %s34, 1
      %p346 = scmp.ne.s32.totalorder %s341, %s343
      %p347 = scmp.eq.s32.totalorder %s34, 0
      %p348 = por %p346, %p347
      %p349 = scmp.ne.s32.totalorder %s341, %s343
      %p350 = scmp.eq.s32.totalorder %s39, 1
      %p351 = por %p349, %p350
      %p352 = scmp.ne.s32.totalorder %s343, %s344
      %p353 = scmp.eq.s32.totalorder %s39, 0
      %p354 = por %p352, %p353
      %p355 = scmp.ne.s32.totalorder %s343, %s344
      %p356 = scmp.eq.s32.totalorder %s40, 1
      %p357 = por %p355, %p356
      %p359 = scmp.ne.s32.totalorder %s344, %s358
      %p360 = scmp.eq.s32.totalorder %s40, 0
      %p361 = por %p359, %p360
      %s362 = ssub.s32 %s34, %s41
      %p363 = scmp.eq.s32.totalorder %s362, 0
      %s365 = sadd.s32 %s364, 1
      %s366 = scalar_select %p363, %s364, %s365
      %p369 = pneg %p363
      %p370 = scmp.eq.s32.totalorder %s34, 1
      %p371 = por %p369, %p370
      %p372 = scmp.ne.s32.totalorder %s364, %s367
      %p373 = scmp.eq.s32.totalorder %s34, 0
      %p374 = por %p372, %p373
      %p375 = scmp.ne.s32.totalorder %s364, %s367
      %p376 = scmp.eq.s32.totalorder %s39, 1
      %p377 = por %p375, %p376
      %p378 = scmp.ne.s32.totalorder %s367, %s368
      %p379 = scmp.eq.s32.totalorder %s39, 0
      %p380 = por %p378, %p379
      %p381 = scmp.ne.s32.totalorder %s367, %s368
      %p382 = scmp.eq.s32.totalorder %s40, 1
      %p383 = por %p381, %p382
      %p385 = scmp.ne.s32.totalorder %s368, %s384
      %p386 = scmp.eq.s32.totalorder %s40, 0
      %p387 = por %p385, %p386
      %p388 = scmp.le.s32.totalorder 1, %s34
      %p389 = scmp.lt.s32.totalorder %s34, 3
      %p390 = pnand %p388, %p389
      %p391 = pneg %p390
      // Predicated region
      $region9: #{tpu_custom_call.1} parent=5 // pred_check
        _
      $region10: #{tpu_custom_call.1} parent=5 // pred_check_branch
        %393 = sbr.rel (%p390) target = $region12
      $region11: #{tpu_custom_call.1} parent=5 // pred_region
        %s394 = ssub.s32 %s34, 1
        // Predicated region
        $region13: #{tpu_custom_call.1} parent=11 // pred_check
          %p395 = pneg %p81
        $region14: #{tpu_custom_call.1} parent=11 // pred_check_branch
          %397 = sbr.rel (%p395) target = $region16
        $region15: #{tpu_custom_call.1} parent=11 // pred_region
          %s399 = ssub.s32 32, 32
          %400 = vsyncadd [#allocation6], %s399
          %s402 = sshll.u32 [#allocation5], 4
          %s403 = int_to_ptr.vmem [resolvable:$true] %s402
          %405 = dma.hbm_to_vmem [thread:$0]  %s1, 32, %s403, [#allocation6]
        $region16: #{tpu_custom_call.1} parent=11 // pred_fallthru
          _
        // Predicated region
        $region17: #{tpu_custom_call.1} parent=11 // pred_check
          %p406 = pneg %p102
        $region18: #{tpu_custom_call.1} parent=11 // pred_check_branch
          %408 = sbr.rel (%p406) target = $region20
        $region19: #{tpu_custom_call.1} parent=11 // pred_region
          %s410 = ssub.s32 32, 32
          %411 = vsyncadd [#allocation6], %s410
          %s413 = sshll.u32 [#allocation7], 4
          %s414 = int_to_ptr.vmem [resolvable:$true] %s413
          %416 = dma.hbm_to_vmem [thread:$0]  %s2, 32, %s414, [#allocation6]
        $region20: #{tpu_custom_call.1} parent=11 // pred_fallthru
          _
        // Predicated region
        $region21: #{tpu_custom_call.1} parent=11 // pred_check
          %p417 = pneg %p123
        $region22: #{tpu_custom_call.1} parent=11 // pred_check_branch
          %419 = sbr.rel (%p417) target = $region24
        $region23: #{tpu_custom_call.1} parent=11 // pred_region
          %s421 = ssub.s32 192, 192
          %422 = vsyncadd [#allocation9], %s421
          %s423 = sshll.u32 [#allocation8], 4
          %s424 = int_to_ptr.vmem [resolvable:$true] %s423
          %429 = dma.hbm_to_vmem [thread:$0]  %s3, 192, %s424, [#allocation9], 64, 64, 4
        $region24: #{tpu_custom_call.1} parent=11 // pred_fallthru
          _
        // Predicated region
        $region25: #{tpu_custom_call.1} parent=11 // pred_check
          %p430 = pneg %p144
        $region26: #{tpu_custom_call.1} parent=11 // pred_check_branch
          %432 = sbr.rel (%p430) target = $region28
        $region27: #{tpu_custom_call.1} parent=11 // pred_region
          %s434 = ssub.s32 32, 32
          %435 = vsyncadd [#allocation9], %s434
          %s437 = sshll.u32 [#allocation10], 4
          %s438 = int_to_ptr.vmem [resolvable:$true] %s437
          %440 = dma.hbm_to_vmem [thread:$0]  %s4, 32, %s438, [#allocation9]
        $region28: #{tpu_custom_call.1} parent=11 // pred_fallthru
          _
        // Predicated region
        $region29: #{tpu_custom_call.1} parent=11 // pred_check
          %p441 = pneg %p165
        $region30: #{tpu_custom_call.1} parent=11 // pred_check_branch
          %443 = sbr.rel (%p441) target = $region32
        $region31: #{tpu_custom_call.1} parent=11 // pred_region
          %s445 = ssub.s32 192, 192
          %446 = vsyncadd [#allocation12], %s445
          %s447 = sshll.u32 [#allocation11], 4
          %s448 = int_to_ptr.vmem [resolvable:$true] %s447
          %453 = dma.hbm_to_vmem [thread:$0]  %s5, 192, %s448, [#allocation12], 64, 64, 4
        $region32: #{tpu_custom_call.1} parent=11 // pred_fallthru
          _
        // Predicated region
        $region33: #{tpu_custom_call.1} parent=11 // pred_check
          %p454 = pneg %p186
        $region34: #{tpu_custom_call.1} parent=11 // pred_check_branch
          %456 = sbr.rel (%p454) target = $region36
        $region35: #{tpu_custom_call.1} parent=11 // pred_region
          %s458 = ssub.s32 32, 32
          %459 = vsyncadd [#allocation12], %s458
          %s461 = sshll.u32 [#allocation13], 4
          %s462 = int_to_ptr.vmem [resolvable:$true] %s461
          %464 = dma.hbm_to_vmem [thread:$0]  %s6, 32, %s462, [#allocation12]
        $region36: #{tpu_custom_call.1} parent=11 // pred_fallthru
          _
        // Predicated region
        $region37: #{tpu_custom_call.1} parent=11 // pred_check
          %p465 = pneg %p207
        $region38: #{tpu_custom_call.1} parent=11 // pred_check_branch
          %467 = sbr.rel (%p465) target = $region40
        $region39: #{tpu_custom_call.1} parent=11 // pred_region
          %s469 = ssub.s32 576, 576
          %470 = vsyncadd [#allocation15], %s469
          %s471 = sshll.u32 [#allocation14], 4
          %s472 = int_to_ptr.vmem [resolvable:$true] %s471
          %477 = dma.hbm_to_vmem [thread:$0]  %s7, 576, %s472, [#allocation15], 64, 64, 4
        $region40: #{tpu_custom_call.1} parent=11 // pred_fallthru
          _
        // Predicated region
        $region41: #{tpu_custom_call.1} parent=11 // pred_check
          %p478 = pneg %p228
        $region42: #{tpu_custom_call.1} parent=11 // pred_check_branch
          %480 = sbr.rel (%p478) target = $region44
        $region43: #{tpu_custom_call.1} parent=11 // pred_region
          %s482 = ssub.s32 32, 32
          %483 = vsyncadd [#allocation15], %s482
          %s485 = sshll.u32 [#allocation16], 4
          %s486 = int_to_ptr.vmem [resolvable:$true] %s485
          %488 = dma.hbm_to_vmem [thread:$0]  %s8, 32, %s486, [#allocation15]
        $region44: #{tpu_custom_call.1} parent=11 // pred_fallthru
          _
        // Predicated region
        $region45: #{tpu_custom_call.1} parent=11 // pred_check
          %p489 = pneg %p249
        $region46: #{tpu_custom_call.1} parent=11 // pred_check_branch
          %491 = sbr.rel (%p489) target = $region48
        $region47: #{tpu_custom_call.1} parent=11 // pred_region
          %s493 = ssub.s32 192, 192
          %494 = vsyncadd [#allocation18], %s493
          %s495 = sshll.u32 [#allocation17], 4
          %s496 = int_to_ptr.vmem [resolvable:$true] %s495
          %501 = dma.hbm_to_vmem [thread:$0]  %s9, 192, %s496, [#allocation18], 64, 64, 4
        $region48: #{tpu_custom_call.1} parent=11 // pred_fallthru
          _
        // Predicated region
        $region49: #{tpu_custom_call.1} parent=11 // pred_check
          %p502 = pneg %p270
        $region50: #{tpu_custom_call.1} parent=11 // pred_check_branch
          %504 = sbr.rel (%p502) target = $region52
        $region51: #{tpu_custom_call.1} parent=11 // pred_region
          %s506 = ssub.s32 32, 32
          %507 = vsyncadd [#allocation18], %s506
          %s509 = sshll.u32 [#allocation19], 4
          %s510 = int_to_ptr.vmem [resolvable:$true] %s509
          %512 = dma.hbm_to_vmem [thread:$0]  %s10, 32, %s510, [#allocation18]
        $region52: #{tpu_custom_call.1} parent=11 // pred_fallthru
          _
        // Predicated region
        $region53: #{tpu_custom_call.1} parent=11 // pred_check
          %p513 = pneg %p291
        $region54: #{tpu_custom_call.1} parent=11 // pred_check_branch
          %515 = sbr.rel (%p513) target = $region56
        $region55: #{tpu_custom_call.1} parent=11 // pred_region
          %s517 = ssub.s32 192, 192
          %518 = vsyncadd [#allocation21], %s517
          %s519 = sshll.u32 [#allocation20], 4
          %s520 = int_to_ptr.vmem [resolvable:$true] %s519
          %525 = dma.hbm_to_vmem [thread:$0]  %s11, 192, %s520, [#allocation21], 64, 64, 4
        $region56: #{tpu_custom_call.1} parent=11 // pred_fallthru
          _
        // Predicated region
        $region57: #{tpu_custom_call.1} parent=11 // pred_check
          %p526 = pneg %p312
        $region58: #{tpu_custom_call.1} parent=11 // pred_check_branch
          %528 = sbr.rel (%p526) target = $region60
        $region59: #{tpu_custom_call.1} parent=11 // pred_region
          %s530 = ssub.s32 32, 32
          %531 = vsyncadd [#allocation21], %s530
          %s533 = sshll.u32 [#allocation22], 4
          %s534 = int_to_ptr.vmem [resolvable:$true] %s533
          %536 = dma.hbm_to_vmem [thread:$0]  %s12, 32, %s534, [#allocation21]
        $region60: #{tpu_custom_call.1} parent=11 // pred_fallthru
          _
        // Predicated region
        $region61: #{tpu_custom_call.1} parent=11 // pred_check
          %p537 = pneg %p333
        $region62: #{tpu_custom_call.1} parent=11 // pred_check_branch
          %539 = sbr.rel (%p537) target = $region64
        $region63: #{tpu_custom_call.1} parent=11 // pred_region
          %s541 = ssub.s32 32, 32
          %542 = vsyncadd [#allocation24], %s541
          %s544 = sshll.u32 [#allocation23], 4
          %s545 = int_to_ptr.vmem [resolvable:$true] %s544
          %547 = dma.hbm_to_vmem [thread:$0]  %s13, 32, %s545, [#allocation24]
        $region64: #{tpu_custom_call.1} parent=11 // pred_fallthru
          _
        // Predicated region
        $region65: #{tpu_custom_call.1} parent=11 // pred_check
          %p548 = pneg %p354
        $region66: #{tpu_custom_call.1} parent=11 // pred_check_branch
          %550 = sbr.rel (%p548) target = $region68
        $region67: #{tpu_custom_call.1} parent=11 // pred_region
          %s552 = ssub.s32 32, 32
          %553 = vsyncadd [#allocation24], %s552
          %s555 = sshll.u32 [#allocation25], 4
          %s556 = int_to_ptr.vmem [resolvable:$true] %s555
          %558 = dma.hbm_to_vmem [thread:$0]  %s14, 32, %s556, [#allocation24]
        $region68: #{tpu_custom_call.1} parent=11 // pred_fallthru
          _
      $region12: #{tpu_custom_call.1} parent=5 // pred_fallthru
        _
      %p559 = scmp.lt.s32.totalorder %s34, 2
      // Predicated region
      $region69: #{tpu_custom_call.1} parent=5 // pred_check
        %p560 = pneg %p559
      $region70: #{tpu_custom_call.1} parent=5 // pred_check_branch
        %562 = sbr.rel (%p560) target = $region72
      $region71: #{tpu_custom_call.1} parent=5 // pred_region
        // Predicated region
        $region73: #{tpu_custom_call.1} parent=71 // pred_check
          %p563 = pneg %p54
        $region74: #{tpu_custom_call.1} parent=71 // pred_check_branch
          %565 = sbr.rel (%p563) target = $region76
        $region75: #{tpu_custom_call.1} parent=71 // pred_region
          %s566 = sand.u32 %s44, 1
          %s567 = scalar_lea.sflag [#allocation3], %s566
          %s568 = sand.u32 %s44, 1
          %s569 = smul.addr %s568, 128
          %s570 = scalar_lea.vmem [#allocation2], %s569
          %s572 = ssub.s32 2048, 2048
          %573 = vsyncadd %s567, %s572
          %s574 = smul.addr %s34, 32
          %s575 = smul.addr %s574, 64
          %s576 = scalar_lea.hbm %s0, %s575
          %s577 = sshll.u32 %s570, 4
          %s578 = int_to_ptr.vmem [resolvable:$true] %s577
          %583 = dma.hbm_to_vmem [thread:$0]  %s576, 2048, %s578, %s567, 64, 64, 4
        $region76: #{tpu_custom_call.1} parent=71 // pred_fallthru
          _
      $region72: #{tpu_custom_call.1} parent=5 // pred_fallthru
        _
      %p584 = scmp.le.s32.totalorder 1, %s34
      %p585 = scmp.lt.s32.totalorder %s34, 3
      %p586 = pnand %p584, %p585
      %p587 = pneg %p586
      // Predicated region
      $region77: #{tpu_custom_call.1} parent=5 // pred_check
        _
      $region78: #{tpu_custom_call.1} parent=5 // pred_check_branch
        %589 = sbr.rel (%p586) target = $region80
      $region79: #{tpu_custom_call.1} parent=5 // pred_region
        %s590 = ssub.s32 %s34, 1
        %s591 = sand.u32 %s47, 1
        %s592 = scalar_lea.sflag [#allocation3], %s591
        %s593 = sand.u32 %s47, 1
        %s594 = smul.addr %s593, 128
        %s595 = scalar_lea.vmem [#allocation2], %s594
        // Predicated region
        $region81: #{tpu_custom_call.1} parent=79 // pred_check
          %p596 = pneg %p60
        $region82: #{tpu_custom_call.1} parent=79 // pred_check_branch
          %598 = sbr.rel (%p596) target = $region84
        $region83: #{tpu_custom_call.1} parent=79 // pred_region
          %599 = dma.done %s592, 2048
        $region84: #{tpu_custom_call.1} parent=79 // pred_fallthru
          _
        // Predicated region
        $region85: #{tpu_custom_call.1} parent=79 // pred_check
          %p600 = pneg %p81
        $region86: #{tpu_custom_call.1} parent=79 // pred_check_branch
          %602 = sbr.rel (%p600) target = $region88
        $region87: #{tpu_custom_call.1} parent=79 // pred_region
          %603 = dma.done [#allocation6], 32
        $region88: #{tpu_custom_call.1} parent=79 // pred_fallthru
          _
        // Predicated region
        $region89: #{tpu_custom_call.1} parent=79 // pred_check
          %p604 = pneg %p102
        $region90: #{tpu_custom_call.1} parent=79 // pred_check_branch
          %606 = sbr.rel (%p604) target = $region92
        $region91: #{tpu_custom_call.1} parent=79 // pred_region
          %607 = dma.done [#allocation6], 32
        $region92: #{tpu_custom_call.1} parent=79 // pred_fallthru
          _
        // Predicated region
        $region93: #{tpu_custom_call.1} parent=79 // pred_check
          %p608 = pneg %p123
        $region94: #{tpu_custom_call.1} parent=79 // pred_check_branch
          %610 = sbr.rel (%p608) target = $region96
        $region95: #{tpu_custom_call.1} parent=79 // pred_region
          %611 = dma.done [#allocation9], 192
        $region96: #{tpu_custom_call.1} parent=79 // pred_fallthru
          _
        // Predicated region
        $region97: #{tpu_custom_call.1} parent=79 // pred_check
          %p612 = pneg %p144
        $region98: #{tpu_custom_call.1} parent=79 // pred_check_branch
          %614 = sbr.rel (%p612) target = $region100
        $region99: #{tpu_custom_call.1} parent=79 // pred_region
          %615 = dma.done [#allocation9], 32
        $region100: #{tpu_custom_call.1} parent=79 // pred_fallthru
          _
        // Predicated region
        $region101: #{tpu_custom_call.1} parent=79 // pred_check
          %p616 = pneg %p165
        $region102: #{tpu_custom_call.1} parent=79 // pred_check_branch
          %618 = sbr.rel (%p616) target = $region104
        $region103: #{tpu_custom_call.1} parent=79 // pred_region
          %619 = dma.done [#allocation12], 192
        $region104: #{tpu_custom_call.1} parent=79 // pred_fallthru
          _
        // Predicated region
        $region105: #{tpu_custom_call.1} parent=79 // pred_check
          %p620 = pneg %p186
        $region106: #{tpu_custom_call.1} parent=79 // pred_check_branch
          %622 = sbr.rel (%p620) target = $region108
        $region107: #{tpu_custom_call.1} parent=79 // pred_region
          %623 = dma.done [#allocation12], 32
        $region108: #{tpu_custom_call.1} parent=79 // pred_fallthru
          _
        // Predicated region
        $region109: #{tpu_custom_call.1} parent=79 // pred_check
          %p624 = pneg %p207
        $region110: #{tpu_custom_call.1} parent=79 // pred_check_branch
          %626 = sbr.rel (%p624) target = $region112
        $region111: #{tpu_custom_call.1} parent=79 // pred_region
          %627 = dma.done [#allocation15], 576
        $region112: #{tpu_custom_call.1} parent=79 // pred_fallthru
          _
        // Predicated region
        $region113: #{tpu_custom_call.1} parent=79 // pred_check
          %p628 = pneg %p228
        $region114: #{tpu_custom_call.1} parent=79 // pred_check_branch
          %630 = sbr.rel (%p628) target = $region116
        $region115: #{tpu_custom_call.1} parent=79 // pred_region
          %631 = dma.done [#allocation15], 32
        $region116: #{tpu_custom_call.1} parent=79 // pred_fallthru
          _
        // Predicated region
        $region117: #{tpu_custom_call.1} parent=79 // pred_check
          %p632 = pneg %p249
        $region118: #{tpu_custom_call.1} parent=79 // pred_check_branch
          %634 = sbr.rel (%p632) target = $region120
        $region119: #{tpu_custom_call.1} parent=79 // pred_region
          %635 = dma.done [#allocation18], 192
        $region120: #{tpu_custom_call.1} parent=79 // pred_fallthru
          _
        // Predicated region
        $region121: #{tpu_custom_call.1} parent=79 // pred_check
          %p636 = pneg %p270
        $region122: #{tpu_custom_call.1} parent=79 // pred_check_branch
          %638 = sbr.rel (%p636) target = $region124
        $region123: #{tpu_custom_call.1} parent=79 // pred_region
          %639 = dma.done [#allocation18], 32
        $region124: #{tpu_custom_call.1} parent=79 // pred_fallthru
          _
        // Predicated region
        $region125: #{tpu_custom_call.1} parent=79 // pred_check
          %p640 = pneg %p291
        $region126: #{tpu_custom_call.1} parent=79 // pred_check_branch
          %642 = sbr.rel (%p640) target = $region128
        $region127: #{tpu_custom_call.1} parent=79 // pred_region
          %643 = dma.done [#allocation21], 192
        $region128: #{tpu_custom_call.1} parent=79 // pred_fallthru
          _
        // Predicated region
        $region129: #{tpu_custom_call.1} parent=79 // pred_check
          %p644 = pneg %p312
        $region130: #{tpu_custom_call.1} parent=79 // pred_check_branch
          %646 = sbr.rel (%p644) target = $region132
        $region131: #{tpu_custom_call.1} parent=79 // pred_region
          %647 = dma.done [#allocation21], 32
        $region132: #{tpu_custom_call.1} parent=79 // pred_fallthru
          _
        // Predicated region
        $region133: #{tpu_custom_call.1} parent=79 // pred_check
          %p648 = pneg %p333
        $region134: #{tpu_custom_call.1} parent=79 // pred_check_branch
          %650 = sbr.rel (%p648) target = $region136
        $region135: #{tpu_custom_call.1} parent=79 // pred_region
          %651 = dma.done [#allocation24], 32
        $region136: #{tpu_custom_call.1} parent=79 // pred_fallthru
          _
        // Predicated region
        $region137: #{tpu_custom_call.1} parent=79 // pred_check
          %p652 = pneg %p354
        $region138: #{tpu_custom_call.1} parent=79 // pred_check_branch
          %654 = sbr.rel (%p652) target = $region140
        $region139: #{tpu_custom_call.1} parent=79 // pred_region
          %655 = dma.done [#allocation24], 32
        $region140: #{tpu_custom_call.1} parent=79 // pred_fallthru
          _
        %s656 = sand.u32 %s47, 1
        %s657 = scalar_lea.sflag [#allocation3], %s656
        %s658 = sand.u32 %s47, 1
        %s659 = smul.addr %s658, 128
        %s660 = scalar_lea.vmem [#allocation2], %s659
        %p661 = pneg %p60
        %p662 = pneg %p57
        %p663 = pneg %p81
        %p664 = pneg %p78
        %p665 = pneg %p102
        %p666 = pneg %p99
        %p667 = pneg %p123
        %p668 = pneg %p120
        %p669 = pneg %p144
        %p670 = pneg %p141
        %p671 = pneg %p165
        %p672 = pneg %p162
        %p673 = pneg %p186
        %p674 = pneg %p183
        %p675 = pneg %p207
        %p676 = pneg %p204
        %p677 = pneg %p228
        %p678 = pneg %p225
        %p679 = pneg %p249
        %p680 = pneg %p246
        %p681 = pneg %p270
        %p682 = pneg %p267
        %p683 = pneg %p291
        %p684 = pneg %p288
        %p685 = pneg %p312
        %p686 = pneg %p309
        %p687 = pneg %p333
        %p688 = pneg %p330
        %p689 = pneg %p354
        %p690 = pneg %p351
        %p691 = pneg %p380
        %p692 = pneg %p377
        %s693 = sand.u32 %s367, 1
        %s694 = scalar_lea.sflag [#allocation4], %s693
        %s695 = sand.u32 %s367, 1
        %s696 = smul.addr %s695, 256
        %s697 = scalar_lea.vmem [#allocation26], %s696
        %v700 = vld [vmem:[%s595] sm:$0xf]
        %v701 = vld [vmem:[%s595 + $0x4] sm:$0xf]
        %v702 = vld [vmem:[%s595 + $0x8] sm:$0xf]
        %v703 = vld [vmem:[%s595 + $0xc] sm:$0xf]
        %v704 = vld [vmem:[%s595 + $0x10] sm:$0xf]
        %v705 = vld [vmem:[%s595 + $0x14] sm:$0xf]
        %v706 = vld [vmem:[%s595 + $0x18] sm:$0xf]
        %v707 = vld [vmem:[%s595 + $0x1c] sm:$0xf]
        %v708 = vld [vmem:[%s595 + $0x20] sm:$0xf]
        %v709 = vld [vmem:[%s595 + $0x24] sm:$0xf]
        %v710 = vld [vmem:[%s595 + $0x28] sm:$0xf]
        %v711 = vld [vmem:[%s595 + $0x2c] sm:$0xf]
        %v712 = vld [vmem:[%s595 + $0x30] sm:$0xf]
        %v713 = vld [vmem:[%s595 + $0x34] sm:$0xf]
        %v714 = vld [vmem:[%s595 + $0x38] sm:$0xf]
        %v715 = vld [vmem:[%s595 + $0x3c] sm:$0xf]
        %v716 = vld [vmem:[%s595 + $0x40] sm:$0xf]
        %v717 = vld [vmem:[%s595 + $0x44] sm:$0xf]
        %v718 = vld [vmem:[%s595 + $0x48] sm:$0xf]
        %v719 = vld [vmem:[%s595 + $0x4c] sm:$0xf]
        %v720 = vld [vmem:[%s595 + $0x50] sm:$0xf]
        %v721 = vld [vmem:[%s595 + $0x54] sm:$0xf]
        %v722 = vld [vmem:[%s595 + $0x58] sm:$0xf]
        %v723 = vld [vmem:[%s595 + $0x5c] sm:$0xf]
        %v724 = vld [vmem:[%s595 + $0x60] sm:$0xf]
        %v725 = vld [vmem:[%s595 + $0x64] sm:$0xf]
        %v726 = vld [vmem:[%s595 + $0x68] sm:$0xf]
        %v727 = vld [vmem:[%s595 + $0x6c] sm:$0xf]
        %v728 = vld [vmem:[%s595 + $0x70] sm:$0xf]
        %v729 = vld [vmem:[%s595 + $0x74] sm:$0xf]
        %v730 = vld [vmem:[%s595 + $0x78] sm:$0xf]
        %v731 = vld [vmem:[%s595 + $0x7c] sm:$0xf]
        %v732 = vld [vmem:[#allocation5] sm:$0x3]
        %v765 = vunpack.c.l.b16 %v700
        %v766 = vunpack.c.l.b16 %v701
        %v767 = vunpack.c.l.b16 %v702
        %v768 = vunpack.c.l.b16 %v703
        %v769 = vunpack.c.l.b16 %v704
        %v770 = vunpack.c.l.b16 %v705
        %v771 = vunpack.c.l.b16 %v706
        %v772 = vunpack.c.l.b16 %v707
        %v773 = vunpack.c.l.b16 %v708
        %v774 = vunpack.c.l.b16 %v709
        %v775 = vunpack.c.l.b16 %v710
        %v776 = vunpack.c.l.b16 %v711
        %v777 = vunpack.c.l.b16 %v712
        %v778 = vunpack.c.l.b16 %v713
        %v779 = vunpack.c.l.b16 %v714
        %v780 = vunpack.c.l.b16 %v715
        %v781 = vunpack.c.l.b16 %v716
        %v782 = vunpack.c.l.b16 %v717
        %v783 = vunpack.c.l.b16 %v718
        %v784 = vunpack.c.l.b16 %v719
        %v785 = vunpack.c.l.b16 %v720
        %v786 = vunpack.c.l.b16 %v721
        %v787 = vunpack.c.l.b16 %v722
        %v788 = vunpack.c.l.b16 %v723
        %v789 = vunpack.c.l.b16 %v724
        %v790 = vunpack.c.l.b16 %v725
        %v791 = vunpack.c.l.b16 %v726
        %v792 = vunpack.c.l.b16 %v727
        %v793 = vunpack.c.l.b16 %v728
        %v794 = vunpack.c.l.b16 %v729
        %v795 = vunpack.c.l.b16 %v730
        %v796 = vunpack.c.l.b16 %v731
        %v797 = vpack.c.b16 %v766, %v765
        %v798 = vpack.c.b16 %v768, %v767
        %v799 = vpack.c.b16 %v770, %v769
        %v800 = vpack.c.b16 %v772, %v771
        %v801 = vpack.c.b16 %v774, %v773
        %v802 = vpack.c.b16 %v776, %v775
        %v803 = vpack.c.b16 %v778, %v777
        %v804 = vpack.c.b16 %v780, %v779
        %v805 = vpack.c.b16 %v782, %v781
        %v806 = vpack.c.b16 %v784, %v783
        %v807 = vpack.c.b16 %v786, %v785
        %v808 = vpack.c.b16 %v788, %v787
        %v809 = vpack.c.b16 %v790, %v789
        %v810 = vpack.c.b16 %v792, %v791
        %v811 = vpack.c.b16 %v794, %v793
        %v812 = vpack.c.b16 %v796, %v795
        %vm813 = vcmask 31744
        %v815 = vsel %vm813, %v797, 0
        %v818 = vsel %vm813, %v798, 0
        %v821 = vsel %vm813, %v799, 0
        %v824 = vsel %vm813, %v800, 0
        %v827 = vsel %vm813, %v801, 0
        %v830 = vsel %vm813, %v802, 0
        %v833 = vsel %vm813, %v803, 0
        %v836 = vsel %vm813, %v804, 0
        %v839 = vsel %vm813, %v805, 0
        %v842 = vsel %vm813, %v806, 0
        %v845 = vsel %vm813, %v807, 0
        %v848 = vsel %vm813, %v808, 0
        %v851 = vsel %vm813, %v809, 0
        %v854 = vsel %vm813, %v810, 0
        %v857 = vsel %vm813, %v811, 0
        %v860 = vsel %vm813, %v812, 0
        %vm862 = vcmask 1041408
        %v864 = vsel %vm862, %v732, 0
        %866 = vmatprep.subr.bf16.mxu0 0
        %867 = vmatpush1.bf16.msra.mxu0 %v864
        %868 = vmatprep.subr.bf16.mxu0 0
        %869 = vmatpush1.bf16.msra.mxu0 0
        %870 = vmatprep.subr.bf16.mxu0 0
        %871 = vmatpush1.bf16.msra.mxu0 0
        %872 = vmatprep.subr.bf16.mxu0 0
        %873 = vmatpush1.bf16.msra.mxu0 0
        %874 = vmatprep.subr.bf16.mxu0 0
        %875 = vmatpush1.bf16.msra.mxu0 0
        %876 = vmatprep.subr.bf16.mxu0 0
        %877 = vmatpush1.bf16.msra.mxu0 0
        %878 = vmatprep.subr.bf16.mxu0 0
        %879 = vmatpush1.bf16.msra.mxu0 0
        %880 = vmatprep.subr.bf16.mxu0 0
        %881 = vmatpush1.bf16.msra.mxu0 0
        %882 = vmatprep.subr.bf16.mxu0 0
        %883 = vmatpush1.bf16.msra.mxu0 0
        %884 = vmatprep.subr.bf16.mxu0 0
        %885 = vmatpush1.bf16.msra.mxu0 0
        %886 = vmatprep.subr.bf16.mxu0 0
        %887 = vmatpush1.bf16.msra.mxu0 0
        %888 = vmatprep.subr.bf16.mxu0 0
        %889 = vmatpush1.bf16.msra.mxu0 0
        %890 = vmatprep.subr.bf16.mxu0 0
        %891 = vmatpush1.bf16.msra.mxu0 0
        %892 = vmatprep.subr.bf16.mxu0 0
        %893 = vmatpush1.bf16.msra.mxu0 0
        %894 = vmatprep.subr.bf16.mxu0 0
        %895 = vmatpush1.bf16.msra.mxu0 0
        %896 = vmatprep.subr.bf16.mxu0 0
        %897 = vmatpush1.bf16.msra.mxu0 0
        %898 = vmatprep.mubr.bf16.mxu0 0
        %899 = vmatmul.mubr.bf16.gmra.mrb[0].mxu0 %v815
        %v900 = vpop.f32.mrb[0].mxu0
        %v901 = vadd.f32 0.0, %v900
        %v902 = vpop.f32.mrb[0].mxu0
        %v903 = vpop.f32.mrb[0].mxu0
        %v904 = vadd.f32 0.0, %v903
        %v905 = vpop.f32.mrb[0].mxu0
        %906 = vmatprep.mubr.bf16.mxu0 0
        %907 = vmatmul.mubr.bf16.gmra.mrb[0].mxu0 %v818
        %v908 = vpop.f32.mrb[0].mxu0
        %v909 = vadd.f32 0.0, %v908
        %v910 = vpop.f32.mrb[0].mxu0
        %v911 = vpop.f32.mrb[0].mxu0
        %v912 = vadd.f32 0.0, %v911
        %v913 = vpop.f32.mrb[0].mxu0
        %914 = vmatprep.mubr.bf16.mxu0 0
        %915 = vmatmul.mubr.bf16.gmra.mrb[0].mxu0 %v821
        %v916 = vpop.f32.mrb[0].mxu0
        %v917 = vadd.f32 0.0, %v916
        %v918 = vpop.f32.mrb[0].mxu0
        %v919 = vpop.f32.mrb[0].mxu0
        %v920 = vadd.f32 0.0, %v919
        %v921 = vpop.f32.mrb[0].mxu0
        %922 = vmatprep.mubr.bf16.mxu0 0
        %923 = vmatmul.mubr.bf16.gmra.mrb[0].mxu0 %v824
        %v924 = vpop.f32.mrb[0].mxu0
        %v925 = vadd.f32 0.0, %v924
        %v926 = vpop.f32.mrb[0].mxu0
        %v927 = vpop.f32.mrb[0].mxu0
        %v928 = vadd.f32 0.0, %v927
        %v929 = vpop.f32.mrb[0].mxu0
        %930 = vmatprep.mubr.bf16.mxu0 0
        %931 = vmatmul.mubr.bf16.gmra.mrb[0].mxu0 %v827
        %v932 = vpop.f32.mrb[0].mxu0
        %v933 = vadd.f32 0.0, %v932
        %v934 = vpop.f32.mrb[0].mxu0
        %v935 = vpop.f32.mrb[0].mxu0
        %v936 = vadd.f32 0.0, %v935
        %v937 = vpop.f32.mrb[0].mxu0
        %938 = vmatprep.mubr.bf16.mxu0 0
        %939 = vmatmul.mubr.bf16.gmra.mrb[0].mxu0 %v830
        %v940 = vpop.f32.mrb[0].mxu0
        %v941 = vadd.f32 0.0, %v940
        %v942 = vpop.f32.mrb[0].mxu0
        %v943 = vpop.f32.mrb[0].mxu0
        %v944 = vadd.f32 0.0, %v943
        %v945 = vpop.f32.mrb[0].mxu0
        %946 = vmatprep.mubr.bf16.mxu0 0
        %947 = vmatmul.mubr.bf16.gmra.mrb[0].mxu0 %v833
        %v948 = vpop.f32.mrb[0].mxu0
        %v949 = vadd.f32 0.0, %v948
        %v950 = vpop.f32.mrb[0].mxu0
        %v951 = vpop.f32.mrb[0].mxu0
        %v952 = vadd.f32 0.0, %v951
        %v953 = vpop.f32.mrb[0].mxu0
        %954 = vmatprep.mubr.bf16.mxu0 0
        %955 = vmatmul.mubr.bf16.gmra.mrb[0].mxu0 %v836
        %v956 = vpop.f32.mrb[0].mxu0
        %v957 = vadd.f32 0.0, %v956
        %v958 = vpop.f32.mrb[0].mxu0
        %v959 = vpop.f32.mrb[0].mxu0
        %v960 = vadd.f32 0.0, %v959
        %v961 = vpop.f32.mrb[0].mxu0
        %962 = vmatprep.mubr.bf16.mxu0 0
        %963 = vmatmul.mubr.bf16.gmra.mrb[0].mxu0 %v839
        %v964 = vpop.f32.mrb[0].mxu0
        %v965 = vadd.f32 0.0, %v964
        %v966 = vpop.f32.mrb[0].mxu0
        %v967 = vpop.f32.mrb[0].mxu0
        %v968 = vadd.f32 0.0, %v967
        %v969 = vpop.f32.mrb[0].mxu0
        %970 = vmatprep.mubr.bf16.mxu0 0
        %971 = vmatmul.mubr.bf16.gmra.mrb[0].mxu0 %v842
        %v972 = vpop.f32.mrb[0].mxu0
        %v973 = vadd.f32 0.0, %v972
        %v974 = vpop.f32.mrb[0].mxu0
        %v975 = vpop.f32.mrb[0].mxu0
        %v976 = vadd.f32 0.0, %v975
        %v977 = vpop.f32.mrb[0].mxu0
        %978 = vmatprep.mubr.bf16.mxu0 0
        %979 = vmatmul.mubr.bf16.gmra.mrb[0].mxu0 %v845
        %v980 = vpop.f32.mrb[0].mxu0
        %v981 = vadd.f32 0.0, %v980
        %v982 = vpop.f32.mrb[0].mxu0
        %v983 = vpop.f32.mrb[0].mxu0
        %v984 = vadd.f32 0.0, %v983
        %v985 = vpop.f32.mrb[0].mxu0
        %986 = vmatprep.mubr.bf16.mxu0 0
        %987 = vmatmul.mubr.bf16.gmra.mrb[0].mxu0 %v848
        %v988 = vpop.f32.mrb[0].mxu0
        %v989 = vadd.f32 0.0, %v988
        %v990 = vpop.f32.mrb[0].mxu0
        %v991 = vpop.f32.mrb[0].mxu0
        %v992 = vadd.f32 0.0, %v991
        %v993 = vpop.f32.mrb[0].mxu0
        %994 = vmatprep.mubr.bf16.mxu0 0
        %995 = vmatmul.mubr.bf16.gmra.mrb[0].mxu0 %v851
        %v996 = vpop.f32.mrb[0].mxu0
        %v997 = vadd.f32 0.0, %v996
        %v998 = vpop.f32.mrb[0].mxu0
        %v999 = vpop.f32.mrb[0].mxu0
        %v1000 = vadd.f32 0.0, %v999
        %v1001 = vpop.f32.mrb[0].mxu0
        %1002 = vmatprep.mubr.bf16.mxu0 0
        %1003 = vmatmul.mubr.bf16.gmra.mrb[0].mxu0 %v854
        %v1004 = vpop.f32.mrb[0].mxu0
        %v1005 = vadd.f32 0.0, %v1004
        %v1006 = vpop.f32.mrb[0].mxu0
        %v1007 = vpop.f32.mrb[0].mxu0
        %v1008 = vadd.f32 0.0, %v1007
        %v1009 = vpop.f32.mrb[0].mxu0
        %1010 = vmatprep.mubr.bf16.mxu0 0
        %1011 = vmatmul.mubr.bf16.gmra.mrb[0].mxu0 %v857
        %v1012 = vpop.f32.mrb[0].mxu0
        %v1013 = vadd.f32 0.0, %v1012
        %v1014 = vpop.f32.mrb[0].mxu0
        %v1015 = vpop.f32.mrb[0].mxu0
        %v1016 = vadd.f32 0.0, %v1015
        %v1017 = vpop.f32.mrb[0].mxu0
        %1018 = vmatprep.mubr.bf16.mxu0 0
        %1019 = vmatmul.mubr.bf16.gmra.mrb[0].mxu0 %v860
        %v1020 = vpop.f32.mrb[0].mxu0
        %v1021 = vadd.f32 0.0, %v1020
        %v1022 = vpop.f32.mrb[0].mxu0
        %v1023 = vpop.f32.mrb[0].mxu0
        %v1024 = vadd.f32 0.0, %v1023
        %v1025 = vpop.f32.mrb[0].mxu0
        %1026 = vdwg.mxu0
        %v1027 = vld [vmem:[#allocation7] sm:$0x1]
        %v1028 = vlaneseq
        %v1029 = vshrl.u32 %v1028, 7
        %v1030 = vsub.s32 0, %v1029
        %v1031 = vrot.slane %v1027, %v1030
        %v1032 = vmul.f32 %v901, %v1031
        %v1033 = vmul.f32 %v904, %v1031
        %v1034 = vmul.f32 %v909, %v1031
        %v1035 = vmul.f32 %v912, %v1031
        %v1036 = vmul.f32 %v917, %v1031
        %v1037 = vmul.f32 %v920, %v1031
        %v1038 = vmul.f32 %v925, %v1031
        %v1039 = vmul.f32 %v928, %v1031
        %v1040 = vmul.f32 %v933, %v1031
        %v1041 = vmul.f32 %v936, %v1031
        %v1042 = vmul.f32 %v941, %v1031
        %v1043 = vmul.f32 %v944, %v1031
        %v1044 = vmul.f32 %v949, %v1031
        %v1045 = vmul.f32 %v952, %v1031
        %v1046 = vmul.f32 %v957, %v1031
        %v1047 = vmul.f32 %v960, %v1031
        %v1048 = vmul.f32 %v965, %v1031
        %v1049 = vmul.f32 %v968, %v1031
        %v1050 = vmul.f32 %v973, %v1031
        %v1051 = vmul.f32 %v976, %v1031
        %v1052 = vmul.f32 %v981, %v1031
        %v1053 = vmul.f32 %v984, %v1031
        %v1054 = vmul.f32 %v989, %v1031
        %v1055 = vmul.f32 %v992, %v1031
        %v1056 = vmul.f32 %v997, %v1031
        %v1057 = vmul.f32 %v1000, %v1031
        %v1058 = vmul.f32 %v1005, %v1031
        %v1059 = vmul.f32 %v1008, %v1031
        %v1060 = vmul.f32 %v1013, %v1031
        %v1061 = vmul.f32 %v1016, %v1031
        %v1062 = vmul.f32 %v1021, %v1031
        %v1063 = vmul.f32 %v1024, %v1031
        %v1064 = vld [vmem:[#allocation7 + $0x1] sm:$0x1]
        %v1065 = vlaneseq
        %v1066 = vshrl.u32 %v1065, 7
        %v1067 = vsub.s32 0, %v1066
        %v1068 = vrot.slane %v1064, %v1067
        %v1069 = vadd.f32 %v1032, %v1068
        %v1070 = vadd.f32 %v1033, %v1068
        %v1071 = vadd.f32 %v1034, %v1068
        %v1072 = vadd.f32 %v1035, %v1068
        %v1073 = vadd.f32 %v1036, %v1068
        %v1074 = vadd.f32 %v1037, %v1068
        %v1075 = vadd.f32 %v1038, %v1068
        %v1076 = vadd.f32 %v1039, %v1068
        %v1077 = vadd.f32 %v1040, %v1068
        %v1078 = vadd.f32 %v1041, %v1068
        %v1079 = vadd.f32 %v1042, %v1068
        %v1080 = vadd.f32 %v1043, %v1068
        %v1081 = vadd.f32 %v1044, %v1068
        %v1082 = vadd.f32 %v1045, %v1068
        %v1083 = vadd.f32 %v1046, %v1068
        %v1084 = vadd.f32 %v1047, %v1068
        %v1085 = vadd.f32 %v1048, %v1068
        %v1086 = vadd.f32 %v1049, %v1068
        %v1087 = vadd.f32 %v1050, %v1068
        %v1088 = vadd.f32 %v1051, %v1068
        %v1089 = vadd.f32 %v1052, %v1068
        %v1090 = vadd.f32 %v1053, %v1068
        %v1091 = vadd.f32 %v1054, %v1068
        %v1092 = vadd.f32 %v1055, %v1068
        %v1093 = vadd.f32 %v1056, %v1068
        %v1094 = vadd.f32 %v1057, %v1068
        %v1095 = vadd.f32 %v1058, %v1068
        %v1096 = vadd.f32 %v1059, %v1068
        %v1097 = vadd.f32 %v1060, %v1068
        %v1098 = vadd.f32 %v1061, %v1068
        %v1099 = vadd.f32 %v1062, %v1068
        %v1100 = vadd.f32 %v1063, %v1068
        %v1101 = vmax.f32 %v1069, 0.0
        %v1102 = vmax.f32 %v1070, 0.0
        %v1103 = vmax.f32 %v1071, 0.0
        %v1104 = vmax.f32 %v1072, 0.0
        %v1105 = vmax.f32 %v1073, 0.0
        %v1106 = vmax.f32 %v1074, 0.0
        %v1107 = vmax.f32 %v1075, 0.0
        %v1108 = vmax.f32 %v1076, 0.0
        %v1109 = vmax.f32 %v1077, 0.0
        %v1110 = vmax.f32 %v1078, 0.0
        %v1111 = vmax.f32 %v1079, 0.0
        %v1112 = vmax.f32 %v1080, 0.0
        %v1113 = vmax.f32 %v1081, 0.0
        %v1114 = vmax.f32 %v1082, 0.0
        %v1115 = vmax.f32 %v1083, 0.0
        %v1116 = vmax.f32 %v1084, 0.0
        %v1117 = vmax.f32 %v1085, 0.0
        %v1118 = vmax.f32 %v1086, 0.0
        %v1119 = vmax.f32 %v1087, 0.0
        %v1120 = vmax.f32 %v1088, 0.0
        %v1121 = vmax.f32 %v1089, 0.0
        %v1122 = vmax.f32 %v1090, 0.0
        %v1123 = vmax.f32 %v1091, 0.0
        %v1124 = vmax.f32 %v1092, 0.0
        %v1125 = vmax.f32 %v1093, 0.0
        %v1126 = vmax.f32 %v1094, 0.0
        %v1127 = vmax.f32 %v1095, 0.0
        %v1128 = vmax.f32 %v1096, 0.0
        %v1129 = vmax.f32 %v1097, 0.0
        %v1130 = vmax.f32 %v1098, 0.0
        %v1131 = vmax.f32 %v1099, 0.0
        %v1132 = vmax.f32 %v1100, 0.0
        %v1133 = vpack.c.bf16 %v1102, %v1101
        %v1134 = vpack.c.bf16 %v1104, %v1103
        %v1135 = vpack.c.bf16 %v1106, %v1105
        %v1136 = vpack.c.bf16 %v1108, %v1107
        %v1137 = vpack.c.bf16 %v1110, %v1109
        %v1138 = vpack.c.bf16 %v1112, %v1111
        %v1139 = vpack.c.bf16 %v1114, %v1113
        %v1140 = vpack.c.bf16 %v1116, %v1115
        %v1141 = vpack.c.bf16 %v1118, %v1117
        %v1142 = vpack.c.bf16 %v1120, %v1119
        %v1143 = vpack.c.bf16 %v1122, %v1121
        %v1144 = vpack.c.bf16 %v1124, %v1123
        %v1145 = vpack.c.bf16 %v1126, %v1125
        %v1146 = vpack.c.bf16 %v1128, %v1127
        %v1147 = vpack.c.bf16 %v1130, %v1129
        %v1148 = vpack.c.bf16 %v1132, %v1131
        %v1165 = vrot.slane %v1133, 4
        %v1166 = vrot.slane %v1134, 4
        %v1167 = vrot.slane %v1135, 4
        %v1168 = vrot.slane %v1136, 4
        %v1169 = vrot.slane %v1137, 4
        %v1170 = vrot.slane %v1138, 4
        %v1171 = vrot.slane %v1139, 4
        %v1172 = vrot.slane %v1140, 4
        %v1173 = vrot.slane %v1141, 4
        %v1174 = vrot.slane %v1142, 4
        %v1175 = vrot.slane %v1143, 4
        %v1176 = vrot.slane %v1144, 4
        %v1177 = vrot.slane %v1145, 4
        %v1178 = vrot.slane %v1146, 4
        %v1179 = vrot.slane %v1147, 4
        %v1180 = vrot.slane %v1148, 4
        %1181 = vrot.lane.b32.xlu0 %v1165, 120
        %v1182 = vpop.permute.xlu0 %1181
        %1183 = vrot.lane.b32.xlu0 %v1166, 120
        %v1184 = vpop.permute.xlu0 %1183
        %1185 = vrot.lane.b32.xlu0 %v1167, 120
        %v1186 = vpop.permute.xlu0 %1185
        %1187 = vrot.lane.b32.xlu0 %v1168, 120
        %v1188 = vpop.permute.xlu0 %1187
        %1189 = vrot.lane.b32.xlu0 %v1169, 120
        %v1190 = vpop.permute.xlu0 %1189
        %1191 = vrot.lane.b32.xlu0 %v1170, 120
        %v1192 = vpop.permute.xlu0 %1191
        %1193 = vrot.lane.b32.xlu0 %v1171, 120
        %v1194 = vpop.permute.xlu0 %1193
        %1195 = vrot.lane.b32.xlu0 %v1172, 120
        %v1196 = vpop.permute.xlu0 %1195
        %1197 = vrot.lane.b32.xlu0 %v1173, 120
        %v1198 = vpop.permute.xlu0 %1197
        %1199 = vrot.lane.b32.xlu0 %v1174, 120
        %v1200 = vpop.permute.xlu0 %1199
        %1201 = vrot.lane.b32.xlu0 %v1175, 120
        %v1202 = vpop.permute.xlu0 %1201
        %1203 = vrot.lane.b32.xlu0 %v1176, 120
        %v1204 = vpop.permute.xlu0 %1203
        %1205 = vrot.lane.b32.xlu0 %v1177, 120
        %v1206 = vpop.permute.xlu0 %1205
        %1207 = vrot.lane.b32.xlu0 %v1178, 120
        %v1208 = vpop.permute.xlu0 %1207
        %1209 = vrot.lane.b32.xlu0 %v1179, 120
        %v1210 = vpop.permute.xlu0 %1209
        %1211 = vrot.lane.b32.xlu0 %v1180, 120
        %v1212 = vpop.permute.xlu0 %1211
        %vm1213 = vcmask 1043456
        %v1216 = vsel %vm1213, 0, %v1182
        %v1218 = vsel %vm1213, 0, %v1184
        %v1220 = vsel %vm1213, 0, %v1186
        %v1222 = vsel %vm1213, 0, %v1188
        %v1224 = vsel %vm1213, 0, %v1190
        %v1226 = vsel %vm1213, 0, %v1192
        %v1228 = vsel %vm1213, 0, %v1194
        %v1230 = vsel %vm1213, 0, %v1196
        %v1232 = vsel %vm1213, 0, %v1198
        %v1234 = vsel %vm1213, 0, %v1200
        %v1236 = vsel %vm1213, 0, %v1202
        %v1238 = vsel %vm1213, 0, %v1204
        %v1240 = vsel %vm1213, 0, %v1206
        %v1242 = vsel %vm1213, 0, %v1208
        %v1244 = vsel %vm1213, 0, %v1210
        %v1246 = vsel %vm1213, 0, %v1212
        %v1247 = vsel %vm1213, %v1182, 0
        %v1248 = vsel %vm1213, %v1184, 0
        %v1249 = vsel %vm1213, %v1186, 0
        %v1250 = vsel %vm1213, %v1188, 0
        %v1251 = vsel %vm1213, %v1190, 0
        %v1252 = vsel %vm1213, %v1192, 0
        %v1253 = vsel %vm1213, %v1194, 0
        %v1254 = vsel %vm1213, %v1196, 0
        %v1255 = vsel %vm1213, %v1198, 0
        %v1256 = vsel %vm1213, %v1200, 0
        %v1257 = vsel %vm1213, %v1202, 0
        %v1258 = vsel %vm1213, %v1204, 0
        %v1259 = vsel %vm1213, %v1206, 0
        %v1260 = vsel %vm1213, %v1208, 0
        %v1261 = vsel %vm1213, %v1210, 0
        %v1262 = vsel %vm1213, %v1212, 0
        %vm1263 = vsmask.f32 7424
        %v1264 = vshrl.u32 %v1216, 16
        %v1266 = vshll.u32 %v1216, 16
        %v1268 = vrot.slane %v1266, 1
        %v1269 = vor.u32 %v1264, %v1268
        %v1270 = vshll.u32 %v1247, 16
        %v1272 = vrot.slane %v1270, 1
        %v1273 = vsel %vm1263, %v1269, %v1272
        %v1274 = vshrl.u32 %v1247, 16
        %v1276 = vor.u32 %v1274, %v1272
        %v1277 = vshrl.u32 %v1218, 16
        %v1279 = vshll.u32 %v1218, 16
        %v1281 = vrot.slane %v1279, 1
        %v1282 = vor.u32 %v1277, %v1281
        %v1283 = vshll.u32 %v1248, 16
        %v1285 = vrot.slane %v1283, 1
        %v1286 = vsel %vm1263, %v1282, %v1285
        %v1287 = vshrl.u32 %v1248, 16
        %v1289 = vor.u32 %v1287, %v1285
        %v1290 = vshrl.u32 %v1220, 16
        %v1292 = vshll.u32 %v1220, 16
        %v1294 = vrot.slane %v1292, 1
        %v1295 = vor.u32 %v1290, %v1294
        %v1296 = vshll.u32 %v1249, 16
        %v1298 = vrot.slane %v1296, 1
        %v1299 = vsel %vm1263, %v1295, %v1298
        %v1300 = vshrl.u32 %v1249, 16
        %v1302 = vor.u32 %v1300, %v1298
        %v1303 = vshrl.u32 %v1222, 16
        %v1305 = vshll.u32 %v1222, 16
        %v1307 = vrot.slane %v1305, 1
        %v1308 = vor.u32 %v1303, %v1307
        %v1309 = vshll.u32 %v1250, 16
        %v1311 = vrot.slane %v1309, 1
        %v1312 = vsel %vm1263, %v1308, %v1311
        %v1313 = vshrl.u32 %v1250, 16
        %v1315 = vor.u32 %v1313, %v1311
        %v1316 = vshrl.u32 %v1224, 16
        %v1318 = vshll.u32 %v1224, 16
        %v1320 = vrot.slane %v1318, 1
        %v1321 = vor.u32 %v1316, %v1320
        %v1322 = vshll.u32 %v1251, 16
        %v1324 = vrot.slane %v1322, 1
        %v1325 = vsel %vm1263, %v1321, %v1324
        %v1326 = vshrl.u32 %v1251, 16
        %v1328 = vor.u32 %v1326, %v1324
        %v1329 = vshrl.u32 %v1226, 16
        %v1331 = vshll.u32 %v1226, 16
        %v1333 = vrot.slane %v1331, 1
        %v1334 = vor.u32 %v1329, %v1333
        %v1335 = vshll.u32 %v1252, 16
        %v1337 = vrot.slane %v1335, 1
        %v1338 = vsel %vm1263, %v1334, %v1337
        %v1339 = vshrl.u32 %v1252, 16
        %v1341 = vor.u32 %v1339, %v1337
        %v1342 = vshrl.u32 %v1228, 16
        %v1344 = vshll.u32 %v1228, 16
        %v1346 = vrot.slane %v1344, 1
        %v1347 = vor.u32 %v1342, %v1346
        %v1348 = vshll.u32 %v1253, 16
        %v1350 = vrot.slane %v1348, 1
        %v1351 = vsel %vm1263, %v1347, %v1350
        %v1352 = vshrl.u32 %v1253, 16
        %v1354 = vor.u32 %v1352, %v1350
        %v1355 = vshrl.u32 %v1230, 16
        %v1357 = vshll.u32 %v1230, 16
        %v1359 = vrot.slane %v1357, 1
        %v1360 = vor.u32 %v1355, %v1359
        %v1361 = vshll.u32 %v1254, 16
        %v1363 = vrot.slane %v1361, 1
        %v1364 = vsel %vm1263, %v1360, %v1363
        %v1365 = vshrl.u32 %v1254, 16
        %v1367 = vor.u32 %v1365, %v1363
        %v1368 = vshrl.u32 %v1232, 16
        %v1370 = vshll.u32 %v1232, 16
        %v1372 = vrot.slane %v1370, 1
        %v1373 = vor.u32 %v1368, %v1372
        %v1374 = vshll.u32 %v1255, 16
        %v1376 = vrot.slane %v1374, 1
        %v1377 = vsel %vm1263, %v1373, %v1376
        %v1378 = vshrl.u32 %v1255, 16
        %v1380 = vor.u32 %v1378, %v1376
        %v1381 = vshrl.u32 %v1234, 16
        %v1383 = vshll.u32 %v1234, 16
        %v1385 = vrot.slane %v1383, 1
        %v1386 = vor.u32 %v1381, %v1385
        %v1387 = vshll.u32 %v1256, 16
        %v1389 = vrot.slane %v1387, 1
        %v1390 = vsel %vm1263, %v1386, %v1389
        %v1391 = vshrl.u32 %v1256, 16
        %v1393 = vor.u32 %v1391, %v1389
        %v1394 = vshrl.u32 %v1236, 16
        %v1396 = vshll.u32 %v1236, 16
        %v1398 = vrot.slane %v1396, 1
        %v1399 = vor.u32 %v1394, %v1398
        %v1400 = vshll.u32 %v1257, 16
        %v1402 = vrot.slane %v1400, 1
        %v1403 = vsel %vm1263, %v1399, %v1402
        %v1404 = vshrl.u32 %v1257, 16
        %v1406 = vor.u32 %v1404, %v1402
        %v1407 = vshrl.u32 %v1238, 16
        %v1409 = vshll.u32 %v1238, 16
        %v1411 = vrot.slane %v1409, 1
        %v1412 = vor.u32 %v1407, %v1411
        %v1413 = vshll.u32 %v1258, 16
        %v1415 = vrot.slane %v1413, 1
        %v1416 = vsel %vm1263, %v1412, %v1415
        %v1417 = vshrl.u32 %v1258, 16
        %v1419 = vor.u32 %v1417, %v1415
        %v1420 = vshrl.u32 %v1240, 16
        %v1422 = vshll.u32 %v1240, 16
        %v1424 = vrot.slane %v1422, 1
        %v1425 = vor.u32 %v1420, %v1424
        %v1426 = vshll.u32 %v1259, 16
        %v1428 = vrot.slane %v1426, 1
        %v1429 = vsel %vm1263, %v1425, %v1428
        %v1430 = vshrl.u32 %v1259, 16
        %v1432 = vor.u32 %v1430, %v1428
        %v1433 = vshrl.u32 %v1242, 16
        %v1435 = vshll.u32 %v1242, 16
        %v1437 = vrot.slane %v1435, 1
        %v1438 = vor.u32 %v1433, %v1437
        %v1439 = vshll.u32 %v1260, 16
        %v1441 = vrot.slane %v1439, 1
        %v1442 = vsel %vm1263, %v1438, %v1441
        %v1443 = vshrl.u32 %v1260, 16
        %v1445 = vor.u32 %v1443, %v1441
        %v1446 = vshrl.u32 %v1244, 16
        %v1448 = vshll.u32 %v1244, 16
        %v1450 = vrot.slane %v1448, 1
        %v1451 = vor.u32 %v1446, %v1450
        %v1452 = vshll.u32 %v1261, 16
        %v1454 = vrot.slane %v1452, 1
        %v1455 = vsel %vm1263, %v1451, %v1454
        %v1456 = vshrl.u32 %v1261, 16
        %v1458 = vor.u32 %v1456, %v1454
        %v1459 = vshrl.u32 %v1246, 16
        %v1461 = vshll.u32 %v1246, 16
        %v1463 = vrot.slane %v1461, 1
        %v1464 = vor.u32 %v1459, %v1463
        %v1465 = vshll.u32 %v1262, 16
        %v1467 = vrot.slane %v1465, 1
        %v1468 = vsel %vm1263, %v1464, %v1467
        %v1469 = vshrl.u32 %v1262, 16
        %v1471 = vor.u32 %v1469, %v1467
        %1472 = vrot.lane.b32.xlu0 %v1273, 8
        %v1473 = vpop.permute.xlu0 %1472
        %1474 = vrot.lane.b32.xlu0 %v1276, 8
        %v1475 = vpop.permute.xlu0 %1474
        %1476 = vrot.lane.b32.xlu0 %v1286, 8
        %v1477 = vpop.permute.xlu0 %1476
        %1478 = vrot.lane.b32.xlu0 %v1289, 8
        %v1479 = vpop.permute.xlu0 %1478
        %1480 = vrot.lane.b32.xlu0 %v1299, 8
        %v1481 = vpop.permute.xlu0 %1480
        %1482 = vrot.lane.b32.xlu0 %v1302, 8
        %v1483 = vpop.permute.xlu0 %1482
        %1484 = vrot.lane.b32.xlu0 %v1312, 8
        %v1485 = vpop.permute.xlu0 %1484
        %1486 = vrot.lane.b32.xlu0 %v1315, 8
        %v1487 = vpop.permute.xlu0 %1486
        %1488 = vrot.lane.b32.xlu0 %v1325, 8
        %v1489 = vpop.permute.xlu0 %1488
        %1490 = vrot.lane.b32.xlu0 %v1328, 8
        %v1491 = vpop.permute.xlu0 %1490
        %1492 = vrot.lane.b32.xlu0 %v1338, 8
        %v1493 = vpop.permute.xlu0 %1492
        %1494 = vrot.lane.b32.xlu0 %v1341, 8
        %v1495 = vpop.permute.xlu0 %1494
        %1496 = vrot.lane.b32.xlu0 %v1351, 8
        %v1497 = vpop.permute.xlu0 %1496
        %1498 = vrot.lane.b32.xlu0 %v1354, 8
        %v1499 = vpop.permute.xlu0 %1498
        %1500 = vrot.lane.b32.xlu0 %v1364, 8
        %v1501 = vpop.permute.xlu0 %1500
        %1502 = vrot.lane.b32.xlu0 %v1367, 8
        %v1503 = vpop.permute.xlu0 %1502
        %1504 = vrot.lane.b32.xlu0 %v1377, 8
        %v1505 = vpop.permute.xlu0 %1504
        %1506 = vrot.lane.b32.xlu0 %v1380, 8
        %v1507 = vpop.permute.xlu0 %1506
        %1508 = vrot.lane.b32.xlu0 %v1390, 8
        %v1509 = vpop.permute.xlu0 %1508
        %1510 = vrot.lane.b32.xlu0 %v1393, 8
        %v1511 = vpop.permute.xlu0 %1510
        %1512 = vrot.lane.b32.xlu0 %v1403, 8
        %v1513 = vpop.permute.xlu0 %1512
        %1514 = vrot.lane.b32.xlu0 %v1406, 8
        %v1515 = vpop.permute.xlu0 %1514
        %1516 = vrot.lane.b32.xlu0 %v1416, 8
        %v1517 = vpop.permute.xlu0 %1516
        %1518 = vrot.lane.b32.xlu0 %v1419, 8
        %v1519 = vpop.permute.xlu0 %1518
        %1520 = vrot.lane.b32.xlu0 %v1429, 8
        %v1521 = vpop.permute.xlu0 %1520
        %1522 = vrot.lane.b32.xlu0 %v1432, 8
        %v1523 = vpop.permute.xlu0 %1522
        %1524 = vrot.lane.b32.xlu0 %v1442, 8
        %v1525 = vpop.permute.xlu0 %1524
        %1526 = vrot.lane.b32.xlu0 %v1445, 8
        %v1527 = vpop.permute.xlu0 %1526
        %1528 = vrot.lane.b32.xlu0 %v1455, 8
        %v1529 = vpop.permute.xlu0 %1528
        %1530 = vrot.lane.b32.xlu0 %v1458, 8
        %v1531 = vpop.permute.xlu0 %1530
        %1532 = vrot.lane.b32.xlu0 %v1468, 8
        %v1533 = vpop.permute.xlu0 %1532
        %1534 = vrot.lane.b32.xlu0 %v1471, 8
        %v1535 = vpop.permute.xlu0 %1534
        %vm1568 = vcmask 1046528
        %v1569 = vrot.slane %v1216, 1
        %v1570 = vrot.slane %v1247, 1
        %v1571 = vsel %vm1568, %v1569, %v1570
        %v1572 = vrot.slane %v1218, 1
        %v1573 = vrot.slane %v1248, 1
        %v1574 = vsel %vm1568, %v1572, %v1573
        %v1575 = vrot.slane %v1220, 1
        %v1576 = vrot.slane %v1249, 1
        %v1577 = vsel %vm1568, %v1575, %v1576
        %v1578 = vrot.slane %v1222, 1
        %v1579 = vrot.slane %v1250, 1
        %v1580 = vsel %vm1568, %v1578, %v1579
        %v1581 = vrot.slane %v1224, 1
        %v1582 = vrot.slane %v1251, 1
        %v1583 = vsel %vm1568, %v1581, %v1582
        %v1584 = vrot.slane %v1226, 1
        %v1585 = vrot.slane %v1252, 1
        %v1586 = vsel %vm1568, %v1584, %v1585
        %v1587 = vrot.slane %v1228, 1
        %v1588 = vrot.slane %v1253, 1
        %v1589 = vsel %vm1568, %v1587, %v1588
        %v1590 = vrot.slane %v1230, 1
        %v1591 = vrot.slane %v1254, 1
        %v1592 = vsel %vm1568, %v1590, %v1591
        %v1593 = vrot.slane %v1232, 1
        %v1594 = vrot.slane %v1255, 1
        %v1595 = vsel %vm1568, %v1593, %v1594
        %v1596 = vrot.slane %v1234, 1
        %v1597 = vrot.slane %v1256, 1
        %v1598 = vsel %vm1568, %v1596, %v1597
        %v1599 = vrot.slane %v1236, 1
        %v1600 = vrot.slane %v1257, 1
        %v1601 = vsel %vm1568, %v1599, %v1600
        %v1602 = vrot.slane %v1238, 1
        %v1603 = vrot.slane %v1258, 1
        %v1604 = vsel %vm1568, %v1602, %v1603
        %v1605 = vrot.slane %v1240, 1
        %v1606 = vrot.slane %v1259, 1
        %v1607 = vsel %vm1568, %v1605, %v1606
        %v1608 = vrot.slane %v1242, 1
        %v1609 = vrot.slane %v1260, 1
        %v1610 = vsel %vm1568, %v1608, %v1609
        %v1611 = vrot.slane %v1244, 1
        %v1612 = vrot.slane %v1261, 1
        %v1613 = vsel %vm1568, %v1611, %v1612
        %v1614 = vrot.slane %v1246, 1
        %v1615 = vrot.slane %v1262, 1
        %v1616 = vsel %vm1568, %v1614, %v1615
        %1617 = vrot.lane.b32.xlu0 %v1571, 16
        %v1618 = vpop.permute.xlu0 %1617
        %1619 = vrot.lane.b32.xlu0 %v1570, 16
        %v1620 = vpop.permute.xlu0 %1619
        %1621 = vrot.lane.b32.xlu0 %v1574, 16
        %v1622 = vpop.permute.xlu0 %1621
        %1623 = vrot.lane.b32.xlu0 %v1573, 16
        %v1624 = vpop.permute.xlu0 %1623
        %1625 = vrot.lane.b32.xlu0 %v1577, 16
        %v1626 = vpop.permute.xlu0 %1625
        %1627 = vrot.lane.b32.xlu0 %v1576, 16
        %v1628 = vpop.permute.xlu0 %1627
        %1629 = vrot.lane.b32.xlu0 %v1580, 16
        %v1630 = vpop.permute.xlu0 %1629
        %1631 = vrot.lane.b32.xlu0 %v1579, 16
        %v1632 = vpop.permute.xlu0 %1631
        %1633 = vrot.lane.b32.xlu0 %v1583, 16
        %v1634 = vpop.permute.xlu0 %1633
        %1635 = vrot.lane.b32.xlu0 %v1582, 16
        %v1636 = vpop.permute.xlu0 %1635
        %1637 = vrot.lane.b32.xlu0 %v1586, 16
        %v1638 = vpop.permute.xlu0 %1637
        %1639 = vrot.lane.b32.xlu0 %v1585, 16
        %v1640 = vpop.permute.xlu0 %1639
        %1641 = vrot.lane.b32.xlu0 %v1589, 16
        %v1642 = vpop.permute.xlu0 %1641
        %1643 = vrot.lane.b32.xlu0 %v1588, 16
        %v1644 = vpop.permute.xlu0 %1643
        %1645 = vrot.lane.b32.xlu0 %v1592, 16
        %v1646 = vpop.permute.xlu0 %1645
        %1647 = vrot.lane.b32.xlu0 %v1591, 16
        %v1648 = vpop.permute.xlu0 %1647
        %1649 = vrot.lane.b32.xlu0 %v1595, 16
        %v1650 = vpop.permute.xlu0 %1649
        %1651 = vrot.lane.b32.xlu0 %v1594, 16
        %v1652 = vpop.permute.xlu0 %1651
        %1653 = vrot.lane.b32.xlu0 %v1598, 16
        %v1654 = vpop.permute.xlu0 %1653
        %1655 = vrot.lane.b32.xlu0 %v1597, 16
        %v1656 = vpop.permute.xlu0 %1655
        %1657 = vrot.lane.b32.xlu0 %v1601, 16
        %v1658 = vpop.permute.xlu0 %1657
        %1659 = vrot.lane.b32.xlu0 %v1600, 16
        %v1660 = vpop.permute.xlu0 %1659
        %1661 = vrot.lane.b32.xlu0 %v1604, 16
        %v1662 = vpop.permute.xlu0 %1661
        %1663 = vrot.lane.b32.xlu0 %v1603, 16
        %v1664 = vpop.permute.xlu0 %1663
        %1665 = vrot.lane.b32.xlu0 %v1607, 16
        %v1666 = vpop.permute.xlu0 %1665
        %1667 = vrot.lane.b32.xlu0 %v1606, 16
        %v1668 = vpop.permute.xlu0 %1667
        %1669 = vrot.lane.b32.xlu0 %v1610, 16
        %v1670 = vpop.permute.xlu0 %1669
        %1671 = vrot.lane.b32.xlu0 %v1609, 16
        %v1672 = vpop.permute.xlu0 %1671
        %1673 = vrot.lane.b32.xlu0 %v1613, 16
        %v1674 = vpop.permute.xlu0 %1673
        %1675 = vrot.lane.b32.xlu0 %v1612, 16
        %v1676 = vpop.permute.xlu0 %1675
        %1677 = vrot.lane.b32.xlu0 %v1616, 16
        %v1678 = vpop.permute.xlu0 %1677
        %1679 = vrot.lane.b32.xlu0 %v1615, 16
        %v1680 = vpop.permute.xlu0 %1679
        %vm1681 = vcmask 64512
        %v1683 = vsel %vm1681, %v1216, %v1473
        %v1685 = vsel %vm1681, %v1247, %v1475
        %v1687 = vsel %vm1681, %v1218, %v1477
        %v1689 = vsel %vm1681, %v1248, %v1479
        %v1691 = vsel %vm1681, %v1220, %v1481
        %v1693 = vsel %vm1681, %v1249, %v1483
        %v1695 = vsel %vm1681, %v1222, %v1485
        %v1697 = vsel %vm1681, %v1250, %v1487
        %v1699 = vsel %vm1681, %v1224, %v1489
        %v1701 = vsel %vm1681, %v1251, %v1491
        %v1703 = vsel %vm1681, %v1226, %v1493
        %v1705 = vsel %vm1681, %v1252, %v1495
        %v1707 = vsel %vm1681, %v1228, %v1497
        %v1709 = vsel %vm1681, %v1253, %v1499
        %v1711 = vsel %vm1681, %v1230, %v1501
        %v1713 = vsel %vm1681, %v1254, %v1503
        %v1715 = vsel %vm1681, %v1232, %v1505
        %v1717 = vsel %vm1681, %v1255, %v1507
        %v1719 = vsel %vm1681, %v1234, %v1509
        %v1721 = vsel %vm1681, %v1256, %v1511
        %v1723 = vsel %vm1681, %v1236, %v1513
        %v1725 = vsel %vm1681, %v1257, %v1515
        %v1727 = vsel %vm1681, %v1238, %v1517
        %v1729 = vsel %vm1681, %v1258, %v1519
        %v1731 = vsel %vm1681, %v1240, %v1521
        %v1733 = vsel %vm1681, %v1259, %v1523
        %v1735 = vsel %vm1681, %v1242, %v1525
        %v1737 = vsel %vm1681, %v1260, %v1527
        %v1739 = vsel %vm1681, %v1244, %v1529
        %v1741 = vsel %vm1681, %v1261, %v1531
        %v1743 = vsel %vm1681, %v1246, %v1533
        %v1745 = vsel %vm1681, %v1262, %v1535
        %vm1746 = vcmask 130048
        %v1748 = vsel %vm1746, %v1683, %v1618
        %v1750 = vsel %vm1746, %v1685, %v1620
        %v1752 = vsel %vm1746, %v1687, %v1622
        %v1754 = vsel %vm1746, %v1689, %v1624
        %v1756 = vsel %vm1746, %v1691, %v1626
        %v1758 = vsel %vm1746, %v1693, %v1628
        %v1760 = vsel %vm1746, %v1695, %v1630
        %v1762 = vsel %vm1746, %v1697, %v1632
        %v1764 = vsel %vm1746, %v1699, %v1634
        %v1766 = vsel %vm1746, %v1701, %v1636
        %v1768 = vsel %vm1746, %v1703, %v1638
        %v1770 = vsel %vm1746, %v1705, %v1640
        %v1772 = vsel %vm1746, %v1707, %v1642
        %v1774 = vsel %vm1746, %v1709, %v1644
        %v1776 = vsel %vm1746, %v1711, %v1646
        %v1778 = vsel %vm1746, %v1713, %v1648
        %v1780 = vsel %vm1746, %v1715, %v1650
        %v1782 = vsel %vm1746, %v1717, %v1652
        %v1784 = vsel %vm1746, %v1719, %v1654
        %v1786 = vsel %vm1746, %v1721, %v1656
        %v1788 = vsel %vm1746, %v1723, %v1658
        %v1790 = vsel %vm1746, %v1725, %v1660
        %v1792 = vsel %vm1746, %v1727, %v1662
        %v1794 = vsel %vm1746, %v1729, %v1664
        %v1796 = vsel %vm1746, %v1731, %v1666
        %v1798 = vsel %vm1746, %v1733, %v1668
        %v1800 = vsel %vm1746, %v1735, %v1670
        %v1802 = vsel %vm1746, %v1737, %v1672
        %v1804 = vsel %vm1746, %v1739, %v1674
        %v1806 = vsel %vm1746, %v1741, %v1676
        %v1808 = vsel %vm1746, %v1743, %v1678
        %v1810 = vsel %vm1746, %v1745, %v1680
        %vm1811 = vsmask.f32 4352
        %v1812 = vshrl.u32 %v1748, 16
        %v1814 = vrot.slane %v1812, 3
        %v1815 = vshll.u32 %v1748, 16
        %v1817 = vrot.slane %v1815, 4
        %v1818 = vor.u32 %v1814, %v1817
        %v1819 = vshrl.u32 %v1750, 16
        %v1821 = vrot.slane %v1819, 3
        %v1822 = vshll.u32 %v1750, 16
        %v1824 = vrot.slane %v1822, 4
        %v1825 = vor.u32 %v1821, %v1824
        %v1826 = vsel %vm1811, %v1818, %v1825
        %v1827 = vshrl.u32 %v1752, 16
        %v1829 = vrot.slane %v1827, 3
        %v1830 = vshll.u32 %v1752, 16
        %v1832 = vrot.slane %v1830, 4
        %v1833 = vor.u32 %v1829, %v1832
        %v1834 = vshrl.u32 %v1754, 16
        %v1836 = vrot.slane %v1834, 3
        %v1837 = vshll.u32 %v1754, 16
        %v1839 = vrot.slane %v1837, 4
        %v1840 = vor.u32 %v1836, %v1839
        %v1841 = vsel %vm1811, %v1833, %v1840
        %v1842 = vshrl.u32 %v1756, 16
        %v1844 = vrot.slane %v1842, 3
        %v1845 = vshll.u32 %v1756, 16
        %v1847 = vrot.slane %v1845, 4
        %v1848 = vor.u32 %v1844, %v1847
        %v1849 = vshrl.u32 %v1758, 16
        %v1851 = vrot.slane %v1849, 3
        %v1852 = vshll.u32 %v1758, 16
        %v1854 = vrot.slane %v1852, 4
        %v1855 = vor.u32 %v1851, %v1854
        %v1856 = vsel %vm1811, %v1848, %v1855
        %v1857 = vshrl.u32 %v1760, 16
        %v1859 = vrot.slane %v1857, 3
        %v1860 = vshll.u32 %v1760, 16
        %v1862 = vrot.slane %v1860, 4
        %v1863 = vor.u32 %v1859, %v1862
        %v1864 = vshrl.u32 %v1762, 16
        %v1866 = vrot.slane %v1864, 3
        %v1867 = vshll.u32 %v1762, 16
        %v1869 = vrot.slane %v1867, 4
        %v1870 = vor.u32 %v1866, %v1869
        %v1871 = vsel %vm1811, %v1863, %v1870
        %v1872 = vshrl.u32 %v1764, 16
        %v1874 = vrot.slane %v1872, 3
        %v1875 = vshll.u32 %v1764, 16
        %v1877 = vrot.slane %v1875, 4
        %v1878 = vor.u32 %v1874, %v1877
        %v1879 = vshrl.u32 %v1766, 16
        %v1881 = vrot.slane %v1879, 3
        %v1882 = vshll.u32 %v1766, 16
        %v1884 = vrot.slane %v1882, 4
        %v1885 = vor.u32 %v1881, %v1884
        %v1886 = vsel %vm1811, %v1878, %v1885
        %v1887 = vshrl.u32 %v1768, 16
        %v1889 = vrot.slane %v1887, 3
        %v1890 = vshll.u32 %v1768, 16
        %v1892 = vrot.slane %v1890, 4
        %v1893 = vor.u32 %v1889, %v1892
        %v1894 = vshrl.u32 %v1770, 16
        %v1896 = vrot.slane %v1894, 3
        %v1897 = vshll.u32 %v1770, 16
        %v1899 = vrot.slane %v1897, 4
        %v1900 = vor.u32 %v1896, %v1899
        %v1901 = vsel %vm1811, %v1893, %v1900
        %v1902 = vshrl.u32 %v1772, 16
        %v1904 = vrot.slane %v1902, 3
        %v1905 = vshll.u32 %v1772, 16
        %v1907 = vrot.slane %v1905, 4
        %v1908 = vor.u32 %v1904, %v1907
        %v1909 = vshrl.u32 %v1774, 16
        %v1911 = vrot.slane %v1909, 3
        %v1912 = vshll.u32 %v1774, 16
        %v1914 = vrot.slane %v1912, 4
        %v1915 = vor.u32 %v1911, %v1914
        %v1916 = vsel %vm1811, %v1908, %v1915
        %v1917 = vshrl.u32 %v1776, 16
        %v1919 = vrot.slane %v1917, 3
        %v1920 = vshll.u32 %v1776, 16
        %v1922 = vrot.slane %v1920, 4
        %v1923 = vor.u32 %v1919, %v1922
        %v1924 = vshrl.u32 %v1778, 16
        %v1926 = vrot.slane %v1924, 3
        %v1927 = vshll.u32 %v1778, 16
        %v1929 = vrot.slane %v1927, 4
        %v1930 = vor.u32 %v1926, %v1929
        %v1931 = vsel %vm1811, %v1923, %v1930
        %v1932 = vshrl.u32 %v1780, 16
        %v1934 = vrot.slane %v1932, 3
        %v1935 = vshll.u32 %v1780, 16
        %v1937 = vrot.slane %v1935, 4
        %v1938 = vor.u32 %v1934, %v1937
        %v1939 = vshrl.u32 %v1782, 16
        %v1941 = vrot.slane %v1939, 3
        %v1942 = vshll.u32 %v1782, 16
        %v1944 = vrot.slane %v1942, 4
        %v1945 = vor.u32 %v1941, %v1944
        %v1946 = vsel %vm1811, %v1938, %v1945
        %v1947 = vshrl.u32 %v1784, 16
        %v1949 = vrot.slane %v1947, 3
        %v1950 = vshll.u32 %v1784, 16
        %v1952 = vrot.slane %v1950, 4
        %v1953 = vor.u32 %v1949, %v1952
        %v1954 = vshrl.u32 %v1786, 16
        %v1956 = vrot.slane %v1954, 3
        %v1957 = vshll.u32 %v1786, 16
        %v1959 = vrot.slane %v1957, 4
        %v1960 = vor.u32 %v1956, %v1959
        %v1961 = vsel %vm1811, %v1953, %v1960
        %v1962 = vshrl.u32 %v1788, 16
        %v1964 = vrot.slane %v1962, 3
        %v1965 = vshll.u32 %v1788, 16
        %v1967 = vrot.slane %v1965, 4
        %v1968 = vor.u32 %v1964, %v1967
        %v1969 = vshrl.u32 %v1790, 16
        %v1971 = vrot.slane %v1969, 3
        %v1972 = vshll.u32 %v1790, 16
        %v1974 = vrot.slane %v1972, 4
        %v1975 = vor.u32 %v1971, %v1974
        %v1976 = vsel %vm1811, %v1968, %v1975
        %v1977 = vshrl.u32 %v1792, 16
        %v1979 = vrot.slane %v1977, 3
        %v1980 = vshll.u32 %v1792, 16
        %v1982 = vrot.slane %v1980, 4
        %v1983 = vor.u32 %v1979, %v1982
        %v1984 = vshrl.u32 %v1794, 16
        %v1986 = vrot.slane %v1984, 3
        %v1987 = vshll.u32 %v1794, 16
        %v1989 = vrot.slane %v1987, 4
        %v1990 = vor.u32 %v1986, %v1989
        %v1991 = vsel %vm1811, %v1983, %v1990
        %v1992 = vshrl.u32 %v1796, 16
        %v1994 = vrot.slane %v1992, 3
        %v1995 = vshll.u32 %v1796, 16
        %v1997 = vrot.slane %v1995, 4
        %v1998 = vor.u32 %v1994, %v1997
        %v1999 = vshrl.u32 %v1798, 16
        %v2001 = vrot.slane %v1999, 3
        %v2002 = vshll.u32 %v1798, 16
        %v2004 = vrot.slane %v2002, 4
        %v2005 = vor.u32 %v2001, %v2004
        %v2006 = vsel %vm1811, %v1998, %v2005
        %v2007 = vshrl.u32 %v1800, 16
        %v2009 = vrot.slane %v2007, 3
        %v2010 = vshll.u32 %v1800, 16
        %v2012 = vrot.slane %v2010, 4
        %v2013 = vor.u32 %v2009, %v2012
        %v2014 = vshrl.u32 %v1802, 16
        %v2016 = vrot.slane %v2014, 3
        %v2017 = vshll.u32 %v1802, 16
        %v2019 = vrot.slane %v2017, 4
        %v2020 = vor.u32 %v2016, %v2019
        %v2021 = vsel %vm1811, %v2013, %v2020
        %v2022 = vshrl.u32 %v1804, 16
        %v2024 = vrot.slane %v2022, 3
        %v2025 = vshll.u32 %v1804, 16
        %v2027 = vrot.slane %v2025, 4
        %v2028 = vor.u32 %v2024, %v2027
        %v2029 = vshrl.u32 %v1806, 16
        %v2031 = vrot.slane %v2029, 3
        %v2032 = vshll.u32 %v1806, 16
        %v2034 = vrot.slane %v2032, 4
        %v2035 = vor.u32 %v2031, %v2034
        %v2036 = vsel %vm1811, %v2028, %v2035
        %v2037 = vshrl.u32 %v1808, 16
        %v2039 = vrot.slane %v2037, 3
        %v2040 = vshll.u32 %v1808, 16
        %v2042 = vrot.slane %v2040, 4
        %v2043 = vor.u32 %v2039, %v2042
        %v2044 = vshrl.u32 %v1810, 16
        %v2046 = vrot.slane %v2044, 3
        %v2047 = vshll.u32 %v1810, 16
        %v2049 = vrot.slane %v2047, 4
        %v2050 = vor.u32 %v2046, %v2049
        %v2051 = vsel %vm1811, %v2043, %v2050
        %v2052 = vld [vmem:[#allocation8] sm:$0xf]
        %v2053 = vld [vmem:[#allocation8 + $0x4] sm:$0xf]
        %v2054 = vld [vmem:[#allocation8 + $0x8] sm:$0xf]
        %v2058 = vunpack.c.l.b16 %v2052
        %v2059 = vunpack.c.l.b16 %v2053
        %v2060 = vunpack.c.l.b16 %v2054
        %v2061 = vpack.c.b16 %v2059, %v2058
        %v2062 = vpack.c.b16 %v2060, %v2060
        %vm2064 = vcmask 195584
        %v2066 = vsel %vm2064, %v1826, 0
        %v2069 = vsel %vm2064, %v1841, 0
        %v2072 = vsel %vm2064, %v1856, 0
        %v2075 = vsel %vm2064, %v1871, 0
        %v2078 = vsel %vm2064, %v1886, 0
        %v2081 = vsel %vm2064, %v1901, 0
        %v2084 = vsel %vm2064, %v1916, 0
        %v2087 = vsel %vm2064, %v1931, 0
        %v2090 = vsel %vm2064, %v1946, 0
        %v2093 = vsel %vm2064, %v1961, 0
        %v2096 = vsel %vm2064, %v1976, 0
        %v2099 = vsel %vm2064, %v1991, 0
        %v2102 = vsel %vm2064, %v2006, 0
        %v2105 = vsel %vm2064, %v2021, 0
        %v2108 = vsel %vm2064, %v2036, 0
        %v2111 = vsel %vm2064, %v2051, 0
        %v2114 = vsel %vm1213, %v2062, 0
        %2116 = vmatprep.subr.bf16.mxu0 0
        %2117 = vmatpush1.bf16.msra.mxu0 %v2061
        %2118 = vmatprep.subr.bf16.mxu0 0
        %2119 = vmatpush1.bf16.msra.mxu0 %v2114
        %2120 = vmatprep.subr.bf16.mxu0 0
        %2121 = vmatpush1.bf16.msra.mxu0 0
        %2122 = vmatprep.subr.bf16.mxu0 0
        %2123 = vmatpush1.bf16.msra.mxu0 0
        %2124 = vmatprep.subr.bf16.mxu0 0
        %2125 = vmatpush1.bf16.msra.mxu0 0
        %2126 = vmatprep.subr.bf16.mxu0 0
        %2127 = vmatpush1.bf16.msra.mxu0 0
        %2128 = vmatprep.subr.bf16.mxu0 0
        %2129 = vmatpush1.bf16.msra.mxu0 0
        %2130 = vmatprep.subr.bf16.mxu0 0
        %2131 = vmatpush1.bf16.msra.mxu0 0
        %2132 = vmatprep.subr.bf16.mxu0 0
        %2133 = vmatpush1.bf16.msra.mxu0 0
        %2134 = vmatprep.subr.bf16.mxu0 0
        %2135 = vmatpush1.bf16.msra.mxu0 0
        %2136 = vmatprep.subr.bf16.mxu0 0
        %2137 = vmatpush1.bf16.msra.mxu0 0
        %2138 = vmatprep.subr.bf16.mxu0 0
        %2139 = vmatpush1.bf16.msra.mxu0 0
        %2140 = vmatprep.subr.bf16.mxu0 0
        %2141 = vmatpush1.bf16.msra.mxu0 0
        %2142 = vmatprep.subr.bf16.mxu0 0
        %2143 = vmatpush1.bf16.msra.mxu0 0
        %2144 = vmatprep.subr.bf16.mxu0 0
        %2145 = vmatpush1.bf16.msra.mxu0 0
        %2146 = vmatprep.subr.bf16.mxu0 0
        %2147 = vmatpush1.bf16.msra.mxu0 0
        %2148 = vmatprep.mubr.bf16.mxu0 0
        %2149 = vmatmul.mubr.bf16.gmra.mrb[0].mxu0 %v2066
        %v2150 = vpop.f32.mrb[0].mxu0
        %v2151 = vadd.f32 0.0, %v2150
        %v2152 = vpop.f32.mrb[0].mxu0
        %v2153 = vpop.f32.mrb[0].mxu0
        %v2154 = vadd.f32 0.0, %v2153
        %v2155 = vpop.f32.mrb[0].mxu0
        %2156 = vmatprep.mubr.bf16.mxu0 0
        %2157 = vmatmul.mubr.bf16.gmra.mrb[0].mxu0 %v2069
        %v2158 = vpop.f32.mrb[0].mxu0
        %v2159 = vadd.f32 0.0, %v2158
        %v2160 = vpop.f32.mrb[0].mxu0
        %v2161 = vpop.f32.mrb[0].mxu0
        %v2162 = vadd.f32 0.0, %v2161
        %v2163 = vpop.f32.mrb[0].mxu0
        %2164 = vmatprep.mubr.bf16.mxu0 0
        %2165 = vmatmul.mubr.bf16.gmra.mrb[0].mxu0 %v2072
        %v2166 = vpop.f32.mrb[0].mxu0
        %v2167 = vadd.f32 0.0, %v2166
        %v2168 = vpop.f32.mrb[0].mxu0
        %v2169 = vpop.f32.mrb[0].mxu0
        %v2170 = vadd.f32 0.0, %v2169
        %v2171 = vpop.f32.mrb[0].mxu0
        %2172 = vmatprep.mubr.bf16.mxu0 0
        %2173 = vmatmul.mubr.bf16.gmra.mrb[0].mxu0 %v2075
        %v2174 = vpop.f32.mrb[0].mxu0
        %v2175 = vadd.f32 0.0, %v2174
        %v2176 = vpop.f32.mrb[0].mxu0
        %v2177 = vpop.f32.mrb[0].mxu0
        %v2178 = vadd.f32 0.0, %v2177
        %v2179 = vpop.f32.mrb[0].mxu0
        %2180 = vmatprep.mubr.bf16.mxu0 0
        %2181 = vmatmul.mubr.bf16.gmra.mrb[0].mxu0 %v2078
        %v2182 = vpop.f32.mrb[0].mxu0
        %v2183 = vadd.f32 0.0, %v2182
        %v2184 = vpop.f32.mrb[0].mxu0
        %v2185 = vpop.f32.mrb[0].mxu0
        %v2186 = vadd.f32 0.0, %v2185
        %v2187 = vpop.f32.mrb[0].mxu0
        %2188 = vmatprep.mubr.bf16.mxu0 0
        %2189 = vmatmul.mubr.bf16.gmra.mrb[0].mxu0 %v2081
        %v2190 = vpop.f32.mrb[0].mxu0
        %v2191 = vadd.f32 0.0, %v2190
        %v2192 = vpop.f32.mrb[0].mxu0
        %v2193 = vpop.f32.mrb[0].mxu0
        %v2194 = vadd.f32 0.0, %v2193
        %v2195 = vpop.f32.mrb[0].mxu0
        %2196 = vmatprep.mubr.bf16.mxu0 0
        %2197 = vmatmul.mubr.bf16.gmra.mrb[0].mxu0 %v2084
        %v2198 = vpop.f32.mrb[0].mxu0
        %v2199 = vadd.f32 0.0, %v2198
        %v2200 = vpop.f32.mrb[0].mxu0
        %v2201 = vpop.f32.mrb[0].mxu0
        %v2202 = vadd.f32 0.0, %v2201
        %v2203 = vpop.f32.mrb[0].mxu0
        %2204 = vmatprep.mubr.bf16.mxu0 0
        %2205 = vmatmul.mubr.bf16.gmra.mrb[0].mxu0 %v2087
        %v2206 = vpop.f32.mrb[0].mxu0
        %v2207 = vadd.f32 0.0, %v2206
        %v2208 = vpop.f32.mrb[0].mxu0
        %v2209 = vpop.f32.mrb[0].mxu0
        %v2210 = vadd.f32 0.0, %v2209
        %v2211 = vpop.f32.mrb[0].mxu0
        %2212 = vmatprep.mubr.bf16.mxu0 0
        %2213 = vmatmul.mubr.bf16.gmra.mrb[0].mxu0 %v2090
        %v2214 = vpop.f32.mrb[0].mxu0
        %v2215 = vadd.f32 0.0, %v2214
        %v2216 = vpop.f32.mrb[0].mxu0
        %v2217 = vpop.f32.mrb[0].mxu0
        %v2218 = vadd.f32 0.0, %v2217
        %v2219 = vpop.f32.mrb[0].mxu0
        %2220 = vmatprep.mubr.bf16.mxu0 0
        %2221 = vmatmul.mubr.bf16.gmra.mrb[0].mxu0 %v2093
        %v2222 = vpop.f32.mrb[0].mxu0
        %v2223 = vadd.f32 0.0, %v2222
        %v2224 = vpop.f32.mrb[0].mxu0
        %v2225 = vpop.f32.mrb[0].mxu0
        %v2226 = vadd.f32 0.0, %v2225
        %v2227 = vpop.f32.mrb[0].mxu0
        %2228 = vmatprep.mubr.bf16.mxu0 0
        %2229 = vmatmul.mubr.bf16.gmra.mrb[0].mxu0 %v2096
        %v2230 = vpop.f32.mrb[0].mxu0
        %v2231 = vadd.f32 0.0, %v2230
        %v2232 = vpop.f32.mrb[0].mxu0
        %v2233 = vpop.f32.mrb[0].mxu0
        %v2234 = vadd.f32 0.0, %v2233
        %v2235 = vpop.f32.mrb[0].mxu0
        %2236 = vmatprep.mubr.bf16.mxu0 0
        %2237 = vmatmul.mubr.bf16.gmra.mrb[0].mxu0 %v2099
        %v2238 = vpop.f32.mrb[0].mxu0
        %v2239 = vadd.f32 0.0, %v2238
        %v2240 = vpop.f32.mrb[0].mxu0
        %v2241 = vpop.f32.mrb[0].mxu0
        %v2242 = vadd.f32 0.0, %v2241
        %v2243 = vpop.f32.mrb[0].mxu0
        %2244 = vmatprep.mubr.bf16.mxu0 0
        %2245 = vmatmul.mubr.bf16.gmra.mrb[0].mxu0 %v2102
        %v2246 = vpop.f32.mrb[0].mxu0
        %v2247 = vadd.f32 0.0, %v2246
        %v2248 = vpop.f32.mrb[0].mxu0
        %v2249 = vpop.f32.mrb[0].mxu0
        %v2250 = vadd.f32 0.0, %v2249
        %v2251 = vpop.f32.mrb[0].mxu0
        %2252 = vmatprep.mubr.bf16.mxu0 0
        %2253 = vmatmul.mubr.bf16.gmra.mrb[0].mxu0 %v2105
        %v2254 = vpop.f32.mrb[0].mxu0
        %v2255 = vadd.f32 0.0, %v2254
        %v2256 = vpop.f32.mrb[0].mxu0
        %v2257 = vpop.f32.mrb[0].mxu0
        %v2258 = vadd.f32 0.0, %v2257
        %v2259 = vpop.f32.mrb[0].mxu0
        %2260 = vmatprep.mubr.bf16.mxu0 0
        %2261 = vmatmul.mubr.bf16.gmra.mrb[0].mxu0 %v2108
        %v2262 = vpop.f32.mrb[0].mxu0
        %v2263 = vadd.f32 0.0, %v2262
        %v2264 = vpop.f32.mrb[0].mxu0
        %v2265 = vpop.f32.mrb[0].mxu0
        %v2266 = vadd.f32 0.0, %v2265
        %v2267 = vpop.f32.mrb[0].mxu0
        %2268 = vmatprep.mubr.bf16.mxu0 0
        %2269 = vmatmul.mubr.bf16.gmra.mrb[0].mxu0 %v2111
        %v2270 = vpop.f32.mrb[0].mxu0
        %v2271 = vadd.f32 0.0, %v2270
        %v2272 = vpop.f32.mrb[0].mxu0
        %v2273 = vpop.f32.mrb[0].mxu0
        %v2274 = vadd.f32 0.0, %v2273
        %v2275 = vpop.f32.mrb[0].mxu0
        %2276 = vdwg.mxu0
        %v2277 = vld [vmem:[#allocation10] sm:$0x1]
        %v2278 = vlaneseq
        %v2279 = vshrl.u32 %v2278, 7
        %v2280 = vsub.s32 0, %v2279
        %v2281 = vrot.slane %v2277, %v2280
        %v2282 = vmul.f32 %v2151, %v2281
        %v2283 = vmul.f32 %v2154, %v2281
        %v2284 = vmul.f32 %v2159, %v2281
        %v2285 = vmul.f32 %v2162, %v2281
        %v2286 = vmul.f32 %v2167, %v2281
        %v2287 = vmul.f32 %v2170, %v2281
        %v2288 = vmul.f32 %v2175, %v2281
        %v2289 = vmul.f32 %v2178, %v2281
        %v2290 = vmul.f32 %v2183, %v2281
        %v2291 = vmul.f32 %v2186, %v2281
        %v2292 = vmul.f32 %v2191, %v2281
        %v2293 = vmul.f32 %v2194, %v2281
        %v2294 = vmul.f32 %v2199, %v2281
        %v2295 = vmul.f32 %v2202, %v2281
        %v2296 = vmul.f32 %v2207, %v2281
        %v2297 = vmul.f32 %v2210, %v2281
        %v2298 = vmul.f32 %v2215, %v2281
        %v2299 = vmul.f32 %v2218, %v2281
        %v2300 = vmul.f32 %v2223, %v2281
        %v2301 = vmul.f32 %v2226, %v2281
        %v2302 = vmul.f32 %v2231, %v2281
        %v2303 = vmul.f32 %v2234, %v2281
        %v2304 = vmul.f32 %v2239, %v2281
        %v2305 = vmul.f32 %v2242, %v2281
        %v2306 = vmul.f32 %v2247, %v2281
        %v2307 = vmul.f32 %v2250, %v2281
        %v2308 = vmul.f32 %v2255, %v2281
        %v2309 = vmul.f32 %v2258, %v2281
        %v2310 = vmul.f32 %v2263, %v2281
        %v2311 = vmul.f32 %v2266, %v2281
        %v2312 = vmul.f32 %v2271, %v2281
        %v2313 = vmul.f32 %v2274, %v2281
        %v2314 = vld [vmem:[#allocation10 + $0x1] sm:$0x1]
        %v2315 = vlaneseq
        %v2316 = vshrl.u32 %v2315, 7
        %v2317 = vsub.s32 0, %v2316
        %v2318 = vrot.slane %v2314, %v2317
        %v2319 = vadd.f32 %v2282, %v2318
        %v2320 = vadd.f32 %v2283, %v2318
        %v2321 = vadd.f32 %v2284, %v2318
        %v2322 = vadd.f32 %v2285, %v2318
        %v2323 = vadd.f32 %v2286, %v2318
        %v2324 = vadd.f32 %v2287, %v2318
        %v2325 = vadd.f32 %v2288, %v2318
        %v2326 = vadd.f32 %v2289, %v2318
        %v2327 = vadd.f32 %v2290, %v2318
        %v2328 = vadd.f32 %v2291, %v2318
        %v2329 = vadd.f32 %v2292, %v2318
        %v2330 = vadd.f32 %v2293, %v2318
        %v2331 = vadd.f32 %v2294, %v2318
        %v2332 = vadd.f32 %v2295, %v2318
        %v2333 = vadd.f32 %v2296, %v2318
        %v2334 = vadd.f32 %v2297, %v2318
        %v2335 = vadd.f32 %v2298, %v2318
        %v2336 = vadd.f32 %v2299, %v2318
        %v2337 = vadd.f32 %v2300, %v2318
        %v2338 = vadd.f32 %v2301, %v2318
        %v2339 = vadd.f32 %v2302, %v2318
        %v2340 = vadd.f32 %v2303, %v2318
        %v2341 = vadd.f32 %v2304, %v2318
        %v2342 = vadd.f32 %v2305, %v2318
        %v2343 = vadd.f32 %v2306, %v2318
        %v2344 = vadd.f32 %v2307, %v2318
        %v2345 = vadd.f32 %v2308, %v2318
        %v2346 = vadd.f32 %v2309, %v2318
        %v2347 = vadd.f32 %v2310, %v2318
        %v2348 = vadd.f32 %v2311, %v2318
        %v2349 = vadd.f32 %v2312, %v2318
        %v2350 = vadd.f32 %v2313, %v2318
        %v2351 = vmax.f32 %v2319, 0.0
        %v2352 = vmax.f32 %v2320, 0.0
        %v2353 = vmax.f32 %v2321, 0.0
        %v2354 = vmax.f32 %v2322, 0.0
        %v2355 = vmax.f32 %v2323, 0.0
        %v2356 = vmax.f32 %v2324, 0.0
        %v2357 = vmax.f32 %v2325, 0.0
        %v2358 = vmax.f32 %v2326, 0.0
        %v2359 = vmax.f32 %v2327, 0.0
        %v2360 = vmax.f32 %v2328, 0.0
        %v2361 = vmax.f32 %v2329, 0.0
        %v2362 = vmax.f32 %v2330, 0.0
        %v2363 = vmax.f32 %v2331, 0.0
        %v2364 = vmax.f32 %v2332, 0.0
        %v2365 = vmax.f32 %v2333, 0.0
        %v2366 = vmax.f32 %v2334, 0.0
        %v2367 = vmax.f32 %v2335, 0.0
        %v2368 = vmax.f32 %v2336, 0.0
        %v2369 = vmax.f32 %v2337, 0.0
        %v2370 = vmax.f32 %v2338, 0.0
        %v2371 = vmax.f32 %v2339, 0.0
        %v2372 = vmax.f32 %v2340, 0.0
        %v2373 = vmax.f32 %v2341, 0.0
        %v2374 = vmax.f32 %v2342, 0.0
        %v2375 = vmax.f32 %v2343, 0.0
        %v2376 = vmax.f32 %v2344, 0.0
        %v2377 = vmax.f32 %v2345, 0.0
        %v2378 = vmax.f32 %v2346, 0.0
        %v2379 = vmax.f32 %v2347, 0.0
        %v2380 = vmax.f32 %v2348, 0.0
        %v2381 = vmax.f32 %v2349, 0.0
        %v2382 = vmax.f32 %v2350, 0.0
        %2383 = vrot.lane.b32.xlu0 %v1133, 120
        %v2384 = vpop.permute.xlu0 %2383
        %2385 = vrot.lane.b32.xlu0 %v1134, 120
        %v2386 = vpop.permute.xlu0 %2385
        %2387 = vrot.lane.b32.xlu0 %v1135, 120
        %v2388 = vpop.permute.xlu0 %2387
        %2389 = vrot.lane.b32.xlu0 %v1136, 120
        %v2390 = vpop.permute.xlu0 %2389
        %2391 = vrot.lane.b32.xlu0 %v1137, 120
        %v2392 = vpop.permute.xlu0 %2391
        %2393 = vrot.lane.b32.xlu0 %v1138, 120
        %v2394 = vpop.permute.xlu0 %2393
        %2395 = vrot.lane.b32.xlu0 %v1139, 120
        %v2396 = vpop.permute.xlu0 %2395
        %2397 = vrot.lane.b32.xlu0 %v1140, 120
        %v2398 = vpop.permute.xlu0 %2397
        %2399 = vrot.lane.b32.xlu0 %v1141, 120
        %v2400 = vpop.permute.xlu0 %2399
        %2401 = vrot.lane.b32.xlu0 %v1142, 120
        %v2402 = vpop.permute.xlu0 %2401
        %2403 = vrot.lane.b32.xlu0 %v1143, 120
        %v2404 = vpop.permute.xlu0 %2403
        %2405 = vrot.lane.b32.xlu0 %v1144, 120
        %v2406 = vpop.permute.xlu0 %2405
        %2407 = vrot.lane.b32.xlu0 %v1145, 120
        %v2408 = vpop.permute.xlu0 %2407
        %2409 = vrot.lane.b32.xlu0 %v1146, 120
        %v2410 = vpop.permute.xlu0 %2409
        %2411 = vrot.lane.b32.xlu0 %v1147, 120
        %v2412 = vpop.permute.xlu0 %2411
        %2413 = vrot.lane.b32.xlu0 %v1148, 120
        %v2414 = vpop.permute.xlu0 %2413
        %2415 = vrot.lane.b32.xlu0 %v2384, 8
        %v2416 = vpop.permute.xlu0 %2415
        %2417 = vrot.lane.b32.xlu0 %v2386, 8
        %v2418 = vpop.permute.xlu0 %2417
        %2419 = vrot.lane.b32.xlu0 %v2388, 8
        %v2420 = vpop.permute.xlu0 %2419
        %2421 = vrot.lane.b32.xlu0 %v2390, 8
        %v2422 = vpop.permute.xlu0 %2421
        %2423 = vrot.lane.b32.xlu0 %v2392, 8
        %v2424 = vpop.permute.xlu0 %2423
        %2425 = vrot.lane.b32.xlu0 %v2394, 8
        %v2426 = vpop.permute.xlu0 %2425
        %2427 = vrot.lane.b32.xlu0 %v2396, 8
        %v2428 = vpop.permute.xlu0 %2427
        %2429 = vrot.lane.b32.xlu0 %v2398, 8
        %v2430 = vpop.permute.xlu0 %2429
        %2431 = vrot.lane.b32.xlu0 %v2400, 8
        %v2432 = vpop.permute.xlu0 %2431
        %2433 = vrot.lane.b32.xlu0 %v2402, 8
        %v2434 = vpop.permute.xlu0 %2433
        %2435 = vrot.lane.b32.xlu0 %v2404, 8
        %v2436 = vpop.permute.xlu0 %2435
        %2437 = vrot.lane.b32.xlu0 %v2406, 8
        %v2438 = vpop.permute.xlu0 %2437
        %2439 = vrot.lane.b32.xlu0 %v2408, 8
        %v2440 = vpop.permute.xlu0 %2439
        %2441 = vrot.lane.b32.xlu0 %v2410, 8
        %v2442 = vpop.permute.xlu0 %2441
        %2443 = vrot.lane.b32.xlu0 %v2412, 8
        %v2444 = vpop.permute.xlu0 %2443
        %2445 = vrot.lane.b32.xlu0 %v2414, 8
        %v2446 = vpop.permute.xlu0 %2445
        %2448 = vrot.lane.b32.xlu0 %v2386, 16
        %v2449 = vpop.permute.xlu0 %2448
        %2450 = vrot.lane.b32.xlu0 %v2388, 16
        %v2451 = vpop.permute.xlu0 %2450
        %2452 = vrot.lane.b32.xlu0 %v2390, 16
        %v2453 = vpop.permute.xlu0 %2452
        %2454 = vrot.lane.b32.xlu0 %v2392, 16
        %v2455 = vpop.permute.xlu0 %2454
        %2456 = vrot.lane.b32.xlu0 %v2394, 16
        %v2457 = vpop.permute.xlu0 %2456
        %2458 = vrot.lane.b32.xlu0 %v2396, 16
        %v2459 = vpop.permute.xlu0 %2458
        %2460 = vrot.lane.b32.xlu0 %v2398, 16
        %v2461 = vpop.permute.xlu0 %2460
        %2462 = vrot.lane.b32.xlu0 %v2400, 16
        %v2463 = vpop.permute.xlu0 %2462
        %2464 = vrot.lane.b32.xlu0 %v2402, 16
        %v2465 = vpop.permute.xlu0 %2464
        %2466 = vrot.lane.b32.xlu0 %v2404, 16
        %v2467 = vpop.permute.xlu0 %2466
        %2468 = vrot.lane.b32.xlu0 %v2406, 16
        %v2469 = vpop.permute.xlu0 %2468
        %2470 = vrot.lane.b32.xlu0 %v2408, 16
        %v2471 = vpop.permute.xlu0 %2470
        %2472 = vrot.lane.b32.xlu0 %v2410, 16
        %v2473 = vpop.permute.xlu0 %2472
        %2474 = vrot.lane.b32.xlu0 %v2412, 16
        %v2475 = vpop.permute.xlu0 %2474
        %2476 = vrot.lane.b32.xlu0 %v2414, 16
        %v2477 = vpop.permute.xlu0 %2476
        %2478 = vrot.lane.b32.xlu0 0, 16
        %v2479 = vpop.permute.xlu0 %2478
        %v2481 = vsel %vm1681, 0, %v2416
        %v2484 = vsel %vm1681, %v2384, %v2418
        %v2487 = vsel %vm1681, %v2386, %v2420
        %v2490 = vsel %vm1681, %v2388, %v2422
        %v2493 = vsel %vm1681, %v2390, %v2424
        %v2496 = vsel %vm1681, %v2392, %v2426
        %v2499 = vsel %vm1681, %v2394, %v2428
        %v2502 = vsel %vm1681, %v2396, %v2430
        %v2505 = vsel %vm1681, %v2398, %v2432
        %v2508 = vsel %vm1681, %v2400, %v2434
        %v2511 = vsel %vm1681, %v2402, %v2436
        %v2514 = vsel %vm1681, %v2404, %v2438
        %v2517 = vsel %vm1681, %v2406, %v2440
        %v2520 = vsel %vm1681, %v2408, %v2442
        %v2523 = vsel %vm1681, %v2410, %v2444
        %v2526 = vsel %vm1681, %v2412, %v2446
        %v2528 = vsel %vm1746, %v2481, %v2449
        %v2530 = vsel %vm1746, %v2484, %v2451
        %v2532 = vsel %vm1746, %v2487, %v2453
        %v2534 = vsel %vm1746, %v2490, %v2455
        %v2536 = vsel %vm1746, %v2493, %v2457
        %v2538 = vsel %vm1746, %v2496, %v2459
        %v2540 = vsel %vm1746, %v2499, %v2461
        %v2542 = vsel %vm1746, %v2502, %v2463
        %v2544 = vsel %vm1746, %v2505, %v2465
        %v2546 = vsel %vm1746, %v2508, %v2467
        %v2548 = vsel %vm1746, %v2511, %v2469
        %v2550 = vsel %vm1746, %v2514, %v2471
        %v2552 = vsel %vm1746, %v2517, %v2473
        %v2554 = vsel %vm1746, %v2520, %v2475
        %v2556 = vsel %vm1746, %v2523, %v2477
        %v2558 = vsel %vm1746, %v2526, %v2479
        %v2559 = vld [vmem:[#allocation11] sm:$0xf]
        %v2560 = vld [vmem:[#allocation11 + $0x4] sm:$0xf]
        %v2561 = vld [vmem:[#allocation11 + $0x8] sm:$0xf]
        %v2565 = vunpack.c.l.b16 %v2559
        %v2566 = vunpack.c.l.b16 %v2560
        %v2567 = vunpack.c.l.b16 %v2561
        %v2568 = vpack.c.b16 %v2566, %v2565
        %v2569 = vpack.c.b16 %v2567, %v2567
        %v2571 = vsel %vm2064, %v2528, 0
        %v2573 = vsel %vm2064, %v2530, 0
        %v2575 = vsel %vm2064, %v2532, 0
        %v2577 = vsel %vm2064, %v2534, 0
        %v2579 = vsel %vm2064, %v2536, 0
        %v2581 = vsel %vm2064, %v2538, 0
        %v2583 = vsel %vm2064, %v2540, 0
        %v2585 = vsel %vm2064, %v2542, 0
        %v2587 = vsel %vm2064, %v2544, 0
        %v2589 = vsel %vm2064, %v2546, 0
        %v2591 = vsel %vm2064, %v2548, 0
        %v2593 = vsel %vm2064, %v2550, 0
        %v2595 = vsel %vm2064, %v2552, 0
        %v2597 = vsel %vm2064, %v2554, 0
        %v2599 = vsel %vm2064, %v2556, 0
        %v2601 = vsel %vm2064, %v2558, 0
        %v2604 = vsel %vm1213, %v2569, 0
        %2606 = vmatprep.subr.bf16.mxu0 0
        %2607 = vmatpush1.bf16.msra.mxu0 %v2568
        %2608 = vmatprep.subr.bf16.mxu0 0
        %2609 = vmatpush1.bf16.msra.mxu0 %v2604
        %2610 = vmatprep.subr.bf16.mxu0 0
        %2611 = vmatpush1.bf16.msra.mxu0 0
        %2612 = vmatprep.subr.bf16.mxu0 0
        %2613 = vmatpush1.bf16.msra.mxu0 0
        %2614 = vmatprep.subr.bf16.mxu0 0
        %2615 = vmatpush1.bf16.msra.mxu0 0
        %2616 = vmatprep.subr.bf16.mxu0 0
        %2617 = vmatpush1.bf16.msra.mxu0 0
        %2618 = vmatprep.subr.bf16.mxu0 0
        %2619 = vmatpush1.bf16.msra.mxu0 0
        %2620 = vmatprep.subr.bf16.mxu0 0
        %2621 = vmatpush1.bf16.msra.mxu0 0
        %2622 = vmatprep.subr.bf16.mxu0 0
        %2623 = vmatpush1.bf16.msra.mxu0 0
        %2624 = vmatprep.subr.bf16.mxu0 0
        %2625 = vmatpush1.bf16.msra.mxu0 0
        %2626 = vmatprep.subr.bf16.mxu0 0
        %2627 = vmatpush1.bf16.msra.mxu0 0
        %2628 = vmatprep.subr.bf16.mxu0 0
        %2629 = vmatpush1.bf16.msra.mxu0 0
        %2630 = vmatprep.subr.bf16.mxu0 0
        %2631 = vmatpush1.bf16.msra.mxu0 0
        %2632 = vmatprep.subr.bf16.mxu0 0
        %2633 = vmatpush1.bf16.msra.mxu0 0
        %2634 = vmatprep.subr.bf16.mxu0 0
        %2635 = vmatpush1.bf16.msra.mxu0 0
        %2636 = vmatprep.subr.bf16.mxu0 0
        %2637 = vmatpush1.bf16.msra.mxu0 0
        %2638 = vmatprep.mubr.bf16.mxu0 0
        %2639 = vmatmul.mubr.bf16.gmra.mrb[0].mxu0 %v2571
        %v2640 = vpop.f32.mrb[0].mxu0
        %v2641 = vadd.f32 0.0, %v2640
        %v2642 = vpop.f32.mrb[0].mxu0
        %v2643 = vpop.f32.mrb[0].mxu0
        %v2644 = vadd.f32 0.0, %v2643
        %v2645 = vpop.f32.mrb[0].mxu0
        %2646 = vmatprep.mubr.bf16.mxu0 0
        %2647 = vmatmul.mubr.bf16.gmra.mrb[0].mxu0 %v2573
        %v2648 = vpop.f32.mrb[0].mxu0
        %v2649 = vadd.f32 0.0, %v2648
        %v2650 = vpop.f32.mrb[0].mxu0
        %v2651 = vpop.f32.mrb[0].mxu0
        %v2652 = vadd.f32 0.0, %v2651
        %v2653 = vpop.f32.mrb[0].mxu0
        %2654 = vmatprep.mubr.bf16.mxu0 0
        %2655 = vmatmul.mubr.bf16.gmra.mrb[0].mxu0 %v2575
        %v2656 = vpop.f32.mrb[0].mxu0
        %v2657 = vadd.f32 0.0, %v2656
        %v2658 = vpop.f32.mrb[0].mxu0
        %v2659 = vpop.f32.mrb[0].mxu0
        %v2660 = vadd.f32 0.0, %v2659
        %v2661 = vpop.f32.mrb[0].mxu0
        %2662 = vmatprep.mubr.bf16.mxu0 0
        %2663 = vmatmul.mubr.bf16.gmra.mrb[0].mxu0 %v2577
        %v2664 = vpop.f32.mrb[0].mxu0
        %v2665 = vadd.f32 0.0, %v2664
        %v2666 = vpop.f32.mrb[0].mxu0
        %v2667 = vpop.f32.mrb[0].mxu0
        %v2668 = vadd.f32 0.0, %v2667
        %v2669 = vpop.f32.mrb[0].mxu0
        %2670 = vmatprep.mubr.bf16.mxu0 0
        %2671 = vmatmul.mubr.bf16.gmra.mrb[0].mxu0 %v2579
        %v2672 = vpop.f32.mrb[0].mxu0
        %v2673 = vadd.f32 0.0, %v2672
        %v2674 = vpop.f32.mrb[0].mxu0
        %v2675 = vpop.f32.mrb[0].mxu0
        %v2676 = vadd.f32 0.0, %v2675
        %v2677 = vpop.f32.mrb[0].mxu0
        %2678 = vmatprep.mubr.bf16.mxu0 0
        %2679 = vmatmul.mubr.bf16.gmra.mrb[0].mxu0 %v2581
        %v2680 = vpop.f32.mrb[0].mxu0
        %v2681 = vadd.f32 0.0, %v2680
        %v2682 = vpop.f32.mrb[0].mxu0
        %v2683 = vpop.f32.mrb[0].mxu0
        %v2684 = vadd.f32 0.0, %v2683
        %v2685 = vpop.f32.mrb[0].mxu0
        %2686 = vmatprep.mubr.bf16.mxu0 0
        %2687 = vmatmul.mubr.bf16.gmra.mrb[0].mxu0 %v2583
        %v2688 = vpop.f32.mrb[0].mxu0
        %v2689 = vadd.f32 0.0, %v2688
        %v2690 = vpop.f32.mrb[0].mxu0
        %v2691 = vpop.f32.mrb[0].mxu0
        %v2692 = vadd.f32 0.0, %v2691
        %v2693 = vpop.f32.mrb[0].mxu0
        %2694 = vmatprep.mubr.bf16.mxu0 0
        %2695 = vmatmul.mubr.bf16.gmra.mrb[0].mxu0 %v2585
        %v2696 = vpop.f32.mrb[0].mxu0
        %v2697 = vadd.f32 0.0, %v2696
        %v2698 = vpop.f32.mrb[0].mxu0
        %v2699 = vpop.f32.mrb[0].mxu0
        %v2700 = vadd.f32 0.0, %v2699
        %v2701 = vpop.f32.mrb[0].mxu0
        %2702 = vmatprep.mubr.bf16.mxu0 0
        %2703 = vmatmul.mubr.bf16.gmra.mrb[0].mxu0 %v2587
        %v2704 = vpop.f32.mrb[0].mxu0
        %v2705 = vadd.f32 0.0, %v2704
        %v2706 = vpop.f32.mrb[0].mxu0
        %v2707 = vpop.f32.mrb[0].mxu0
        %v2708 = vadd.f32 0.0, %v2707
        %v2709 = vpop.f32.mrb[0].mxu0
        %2710 = vmatprep.mubr.bf16.mxu0 0
        %2711 = vmatmul.mubr.bf16.gmra.mrb[0].mxu0 %v2589
        %v2712 = vpop.f32.mrb[0].mxu0
        %v2713 = vadd.f32 0.0, %v2712
        %v2714 = vpop.f32.mrb[0].mxu0
        %v2715 = vpop.f32.mrb[0].mxu0
        %v2716 = vadd.f32 0.0, %v2715
        %v2717 = vpop.f32.mrb[0].mxu0
        %2718 = vmatprep.mubr.bf16.mxu0 0
        %2719 = vmatmul.mubr.bf16.gmra.mrb[0].mxu0 %v2591
        %v2720 = vpop.f32.mrb[0].mxu0
        %v2721 = vadd.f32 0.0, %v2720
        %v2722 = vpop.f32.mrb[0].mxu0
        %v2723 = vpop.f32.mrb[0].mxu0
        %v2724 = vadd.f32 0.0, %v2723
        %v2725 = vpop.f32.mrb[0].mxu0
        %2726 = vmatprep.mubr.bf16.mxu0 0
        %2727 = vmatmul.mubr.bf16.gmra.mrb[0].mxu0 %v2593
        %v2728 = vpop.f32.mrb[0].mxu0
        %v2729 = vadd.f32 0.0, %v2728
        %v2730 = vpop.f32.mrb[0].mxu0
        %v2731 = vpop.f32.mrb[0].mxu0
        %v2732 = vadd.f32 0.0, %v2731
        %v2733 = vpop.f32.mrb[0].mxu0
        %2734 = vmatprep.mubr.bf16.mxu0 0
        %2735 = vmatmul.mubr.bf16.gmra.mrb[0].mxu0 %v2595
        %v2736 = vpop.f32.mrb[0].mxu0
        %v2737 = vadd.f32 0.0, %v2736
        %v2738 = vpop.f32.mrb[0].mxu0
        %v2739 = vpop.f32.mrb[0].mxu0
        %v2740 = vadd.f32 0.0, %v2739
        %v2741 = vpop.f32.mrb[0].mxu0
        %2742 = vmatprep.mubr.bf16.mxu0 0
        %2743 = vmatmul.mubr.bf16.gmra.mrb[0].mxu0 %v2597
        %v2744 = vpop.f32.mrb[0].mxu0
        %v2745 = vadd.f32 0.0, %v2744
        %v2746 = vpop.f32.mrb[0].mxu0
        %v2747 = vpop.f32.mrb[0].mxu0
        %v2748 = vadd.f32 0.0, %v2747
        %v2749 = vpop.f32.mrb[0].mxu0
        %2750 = vmatprep.mubr.bf16.mxu0 0
        %2751 = vmatmul.mubr.bf16.gmra.mrb[0].mxu0 %v2599
        %v2752 = vpop.f32.mrb[0].mxu0
        %v2753 = vadd.f32 0.0, %v2752
        %v2754 = vpop.f32.mrb[0].mxu0
        %v2755 = vpop.f32.mrb[0].mxu0
        %v2756 = vadd.f32 0.0, %v2755
        %v2757 = vpop.f32.mrb[0].mxu0
        %2758 = vmatprep.mubr.bf16.mxu0 0
        %2759 = vmatmul.mubr.bf16.gmra.mrb[0].mxu0 %v2601
        %v2760 = vpop.f32.mrb[0].mxu0
        %v2761 = vadd.f32 0.0, %v2760
        %v2762 = vpop.f32.mrb[0].mxu0
        %v2763 = vpop.f32.mrb[0].mxu0
        %v2764 = vadd.f32 0.0, %v2763
        %v2765 = vpop.f32.mrb[0].mxu0
        %2766 = vdwg.mxu0
        %v2767 = vld [vmem:[#allocation13] sm:$0x1]
        %v2768 = vlaneseq
        %v2769 = vshrl.u32 %v2768, 7
        %v2770 = vsub.s32 0, %v2769
        %v2771 = vrot.slane %v2767, %v2770
        %v2772 = vmul.f32 %v2641, %v2771
        %v2773 = vmul.f32 %v2644, %v2771
        %v2774 = vmul.f32 %v2649, %v2771
        %v2775 = vmul.f32 %v2652, %v2771
        %v2776 = vmul.f32 %v2657, %v2771
        %v2777 = vmul.f32 %v2660, %v2771
        %v2778 = vmul.f32 %v2665, %v2771
        %v2779 = vmul.f32 %v2668, %v2771
        %v2780 = vmul.f32 %v2673, %v2771
        %v2781 = vmul.f32 %v2676, %v2771
        %v2782 = vmul.f32 %v2681, %v2771
        %v2783 = vmul.f32 %v2684, %v2771
        %v2784 = vmul.f32 %v2689, %v2771
        %v2785 = vmul.f32 %v2692, %v2771
        %v2786 = vmul.f32 %v2697, %v2771
        %v2787 = vmul.f32 %v2700, %v2771
        %v2788 = vmul.f32 %v2705, %v2771
        %v2789 = vmul.f32 %v2708, %v2771
        %v2790 = vmul.f32 %v2713, %v2771
        %v2791 = vmul.f32 %v2716, %v2771
        %v2792 = vmul.f32 %v2721, %v2771
        %v2793 = vmul.f32 %v2724, %v2771
        %v2794 = vmul.f32 %v2729, %v2771
        %v2795 = vmul.f32 %v2732, %v2771
        %v2796 = vmul.f32 %v2737, %v2771
        %v2797 = vmul.f32 %v2740, %v2771
        %v2798 = vmul.f32 %v2745, %v2771
        %v2799 = vmul.f32 %v2748, %v2771
        %v2800 = vmul.f32 %v2753, %v2771
        %v2801 = vmul.f32 %v2756, %v2771
        %v2802 = vmul.f32 %v2761, %v2771
        %v2803 = vmul.f32 %v2764, %v2771
        %v2804 = vld [vmem:[#allocation13 + $0x1] sm:$0x1]
        %v2805 = vlaneseq
        %v2806 = vshrl.u32 %v2805, 7
        %v2807 = vsub.s32 0, %v2806
        %v2808 = vrot.slane %v2804, %v2807
        %v2809 = vadd.f32 %v2772, %v2808
        %v2810 = vadd.f32 %v2773, %v2808
        %v2811 = vadd.f32 %v2774, %v2808
        %v2812 = vadd.f32 %v2775, %v2808
        %v2813 = vadd.f32 %v2776, %v2808
        %v2814 = vadd.f32 %v2777, %v2808
        %v2815 = vadd.f32 %v2778, %v2808
        %v2816 = vadd.f32 %v2779, %v2808
        %v2817 = vadd.f32 %v2780, %v2808
        %v2818 = vadd.f32 %v2781, %v2808
        %v2819 = vadd.f32 %v2782, %v2808
        %v2820 = vadd.f32 %v2783, %v2808
        %v2821 = vadd.f32 %v2784, %v2808
        %v2822 = vadd.f32 %v2785, %v2808
        %v2823 = vadd.f32 %v2786, %v2808
        %v2824 = vadd.f32 %v2787, %v2808
        %v2825 = vadd.f32 %v2788, %v2808
        %v2826 = vadd.f32 %v2789, %v2808
        %v2827 = vadd.f32 %v2790, %v2808
        %v2828 = vadd.f32 %v2791, %v2808
        %v2829 = vadd.f32 %v2792, %v2808
        %v2830 = vadd.f32 %v2793, %v2808
        %v2831 = vadd.f32 %v2794, %v2808
        %v2832 = vadd.f32 %v2795, %v2808
        %v2833 = vadd.f32 %v2796, %v2808
        %v2834 = vadd.f32 %v2797, %v2808
        %v2835 = vadd.f32 %v2798, %v2808
        %v2836 = vadd.f32 %v2799, %v2808
        %v2837 = vadd.f32 %v2800, %v2808
        %v2838 = vadd.f32 %v2801, %v2808
        %v2839 = vadd.f32 %v2802, %v2808
        %v2840 = vadd.f32 %v2803, %v2808
        %v2841 = vmax.f32 %v2809, 0.0
        %v2842 = vmax.f32 %v2810, 0.0
        %v2843 = vmax.f32 %v2811, 0.0
        %v2844 = vmax.f32 %v2812, 0.0
        %v2845 = vmax.f32 %v2813, 0.0
        %v2846 = vmax.f32 %v2814, 0.0
        %v2847 = vmax.f32 %v2815, 0.0
        %v2848 = vmax.f32 %v2816, 0.0
        %v2849 = vmax.f32 %v2817, 0.0
        %v2850 = vmax.f32 %v2818, 0.0
        %v2851 = vmax.f32 %v2819, 0.0
        %v2852 = vmax.f32 %v2820, 0.0
        %v2853 = vmax.f32 %v2821, 0.0
        %v2854 = vmax.f32 %v2822, 0.0
        %v2855 = vmax.f32 %v2823, 0.0
        %v2856 = vmax.f32 %v2824, 0.0
        %v2857 = vmax.f32 %v2825, 0.0
        %v2858 = vmax.f32 %v2826, 0.0
        %v2859 = vmax.f32 %v2827, 0.0
        %v2860 = vmax.f32 %v2828, 0.0
        %v2861 = vmax.f32 %v2829, 0.0
        %v2862 = vmax.f32 %v2830, 0.0
        %v2863 = vmax.f32 %v2831, 0.0
        %v2864 = vmax.f32 %v2832, 0.0
        %v2865 = vmax.f32 %v2833, 0.0
        %v2866 = vmax.f32 %v2834, 0.0
        %v2867 = vmax.f32 %v2835, 0.0
        %v2868 = vmax.f32 %v2836, 0.0
        %v2869 = vmax.f32 %v2837, 0.0
        %v2870 = vmax.f32 %v2838, 0.0
        %v2871 = vmax.f32 %v2839, 0.0
        %v2872 = vmax.f32 %v2840, 0.0
        %2873 = vrot.lane.b32.xlu0 %v1133, 112
        %v2874 = vpop.permute.xlu0 %2873
        %2875 = vrot.lane.b32.xlu0 %v1134, 112
        %v2876 = vpop.permute.xlu0 %2875
        %2877 = vrot.lane.b32.xlu0 %v1135, 112
        %v2878 = vpop.permute.xlu0 %2877
        %2879 = vrot.lane.b32.xlu0 %v1136, 112
        %v2880 = vpop.permute.xlu0 %2879
        %2881 = vrot.lane.b32.xlu0 %v1137, 112
        %v2882 = vpop.permute.xlu0 %2881
        %2883 = vrot.lane.b32.xlu0 %v1138, 112
        %v2884 = vpop.permute.xlu0 %2883
        %2885 = vrot.lane.b32.xlu0 %v1139, 112
        %v2886 = vpop.permute.xlu0 %2885
        %2887 = vrot.lane.b32.xlu0 %v1140, 112
        %v2888 = vpop.permute.xlu0 %2887
        %2889 = vrot.lane.b32.xlu0 %v1141, 112
        %v2890 = vpop.permute.xlu0 %2889
        %2891 = vrot.lane.b32.xlu0 %v1142, 112
        %v2892 = vpop.permute.xlu0 %2891
        %2893 = vrot.lane.b32.xlu0 %v1143, 112
        %v2894 = vpop.permute.xlu0 %2893
        %2895 = vrot.lane.b32.xlu0 %v1144, 112
        %v2896 = vpop.permute.xlu0 %2895
        %2897 = vrot.lane.b32.xlu0 %v1145, 112
        %v2898 = vpop.permute.xlu0 %2897
        %2899 = vrot.lane.b32.xlu0 %v1146, 112
        %v2900 = vpop.permute.xlu0 %2899
        %2901 = vrot.lane.b32.xlu0 %v1147, 112
        %v2902 = vpop.permute.xlu0 %2901
        %2903 = vrot.lane.b32.xlu0 %v1148, 112
        %v2904 = vpop.permute.xlu0 %2903
        %v2905 = vrot.slane 0, 4
        %v2906 = vrot.slane %v2874, 4
        %v2907 = vrot.slane %v2876, 4
        %v2908 = vrot.slane %v2878, 4
        %v2909 = vrot.slane %v2880, 4
        %v2910 = vrot.slane %v2882, 4
        %v2911 = vrot.slane %v2884, 4
        %v2912 = vrot.slane %v2886, 4
        %v2913 = vrot.slane %v2888, 4
        %v2914 = vrot.slane %v2890, 4
        %v2915 = vrot.slane %v2892, 4
        %v2916 = vrot.slane %v2894, 4
        %v2917 = vrot.slane %v2896, 4
        %v2918 = vrot.slane %v2898, 4
        %v2919 = vrot.slane %v2900, 4
        %v2920 = vrot.slane %v2902, 4
        %v2921 = vrot.slane %v2904, 4
        %v2923 = vsel %vm1213, 0, %v2905
        %v2925 = vsel %vm1213, 0, %v2906
        %v2927 = vsel %vm1213, 0, %v2907
        %v2929 = vsel %vm1213, 0, %v2908
        %v2931 = vsel %vm1213, 0, %v2909
        %v2933 = vsel %vm1213, 0, %v2910
        %v2935 = vsel %vm1213, 0, %v2911
        %v2937 = vsel %vm1213, 0, %v2912
        %v2939 = vsel %vm1213, 0, %v2913
        %v2941 = vsel %vm1213, 0, %v2914
        %v2943 = vsel %vm1213, 0, %v2915
        %v2945 = vsel %vm1213, 0, %v2916
        %v2947 = vsel %vm1213, 0, %v2917
        %v2949 = vsel %vm1213, 0, %v2918
        %v2951 = vsel %vm1213, 0, %v2919
        %v2953 = vsel %vm1213, 0, %v2920
        %v2955 = vsel %vm1213, 0, %v2921
        %v2956 = vsel %vm1213, %v2905, 0
        %v2957 = vsel %vm1213, %v2906, 0
        %v2958 = vsel %vm1213, %v2907, 0
        %v2959 = vsel %vm1213, %v2908, 0
        %v2960 = vsel %vm1213, %v2909, 0
        %v2961 = vsel %vm1213, %v2910, 0
        %v2962 = vsel %vm1213, %v2911, 0
        %v2963 = vsel %vm1213, %v2912, 0
        %v2964 = vsel %vm1213, %v2913, 0
        %v2965 = vsel %vm1213, %v2914, 0
        %v2966 = vsel %vm1213, %v2915, 0
        %v2967 = vsel %vm1213, %v2916, 0
        %v2968 = vsel %vm1213, %v2917, 0
        %v2969 = vsel %vm1213, %v2918, 0
        %v2970 = vsel %vm1213, %v2919, 0
        %v2971 = vsel %vm1213, %v2920, 0
        %v2972 = vsel %vm1213, %v2921, 0
        %v2973 = vshrl.u32 %v2923, 16
        %v2975 = vshll.u32 %v2923, 16
        %v2977 = vrot.slane %v2975, 1
        %v2978 = vor.u32 %v2973, %v2977
        %v2979 = vshll.u32 %v2956, 16
        %v2981 = vrot.slane %v2979, 1
        %v2982 = vsel %vm1263, %v2978, %v2981
        %v2983 = vshrl.u32 %v2956, 16
        %v2985 = vor.u32 %v2983, %v2981
        %v2986 = vshrl.u32 %v2925, 16
        %v2988 = vshll.u32 %v2925, 16
        %v2990 = vrot.slane %v2988, 1
        %v2991 = vor.u32 %v2986, %v2990
        %v2992 = vshll.u32 %v2957, 16
        %v2994 = vrot.slane %v2992, 1
        %v2995 = vsel %vm1263, %v2991, %v2994
        %v2996 = vshrl.u32 %v2957, 16
        %v2998 = vor.u32 %v2996, %v2994
        %v2999 = vshrl.u32 %v2927, 16
        %v3001 = vshll.u32 %v2927, 16
        %v3003 = vrot.slane %v3001, 1
        %v3004 = vor.u32 %v2999, %v3003
        %v3005 = vshll.u32 %v2958, 16
        %v3007 = vrot.slane %v3005, 1
        %v3008 = vsel %vm1263, %v3004, %v3007
        %v3009 = vshrl.u32 %v2958, 16
        %v3011 = vor.u32 %v3009, %v3007
        %v3012 = vshrl.u32 %v2929, 16
        %v3014 = vshll.u32 %v2929, 16
        %v3016 = vrot.slane %v3014, 1
        %v3017 = vor.u32 %v3012, %v3016
        %v3018 = vshll.u32 %v2959, 16
        %v3020 = vrot.slane %v3018, 1
        %v3021 = vsel %vm1263, %v3017, %v3020
        %v3022 = vshrl.u32 %v2959, 16
        %v3024 = vor.u32 %v3022, %v3020
        %v3025 = vshrl.u32 %v2931, 16
        %v3027 = vshll.u32 %v2931, 16
        %v3029 = vrot.slane %v3027, 1
        %v3030 = vor.u32 %v3025, %v3029
        %v3031 = vshll.u32 %v2960, 16
        %v3033 = vrot.slane %v3031, 1
        %v3034 = vsel %vm1263, %v3030, %v3033
        %v3035 = vshrl.u32 %v2960, 16
        %v3037 = vor.u32 %v3035, %v3033
        %v3038 = vshrl.u32 %v2933, 16
        %v3040 = vshll.u32 %v2933, 16
        %v3042 = vrot.slane %v3040, 1
        %v3043 = vor.u32 %v3038, %v3042
        %v3044 = vshll.u32 %v2961, 16
        %v3046 = vrot.slane %v3044, 1
        %v3047 = vsel %vm1263, %v3043, %v3046
        %v3048 = vshrl.u32 %v2961, 16
        %v3050 = vor.u32 %v3048, %v3046
        %v3051 = vshrl.u32 %v2935, 16
        %v3053 = vshll.u32 %v2935, 16
        %v3055 = vrot.slane %v3053, 1
        %v3056 = vor.u32 %v3051, %v3055
        %v3057 = vshll.u32 %v2962, 16
        %v3059 = vrot.slane %v3057, 1
        %v3060 = vsel %vm1263, %v3056, %v3059
        %v3061 = vshrl.u32 %v2962, 16
        %v3063 = vor.u32 %v3061, %v3059
        %v3064 = vshrl.u32 %v2937, 16
        %v3066 = vshll.u32 %v2937, 16
        %v3068 = vrot.slane %v3066, 1
        %v3069 = vor.u32 %v3064, %v3068
        %v3070 = vshll.u32 %v2963, 16
        %v3072 = vrot.slane %v3070, 1
        %v3073 = vsel %vm1263, %v3069, %v3072
        %v3074 = vshrl.u32 %v2963, 16
        %v3076 = vor.u32 %v3074, %v3072
        %v3077 = vshrl.u32 %v2939, 16
        %v3079 = vshll.u32 %v2939, 16
        %v3081 = vrot.slane %v3079, 1
        %v3082 = vor.u32 %v3077, %v3081
        %v3083 = vshll.u32 %v2964, 16
        %v3085 = vrot.slane %v3083, 1
        %v3086 = vsel %vm1263, %v3082, %v3085
        %v3087 = vshrl.u32 %v2964, 16
        %v3089 = vor.u32 %v3087, %v3085
        %v3090 = vshrl.u32 %v2941, 16
        %v3092 = vshll.u32 %v2941, 16
        %v3094 = vrot.slane %v3092, 1
        %v3095 = vor.u32 %v3090, %v3094
        %v3096 = vshll.u32 %v2965, 16
        %v3098 = vrot.slane %v3096, 1
        %v3099 = vsel %vm1263, %v3095, %v3098
        %v3100 = vshrl.u32 %v2965, 16
        %v3102 = vor.u32 %v3100, %v3098
        %v3103 = vshrl.u32 %v2943, 16
        %v3105 = vshll.u32 %v2943, 16
        %v3107 = vrot.slane %v3105, 1
        %v3108 = vor.u32 %v3103, %v3107
        %v3109 = vshll.u32 %v2966, 16
        %v3111 = vrot.slane %v3109, 1
        %v3112 = vsel %vm1263, %v3108, %v3111
        %v3113 = vshrl.u32 %v2966, 16
        %v3115 = vor.u32 %v3113, %v3111
        %v3116 = vshrl.u32 %v2945, 16
        %v3118 = vshll.u32 %v2945, 16
        %v3120 = vrot.slane %v3118, 1
        %v3121 = vor.u32 %v3116, %v3120
        %v3122 = vshll.u32 %v2967, 16
        %v3124 = vrot.slane %v3122, 1
        %v3125 = vsel %vm1263, %v3121, %v3124
        %v3126 = vshrl.u32 %v2967, 16
        %v3128 = vor.u32 %v3126, %v3124
        %v3129 = vshrl.u32 %v2947, 16
        %v3131 = vshll.u32 %v2947, 16
        %v3133 = vrot.slane %v3131, 1
        %v3134 = vor.u32 %v3129, %v3133
        %v3135 = vshll.u32 %v2968, 16
        %v3137 = vrot.slane %v3135, 1
        %v3138 = vsel %vm1263, %v3134, %v3137
        %v3139 = vshrl.u32 %v2968, 16
        %v3141 = vor.u32 %v3139, %v3137
        %v3142 = vshrl.u32 %v2949, 16
        %v3144 = vshll.u32 %v2949, 16
        %v3146 = vrot.slane %v3144, 1
        %v3147 = vor.u32 %v3142, %v3146
        %v3148 = vshll.u32 %v2969, 16
        %v3150 = vrot.slane %v3148, 1
        %v3151 = vsel %vm1263, %v3147, %v3150
        %v3152 = vshrl.u32 %v2969, 16
        %v3154 = vor.u32 %v3152, %v3150
        %v3155 = vshrl.u32 %v2951, 16
        %v3157 = vshll.u32 %v2951, 16
        %v3159 = vrot.slane %v3157, 1
        %v3160 = vor.u32 %v3155, %v3159
        %v3161 = vshll.u32 %v2970, 16
        %v3163 = vrot.slane %v3161, 1
        %v3164 = vsel %vm1263, %v3160, %v3163
        %v3165 = vshrl.u32 %v2970, 16
        %v3167 = vor.u32 %v3165, %v3163
        %v3168 = vshrl.u32 %v2953, 16
        %v3170 = vshll.u32 %v2953, 16
        %v3172 = vrot.slane %v3170, 1
        %v3173 = vor.u32 %v3168, %v3172
        %v3174 = vshll.u32 %v2971, 16
        %v3176 = vrot.slane %v3174, 1
        %v3177 = vsel %vm1263, %v3173, %v3176
        %v3178 = vshrl.u32 %v2971, 16
        %v3180 = vor.u32 %v3178, %v3176
        %3181 = vrot.lane.b32.xlu0 %v2982, 8
        %v3182 = vpop.permute.xlu0 %3181
        %3183 = vrot.lane.b32.xlu0 %v2985, 8
        %v3184 = vpop.permute.xlu0 %3183
        %3185 = vrot.lane.b32.xlu0 %v2995, 8
        %v3186 = vpop.permute.xlu0 %3185
        %3187 = vrot.lane.b32.xlu0 %v2998, 8
        %v3188 = vpop.permute.xlu0 %3187
        %3189 = vrot.lane.b32.xlu0 %v3008, 8
        %v3190 = vpop.permute.xlu0 %3189
        %3191 = vrot.lane.b32.xlu0 %v3011, 8
        %v3192 = vpop.permute.xlu0 %3191
        %3193 = vrot.lane.b32.xlu0 %v3021, 8
        %v3194 = vpop.permute.xlu0 %3193
        %3195 = vrot.lane.b32.xlu0 %v3024, 8
        %v3196 = vpop.permute.xlu0 %3195
        %3197 = vrot.lane.b32.xlu0 %v3034, 8
        %v3198 = vpop.permute.xlu0 %3197
        %3199 = vrot.lane.b32.xlu0 %v3037, 8
        %v3200 = vpop.permute.xlu0 %3199
        %3201 = vrot.lane.b32.xlu0 %v3047, 8
        %v3202 = vpop.permute.xlu0 %3201
        %3203 = vrot.lane.b32.xlu0 %v3050, 8
        %v3204 = vpop.permute.xlu0 %3203
        %3205 = vrot.lane.b32.xlu0 %v3060, 8
        %v3206 = vpop.permute.xlu0 %3205
        %3207 = vrot.lane.b32.xlu0 %v3063, 8
        %v3208 = vpop.permute.xlu0 %3207
        %3209 = vrot.lane.b32.xlu0 %v3073, 8
        %v3210 = vpop.permute.xlu0 %3209
        %3211 = vrot.lane.b32.xlu0 %v3076, 8
        %v3212 = vpop.permute.xlu0 %3211
        %3213 = vrot.lane.b32.xlu0 %v3086, 8
        %v3214 = vpop.permute.xlu0 %3213
        %3215 = vrot.lane.b32.xlu0 %v3089, 8
        %v3216 = vpop.permute.xlu0 %3215
        %3217 = vrot.lane.b32.xlu0 %v3099, 8
        %v3218 = vpop.permute.xlu0 %3217
        %3219 = vrot.lane.b32.xlu0 %v3102, 8
        %v3220 = vpop.permute.xlu0 %3219
        %3221 = vrot.lane.b32.xlu0 %v3112, 8
        %v3222 = vpop.permute.xlu0 %3221
        %3223 = vrot.lane.b32.xlu0 %v3115, 8
        %v3224 = vpop.permute.xlu0 %3223
        %3225 = vrot.lane.b32.xlu0 %v3125, 8
        %v3226 = vpop.permute.xlu0 %3225
        %3227 = vrot.lane.b32.xlu0 %v3128, 8
        %v3228 = vpop.permute.xlu0 %3227
        %3229 = vrot.lane.b32.xlu0 %v3138, 8
        %v3230 = vpop.permute.xlu0 %3229
        %3231 = vrot.lane.b32.xlu0 %v3141, 8
        %v3232 = vpop.permute.xlu0 %3231
        %3233 = vrot.lane.b32.xlu0 %v3151, 8
        %v3234 = vpop.permute.xlu0 %3233
        %3235 = vrot.lane.b32.xlu0 %v3154, 8
        %v3236 = vpop.permute.xlu0 %3235
        %3237 = vrot.lane.b32.xlu0 %v3164, 8
        %v3238 = vpop.permute.xlu0 %3237
        %3239 = vrot.lane.b32.xlu0 %v3167, 8
        %v3240 = vpop.permute.xlu0 %3239
        %3241 = vrot.lane.b32.xlu0 %v3177, 8
        %v3242 = vpop.permute.xlu0 %3241
        %3243 = vrot.lane.b32.xlu0 %v3180, 8
        %v3244 = vpop.permute.xlu0 %3243
        %v3277 = vrot.slane %v2923, 1
        %v3278 = vrot.slane %v2956, 1
        %v3279 = vsel %vm1568, %v3277, %v3278
        %v3280 = vrot.slane %v2925, 1
        %v3281 = vrot.slane %v2957, 1
        %v3282 = vsel %vm1568, %v3280, %v3281
        %v3283 = vrot.slane %v2927, 1
        %v3284 = vrot.slane %v2958, 1
        %v3285 = vsel %vm1568, %v3283, %v3284
        %v3286 = vrot.slane %v2929, 1
        %v3287 = vrot.slane %v2959, 1
        %v3288 = vsel %vm1568, %v3286, %v3287
        %v3289 = vrot.slane %v2931, 1
        %v3290 = vrot.slane %v2960, 1
        %v3291 = vsel %vm1568, %v3289, %v3290
        %v3292 = vrot.slane %v2933, 1
        %v3293 = vrot.slane %v2961, 1
        %v3294 = vsel %vm1568, %v3292, %v3293
        %v3295 = vrot.slane %v2935, 1
        %v3296 = vrot.slane %v2962, 1
        %v3297 = vsel %vm1568, %v3295, %v3296
        %v3298 = vrot.slane %v2937, 1
        %v3299 = vrot.slane %v2963, 1
        %v3300 = vsel %vm1568, %v3298, %v3299
        %v3301 = vrot.slane %v2939, 1
        %v3302 = vrot.slane %v2964, 1
        %v3303 = vsel %vm1568, %v3301, %v3302
        %v3304 = vrot.slane %v2941, 1
        %v3305 = vrot.slane %v2965, 1
        %v3306 = vsel %vm1568, %v3304, %v3305
        %v3307 = vrot.slane %v2943, 1
        %v3308 = vrot.slane %v2966, 1
        %v3309 = vsel %vm1568, %v3307, %v3308
        %v3310 = vrot.slane %v2945, 1
        %v3311 = vrot.slane %v2967, 1
        %v3312 = vsel %vm1568, %v3310, %v3311
        %v3313 = vrot.slane %v2947, 1
        %v3314 = vrot.slane %v2968, 1
        %v3315 = vsel %vm1568, %v3313, %v3314
        %v3316 = vrot.slane %v2949, 1
        %v3317 = vrot.slane %v2969, 1
        %v3318 = vsel %vm1568, %v3316, %v3317
        %v3319 = vrot.slane %v2951, 1
        %v3320 = vrot.slane %v2970, 1
        %v3321 = vsel %vm1568, %v3319, %v3320
        %v3322 = vrot.slane %v2953, 1
        %v3323 = vrot.slane %v2971, 1
        %v3324 = vsel %vm1568, %v3322, %v3323
        %3325 = vrot.lane.b32.xlu0 %v3279, 16
        %v3326 = vpop.permute.xlu0 %3325
        %3327 = vrot.lane.b32.xlu0 %v3278, 16
        %v3328 = vpop.permute.xlu0 %3327
        %3329 = vrot.lane.b32.xlu0 %v3282, 16
        %v3330 = vpop.permute.xlu0 %3329
        %3331 = vrot.lane.b32.xlu0 %v3281, 16
        %v3332 = vpop.permute.xlu0 %3331
        %3333 = vrot.lane.b32.xlu0 %v3285, 16
        %v3334 = vpop.permute.xlu0 %3333
        %3335 = vrot.lane.b32.xlu0 %v3284, 16
        %v3336 = vpop.permute.xlu0 %3335
        %3337 = vrot.lane.b32.xlu0 %v3288, 16
        %v3338 = vpop.permute.xlu0 %3337
        %3339 = vrot.lane.b32.xlu0 %v3287, 16
        %v3340 = vpop.permute.xlu0 %3339
        %3341 = vrot.lane.b32.xlu0 %v3291, 16
        %v3342 = vpop.permute.xlu0 %3341
        %3343 = vrot.lane.b32.xlu0 %v3290, 16
        %v3344 = vpop.permute.xlu0 %3343
        %3345 = vrot.lane.b32.xlu0 %v3294, 16
        %v3346 = vpop.permute.xlu0 %3345
        %3347 = vrot.lane.b32.xlu0 %v3293, 16
        %v3348 = vpop.permute.xlu0 %3347
        %3349 = vrot.lane.b32.xlu0 %v3297, 16
        %v3350 = vpop.permute.xlu0 %3349
        %3351 = vrot.lane.b32.xlu0 %v3296, 16
        %v3352 = vpop.permute.xlu0 %3351
        %3353 = vrot.lane.b32.xlu0 %v3300, 16
        %v3354 = vpop.permute.xlu0 %3353
        %3355 = vrot.lane.b32.xlu0 %v3299, 16
        %v3356 = vpop.permute.xlu0 %3355
        %3357 = vrot.lane.b32.xlu0 %v3303, 16
        %v3358 = vpop.permute.xlu0 %3357
        %3359 = vrot.lane.b32.xlu0 %v3302, 16
        %v3360 = vpop.permute.xlu0 %3359
        %3361 = vrot.lane.b32.xlu0 %v3306, 16
        %v3362 = vpop.permute.xlu0 %3361
        %3363 = vrot.lane.b32.xlu0 %v3305, 16
        %v3364 = vpop.permute.xlu0 %3363
        %3365 = vrot.lane.b32.xlu0 %v3309, 16
        %v3366 = vpop.permute.xlu0 %3365
        %3367 = vrot.lane.b32.xlu0 %v3308, 16
        %v3368 = vpop.permute.xlu0 %3367
        %3369 = vrot.lane.b32.xlu0 %v3312, 16
        %v3370 = vpop.permute.xlu0 %3369
        %3371 = vrot.lane.b32.xlu0 %v3311, 16
        %v3372 = vpop.permute.xlu0 %3371
        %3373 = vrot.lane.b32.xlu0 %v3315, 16
        %v3374 = vpop.permute.xlu0 %3373
        %3375 = vrot.lane.b32.xlu0 %v3314, 16
        %v3376 = vpop.permute.xlu0 %3375
        %3377 = vrot.lane.b32.xlu0 %v3318, 16
        %v3378 = vpop.permute.xlu0 %3377
        %3379 = vrot.lane.b32.xlu0 %v3317, 16
        %v3380 = vpop.permute.xlu0 %3379
        %3381 = vrot.lane.b32.xlu0 %v3321, 16
        %v3382 = vpop.permute.xlu0 %3381
        %3383 = vrot.lane.b32.xlu0 %v3320, 16
        %v3384 = vpop.permute.xlu0 %3383
        %3385 = vrot.lane.b32.xlu0 %v3324, 16
        %v3386 = vpop.permute.xlu0 %3385
        %3387 = vrot.lane.b32.xlu0 %v3323, 16
        %v3388 = vpop.permute.xlu0 %3387
        %3391 = vrot.lane.b32.xlu0 %v2925, 24
        %v3392 = vpop.permute.xlu0 %3391
        %3393 = vrot.lane.b32.xlu0 %v2957, 24
        %v3394 = vpop.permute.xlu0 %3393
        %3395 = vrot.lane.b32.xlu0 %v2927, 24
        %v3396 = vpop.permute.xlu0 %3395
        %3397 = vrot.lane.b32.xlu0 %v2958, 24
        %v3398 = vpop.permute.xlu0 %3397
        %3399 = vrot.lane.b32.xlu0 %v2929, 24
        %v3400 = vpop.permute.xlu0 %3399
        %3401 = vrot.lane.b32.xlu0 %v2959, 24
        %v3402 = vpop.permute.xlu0 %3401
        %3403 = vrot.lane.b32.xlu0 %v2931, 24
        %v3404 = vpop.permute.xlu0 %3403
        %3405 = vrot.lane.b32.xlu0 %v2960, 24
        %v3406 = vpop.permute.xlu0 %3405
        %3407 = vrot.lane.b32.xlu0 %v2933, 24
        %v3408 = vpop.permute.xlu0 %3407
        %3409 = vrot.lane.b32.xlu0 %v2961, 24
        %v3410 = vpop.permute.xlu0 %3409
        %3411 = vrot.lane.b32.xlu0 %v2935, 24
        %v3412 = vpop.permute.xlu0 %3411
        %3413 = vrot.lane.b32.xlu0 %v2962, 24
        %v3414 = vpop.permute.xlu0 %3413
        %3415 = vrot.lane.b32.xlu0 %v2937, 24
        %v3416 = vpop.permute.xlu0 %3415
        %3417 = vrot.lane.b32.xlu0 %v2963, 24
        %v3418 = vpop.permute.xlu0 %3417
        %3419 = vrot.lane.b32.xlu0 %v2939, 24
        %v3420 = vpop.permute.xlu0 %3419
        %3421 = vrot.lane.b32.xlu0 %v2964, 24
        %v3422 = vpop.permute.xlu0 %3421
        %3423 = vrot.lane.b32.xlu0 %v2941, 24
        %v3424 = vpop.permute.xlu0 %3423
        %3425 = vrot.lane.b32.xlu0 %v2965, 24
        %v3426 = vpop.permute.xlu0 %3425
        %3427 = vrot.lane.b32.xlu0 %v2943, 24
        %v3428 = vpop.permute.xlu0 %3427
        %3429 = vrot.lane.b32.xlu0 %v2966, 24
        %v3430 = vpop.permute.xlu0 %3429
        %3431 = vrot.lane.b32.xlu0 %v2945, 24
        %v3432 = vpop.permute.xlu0 %3431
        %3433 = vrot.lane.b32.xlu0 %v2967, 24
        %v3434 = vpop.permute.xlu0 %3433
        %3435 = vrot.lane.b32.xlu0 %v2947, 24
        %v3436 = vpop.permute.xlu0 %3435
        %3437 = vrot.lane.b32.xlu0 %v2968, 24
        %v3438 = vpop.permute.xlu0 %3437
        %3439 = vrot.lane.b32.xlu0 %v2949, 24
        %v3440 = vpop.permute.xlu0 %3439
        %3441 = vrot.lane.b32.xlu0 %v2969, 24
        %v3442 = vpop.permute.xlu0 %3441
        %3443 = vrot.lane.b32.xlu0 %v2951, 24
        %v3444 = vpop.permute.xlu0 %3443
        %3445 = vrot.lane.b32.xlu0 %v2970, 24
        %v3446 = vpop.permute.xlu0 %3445
        %3447 = vrot.lane.b32.xlu0 %v2953, 24
        %v3448 = vpop.permute.xlu0 %3447
        %3449 = vrot.lane.b32.xlu0 %v2971, 24
        %v3450 = vpop.permute.xlu0 %3449
        %3451 = vrot.lane.b32.xlu0 %v2955, 24
        %v3452 = vpop.permute.xlu0 %3451
        %3453 = vrot.lane.b32.xlu0 %v2972, 24
        %v3454 = vpop.permute.xlu0 %3453
        %v3455 = vshrl.u32 %v2955, 16
        %v3457 = vshll.u32 %v2955, 16
        %v3459 = vrot.slane %v3457, 1
        %v3460 = vor.u32 %v3455, %v3459
        %v3461 = vshll.u32 %v2972, 16
        %v3463 = vrot.slane %v3461, 1
        %v3464 = vsel %vm1263, %v3460, %v3463
        %v3465 = vshrl.u32 %v2972, 16
        %v3467 = vor.u32 %v3465, %v3463
        %3468 = vrot.lane.b32.xlu0 %v2995, 32
        %v3469 = vpop.permute.xlu0 %3468
        %3470 = vrot.lane.b32.xlu0 %v2998, 32
        %v3471 = vpop.permute.xlu0 %3470
        %3472 = vrot.lane.b32.xlu0 %v3008, 32
        %v3473 = vpop.permute.xlu0 %3472
        %3474 = vrot.lane.b32.xlu0 %v3011, 32
        %v3475 = vpop.permute.xlu0 %3474
        %3476 = vrot.lane.b32.xlu0 %v3021, 32
        %v3477 = vpop.permute.xlu0 %3476
        %3478 = vrot.lane.b32.xlu0 %v3024, 32
        %v3479 = vpop.permute.xlu0 %3478
        %3480 = vrot.lane.b32.xlu0 %v3034, 32
        %v3481 = vpop.permute.xlu0 %3480
        %3482 = vrot.lane.b32.xlu0 %v3037, 32
        %v3483 = vpop.permute.xlu0 %3482
        %3484 = vrot.lane.b32.xlu0 %v3047, 32
        %v3485 = vpop.permute.xlu0 %3484
        %3486 = vrot.lane.b32.xlu0 %v3050, 32
        %v3487 = vpop.permute.xlu0 %3486
        %3488 = vrot.lane.b32.xlu0 %v3060, 32
        %v3489 = vpop.permute.xlu0 %3488
        %3490 = vrot.lane.b32.xlu0 %v3063, 32
        %v3491 = vpop.permute.xlu0 %3490
        %3492 = vrot.lane.b32.xlu0 %v3073, 32
        %v3493 = vpop.permute.xlu0 %3492
        %3494 = vrot.lane.b32.xlu0 %v3076, 32
        %v3495 = vpop.permute.xlu0 %3494
        %3496 = vrot.lane.b32.xlu0 %v3086, 32
        %v3497 = vpop.permute.xlu0 %3496
        %3498 = vrot.lane.b32.xlu0 %v3089, 32
        %v3499 = vpop.permute.xlu0 %3498
        %3500 = vrot.lane.b32.xlu0 %v3099, 32
        %v3501 = vpop.permute.xlu0 %3500
        %3502 = vrot.lane.b32.xlu0 %v3102, 32
        %v3503 = vpop.permute.xlu0 %3502
        %3504 = vrot.lane.b32.xlu0 %v3112, 32
        %v3505 = vpop.permute.xlu0 %3504
        %3506 = vrot.lane.b32.xlu0 %v3115, 32
        %v3507 = vpop.permute.xlu0 %3506
        %3508 = vrot.lane.b32.xlu0 %v3125, 32
        %v3509 = vpop.permute.xlu0 %3508
        %3510 = vrot.lane.b32.xlu0 %v3128, 32
        %v3511 = vpop.permute.xlu0 %3510
        %3512 = vrot.lane.b32.xlu0 %v3138, 32
        %v3513 = vpop.permute.xlu0 %3512
        %3514 = vrot.lane.b32.xlu0 %v3141, 32
        %v3515 = vpop.permute.xlu0 %3514
        %3516 = vrot.lane.b32.xlu0 %v3151, 32
        %v3517 = vpop.permute.xlu0 %3516
        %3518 = vrot.lane.b32.xlu0 %v3154, 32
        %v3519 = vpop.permute.xlu0 %3518
        %3520 = vrot.lane.b32.xlu0 %v3164, 32
        %v3521 = vpop.permute.xlu0 %3520
        %3522 = vrot.lane.b32.xlu0 %v3167, 32
        %v3523 = vpop.permute.xlu0 %3522
        %3524 = vrot.lane.b32.xlu0 %v3177, 32
        %v3525 = vpop.permute.xlu0 %3524
        %3526 = vrot.lane.b32.xlu0 %v3180, 32
        %v3527 = vpop.permute.xlu0 %3526
        %3528 = vrot.lane.b32.xlu0 %v3464, 32
        %v3529 = vpop.permute.xlu0 %3528
        %3530 = vrot.lane.b32.xlu0 %v3467, 32
        %v3531 = vpop.permute.xlu0 %3530
        %v3532 = vrot.slane %v2955, 1
        %v3533 = vrot.slane %v2972, 1
        %v3534 = vsel %vm1568, %v3532, %v3533
        %3535 = vrot.lane.b32.xlu0 %v3282, 40
        %v3536 = vpop.permute.xlu0 %3535
        %3537 = vrot.lane.b32.xlu0 %v3281, 40
        %v3538 = vpop.permute.xlu0 %3537
        %3539 = vrot.lane.b32.xlu0 %v3285, 40
        %v3540 = vpop.permute.xlu0 %3539
        %3541 = vrot.lane.b32.xlu0 %v3284, 40
        %v3542 = vpop.permute.xlu0 %3541
        %3543 = vrot.lane.b32.xlu0 %v3288, 40
        %v3544 = vpop.permute.xlu0 %3543
        %3545 = vrot.lane.b32.xlu0 %v3287, 40
        %v3546 = vpop.permute.xlu0 %3545
        %3547 = vrot.lane.b32.xlu0 %v3291, 40
        %v3548 = vpop.permute.xlu0 %3547
        %3549 = vrot.lane.b32.xlu0 %v3290, 40
        %v3550 = vpop.permute.xlu0 %3549
        %3551 = vrot.lane.b32.xlu0 %v3294, 40
        %v3552 = vpop.permute.xlu0 %3551
        %3553 = vrot.lane.b32.xlu0 %v3293, 40
        %v3554 = vpop.permute.xlu0 %3553
        %3555 = vrot.lane.b32.xlu0 %v3297, 40
        %v3556 = vpop.permute.xlu0 %3555
        %3557 = vrot.lane.b32.xlu0 %v3296, 40
        %v3558 = vpop.permute.xlu0 %3557
        %3559 = vrot.lane.b32.xlu0 %v3300, 40
        %v3560 = vpop.permute.xlu0 %3559
        %3561 = vrot.lane.b32.xlu0 %v3299, 40
        %v3562 = vpop.permute.xlu0 %3561
        %3563 = vrot.lane.b32.xlu0 %v3303, 40
        %v3564 = vpop.permute.xlu0 %3563
        %3565 = vrot.lane.b32.xlu0 %v3302, 40
        %v3566 = vpop.permute.xlu0 %3565
        %3567 = vrot.lane.b32.xlu0 %v3306, 40
        %v3568 = vpop.permute.xlu0 %3567
        %3569 = vrot.lane.b32.xlu0 %v3305, 40
        %v3570 = vpop.permute.xlu0 %3569
        %3571 = vrot.lane.b32.xlu0 %v3309, 40
        %v3572 = vpop.permute.xlu0 %3571
        %3573 = vrot.lane.b32.xlu0 %v3308, 40
        %v3574 = vpop.permute.xlu0 %3573
        %3575 = vrot.lane.b32.xlu0 %v3312, 40
        %v3576 = vpop.permute.xlu0 %3575
        %3577 = vrot.lane.b32.xlu0 %v3311, 40
        %v3578 = vpop.permute.xlu0 %3577
        %3579 = vrot.lane.b32.xlu0 %v3315, 40
        %v3580 = vpop.permute.xlu0 %3579
        %3581 = vrot.lane.b32.xlu0 %v3314, 40
        %v3582 = vpop.permute.xlu0 %3581
        %3583 = vrot.lane.b32.xlu0 %v3318, 40
        %v3584 = vpop.permute.xlu0 %3583
        %3585 = vrot.lane.b32.xlu0 %v3317, 40
        %v3586 = vpop.permute.xlu0 %3585
        %3587 = vrot.lane.b32.xlu0 %v3321, 40
        %v3588 = vpop.permute.xlu0 %3587
        %3589 = vrot.lane.b32.xlu0 %v3320, 40
        %v3590 = vpop.permute.xlu0 %3589
        %3591 = vrot.lane.b32.xlu0 %v3324, 40
        %v3592 = vpop.permute.xlu0 %3591
        %3593 = vrot.lane.b32.xlu0 %v3323, 40
        %v3594 = vpop.permute.xlu0 %3593
        %3595 = vrot.lane.b32.xlu0 %v3534, 40
        %v3596 = vpop.permute.xlu0 %3595
        %3597 = vrot.lane.b32.xlu0 %v3533, 40
        %v3598 = vpop.permute.xlu0 %3597
        %3599 = vrot.lane.b32.xlu0 %v2927, 48
        %v3600 = vpop.permute.xlu0 %3599
        %3601 = vrot.lane.b32.xlu0 %v2958, 48
        %v3602 = vpop.permute.xlu0 %3601
        %3603 = vrot.lane.b32.xlu0 %v2929, 48
        %v3604 = vpop.permute.xlu0 %3603
        %3605 = vrot.lane.b32.xlu0 %v2959, 48
        %v3606 = vpop.permute.xlu0 %3605
        %3607 = vrot.lane.b32.xlu0 %v2931, 48
        %v3608 = vpop.permute.xlu0 %3607
        %3609 = vrot.lane.b32.xlu0 %v2960, 48
        %v3610 = vpop.permute.xlu0 %3609
        %3611 = vrot.lane.b32.xlu0 %v2933, 48
        %v3612 = vpop.permute.xlu0 %3611
        %3613 = vrot.lane.b32.xlu0 %v2961, 48
        %v3614 = vpop.permute.xlu0 %3613
        %3615 = vrot.lane.b32.xlu0 %v2935, 48
        %v3616 = vpop.permute.xlu0 %3615
        %3617 = vrot.lane.b32.xlu0 %v2962, 48
        %v3618 = vpop.permute.xlu0 %3617
        %3619 = vrot.lane.b32.xlu0 %v2937, 48
        %v3620 = vpop.permute.xlu0 %3619
        %3621 = vrot.lane.b32.xlu0 %v2963, 48
        %v3622 = vpop.permute.xlu0 %3621
        %3623 = vrot.lane.b32.xlu0 %v2939, 48
        %v3624 = vpop.permute.xlu0 %3623
        %3625 = vrot.lane.b32.xlu0 %v2964, 48
        %v3626 = vpop.permute.xlu0 %3625
        %3627 = vrot.lane.b32.xlu0 %v2941, 48
        %v3628 = vpop.permute.xlu0 %3627
        %3629 = vrot.lane.b32.xlu0 %v2965, 48
        %v3630 = vpop.permute.xlu0 %3629
        %3631 = vrot.lane.b32.xlu0 %v2943, 48
        %v3632 = vpop.permute.xlu0 %3631
        %3633 = vrot.lane.b32.xlu0 %v2966, 48
        %v3634 = vpop.permute.xlu0 %3633
        %3635 = vrot.lane.b32.xlu0 %v2945, 48
        %v3636 = vpop.permute.xlu0 %3635
        %3637 = vrot.lane.b32.xlu0 %v2967, 48
        %v3638 = vpop.permute.xlu0 %3637
        %3639 = vrot.lane.b32.xlu0 %v2947, 48
        %v3640 = vpop.permute.xlu0 %3639
        %3641 = vrot.lane.b32.xlu0 %v2968, 48
        %v3642 = vpop.permute.xlu0 %3641
        %3643 = vrot.lane.b32.xlu0 %v2949, 48
        %v3644 = vpop.permute.xlu0 %3643
        %3645 = vrot.lane.b32.xlu0 %v2969, 48
        %v3646 = vpop.permute.xlu0 %3645
        %3647 = vrot.lane.b32.xlu0 %v2951, 48
        %v3648 = vpop.permute.xlu0 %3647
        %3649 = vrot.lane.b32.xlu0 %v2970, 48
        %v3650 = vpop.permute.xlu0 %3649
        %3651 = vrot.lane.b32.xlu0 %v2953, 48
        %v3652 = vpop.permute.xlu0 %3651
        %3653 = vrot.lane.b32.xlu0 %v2971, 48
        %v3654 = vpop.permute.xlu0 %3653
        %3655 = vrot.lane.b32.xlu0 %v2955, 48
        %v3656 = vpop.permute.xlu0 %3655
        %3657 = vrot.lane.b32.xlu0 %v2972, 48
        %v3658 = vpop.permute.xlu0 %3657
        %3659 = vrot.lane.b32.xlu0 %v2923, 48
        %v3660 = vpop.permute.xlu0 %3659
        %3661 = vrot.lane.b32.xlu0 %v2956, 48
        %v3662 = vpop.permute.xlu0 %3661
        %3663 = vrot.lane.b32.xlu0 %v3008, 56
        %v3664 = vpop.permute.xlu0 %3663
        %3665 = vrot.lane.b32.xlu0 %v3011, 56
        %v3666 = vpop.permute.xlu0 %3665
        %3667 = vrot.lane.b32.xlu0 %v3021, 56
        %v3668 = vpop.permute.xlu0 %3667
        %3669 = vrot.lane.b32.xlu0 %v3024, 56
        %v3670 = vpop.permute.xlu0 %3669
        %3671 = vrot.lane.b32.xlu0 %v3034, 56
        %v3672 = vpop.permute.xlu0 %3671
        %3673 = vrot.lane.b32.xlu0 %v3037, 56
        %v3674 = vpop.permute.xlu0 %3673
        %3675 = vrot.lane.b32.xlu0 %v3047, 56
        %v3676 = vpop.permute.xlu0 %3675
        %3677 = vrot.lane.b32.xlu0 %v3050, 56
        %v3678 = vpop.permute.xlu0 %3677
        %3679 = vrot.lane.b32.xlu0 %v3060, 56
        %v3680 = vpop.permute.xlu0 %3679
        %3681 = vrot.lane.b32.xlu0 %v3063, 56
        %v3682 = vpop.permute.xlu0 %3681
        %3683 = vrot.lane.b32.xlu0 %v3073, 56
        %v3684 = vpop.permute.xlu0 %3683
        %3685 = vrot.lane.b32.xlu0 %v3076, 56
        %v3686 = vpop.permute.xlu0 %3685
        %3687 = vrot.lane.b32.xlu0 %v3086, 56
        %v3688 = vpop.permute.xlu0 %3687
        %3689 = vrot.lane.b32.xlu0 %v3089, 56
        %v3690 = vpop.permute.xlu0 %3689
        %3691 = vrot.lane.b32.xlu0 %v3099, 56
        %v3692 = vpop.permute.xlu0 %3691
        %3693 = vrot.lane.b32.xlu0 %v3102, 56
        %v3694 = vpop.permute.xlu0 %3693
        %3695 = vrot.lane.b32.xlu0 %v3112, 56
        %v3696 = vpop.permute.xlu0 %3695
        %3697 = vrot.lane.b32.xlu0 %v3115, 56
        %v3698 = vpop.permute.xlu0 %3697
        %3699 = vrot.lane.b32.xlu0 %v3125, 56
        %v3700 = vpop.permute.xlu0 %3699
        %3701 = vrot.lane.b32.xlu0 %v3128, 56
        %v3702 = vpop.permute.xlu0 %3701
        %3703 = vrot.lane.b32.xlu0 %v3138, 56
        %v3704 = vpop.permute.xlu0 %3703
        %3705 = vrot.lane.b32.xlu0 %v3141, 56
        %v3706 = vpop.permute.xlu0 %3705
        %3707 = vrot.lane.b32.xlu0 %v3151, 56
        %v3708 = vpop.permute.xlu0 %3707
        %3709 = vrot.lane.b32.xlu0 %v3154, 56
        %v3710 = vpop.permute.xlu0 %3709
        %3711 = vrot.lane.b32.xlu0 %v3164, 56
        %v3712 = vpop.permute.xlu0 %3711
        %3713 = vrot.lane.b32.xlu0 %v3167, 56
        %v3714 = vpop.permute.xlu0 %3713
        %3715 = vrot.lane.b32.xlu0 %v3177, 56
        %v3716 = vpop.permute.xlu0 %3715
        %3717 = vrot.lane.b32.xlu0 %v3180, 56
        %v3718 = vpop.permute.xlu0 %3717
        %3719 = vrot.lane.b32.xlu0 %v3464, 56
        %v3720 = vpop.permute.xlu0 %3719
        %3721 = vrot.lane.b32.xlu0 %v3467, 56
        %v3722 = vpop.permute.xlu0 %3721
        %3723 = vrot.lane.b32.xlu0 %v2982, 56
        %v3724 = vpop.permute.xlu0 %3723
        %3725 = vrot.lane.b32.xlu0 %v2985, 56
        %v3726 = vpop.permute.xlu0 %3725
        %3727 = vrot.lane.b32.xlu0 %v3285, 64
        %v3728 = vpop.permute.xlu0 %3727
        %3729 = vrot.lane.b32.xlu0 %v3284, 64
        %v3730 = vpop.permute.xlu0 %3729
        %3731 = vrot.lane.b32.xlu0 %v3288, 64
        %v3732 = vpop.permute.xlu0 %3731
        %3733 = vrot.lane.b32.xlu0 %v3287, 64
        %v3734 = vpop.permute.xlu0 %3733
        %3735 = vrot.lane.b32.xlu0 %v3291, 64
        %v3736 = vpop.permute.xlu0 %3735
        %3737 = vrot.lane.b32.xlu0 %v3290, 64
        %v3738 = vpop.permute.xlu0 %3737
        %3739 = vrot.lane.b32.xlu0 %v3294, 64
        %v3740 = vpop.permute.xlu0 %3739
        %3741 = vrot.lane.b32.xlu0 %v3293, 64
        %v3742 = vpop.permute.xlu0 %3741
        %3743 = vrot.lane.b32.xlu0 %v3297, 64
        %v3744 = vpop.permute.xlu0 %3743
        %3745 = vrot.lane.b32.xlu0 %v3296, 64
        %v3746 = vpop.permute.xlu0 %3745
        %3747 = vrot.lane.b32.xlu0 %v3300, 64
        %v3748 = vpop.permute.xlu0 %3747
        %3749 = vrot.lane.b32.xlu0 %v3299, 64
        %v3750 = vpop.permute.xlu0 %3749
        %3751 = vrot.lane.b32.xlu0 %v3303, 64
        %v3752 = vpop.permute.xlu0 %3751
        %3753 = vrot.lane.b32.xlu0 %v3302, 64
        %v3754 = vpop.permute.xlu0 %3753
        %3755 = vrot.lane.b32.xlu0 %v3306, 64
        %v3756 = vpop.permute.xlu0 %3755
        %3757 = vrot.lane.b32.xlu0 %v3305, 64
        %v3758 = vpop.permute.xlu0 %3757
        %3759 = vrot.lane.b32.xlu0 %v3309, 64
        %v3760 = vpop.permute.xlu0 %3759
        %3761 = vrot.lane.b32.xlu0 %v3308, 64
        %v3762 = vpop.permute.xlu0 %3761
        %3763 = vrot.lane.b32.xlu0 %v3312, 64
        %v3764 = vpop.permute.xlu0 %3763
        %3765 = vrot.lane.b32.xlu0 %v3311, 64
        %v3766 = vpop.permute.xlu0 %3765
        %3767 = vrot.lane.b32.xlu0 %v3315, 64
        %v3768 = vpop.permute.xlu0 %3767
        %3769 = vrot.lane.b32.xlu0 %v3314, 64
        %v3770 = vpop.permute.xlu0 %3769
        %3771 = vrot.lane.b32.xlu0 %v3318, 64
        %v3772 = vpop.permute.xlu0 %3771
        %3773 = vrot.lane.b32.xlu0 %v3317, 64
        %v3774 = vpop.permute.xlu0 %3773
        %3775 = vrot.lane.b32.xlu0 %v3321, 64
        %v3776 = vpop.permute.xlu0 %3775
        %3777 = vrot.lane.b32.xlu0 %v3320, 64
        %v3778 = vpop.permute.xlu0 %3777
        %3779 = vrot.lane.b32.xlu0 %v3324, 64
        %v3780 = vpop.permute.xlu0 %3779
        %3781 = vrot.lane.b32.xlu0 %v3323, 64
        %v3782 = vpop.permute.xlu0 %3781
        %3783 = vrot.lane.b32.xlu0 %v3534, 64
        %v3784 = vpop.permute.xlu0 %3783
        %3785 = vrot.lane.b32.xlu0 %v3533, 64
        %v3786 = vpop.permute.xlu0 %3785
        %3787 = vrot.lane.b32.xlu0 %v3279, 64
        %v3788 = vpop.permute.xlu0 %3787
        %3789 = vrot.lane.b32.xlu0 %v3278, 64
        %v3790 = vpop.permute.xlu0 %3789
        %v3792 = vsel %vm1681, %v2923, %v3182
        %v3794 = vsel %vm1681, %v2956, %v3184
        %v3796 = vsel %vm1681, %v2925, %v3186
        %v3798 = vsel %vm1681, %v2957, %v3188
        %v3800 = vsel %vm1681, %v2927, %v3190
        %v3802 = vsel %vm1681, %v2958, %v3192
        %v3804 = vsel %vm1681, %v2929, %v3194
        %v3806 = vsel %vm1681, %v2959, %v3196
        %v3808 = vsel %vm1681, %v2931, %v3198
        %v3810 = vsel %vm1681, %v2960, %v3200
        %v3812 = vsel %vm1681, %v2933, %v3202
        %v3814 = vsel %vm1681, %v2961, %v3204
        %v3816 = vsel %vm1681, %v2935, %v3206
        %v3818 = vsel %vm1681, %v2962, %v3208
        %v3820 = vsel %vm1681, %v2937, %v3210
        %v3822 = vsel %vm1681, %v2963, %v3212
        %v3824 = vsel %vm1681, %v2939, %v3214
        %v3826 = vsel %vm1681, %v2964, %v3216
        %v3828 = vsel %vm1681, %v2941, %v3218
        %v3830 = vsel %vm1681, %v2965, %v3220
        %v3832 = vsel %vm1681, %v2943, %v3222
        %v3834 = vsel %vm1681, %v2966, %v3224
        %v3836 = vsel %vm1681, %v2945, %v3226
        %v3838 = vsel %vm1681, %v2967, %v3228
        %v3840 = vsel %vm1681, %v2947, %v3230
        %v3842 = vsel %vm1681, %v2968, %v3232
        %v3844 = vsel %vm1681, %v2949, %v3234
        %v3846 = vsel %vm1681, %v2969, %v3236
        %v3848 = vsel %vm1681, %v2951, %v3238
        %v3850 = vsel %vm1681, %v2970, %v3240
        %v3852 = vsel %vm1681, %v2953, %v3242
        %v3854 = vsel %vm1681, %v2971, %v3244
        %v3856 = vsel %vm1746, %v3792, %v3326
        %v3858 = vsel %vm1746, %v3794, %v3328
        %v3860 = vsel %vm1746, %v3796, %v3330
        %v3862 = vsel %vm1746, %v3798, %v3332
        %v3864 = vsel %vm1746, %v3800, %v3334
        %v3866 = vsel %vm1746, %v3802, %v3336
        %v3868 = vsel %vm1746, %v3804, %v3338
        %v3870 = vsel %vm1746, %v3806, %v3340
        %v3872 = vsel %vm1746, %v3808, %v3342
        %v3874 = vsel %vm1746, %v3810, %v3344
        %v3876 = vsel %vm1746, %v3812, %v3346
        %v3878 = vsel %vm1746, %v3814, %v3348
        %v3880 = vsel %vm1746, %v3816, %v3350
        %v3882 = vsel %vm1746, %v3818, %v3352
        %v3884 = vsel %vm1746, %v3820, %v3354
        %v3886 = vsel %vm1746, %v3822, %v3356
        %v3888 = vsel %vm1746, %v3824, %v3358
        %v3890 = vsel %vm1746, %v3826, %v3360
        %v3892 = vsel %vm1746, %v3828, %v3362
        %v3894 = vsel %vm1746, %v3830, %v3364
        %v3896 = vsel %vm1746, %v3832, %v3366
        %v3898 = vsel %vm1746, %v3834, %v3368
        %v3900 = vsel %vm1746, %v3836, %v3370
        %v3902 = vsel %vm1746, %v3838, %v3372
        %v3904 = vsel %vm1746, %v3840, %v3374
        %v3906 = vsel %vm1746, %v3842, %v3376
        %v3908 = vsel %vm1746, %v3844, %v3378
        %v3910 = vsel %vm1746, %v3846, %v3380
        %v3912 = vsel %vm1746, %v3848, %v3382
        %v3914 = vsel %vm1746, %v3850, %v3384
        %v3916 = vsel %vm1746, %v3852, %v3386
        %v3918 = vsel %vm1746, %v3854, %v3388
        %v3920 = vsel %vm2064, %v3856, %v3392
        %v3922 = vsel %vm2064, %v3858, %v3394
        %v3924 = vsel %vm2064, %v3860, %v3396
        %v3926 = vsel %vm2064, %v3862, %v3398
        %v3928 = vsel %vm2064, %v3864, %v3400
        %v3930 = vsel %vm2064, %v3866, %v3402
        %v3932 = vsel %vm2064, %v3868, %v3404
        %v3934 = vsel %vm2064, %v3870, %v3406
        %v3936 = vsel %vm2064, %v3872, %v3408
        %v3938 = vsel %vm2064, %v3874, %v3410
        %v3940 = vsel %vm2064, %v3876, %v3412
        %v3942 = vsel %vm2064, %v3878, %v3414
        %v3944 = vsel %vm2064, %v3880, %v3416
        %v3946 = vsel %vm2064, %v3882, %v3418
        %v3948 = vsel %vm2064, %v3884, %v3420
        %v3950 = vsel %vm2064, %v3886, %v3422
        %v3952 = vsel %vm2064, %v3888, %v3424
        %v3954 = vsel %vm2064, %v3890, %v3426
        %v3956 = vsel %vm2064, %v3892, %v3428
        %v3958 = vsel %vm2064, %v3894, %v3430
        %v3960 = vsel %vm2064, %v3896, %v3432
        %v3962 = vsel %vm2064, %v3898, %v3434
        %v3964 = vsel %vm2064, %v3900, %v3436
        %v3966 = vsel %vm2064, %v3902, %v3438
        %v3968 = vsel %vm2064, %v3904, %v3440
        %v3970 = vsel %vm2064, %v3906, %v3442
        %v3972 = vsel %vm2064, %v3908, %v3444
        %v3974 = vsel %vm2064, %v3910, %v3446
        %v3976 = vsel %vm2064, %v3912, %v3448
        %v3978 = vsel %vm2064, %v3914, %v3450
        %v3980 = vsel %vm2064, %v3916, %v3452
        %v3982 = vsel %vm2064, %v3918, %v3454
        %vm3983 = vcmask 261120
        %v3985 = vsel %vm3983, %v3920, %v3469
        %v3987 = vsel %vm3983, %v3922, %v3471
        %v3989 = vsel %vm3983, %v3924, %v3473
        %v3991 = vsel %vm3983, %v3926, %v3475
        %v3993 = vsel %vm3983, %v3928, %v3477
        %v3995 = vsel %vm3983, %v3930, %v3479
        %v3997 = vsel %vm3983, %v3932, %v3481
        %v3999 = vsel %vm3983, %v3934, %v3483
        %v4001 = vsel %vm3983, %v3936, %v3485
        %v4003 = vsel %vm3983, %v3938, %v3487
        %v4005 = vsel %vm3983, %v3940, %v3489
        %v4007 = vsel %vm3983, %v3942, %v3491
        %v4009 = vsel %vm3983, %v3944, %v3493
        %v4011 = vsel %vm3983, %v3946, %v3495
        %v4013 = vsel %vm3983, %v3948, %v3497
        %v4015 = vsel %vm3983, %v3950, %v3499
        %v4017 = vsel %vm3983, %v3952, %v3501
        %v4019 = vsel %vm3983, %v3954, %v3503
        %v4021 = vsel %vm3983, %v3956, %v3505
        %v4023 = vsel %vm3983, %v3958, %v3507
        %v4025 = vsel %vm3983, %v3960, %v3509
        %v4027 = vsel %vm3983, %v3962, %v3511
        %v4029 = vsel %vm3983, %v3964, %v3513
        %v4031 = vsel %vm3983, %v3966, %v3515
        %v4033 = vsel %vm3983, %v3968, %v3517
        %v4035 = vsel %vm3983, %v3970, %v3519
        %v4037 = vsel %vm3983, %v3972, %v3521
        %v4039 = vsel %vm3983, %v3974, %v3523
        %v4041 = vsel %vm3983, %v3976, %v3525
        %v4043 = vsel %vm3983, %v3978, %v3527
        %v4045 = vsel %vm3983, %v3980, %v3529
        %v4047 = vsel %vm3983, %v3982, %v3531
        %vm4048 = vcmask 326656
        %v4050 = vsel %vm4048, %v3985, %v3536
        %v4052 = vsel %vm4048, %v3987, %v3538
        %v4054 = vsel %vm4048, %v3989, %v3540
        %v4056 = vsel %vm4048, %v3991, %v3542
        %v4058 = vsel %vm4048, %v3993, %v3544
        %v4060 = vsel %vm4048, %v3995, %v3546
        %v4062 = vsel %vm4048, %v3997, %v3548
        %v4064 = vsel %vm4048, %v3999, %v3550
        %v4066 = vsel %vm4048, %v4001, %v3552
        %v4068 = vsel %vm4048, %v4003, %v3554
        %v4070 = vsel %vm4048, %v4005, %v3556
        %v4072 = vsel %vm4048, %v4007, %v3558
        %v4074 = vsel %vm4048, %v4009, %v3560
        %v4076 = vsel %vm4048, %v4011, %v3562
        %v4078 = vsel %vm4048, %v4013, %v3564
        %v4080 = vsel %vm4048, %v4015, %v3566
        %v4082 = vsel %vm4048, %v4017, %v3568
        %v4084 = vsel %vm4048, %v4019, %v3570
        %v4086 = vsel %vm4048, %v4021, %v3572
        %v4088 = vsel %vm4048, %v4023, %v3574
        %v4090 = vsel %vm4048, %v4025, %v3576
        %v4092 = vsel %vm4048, %v4027, %v3578
        %v4094 = vsel %vm4048, %v4029, %v3580
        %v4096 = vsel %vm4048, %v4031, %v3582
        %v4098 = vsel %vm4048, %v4033, %v3584
        %v4100 = vsel %vm4048, %v4035, %v3586
        %v4102 = vsel %vm4048, %v4037, %v3588
        %v4104 = vsel %vm4048, %v4039, %v3590
        %v4106 = vsel %vm4048, %v4041, %v3592
        %v4108 = vsel %vm4048, %v4043, %v3594
        %v4110 = vsel %vm4048, %v4045, %v3596
        %v4112 = vsel %vm4048, %v4047, %v3598
        %vm4113 = vcmask 392192
        %v4115 = vsel %vm4113, %v4050, %v3600
        %v4117 = vsel %vm4113, %v4052, %v3602
        %v4119 = vsel %vm4113, %v4054, %v3604
        %v4121 = vsel %vm4113, %v4056, %v3606
        %v4123 = vsel %vm4113, %v4058, %v3608
        %v4125 = vsel %vm4113, %v4060, %v3610
        %v4127 = vsel %vm4113, %v4062, %v3612
        %v4129 = vsel %vm4113, %v4064, %v3614
        %v4131 = vsel %vm4113, %v4066, %v3616
        %v4133 = vsel %vm4113, %v4068, %v3618
        %v4135 = vsel %vm4113, %v4070, %v3620
        %v4137 = vsel %vm4113, %v4072, %v3622
        %v4139 = vsel %vm4113, %v4074, %v3624
        %v4141 = vsel %vm4113, %v4076, %v3626
        %v4143 = vsel %vm4113, %v4078, %v3628
        %v4145 = vsel %vm4113, %v4080, %v3630
        %v4147 = vsel %vm4113, %v4082, %v3632
        %v4149 = vsel %vm4113, %v4084, %v3634
        %v4151 = vsel %vm4113, %v4086, %v3636
        %v4153 = vsel %vm4113, %v4088, %v3638
        %v4155 = vsel %vm4113, %v4090, %v3640
        %v4157 = vsel %vm4113, %v4092, %v3642
        %v4159 = vsel %vm4113, %v4094, %v3644
        %v4161 = vsel %vm4113, %v4096, %v3646
        %v4163 = vsel %vm4113, %v4098, %v3648
        %v4165 = vsel %vm4113, %v4100, %v3650
        %v4167 = vsel %vm4113, %v4102, %v3652
        %v4169 = vsel %vm4113, %v4104, %v3654
        %v4171 = vsel %vm4113, %v4106, %v3656
        %v4173 = vsel %vm4113, %v4108, %v3658
        %v4175 = vsel %vm4113, %v4110, %v3660
        %v4177 = vsel %vm4113, %v4112, %v3662
        %vm4178 = vcmask 457728
        %v4180 = vsel %vm4178, %v4115, %v3664
        %v4182 = vsel %vm4178, %v4117, %v3666
        %v4184 = vsel %vm4178, %v4119, %v3668
        %v4186 = vsel %vm4178, %v4121, %v3670
        %v4188 = vsel %vm4178, %v4123, %v3672
        %v4190 = vsel %vm4178, %v4125, %v3674
        %v4192 = vsel %vm4178, %v4127, %v3676
        %v4194 = vsel %vm4178, %v4129, %v3678
        %v4196 = vsel %vm4178, %v4131, %v3680
        %v4198 = vsel %vm4178, %v4133, %v3682
        %v4200 = vsel %vm4178, %v4135, %v3684
        %v4202 = vsel %vm4178, %v4137, %v3686
        %v4204 = vsel %vm4178, %v4139, %v3688
        %v4206 = vsel %vm4178, %v4141, %v3690
        %v4208 = vsel %vm4178, %v4143, %v3692
        %v4210 = vsel %vm4178, %v4145, %v3694
        %v4212 = vsel %vm4178, %v4147, %v3696
        %v4214 = vsel %vm4178, %v4149, %v3698
        %v4216 = vsel %vm4178, %v4151, %v3700
        %v4218 = vsel %vm4178, %v4153, %v3702
        %v4220 = vsel %vm4178, %v4155, %v3704
        %v4222 = vsel %vm4178, %v4157, %v3706
        %v4224 = vsel %vm4178, %v4159, %v3708
        %v4226 = vsel %vm4178, %v4161, %v3710
        %v4228 = vsel %vm4178, %v4163, %v3712
        %v4230 = vsel %vm4178, %v4165, %v3714
        %v4232 = vsel %vm4178, %v4167, %v3716
        %v4234 = vsel %vm4178, %v4169, %v3718
        %v4236 = vsel %vm4178, %v4171, %v3720
        %v4238 = vsel %vm4178, %v4173, %v3722
        %v4240 = vsel %vm4178, %v4175, %v3724
        %v4242 = vsel %vm4178, %v4177, %v3726
        %vm4243 = vcmask 523264
        %v4245 = vsel %vm4243, %v4180, %v3728
        %v4247 = vsel %vm4243, %v4182, %v3730
        %v4249 = vsel %vm4243, %v4184, %v3732
        %v4251 = vsel %vm4243, %v4186, %v3734
        %v4253 = vsel %vm4243, %v4188, %v3736
        %v4255 = vsel %vm4243, %v4190, %v3738
        %v4257 = vsel %vm4243, %v4192, %v3740
        %v4259 = vsel %vm4243, %v4194, %v3742
        %v4261 = vsel %vm4243, %v4196, %v3744
        %v4263 = vsel %vm4243, %v4198, %v3746
        %v4265 = vsel %vm4243, %v4200, %v3748
        %v4267 = vsel %vm4243, %v4202, %v3750
        %v4269 = vsel %vm4243, %v4204, %v3752
        %v4271 = vsel %vm4243, %v4206, %v3754
        %v4273 = vsel %vm4243, %v4208, %v3756
        %v4275 = vsel %vm4243, %v4210, %v3758
        %v4277 = vsel %vm4243, %v4212, %v3760
        %v4279 = vsel %vm4243, %v4214, %v3762
        %v4281 = vsel %vm4243, %v4216, %v3764
        %v4283 = vsel %vm4243, %v4218, %v3766
        %v4285 = vsel %vm4243, %v4220, %v3768
        %v4287 = vsel %vm4243, %v4222, %v3770
        %v4289 = vsel %vm4243, %v4224, %v3772
        %v4291 = vsel %vm4243, %v4226, %v3774
        %v4293 = vsel %vm4243, %v4228, %v3776
        %v4295 = vsel %vm4243, %v4230, %v3778
        %v4297 = vsel %vm4243, %v4232, %v3780
        %v4299 = vsel %vm4243, %v4234, %v3782
        %v4301 = vsel %vm4243, %v4236, %v3784
        %v4303 = vsel %vm4243, %v4238, %v3786
        %v4305 = vsel %vm4243, %v4240, %v3788
        %v4307 = vsel %vm4243, %v4242, %v3790
        %v4308 = vshrl.u32 %v4245, 16
        %v4310 = vrot.slane %v4308, 3
        %v4311 = vshll.u32 %v4245, 16
        %v4313 = vrot.slane %v4311, 4
        %v4314 = vor.u32 %v4310, %v4313
        %v4315 = vshrl.u32 %v4247, 16
        %v4317 = vrot.slane %v4315, 3
        %v4318 = vshll.u32 %v4247, 16
        %v4320 = vrot.slane %v4318, 4
        %v4321 = vor.u32 %v4317, %v4320
        %v4322 = vsel %vm1811, %v4314, %v4321
        %v4323 = vshrl.u32 %v4249, 16
        %v4325 = vrot.slane %v4323, 3
        %v4326 = vshll.u32 %v4249, 16
        %v4328 = vrot.slane %v4326, 4
        %v4329 = vor.u32 %v4325, %v4328
        %v4330 = vshrl.u32 %v4251, 16
        %v4332 = vrot.slane %v4330, 3
        %v4333 = vshll.u32 %v4251, 16
        %v4335 = vrot.slane %v4333, 4
        %v4336 = vor.u32 %v4332, %v4335
        %v4337 = vsel %vm1811, %v4329, %v4336
        %v4338 = vshrl.u32 %v4253, 16
        %v4340 = vrot.slane %v4338, 3
        %v4341 = vshll.u32 %v4253, 16
        %v4343 = vrot.slane %v4341, 4
        %v4344 = vor.u32 %v4340, %v4343
        %v4345 = vshrl.u32 %v4255, 16
        %v4347 = vrot.slane %v4345, 3
        %v4348 = vshll.u32 %v4255, 16
        %v4350 = vrot.slane %v4348, 4
        %v4351 = vor.u32 %v4347, %v4350
        %v4352 = vsel %vm1811, %v4344, %v4351
        %v4353 = vshrl.u32 %v4257, 16
        %v4355 = vrot.slane %v4353, 3
        %v4356 = vshll.u32 %v4257, 16
        %v4358 = vrot.slane %v4356, 4
        %v4359 = vor.u32 %v4355, %v4358
        %v4360 = vshrl.u32 %v4259, 16
        %v4362 = vrot.slane %v4360, 3
        %v4363 = vshll.u32 %v4259, 16
        %v4365 = vrot.slane %v4363, 4
        %v4366 = vor.u32 %v4362, %v4365
        %v4367 = vsel %vm1811, %v4359, %v4366
        %v4368 = vshrl.u32 %v4261, 16
        %v4370 = vrot.slane %v4368, 3
        %v4371 = vshll.u32 %v4261, 16
        %v4373 = vrot.slane %v4371, 4
        %v4374 = vor.u32 %v4370, %v4373
        %v4375 = vshrl.u32 %v4263, 16
        %v4377 = vrot.slane %v4375, 3
        %v4378 = vshll.u32 %v4263, 16
        %v4380 = vrot.slane %v4378, 4
        %v4381 = vor.u32 %v4377, %v4380
        %v4382 = vsel %vm1811, %v4374, %v4381
        %v4383 = vshrl.u32 %v4265, 16
        %v4385 = vrot.slane %v4383, 3
        %v4386 = vshll.u32 %v4265, 16
        %v4388 = vrot.slane %v4386, 4
        %v4389 = vor.u32 %v4385, %v4388
        %v4390 = vshrl.u32 %v4267, 16
        %v4392 = vrot.slane %v4390, 3
        %v4393 = vshll.u32 %v4267, 16
        %v4395 = vrot.slane %v4393, 4
        %v4396 = vor.u32 %v4392, %v4395
        %v4397 = vsel %vm1811, %v4389, %v4396
        %v4398 = vshrl.u32 %v4269, 16
        %v4400 = vrot.slane %v4398, 3
        %v4401 = vshll.u32 %v4269, 16
        %v4403 = vrot.slane %v4401, 4
        %v4404 = vor.u32 %v4400, %v4403
        %v4405 = vshrl.u32 %v4271, 16
        %v4407 = vrot.slane %v4405, 3
        %v4408 = vshll.u32 %v4271, 16
        %v4410 = vrot.slane %v4408, 4
        %v4411 = vor.u32 %v4407, %v4410
        %v4412 = vsel %vm1811, %v4404, %v4411
        %v4413 = vshrl.u32 %v4273, 16
        %v4415 = vrot.slane %v4413, 3
        %v4416 = vshll.u32 %v4273, 16
        %v4418 = vrot.slane %v4416, 4
        %v4419 = vor.u32 %v4415, %v4418
        %v4420 = vshrl.u32 %v4275, 16
        %v4422 = vrot.slane %v4420, 3
        %v4423 = vshll.u32 %v4275, 16
        %v4425 = vrot.slane %v4423, 4
        %v4426 = vor.u32 %v4422, %v4425
        %v4427 = vsel %vm1811, %v4419, %v4426
        %v4428 = vshrl.u32 %v4277, 16
        %v4430 = vrot.slane %v4428, 3
        %v4431 = vshll.u32 %v4277, 16
        %v4433 = vrot.slane %v4431, 4
        %v4434 = vor.u32 %v4430, %v4433
        %v4435 = vshrl.u32 %v4279, 16
        %v4437 = vrot.slane %v4435, 3
        %v4438 = vshll.u32 %v4279, 16
        %v4440 = vrot.slane %v4438, 4
        %v4441 = vor.u32 %v4437, %v4440
        %v4442 = vsel %vm1811, %v4434, %v4441
        %v4443 = vshrl.u32 %v4281, 16
        %v4445 = vrot.slane %v4443, 3
        %v4446 = vshll.u32 %v4281, 16
        %v4448 = vrot.slane %v4446, 4
        %v4449 = vor.u32 %v4445, %v4448
        %v4450 = vshrl.u32 %v4283, 16
        %v4452 = vrot.slane %v4450, 3
        %v4453 = vshll.u32 %v4283, 16
        %v4455 = vrot.slane %v4453, 4
        %v4456 = vor.u32 %v4452, %v4455
        %v4457 = vsel %vm1811, %v4449, %v4456
        %v4458 = vshrl.u32 %v4285, 16
        %v4460 = vrot.slane %v4458, 3
        %v4461 = vshll.u32 %v4285, 16
        %v4463 = vrot.slane %v4461, 4
        %v4464 = vor.u32 %v4460, %v4463
        %v4465 = vshrl.u32 %v4287, 16
        %v4467 = vrot.slane %v4465, 3
        %v4468 = vshll.u32 %v4287, 16
        %v4470 = vrot.slane %v4468, 4
        %v4471 = vor.u32 %v4467, %v4470
        %v4472 = vsel %vm1811, %v4464, %v4471
        %v4473 = vshrl.u32 %v4289, 16
        %v4475 = vrot.slane %v4473, 3
        %v4476 = vshll.u32 %v4289, 16
        %v4478 = vrot.slane %v4476, 4
        %v4479 = vor.u32 %v4475, %v4478
        %v4480 = vshrl.u32 %v4291, 16
        %v4482 = vrot.slane %v4480, 3
        %v4483 = vshll.u32 %v4291, 16
        %v4485 = vrot.slane %v4483, 4
        %v4486 = vor.u32 %v4482, %v4485
        %v4487 = vsel %vm1811, %v4479, %v4486
        %v4488 = vshrl.u32 %v4293, 16
        %v4490 = vrot.slane %v4488, 3
        %v4491 = vshll.u32 %v4293, 16
        %v4493 = vrot.slane %v4491, 4
        %v4494 = vor.u32 %v4490, %v4493
        %v4495 = vshrl.u32 %v4295, 16
        %v4497 = vrot.slane %v4495, 3
        %v4498 = vshll.u32 %v4295, 16
        %v4500 = vrot.slane %v4498, 4
        %v4501 = vor.u32 %v4497, %v4500
        %v4502 = vsel %vm1811, %v4494, %v4501
        %v4503 = vshrl.u32 %v4297, 16
        %v4505 = vrot.slane %v4503, 3
        %v4506 = vshll.u32 %v4297, 16
        %v4508 = vrot.slane %v4506, 4
        %v4509 = vor.u32 %v4505, %v4508
        %v4510 = vshrl.u32 %v4299, 16
        %v4512 = vrot.slane %v4510, 3
        %v4513 = vshll.u32 %v4299, 16
        %v4515 = vrot.slane %v4513, 4
        %v4516 = vor.u32 %v4512, %v4515
        %v4517 = vsel %vm1811, %v4509, %v4516
        %v4518 = vshrl.u32 %v4301, 16
        %v4520 = vrot.slane %v4518, 3
        %v4521 = vshll.u32 %v4301, 16
        %v4523 = vrot.slane %v4521, 4
        %v4524 = vor.u32 %v4520, %v4523
        %v4525 = vshrl.u32 %v4303, 16
        %v4527 = vrot.slane %v4525, 3
        %v4528 = vshll.u32 %v4303, 16
        %v4530 = vrot.slane %v4528, 4
        %v4531 = vor.u32 %v4527, %v4530
        %v4532 = vsel %vm1811, %v4524, %v4531
        %v4533 = vshrl.u32 %v4305, 16
        %v4535 = vrot.slane %v4533, 3
        %v4536 = vshll.u32 %v4305, 16
        %v4538 = vrot.slane %v4536, 4
        %v4539 = vor.u32 %v4535, %v4538
        %v4540 = vshrl.u32 %v4307, 16
        %v4542 = vrot.slane %v4540, 3
        %v4543 = vshll.u32 %v4307, 16
        %v4545 = vrot.slane %v4543, 4
        %v4546 = vor.u32 %v4542, %v4545
        %v4547 = vsel %vm1811, %v4539, %v4546
        %v4548 = vld [vmem:[#allocation14] sm:$0xf]
        %v4549 = vld [vmem:[#allocation14 + $0x4] sm:$0xf]
        %v4550 = vld [vmem:[#allocation14 + $0x8] sm:$0xf]
        %v4551 = vld [vmem:[#allocation14 + $0xc] sm:$0xf]
        %v4552 = vld [vmem:[#allocation14 + $0x10] sm:$0xf]
        %v4553 = vld [vmem:[#allocation14 + $0x14] sm:$0xf]
        %v4554 = vld [vmem:[#allocation14 + $0x18] sm:$0xf]
        %v4555 = vld [vmem:[#allocation14 + $0x1c] sm:$0xf]
        %v4556 = vld [vmem:[#allocation14 + $0x20] sm:$0xf]
        %v4566 = vunpack.c.l.b16 %v4548
        %v4567 = vunpack.c.l.b16 %v4549
        %v4568 = vunpack.c.l.b16 %v4550
        %v4569 = vunpack.c.l.b16 %v4551
        %v4570 = vunpack.c.l.b16 %v4552
        %v4571 = vunpack.c.l.b16 %v4553
        %v4572 = vunpack.c.l.b16 %v4554
        %v4573 = vunpack.c.l.b16 %v4555
        %v4574 = vunpack.c.l.b16 %v4556
        %v4575 = vpack.c.b16 %v4567, %v4566
        %v4576 = vpack.c.b16 %v4569, %v4568
        %v4577 = vpack.c.b16 %v4571, %v4570
        %v4578 = vpack.c.b16 %v4573, %v4572
        %v4579 = vpack.c.b16 %v4574, %v4574
        %vm4584 = vcmask 588800
        %v4586 = vsel %vm4584, %v4322, 0
        %v4589 = vsel %vm4584, %v4337, 0
        %v4592 = vsel %vm4584, %v4352, 0
        %v4595 = vsel %vm4584, %v4367, 0
        %v4598 = vsel %vm4584, %v4382, 0
        %v4601 = vsel %vm4584, %v4397, 0
        %v4604 = vsel %vm4584, %v4412, 0
        %v4607 = vsel %vm4584, %v4427, 0
        %v4610 = vsel %vm4584, %v4442, 0
        %v4613 = vsel %vm4584, %v4457, 0
        %v4616 = vsel %vm4584, %v4472, 0
        %v4619 = vsel %vm4584, %v4487, 0
        %v4622 = vsel %vm4584, %v4502, 0
        %v4625 = vsel %vm4584, %v4517, 0
        %v4628 = vsel %vm4584, %v4532, 0
        %v4631 = vsel %vm4584, %v4547, 0
        %v4634 = vsel %vm1213, %v4579, 0
        %4636 = vmatprep.subr.bf16.mxu0 0
        %4637 = vmatpush1.bf16.msra.mxu0 %v4575
        %4638 = vmatprep.subr.bf16.mxu0 0
        %4639 = vmatpush1.bf16.msra.mxu0 %v4576
        %4640 = vmatprep.subr.bf16.mxu0 0
        %4641 = vmatpush1.bf16.msra.mxu0 %v4577
        %4642 = vmatprep.subr.bf16.mxu0 0
        %4643 = vmatpush1.bf16.msra.mxu0 %v4578
        %4644 = vmatprep.subr.bf16.mxu0 0
        %4645 = vmatpush1.bf16.msra.mxu0 %v4634
        %4646 = vmatprep.subr.bf16.mxu0 0
        %4647 = vmatpush1.bf16.msra.mxu0 0
        %4648 = vmatprep.subr.bf16.mxu0 0
        %4649 = vmatpush1.bf16.msra.mxu0 0
        %4650 = vmatprep.subr.bf16.mxu0 0
        %4651 = vmatpush1.bf16.msra.mxu0 0
        %4652 = vmatprep.subr.bf16.mxu0 0
        %4653 = vmatpush1.bf16.msra.mxu0 0
        %4654 = vmatprep.subr.bf16.mxu0 0
        %4655 = vmatpush1.bf16.msra.mxu0 0
        %4656 = vmatprep.subr.bf16.mxu0 0
        %4657 = vmatpush1.bf16.msra.mxu0 0
        %4658 = vmatprep.subr.bf16.mxu0 0
        %4659 = vmatpush1.bf16.msra.mxu0 0
        %4660 = vmatprep.subr.bf16.mxu0 0
        %4661 = vmatpush1.bf16.msra.mxu0 0
        %4662 = vmatprep.subr.bf16.mxu0 0
        %4663 = vmatpush1.bf16.msra.mxu0 0
        %4664 = vmatprep.subr.bf16.mxu0 0
        %4665 = vmatpush1.bf16.msra.mxu0 0
        %4666 = vmatprep.subr.bf16.mxu0 0
        %4667 = vmatpush1.bf16.msra.mxu0 0
        %4668 = vmatprep.mubr.bf16.mxu0 0
        %4669 = vmatmul.mubr.bf16.gmra.mrb[0].mxu0 %v4586
        %v4670 = vpop.f32.mrb[0].mxu0
        %v4671 = vadd.f32 0.0, %v4670
        %v4672 = vpop.f32.mrb[0].mxu0
        %v4673 = vpop.f32.mrb[0].mxu0
        %v4674 = vadd.f32 0.0, %v4673
        %v4675 = vpop.f32.mrb[0].mxu0
        %4676 = vmatprep.mubr.bf16.mxu0 0
        %4677 = vmatmul.mubr.bf16.gmra.mrb[0].mxu0 %v4589
        %v4678 = vpop.f32.mrb[0].mxu0
        %v4679 = vadd.f32 0.0, %v4678
        %v4680 = vpop.f32.mrb[0].mxu0
        %v4681 = vpop.f32.mrb[0].mxu0
        %v4682 = vadd.f32 0.0, %v4681
        %v4683 = vpop.f32.mrb[0].mxu0
        %4684 = vmatprep.mubr.bf16.mxu0 0
        %4685 = vmatmul.mubr.bf16.gmra.mrb[0].mxu0 %v4592
        %v4686 = vpop.f32.mrb[0].mxu0
        %v4687 = vadd.f32 0.0, %v4686
        %v4688 = vpop.f32.mrb[0].mxu0
        %v4689 = vpop.f32.mrb[0].mxu0
        %v4690 = vadd.f32 0.0, %v4689
        %v4691 = vpop.f32.mrb[0].mxu0
        %4692 = vmatprep.mubr.bf16.mxu0 0
        %4693 = vmatmul.mubr.bf16.gmra.mrb[0].mxu0 %v4595
        %v4694 = vpop.f32.mrb[0].mxu0
        %v4695 = vadd.f32 0.0, %v4694
        %v4696 = vpop.f32.mrb[0].mxu0
        %v4697 = vpop.f32.mrb[0].mxu0
        %v4698 = vadd.f32 0.0, %v4697
        %v4699 = vpop.f32.mrb[0].mxu0
        %4700 = vmatprep.mubr.bf16.mxu0 0
        %4701 = vmatmul.mubr.bf16.gmra.mrb[0].mxu0 %v4598
        %v4702 = vpop.f32.mrb[0].mxu0
        %v4703 = vadd.f32 0.0, %v4702
        %v4704 = vpop.f32.mrb[0].mxu0
        %v4705 = vpop.f32.mrb[0].mxu0
        %v4706 = vadd.f32 0.0, %v4705
        %v4707 = vpop.f32.mrb[0].mxu0
        %4708 = vmatprep.mubr.bf16.mxu0 0
        %4709 = vmatmul.mubr.bf16.gmra.mrb[0].mxu0 %v4601
        %v4710 = vpop.f32.mrb[0].mxu0
        %v4711 = vadd.f32 0.0, %v4710
        %v4712 = vpop.f32.mrb[0].mxu0
        %v4713 = vpop.f32.mrb[0].mxu0
        %v4714 = vadd.f32 0.0, %v4713
        %v4715 = vpop.f32.mrb[0].mxu0
        %4716 = vmatprep.mubr.bf16.mxu0 0
        %4717 = vmatmul.mubr.bf16.gmra.mrb[0].mxu0 %v4604
        %v4718 = vpop.f32.mrb[0].mxu0
        %v4719 = vadd.f32 0.0, %v4718
        %v4720 = vpop.f32.mrb[0].mxu0
        %v4721 = vpop.f32.mrb[0].mxu0
        %v4722 = vadd.f32 0.0, %v4721
        %v4723 = vpop.f32.mrb[0].mxu0
        %4724 = vmatprep.mubr.bf16.mxu0 0
        %4725 = vmatmul.mubr.bf16.gmra.mrb[0].mxu0 %v4607
        %v4726 = vpop.f32.mrb[0].mxu0
        %v4727 = vadd.f32 0.0, %v4726
        %v4728 = vpop.f32.mrb[0].mxu0
        %v4729 = vpop.f32.mrb[0].mxu0
        %v4730 = vadd.f32 0.0, %v4729
        %v4731 = vpop.f32.mrb[0].mxu0
        %4732 = vmatprep.mubr.bf16.mxu0 0
        %4733 = vmatmul.mubr.bf16.gmra.mrb[0].mxu0 %v4610
        %v4734 = vpop.f32.mrb[0].mxu0
        %v4735 = vadd.f32 0.0, %v4734
        %v4736 = vpop.f32.mrb[0].mxu0
        %v4737 = vpop.f32.mrb[0].mxu0
        %v4738 = vadd.f32 0.0, %v4737
        %v4739 = vpop.f32.mrb[0].mxu0
        %4740 = vmatprep.mubr.bf16.mxu0 0
        %4741 = vmatmul.mubr.bf16.gmra.mrb[0].mxu0 %v4613
        %v4742 = vpop.f32.mrb[0].mxu0
        %v4743 = vadd.f32 0.0, %v4742
        %v4744 = vpop.f32.mrb[0].mxu0
        %v4745 = vpop.f32.mrb[0].mxu0
        %v4746 = vadd.f32 0.0, %v4745
        %v4747 = vpop.f32.mrb[0].mxu0
        %4748 = vmatprep.mubr.bf16.mxu0 0
        %4749 = vmatmul.mubr.bf16.gmra.mrb[0].mxu0 %v4616
        %v4750 = vpop.f32.mrb[0].mxu0
        %v4751 = vadd.f32 0.0, %v4750
        %v4752 = vpop.f32.mrb[0].mxu0
        %v4753 = vpop.f32.mrb[0].mxu0
        %v4754 = vadd.f32 0.0, %v4753
        %v4755 = vpop.f32.mrb[0].mxu0
        %4756 = vmatprep.mubr.bf16.mxu0 0
        %4757 = vmatmul.mubr.bf16.gmra.mrb[0].mxu0 %v4619
        %v4758 = vpop.f32.mrb[0].mxu0
        %v4759 = vadd.f32 0.0, %v4758
        %v4760 = vpop.f32.mrb[0].mxu0
        %v4761 = vpop.f32.mrb[0].mxu0
        %v4762 = vadd.f32 0.0, %v4761
        %v4763 = vpop.f32.mrb[0].mxu0
        %4764 = vmatprep.mubr.bf16.mxu0 0
        %4765 = vmatmul.mubr.bf16.gmra.mrb[0].mxu0 %v4622
        %v4766 = vpop.f32.mrb[0].mxu0
        %v4767 = vadd.f32 0.0, %v4766
        %v4768 = vpop.f32.mrb[0].mxu0
        %v4769 = vpop.f32.mrb[0].mxu0
        %v4770 = vadd.f32 0.0, %v4769
        %v4771 = vpop.f32.mrb[0].mxu0
        %4772 = vmatprep.mubr.bf16.mxu0 0
        %4773 = vmatmul.mubr.bf16.gmra.mrb[0].mxu0 %v4625
        %v4774 = vpop.f32.mrb[0].mxu0
        %v4775 = vadd.f32 0.0, %v4774
        %v4776 = vpop.f32.mrb[0].mxu0
        %v4777 = vpop.f32.mrb[0].mxu0
        %v4778 = vadd.f32 0.0, %v4777
        %v4779 = vpop.f32.mrb[0].mxu0
        %4780 = vmatprep.mubr.bf16.mxu0 0
        %4781 = vmatmul.mubr.bf16.gmra.mrb[0].mxu0 %v4628
        %v4782 = vpop.f32.mrb[0].mxu0
        %v4783 = vadd.f32 0.0, %v4782
        %v4784 = vpop.f32.mrb[0].mxu0
        %v4785 = vpop.f32.mrb[0].mxu0
        %v4786 = vadd.f32 0.0, %v4785
        %v4787 = vpop.f32.mrb[0].mxu0
        %4788 = vmatprep.mubr.bf16.mxu0 0
        %4789 = vmatmul.mubr.bf16.gmra.mrb[0].mxu0 %v4631
        %v4790 = vpop.f32.mrb[0].mxu0
        %v4791 = vadd.f32 0.0, %v4790
        %v4792 = vpop.f32.mrb[0].mxu0
        %v4793 = vpop.f32.mrb[0].mxu0
        %v4794 = vadd.f32 0.0, %v4793
        %v4795 = vpop.f32.mrb[0].mxu0
        %4796 = vdwg.mxu0
        %v4797 = vld [vmem:[#allocation16] sm:$0x1]
        %v4798 = vlaneseq
        %v4799 = vshrl.u32 %v4798, 7
        %v4800 = vsub.s32 0, %v4799
        %v4801 = vrot.slane %v4797, %v4800
        %v4802 = vmul.f32 %v4671, %v4801
        %v4803 = vmul.f32 %v4674, %v4801
        %v4804 = vmul.f32 %v4679, %v4801
        %v4805 = vmul.f32 %v4682, %v4801
        %v4806 = vmul.f32 %v4687, %v4801
        %v4807 = vmul.f32 %v4690, %v4801
        %v4808 = vmul.f32 %v4695, %v4801
        %v4809 = vmul.f32 %v4698, %v4801
        %v4810 = vmul.f32 %v4703, %v4801
        %v4811 = vmul.f32 %v4706, %v4801
        %v4812 = vmul.f32 %v4711, %v4801
        %v4813 = vmul.f32 %v4714, %v4801
        %v4814 = vmul.f32 %v4719, %v4801
        %v4815 = vmul.f32 %v4722, %v4801
        %v4816 = vmul.f32 %v4727, %v4801
        %v4817 = vmul.f32 %v4730, %v4801
        %v4818 = vmul.f32 %v4735, %v4801
        %v4819 = vmul.f32 %v4738, %v4801
        %v4820 = vmul.f32 %v4743, %v4801
        %v4821 = vmul.f32 %v4746, %v4801
        %v4822 = vmul.f32 %v4751, %v4801
        %v4823 = vmul.f32 %v4754, %v4801
        %v4824 = vmul.f32 %v4759, %v4801
        %v4825 = vmul.f32 %v4762, %v4801
        %v4826 = vmul.f32 %v4767, %v4801
        %v4827 = vmul.f32 %v4770, %v4801
        %v4828 = vmul.f32 %v4775, %v4801
        %v4829 = vmul.f32 %v4778, %v4801
        %v4830 = vmul.f32 %v4783, %v4801
        %v4831 = vmul.f32 %v4786, %v4801
        %v4832 = vmul.f32 %v4791, %v4801
        %v4833 = vmul.f32 %v4794, %v4801
        %v4834 = vld [vmem:[#allocation16 + $0x1] sm:$0x1]
        %v4835 = vlaneseq
        %v4836 = vshrl.u32 %v4835, 7
        %v4837 = vsub.s32 0, %v4836
        %v4838 = vrot.slane %v4834, %v4837
        %v4839 = vadd.f32 %v4802, %v4838
        %v4840 = vadd.f32 %v4803, %v4838
        %v4841 = vadd.f32 %v4804, %v4838
        %v4842 = vadd.f32 %v4805, %v4838
        %v4843 = vadd.f32 %v4806, %v4838
        %v4844 = vadd.f32 %v4807, %v4838
        %v4845 = vadd.f32 %v4808, %v4838
        %v4846 = vadd.f32 %v4809, %v4838
        %v4847 = vadd.f32 %v4810, %v4838
        %v4848 = vadd.f32 %v4811, %v4838
        %v4849 = vadd.f32 %v4812, %v4838
        %v4850 = vadd.f32 %v4813, %v4838
        %v4851 = vadd.f32 %v4814, %v4838
        %v4852 = vadd.f32 %v4815, %v4838
        %v4853 = vadd.f32 %v4816, %v4838
        %v4854 = vadd.f32 %v4817, %v4838
        %v4855 = vadd.f32 %v4818, %v4838
        %v4856 = vadd.f32 %v4819, %v4838
        %v4857 = vadd.f32 %v4820, %v4838
        %v4858 = vadd.f32 %v4821, %v4838
        %v4859 = vadd.f32 %v4822, %v4838
        %v4860 = vadd.f32 %v4823, %v4838
        %v4861 = vadd.f32 %v4824, %v4838
        %v4862 = vadd.f32 %v4825, %v4838
        %v4863 = vadd.f32 %v4826, %v4838
        %v4864 = vadd.f32 %v4827, %v4838
        %v4865 = vadd.f32 %v4828, %v4838
        %v4866 = vadd.f32 %v4829, %v4838
        %v4867 = vadd.f32 %v4830, %v4838
        %v4868 = vadd.f32 %v4831, %v4838
        %v4869 = vadd.f32 %v4832, %v4838
        %v4870 = vadd.f32 %v4833, %v4838
        %v4871 = vmax.f32 %v4839, 0.0
        %v4872 = vmax.f32 %v4840, 0.0
        %v4873 = vmax.f32 %v4841, 0.0
        %v4874 = vmax.f32 %v4842, 0.0
        %v4875 = vmax.f32 %v4843, 0.0
        %v4876 = vmax.f32 %v4844, 0.0
        %v4877 = vmax.f32 %v4845, 0.0
        %v4878 = vmax.f32 %v4846, 0.0
        %v4879 = vmax.f32 %v4847, 0.0
        %v4880 = vmax.f32 %v4848, 0.0
        %v4881 = vmax.f32 %v4849, 0.0
        %v4882 = vmax.f32 %v4850, 0.0
        %v4883 = vmax.f32 %v4851, 0.0
        %v4884 = vmax.f32 %v4852, 0.0
        %v4885 = vmax.f32 %v4853, 0.0
        %v4886 = vmax.f32 %v4854, 0.0
        %v4887 = vmax.f32 %v4855, 0.0
        %v4888 = vmax.f32 %v4856, 0.0
        %v4889 = vmax.f32 %v4857, 0.0
        %v4890 = vmax.f32 %v4858, 0.0
        %v4891 = vmax.f32 %v4859, 0.0
        %v4892 = vmax.f32 %v4860, 0.0
        %v4893 = vmax.f32 %v4861, 0.0
        %v4894 = vmax.f32 %v4862, 0.0
        %v4895 = vmax.f32 %v4863, 0.0
        %v4896 = vmax.f32 %v4864, 0.0
        %v4897 = vmax.f32 %v4865, 0.0
        %v4898 = vmax.f32 %v4866, 0.0
        %v4899 = vmax.f32 %v4867, 0.0
        %v4900 = vmax.f32 %v4868, 0.0
        %v4901 = vmax.f32 %v4869, 0.0
        %v4902 = vmax.f32 %v4870, 0.0
        %v4903 = vpack.c.bf16 %v4872, %v4871
        %v4904 = vpack.c.bf16 %v4874, %v4873
        %v4905 = vpack.c.bf16 %v4876, %v4875
        %v4906 = vpack.c.bf16 %v4878, %v4877
        %v4907 = vpack.c.bf16 %v4880, %v4879
        %v4908 = vpack.c.bf16 %v4882, %v4881
        %v4909 = vpack.c.bf16 %v4884, %v4883
        %v4910 = vpack.c.bf16 %v4886, %v4885
        %v4911 = vpack.c.bf16 %v4888, %v4887
        %v4912 = vpack.c.bf16 %v4890, %v4889
        %v4913 = vpack.c.bf16 %v4892, %v4891
        %v4914 = vpack.c.bf16 %v4894, %v4893
        %v4915 = vpack.c.bf16 %v4896, %v4895
        %v4916 = vpack.c.bf16 %v4898, %v4897
        %v4917 = vpack.c.bf16 %v4900, %v4899
        %v4918 = vpack.c.bf16 %v4902, %v4901
        %v4935 = vrot.slane %v4903, 4
        %v4936 = vrot.slane %v4904, 4
        %v4937 = vrot.slane %v4905, 4
        %v4938 = vrot.slane %v4906, 4
        %v4939 = vrot.slane %v4907, 4
        %v4940 = vrot.slane %v4908, 4
        %v4941 = vrot.slane %v4909, 4
        %v4942 = vrot.slane %v4910, 4
        %v4943 = vrot.slane %v4911, 4
        %v4944 = vrot.slane %v4912, 4
        %v4945 = vrot.slane %v4913, 4
        %v4946 = vrot.slane %v4914, 4
        %v4947 = vrot.slane %v4915, 4
        %v4948 = vrot.slane %v4916, 4
        %v4949 = vrot.slane %v4917, 4
        %v4950 = vrot.slane %v4918, 4
        %v4952 = vsel %vm1213, 0, %v4935
        %v4954 = vsel %vm1213, 0, %v4936
        %v4956 = vsel %vm1213, 0, %v4937
        %v4958 = vsel %vm1213, 0, %v4938
        %v4960 = vsel %vm1213, 0, %v4939
        %v4962 = vsel %vm1213, 0, %v4940
        %v4964 = vsel %vm1213, 0, %v4941
        %v4966 = vsel %vm1213, 0, %v4942
        %v4968 = vsel %vm1213, 0, %v4943
        %v4970 = vsel %vm1213, 0, %v4944
        %v4972 = vsel %vm1213, 0, %v4945
        %v4974 = vsel %vm1213, 0, %v4946
        %v4976 = vsel %vm1213, 0, %v4947
        %v4978 = vsel %vm1213, 0, %v4948
        %v4980 = vsel %vm1213, 0, %v4949
        %v4982 = vsel %vm1213, 0, %v4950
        %v4983 = vsel %vm1213, %v4935, 0
        %v4984 = vsel %vm1213, %v4936, 0
        %v4985 = vsel %vm1213, %v4937, 0
        %v4986 = vsel %vm1213, %v4938, 0
        %v4987 = vsel %vm1213, %v4939, 0
        %v4988 = vsel %vm1213, %v4940, 0
        %v4989 = vsel %vm1213, %v4941, 0
        %v4990 = vsel %vm1213, %v4942, 0
        %v4991 = vsel %vm1213, %v4943, 0
        %v4992 = vsel %vm1213, %v4944, 0
        %v4993 = vsel %vm1213, %v4945, 0
        %v4994 = vsel %vm1213, %v4946, 0
        %v4995 = vsel %vm1213, %v4947, 0
        %v4996 = vsel %vm1213, %v4948, 0
        %v4997 = vsel %vm1213, %v4949, 0
        %v4998 = vsel %vm1213, %v4950, 0
        %v4999 = vshrl.u32 %v4952, 16
        %v5001 = vshll.u32 %v4952, 16
        %v5003 = vrot.slane %v5001, 1
        %v5004 = vor.u32 %v4999, %v5003
        %v5005 = vshll.u32 %v4983, 16
        %v5007 = vrot.slane %v5005, 1
        %v5008 = vsel %vm1263, %v5004, %v5007
        %v5009 = vshrl.u32 %v4983, 16
        %v5011 = vor.u32 %v5009, %v5007
        %v5012 = vshrl.u32 %v4954, 16
        %v5014 = vshll.u32 %v4954, 16
        %v5016 = vrot.slane %v5014, 1
        %v5017 = vor.u32 %v5012, %v5016
        %v5018 = vshll.u32 %v4984, 16
        %v5020 = vrot.slane %v5018, 1
        %v5021 = vsel %vm1263, %v5017, %v5020
        %v5022 = vshrl.u32 %v4984, 16
        %v5024 = vor.u32 %v5022, %v5020
        %v5025 = vshrl.u32 %v4956, 16
        %v5027 = vshll.u32 %v4956, 16
        %v5029 = vrot.slane %v5027, 1
        %v5030 = vor.u32 %v5025, %v5029
        %v5031 = vshll.u32 %v4985, 16
        %v5033 = vrot.slane %v5031, 1
        %v5034 = vsel %vm1263, %v5030, %v5033
        %v5035 = vshrl.u32 %v4985, 16
        %v5037 = vor.u32 %v5035, %v5033
        %v5038 = vshrl.u32 %v4958, 16
        %v5040 = vshll.u32 %v4958, 16
        %v5042 = vrot.slane %v5040, 1
        %v5043 = vor.u32 %v5038, %v5042
        %v5044 = vshll.u32 %v4986, 16
        %v5046 = vrot.slane %v5044, 1
        %v5047 = vsel %vm1263, %v5043, %v5046
        %v5048 = vshrl.u32 %v4986, 16
        %v5050 = vor.u32 %v5048, %v5046
        %v5051 = vshrl.u32 %v4960, 16
        %v5053 = vshll.u32 %v4960, 16
        %v5055 = vrot.slane %v5053, 1
        %v5056 = vor.u32 %v5051, %v5055
        %v5057 = vshll.u32 %v4987, 16
        %v5059 = vrot.slane %v5057, 1
        %v5060 = vsel %vm1263, %v5056, %v5059
        %v5061 = vshrl.u32 %v4987, 16
        %v5063 = vor.u32 %v5061, %v5059
        %v5064 = vshrl.u32 %v4962, 16
        %v5066 = vshll.u32 %v4962, 16
        %v5068 = vrot.slane %v5066, 1
        %v5069 = vor.u32 %v5064, %v5068
        %v5070 = vshll.u32 %v4988, 16
        %v5072 = vrot.slane %v5070, 1
        %v5073 = vsel %vm1263, %v5069, %v5072
        %v5074 = vshrl.u32 %v4988, 16
        %v5076 = vor.u32 %v5074, %v5072
        %v5077 = vshrl.u32 %v4964, 16
        %v5079 = vshll.u32 %v4964, 16
        %v5081 = vrot.slane %v5079, 1
        %v5082 = vor.u32 %v5077, %v5081
        %v5083 = vshll.u32 %v4989, 16
        %v5085 = vrot.slane %v5083, 1
        %v5086 = vsel %vm1263, %v5082, %v5085
        %v5087 = vshrl.u32 %v4989, 16
        %v5089 = vor.u32 %v5087, %v5085
        %v5090 = vshrl.u32 %v4966, 16
        %v5092 = vshll.u32 %v4966, 16
        %v5094 = vrot.slane %v5092, 1
        %v5095 = vor.u32 %v5090, %v5094
        %v5096 = vshll.u32 %v4990, 16
        %v5098 = vrot.slane %v5096, 1
        %v5099 = vsel %vm1263, %v5095, %v5098
        %v5100 = vshrl.u32 %v4990, 16
        %v5102 = vor.u32 %v5100, %v5098
        %v5103 = vshrl.u32 %v4968, 16
        %v5105 = vshll.u32 %v4968, 16
        %v5107 = vrot.slane %v5105, 1
        %v5108 = vor.u32 %v5103, %v5107
        %v5109 = vshll.u32 %v4991, 16
        %v5111 = vrot.slane %v5109, 1
        %v5112 = vsel %vm1263, %v5108, %v5111
        %v5113 = vshrl.u32 %v4991, 16
        %v5115 = vor.u32 %v5113, %v5111
        %v5116 = vshrl.u32 %v4970, 16
        %v5118 = vshll.u32 %v4970, 16
        %v5120 = vrot.slane %v5118, 1
        %v5121 = vor.u32 %v5116, %v5120
        %v5122 = vshll.u32 %v4992, 16
        %v5124 = vrot.slane %v5122, 1
        %v5125 = vsel %vm1263, %v5121, %v5124
        %v5126 = vshrl.u32 %v4992, 16
        %v5128 = vor.u32 %v5126, %v5124
        %v5129 = vshrl.u32 %v4972, 16
        %v5131 = vshll.u32 %v4972, 16
        %v5133 = vrot.slane %v5131, 1
        %v5134 = vor.u32 %v5129, %v5133
        %v5135 = vshll.u32 %v4993, 16
        %v5137 = vrot.slane %v5135, 1
        %v5138 = vsel %vm1263, %v5134, %v5137
        %v5139 = vshrl.u32 %v4993, 16
        %v5141 = vor.u32 %v5139, %v5137
        %v5142 = vshrl.u32 %v4974, 16
        %v5144 = vshll.u32 %v4974, 16
        %v5146 = vrot.slane %v5144, 1
        %v5147 = vor.u32 %v5142, %v5146
        %v5148 = vshll.u32 %v4994, 16
        %v5150 = vrot.slane %v5148, 1
        %v5151 = vsel %vm1263, %v5147, %v5150
        %v5152 = vshrl.u32 %v4994, 16
        %v5154 = vor.u32 %v5152, %v5150
        %v5155 = vshrl.u32 %v4976, 16
        %v5157 = vshll.u32 %v4976, 16
        %v5159 = vrot.slane %v5157, 1
        %v5160 = vor.u32 %v5155, %v5159
        %v5161 = vshll.u32 %v4995, 16
        %v5163 = vrot.slane %v5161, 1
        %v5164 = vsel %vm1263, %v5160, %v5163
        %v5165 = vshrl.u32 %v4995, 16
        %v5167 = vor.u32 %v5165, %v5163
        %v5168 = vshrl.u32 %v4978, 16
        %v5170 = vshll.u32 %v4978, 16
        %v5172 = vrot.slane %v5170, 1
        %v5173 = vor.u32 %v5168, %v5172
        %v5174 = vshll.u32 %v4996, 16
        %v5176 = vrot.slane %v5174, 1
        %v5177 = vsel %vm1263, %v5173, %v5176
        %v5178 = vshrl.u32 %v4996, 16
        %v5180 = vor.u32 %v5178, %v5176
        %v5181 = vshrl.u32 %v4980, 16
        %v5183 = vshll.u32 %v4980, 16
        %v5185 = vrot.slane %v5183, 1
        %v5186 = vor.u32 %v5181, %v5185
        %v5187 = vshll.u32 %v4997, 16
        %v5189 = vrot.slane %v5187, 1
        %v5190 = vsel %vm1263, %v5186, %v5189
        %v5191 = vshrl.u32 %v4997, 16
        %v5193 = vor.u32 %v5191, %v5189
        %v5194 = vshrl.u32 %v4982, 16
        %v5196 = vshll.u32 %v4982, 16
        %v5198 = vrot.slane %v5196, 1
        %v5199 = vor.u32 %v5194, %v5198
        %v5200 = vshll.u32 %v4998, 16
        %v5202 = vrot.slane %v5200, 1
        %v5203 = vsel %vm1263, %v5199, %v5202
        %v5204 = vshrl.u32 %v4998, 16
        %v5206 = vor.u32 %v5204, %v5202
        %5207 = vrot.lane.b32.xlu0 %v5008, 8
        %v5208 = vpop.permute.xlu0 %5207
        %5209 = vrot.lane.b32.xlu0 %v5011, 8
        %v5210 = vpop.permute.xlu0 %5209
        %5211 = vrot.lane.b32.xlu0 %v5021, 8
        %v5212 = vpop.permute.xlu0 %5211
        %5213 = vrot.lane.b32.xlu0 %v5024, 8
        %v5214 = vpop.permute.xlu0 %5213
        %5215 = vrot.lane.b32.xlu0 %v5034, 8
        %v5216 = vpop.permute.xlu0 %5215
        %5217 = vrot.lane.b32.xlu0 %v5037, 8
        %v5218 = vpop.permute.xlu0 %5217
        %5219 = vrot.lane.b32.xlu0 %v5047, 8
        %v5220 = vpop.permute.xlu0 %5219
        %5221 = vrot.lane.b32.xlu0 %v5050, 8
        %v5222 = vpop.permute.xlu0 %5221
        %5223 = vrot.lane.b32.xlu0 %v5060, 8
        %v5224 = vpop.permute.xlu0 %5223
        %5225 = vrot.lane.b32.xlu0 %v5063, 8
        %v5226 = vpop.permute.xlu0 %5225
        %5227 = vrot.lane.b32.xlu0 %v5073, 8
        %v5228 = vpop.permute.xlu0 %5227
        %5229 = vrot.lane.b32.xlu0 %v5076, 8
        %v5230 = vpop.permute.xlu0 %5229
        %5231 = vrot.lane.b32.xlu0 %v5086, 8
        %v5232 = vpop.permute.xlu0 %5231
        %5233 = vrot.lane.b32.xlu0 %v5089, 8
        %v5234 = vpop.permute.xlu0 %5233
        %5235 = vrot.lane.b32.xlu0 %v5099, 8
        %v5236 = vpop.permute.xlu0 %5235
        %5237 = vrot.lane.b32.xlu0 %v5102, 8
        %v5238 = vpop.permute.xlu0 %5237
        %5239 = vrot.lane.b32.xlu0 %v5112, 8
        %v5240 = vpop.permute.xlu0 %5239
        %5241 = vrot.lane.b32.xlu0 %v5115, 8
        %v5242 = vpop.permute.xlu0 %5241
        %5243 = vrot.lane.b32.xlu0 %v5125, 8
        %v5244 = vpop.permute.xlu0 %5243
        %5245 = vrot.lane.b32.xlu0 %v5128, 8
        %v5246 = vpop.permute.xlu0 %5245
        %5247 = vrot.lane.b32.xlu0 %v5138, 8
        %v5248 = vpop.permute.xlu0 %5247
        %5249 = vrot.lane.b32.xlu0 %v5141, 8
        %v5250 = vpop.permute.xlu0 %5249
        %5251 = vrot.lane.b32.xlu0 %v5151, 8
        %v5252 = vpop.permute.xlu0 %5251
        %5253 = vrot.lane.b32.xlu0 %v5154, 8
        %v5254 = vpop.permute.xlu0 %5253
        %5255 = vrot.lane.b32.xlu0 %v5164, 8
        %v5256 = vpop.permute.xlu0 %5255
        %5257 = vrot.lane.b32.xlu0 %v5167, 8
        %v5258 = vpop.permute.xlu0 %5257
        %5259 = vrot.lane.b32.xlu0 %v5177, 8
        %v5260 = vpop.permute.xlu0 %5259
        %5261 = vrot.lane.b32.xlu0 %v5180, 8
        %v5262 = vpop.permute.xlu0 %5261
        %5263 = vrot.lane.b32.xlu0 %v5190, 8
        %v5264 = vpop.permute.xlu0 %5263
        %5265 = vrot.lane.b32.xlu0 %v5193, 8
        %v5266 = vpop.permute.xlu0 %5265
        %5267 = vrot.lane.b32.xlu0 %v5203, 8
        %v5268 = vpop.permute.xlu0 %5267
        %5269 = vrot.lane.b32.xlu0 %v5206, 8
        %v5270 = vpop.permute.xlu0 %5269
        %v5303 = vrot.slane %v4952, 1
        %v5304 = vrot.slane %v4983, 1
        %v5305 = vsel %vm1568, %v5303, %v5304
        %v5306 = vrot.slane %v4954, 1
        %v5307 = vrot.slane %v4984, 1
        %v5308 = vsel %vm1568, %v5306, %v5307
        %v5309 = vrot.slane %v4956, 1
        %v5310 = vrot.slane %v4985, 1
        %v5311 = vsel %vm1568, %v5309, %v5310
        %v5312 = vrot.slane %v4958, 1
        %v5313 = vrot.slane %v4986, 1
        %v5314 = vsel %vm1568, %v5312, %v5313
        %v5315 = vrot.slane %v4960, 1
        %v5316 = vrot.slane %v4987, 1
        %v5317 = vsel %vm1568, %v5315, %v5316
        %v5318 = vrot.slane %v4962, 1
        %v5319 = vrot.slane %v4988, 1
        %v5320 = vsel %vm1568, %v5318, %v5319
        %v5321 = vrot.slane %v4964, 1
        %v5322 = vrot.slane %v4989, 1
        %v5323 = vsel %vm1568, %v5321, %v5322
        %v5324 = vrot.slane %v4966, 1
        %v5325 = vrot.slane %v4990, 1
        %v5326 = vsel %vm1568, %v5324, %v5325
        %v5327 = vrot.slane %v4968, 1
        %v5328 = vrot.slane %v4991, 1
        %v5329 = vsel %vm1568, %v5327, %v5328
        %v5330 = vrot.slane %v4970, 1
        %v5331 = vrot.slane %v4992, 1
        %v5332 = vsel %vm1568, %v5330, %v5331
        %v5333 = vrot.slane %v4972, 1
        %v5334 = vrot.slane %v4993, 1
        %v5335 = vsel %vm1568, %v5333, %v5334
        %v5336 = vrot.slane %v4974, 1
        %v5337 = vrot.slane %v4994, 1
        %v5338 = vsel %vm1568, %v5336, %v5337
        %v5339 = vrot.slane %v4976, 1
        %v5340 = vrot.slane %v4995, 1
        %v5341 = vsel %vm1568, %v5339, %v5340
        %v5342 = vrot.slane %v4978, 1
        %v5343 = vrot.slane %v4996, 1
        %v5344 = vsel %vm1568, %v5342, %v5343
        %v5345 = vrot.slane %v4980, 1
        %v5346 = vrot.slane %v4997, 1
        %v5347 = vsel %vm1568, %v5345, %v5346
        %v5348 = vrot.slane %v4982, 1
        %v5349 = vrot.slane %v4998, 1
        %v5350 = vsel %vm1568, %v5348, %v5349
        %5351 = vrot.lane.b32.xlu0 %v5305, 16
        %v5352 = vpop.permute.xlu0 %5351
        %5353 = vrot.lane.b32.xlu0 %v5304, 16
        %v5354 = vpop.permute.xlu0 %5353
        %5355 = vrot.lane.b32.xlu0 %v5308, 16
        %v5356 = vpop.permute.xlu0 %5355
        %5357 = vrot.lane.b32.xlu0 %v5307, 16
        %v5358 = vpop.permute.xlu0 %5357
        %5359 = vrot.lane.b32.xlu0 %v5311, 16
        %v5360 = vpop.permute.xlu0 %5359
        %5361 = vrot.lane.b32.xlu0 %v5310, 16
        %v5362 = vpop.permute.xlu0 %5361
        %5363 = vrot.lane.b32.xlu0 %v5314, 16
        %v5364 = vpop.permute.xlu0 %5363
        %5365 = vrot.lane.b32.xlu0 %v5313, 16
        %v5366 = vpop.permute.xlu0 %5365
        %5367 = vrot.lane.b32.xlu0 %v5317, 16
        %v5368 = vpop.permute.xlu0 %5367
        %5369 = vrot.lane.b32.xlu0 %v5316, 16
        %v5370 = vpop.permute.xlu0 %5369
        %5371 = vrot.lane.b32.xlu0 %v5320, 16
        %v5372 = vpop.permute.xlu0 %5371
        %5373 = vrot.lane.b32.xlu0 %v5319, 16
        %v5374 = vpop.permute.xlu0 %5373
        %5375 = vrot.lane.b32.xlu0 %v5323, 16
        %v5376 = vpop.permute.xlu0 %5375
        %5377 = vrot.lane.b32.xlu0 %v5322, 16
        %v5378 = vpop.permute.xlu0 %5377
        %5379 = vrot.lane.b32.xlu0 %v5326, 16
        %v5380 = vpop.permute.xlu0 %5379
        %5381 = vrot.lane.b32.xlu0 %v5325, 16
        %v5382 = vpop.permute.xlu0 %5381
        %5383 = vrot.lane.b32.xlu0 %v5329, 16
        %v5384 = vpop.permute.xlu0 %5383
        %5385 = vrot.lane.b32.xlu0 %v5328, 16
        %v5386 = vpop.permute.xlu0 %5385
        %5387 = vrot.lane.b32.xlu0 %v5332, 16
        %v5388 = vpop.permute.xlu0 %5387
        %5389 = vrot.lane.b32.xlu0 %v5331, 16
        %v5390 = vpop.permute.xlu0 %5389
        %5391 = vrot.lane.b32.xlu0 %v5335, 16
        %v5392 = vpop.permute.xlu0 %5391
        %5393 = vrot.lane.b32.xlu0 %v5334, 16
        %v5394 = vpop.permute.xlu0 %5393
        %5395 = vrot.lane.b32.xlu0 %v5338, 16
        %v5396 = vpop.permute.xlu0 %5395
        %5397 = vrot.lane.b32.xlu0 %v5337, 16
        %v5398 = vpop.permute.xlu0 %5397
        %5399 = vrot.lane.b32.xlu0 %v5341, 16
        %v5400 = vpop.permute.xlu0 %5399
        %5401 = vrot.lane.b32.xlu0 %v5340, 16
        %v5402 = vpop.permute.xlu0 %5401
        %5403 = vrot.lane.b32.xlu0 %v5344, 16
        %v5404 = vpop.permute.xlu0 %5403
        %5405 = vrot.lane.b32.xlu0 %v5343, 16
        %v5406 = vpop.permute.xlu0 %5405
        %5407 = vrot.lane.b32.xlu0 %v5347, 16
        %v5408 = vpop.permute.xlu0 %5407
        %5409 = vrot.lane.b32.xlu0 %v5346, 16
        %v5410 = vpop.permute.xlu0 %5409
        %5411 = vrot.lane.b32.xlu0 %v5350, 16
        %v5412 = vpop.permute.xlu0 %5411
        %5413 = vrot.lane.b32.xlu0 %v5349, 16
        %v5414 = vpop.permute.xlu0 %5413
        %v5416 = vsel %vm1681, %v4952, %v5208
        %v5418 = vsel %vm1681, %v4983, %v5210
        %v5420 = vsel %vm1681, %v4954, %v5212
        %v5422 = vsel %vm1681, %v4984, %v5214
        %v5424 = vsel %vm1681, %v4956, %v5216
        %v5426 = vsel %vm1681, %v4985, %v5218
        %v5428 = vsel %vm1681, %v4958, %v5220
        %v5430 = vsel %vm1681, %v4986, %v5222
        %v5432 = vsel %vm1681, %v4960, %v5224
        %v5434 = vsel %vm1681, %v4987, %v5226
        %v5436 = vsel %vm1681, %v4962, %v5228
        %v5438 = vsel %vm1681, %v4988, %v5230
        %v5440 = vsel %vm1681, %v4964, %v5232
        %v5442 = vsel %vm1681, %v4989, %v5234
        %v5444 = vsel %vm1681, %v4966, %v5236
        %v5446 = vsel %vm1681, %v4990, %v5238
        %v5448 = vsel %vm1681, %v4968, %v5240
        %v5450 = vsel %vm1681, %v4991, %v5242
        %v5452 = vsel %vm1681, %v4970, %v5244
        %v5454 = vsel %vm1681, %v4992, %v5246
        %v5456 = vsel %vm1681, %v4972, %v5248
        %v5458 = vsel %vm1681, %v4993, %v5250
        %v5460 = vsel %vm1681, %v4974, %v5252
        %v5462 = vsel %vm1681, %v4994, %v5254
        %v5464 = vsel %vm1681, %v4976, %v5256
        %v5466 = vsel %vm1681, %v4995, %v5258
        %v5468 = vsel %vm1681, %v4978, %v5260
        %v5470 = vsel %vm1681, %v4996, %v5262
        %v5472 = vsel %vm1681, %v4980, %v5264
        %v5474 = vsel %vm1681, %v4997, %v5266
        %v5476 = vsel %vm1681, %v4982, %v5268
        %v5478 = vsel %vm1681, %v4998, %v5270
        %v5480 = vsel %vm1746, %v5416, %v5352
        %v5482 = vsel %vm1746, %v5418, %v5354
        %v5484 = vsel %vm1746, %v5420, %v5356
        %v5486 = vsel %vm1746, %v5422, %v5358
        %v5488 = vsel %vm1746, %v5424, %v5360
        %v5490 = vsel %vm1746, %v5426, %v5362
        %v5492 = vsel %vm1746, %v5428, %v5364
        %v5494 = vsel %vm1746, %v5430, %v5366
        %v5496 = vsel %vm1746, %v5432, %v5368
        %v5498 = vsel %vm1746, %v5434, %v5370
        %v5500 = vsel %vm1746, %v5436, %v5372
        %v5502 = vsel %vm1746, %v5438, %v5374
        %v5504 = vsel %vm1746, %v5440, %v5376
        %v5506 = vsel %vm1746, %v5442, %v5378
        %v5508 = vsel %vm1746, %v5444, %v5380
        %v5510 = vsel %vm1746, %v5446, %v5382
        %v5512 = vsel %vm1746, %v5448, %v5384
        %v5514 = vsel %vm1746, %v5450, %v5386
        %v5516 = vsel %vm1746, %v5452, %v5388
        %v5518 = vsel %vm1746, %v5454, %v5390
        %v5520 = vsel %vm1746, %v5456, %v5392
        %v5522 = vsel %vm1746, %v5458, %v5394
        %v5524 = vsel %vm1746, %v5460, %v5396
        %v5526 = vsel %vm1746, %v5462, %v5398
        %v5528 = vsel %vm1746, %v5464, %v5400
        %v5530 = vsel %vm1746, %v5466, %v5402
        %v5532 = vsel %vm1746, %v5468, %v5404
        %v5534 = vsel %vm1746, %v5470, %v5406
        %v5536 = vsel %vm1746, %v5472, %v5408
        %v5538 = vsel %vm1746, %v5474, %v5410
        %v5540 = vsel %vm1746, %v5476, %v5412
        %v5542 = vsel %vm1746, %v5478, %v5414
        %v5543 = vshrl.u32 %v5480, 16
        %v5545 = vrot.slane %v5543, 3
        %v5546 = vshll.u32 %v5480, 16
        %v5548 = vrot.slane %v5546, 4
        %v5549 = vor.u32 %v5545, %v5548
        %v5550 = vshrl.u32 %v5482, 16
        %v5552 = vrot.slane %v5550, 3
        %v5553 = vshll.u32 %v5482, 16
        %v5555 = vrot.slane %v5553, 4
        %v5556 = vor.u32 %v5552, %v5555
        %v5557 = vsel %vm1811, %v5549, %v5556
        %v5558 = vshrl.u32 %v5484, 16
        %v5560 = vrot.slane %v5558, 3
        %v5561 = vshll.u32 %v5484, 16
        %v5563 = vrot.slane %v5561, 4
        %v5564 = vor.u32 %v5560, %v5563
        %v5565 = vshrl.u32 %v5486, 16
        %v5567 = vrot.slane %v5565, 3
        %v5568 = vshll.u32 %v5486, 16
        %v5570 = vrot.slane %v5568, 4
        %v5571 = vor.u32 %v5567, %v5570
        %v5572 = vsel %vm1811, %v5564, %v5571
        %v5573 = vshrl.u32 %v5488, 16
        %v5575 = vrot.slane %v5573, 3
        %v5576 = vshll.u32 %v5488, 16
        %v5578 = vrot.slane %v5576, 4
        %v5579 = vor.u32 %v5575, %v5578
        %v5580 = vshrl.u32 %v5490, 16
        %v5582 = vrot.slane %v5580, 3
        %v5583 = vshll.u32 %v5490, 16
        %v5585 = vrot.slane %v5583, 4
        %v5586 = vor.u32 %v5582, %v5585
        %v5587 = vsel %vm1811, %v5579, %v5586
        %v5588 = vshrl.u32 %v5492, 16
        %v5590 = vrot.slane %v5588, 3
        %v5591 = vshll.u32 %v5492, 16
        %v5593 = vrot.slane %v5591, 4
        %v5594 = vor.u32 %v5590, %v5593
        %v5595 = vshrl.u32 %v5494, 16
        %v5597 = vrot.slane %v5595, 3
        %v5598 = vshll.u32 %v5494, 16
        %v5600 = vrot.slane %v5598, 4
        %v5601 = vor.u32 %v5597, %v5600
        %v5602 = vsel %vm1811, %v5594, %v5601
        %v5603 = vshrl.u32 %v5496, 16
        %v5605 = vrot.slane %v5603, 3
        %v5606 = vshll.u32 %v5496, 16
        %v5608 = vrot.slane %v5606, 4
        %v5609 = vor.u32 %v5605, %v5608
        %v5610 = vshrl.u32 %v5498, 16
        %v5612 = vrot.slane %v5610, 3
        %v5613 = vshll.u32 %v5498, 16
        %v5615 = vrot.slane %v5613, 4
        %v5616 = vor.u32 %v5612, %v5615
        %v5617 = vsel %vm1811, %v5609, %v5616
        %v5618 = vshrl.u32 %v5500, 16
        %v5620 = vrot.slane %v5618, 3
        %v5621 = vshll.u32 %v5500, 16
        %v5623 = vrot.slane %v5621, 4
        %v5624 = vor.u32 %v5620, %v5623
        %v5625 = vshrl.u32 %v5502, 16
        %v5627 = vrot.slane %v5625, 3
        %v5628 = vshll.u32 %v5502, 16
        %v5630 = vrot.slane %v5628, 4
        %v5631 = vor.u32 %v5627, %v5630
        %v5632 = vsel %vm1811, %v5624, %v5631
        %v5633 = vshrl.u32 %v5504, 16
        %v5635 = vrot.slane %v5633, 3
        %v5636 = vshll.u32 %v5504, 16
        %v5638 = vrot.slane %v5636, 4
        %v5639 = vor.u32 %v5635, %v5638
        %v5640 = vshrl.u32 %v5506, 16
        %v5642 = vrot.slane %v5640, 3
        %v5643 = vshll.u32 %v5506, 16
        %v5645 = vrot.slane %v5643, 4
        %v5646 = vor.u32 %v5642, %v5645
        %v5647 = vsel %vm1811, %v5639, %v5646
        %v5648 = vshrl.u32 %v5508, 16
        %v5650 = vrot.slane %v5648, 3
        %v5651 = vshll.u32 %v5508, 16
        %v5653 = vrot.slane %v5651, 4
        %v5654 = vor.u32 %v5650, %v5653
        %v5655 = vshrl.u32 %v5510, 16
        %v5657 = vrot.slane %v5655, 3
        %v5658 = vshll.u32 %v5510, 16
        %v5660 = vrot.slane %v5658, 4
        %v5661 = vor.u32 %v5657, %v5660
        %v5662 = vsel %vm1811, %v5654, %v5661
        %v5663 = vshrl.u32 %v5512, 16
        %v5665 = vrot.slane %v5663, 3
        %v5666 = vshll.u32 %v5512, 16
        %v5668 = vrot.slane %v5666, 4
        %v5669 = vor.u32 %v5665, %v5668
        %v5670 = vshrl.u32 %v5514, 16
        %v5672 = vrot.slane %v5670, 3
        %v5673 = vshll.u32 %v5514, 16
        %v5675 = vrot.slane %v5673, 4
        %v5676 = vor.u32 %v5672, %v5675
        %v5677 = vsel %vm1811, %v5669, %v5676
        %v5678 = vshrl.u32 %v5516, 16
        %v5680 = vrot.slane %v5678, 3
        %v5681 = vshll.u32 %v5516, 16
        %v5683 = vrot.slane %v5681, 4
        %v5684 = vor.u32 %v5680, %v5683
        %v5685 = vshrl.u32 %v5518, 16
        %v5687 = vrot.slane %v5685, 3
        %v5688 = vshll.u32 %v5518, 16
        %v5690 = vrot.slane %v5688, 4
        %v5691 = vor.u32 %v5687, %v5690
        %v5692 = vsel %vm1811, %v5684, %v5691
        %v5693 = vshrl.u32 %v5520, 16
        %v5695 = vrot.slane %v5693, 3
        %v5696 = vshll.u32 %v5520, 16
        %v5698 = vrot.slane %v5696, 4
        %v5699 = vor.u32 %v5695, %v5698
        %v5700 = vshrl.u32 %v5522, 16
        %v5702 = vrot.slane %v5700, 3
        %v5703 = vshll.u32 %v5522, 16
        %v5705 = vrot.slane %v5703, 4
        %v5706 = vor.u32 %v5702, %v5705
        %v5707 = vsel %vm1811, %v5699, %v5706
        %v5708 = vshrl.u32 %v5524, 16
        %v5710 = vrot.slane %v5708, 3
        %v5711 = vshll.u32 %v5524, 16
        %v5713 = vrot.slane %v5711, 4
        %v5714 = vor.u32 %v5710, %v5713
        %v5715 = vshrl.u32 %v5526, 16
        %v5717 = vrot.slane %v5715, 3
        %v5718 = vshll.u32 %v5526, 16
        %v5720 = vrot.slane %v5718, 4
        %v5721 = vor.u32 %v5717, %v5720
        %v5722 = vsel %vm1811, %v5714, %v5721
        %v5723 = vshrl.u32 %v5528, 16
        %v5725 = vrot.slane %v5723, 3
        %v5726 = vshll.u32 %v5528, 16
        %v5728 = vrot.slane %v5726, 4
        %v5729 = vor.u32 %v5725, %v5728
        %v5730 = vshrl.u32 %v5530, 16
        %v5732 = vrot.slane %v5730, 3
        %v5733 = vshll.u32 %v5530, 16
        %v5735 = vrot.slane %v5733, 4
        %v5736 = vor.u32 %v5732, %v5735
        %v5737 = vsel %vm1811, %v5729, %v5736
        %v5738 = vshrl.u32 %v5532, 16
        %v5740 = vrot.slane %v5738, 3
        %v5741 = vshll.u32 %v5532, 16
        %v5743 = vrot.slane %v5741, 4
        %v5744 = vor.u32 %v5740, %v5743
        %v5745 = vshrl.u32 %v5534, 16
        %v5747 = vrot.slane %v5745, 3
        %v5748 = vshll.u32 %v5534, 16
        %v5750 = vrot.slane %v5748, 4
        %v5751 = vor.u32 %v5747, %v5750
        %v5752 = vsel %vm1811, %v5744, %v5751
        %v5753 = vshrl.u32 %v5536, 16
        %v5755 = vrot.slane %v5753, 3
        %v5756 = vshll.u32 %v5536, 16
        %v5758 = vrot.slane %v5756, 4
        %v5759 = vor.u32 %v5755, %v5758
        %v5760 = vshrl.u32 %v5538, 16
        %v5762 = vrot.slane %v5760, 3
        %v5763 = vshll.u32 %v5538, 16
        %v5765 = vrot.slane %v5763, 4
        %v5766 = vor.u32 %v5762, %v5765
        %v5767 = vsel %vm1811, %v5759, %v5766
        %v5768 = vshrl.u32 %v5540, 16
        %v5770 = vrot.slane %v5768, 3
        %v5771 = vshll.u32 %v5540, 16
        %v5773 = vrot.slane %v5771, 4
        %v5774 = vor.u32 %v5770, %v5773
        %v5775 = vshrl.u32 %v5542, 16
        %v5777 = vrot.slane %v5775, 3
        %v5778 = vshll.u32 %v5542, 16
        %v5780 = vrot.slane %v5778, 4
        %v5781 = vor.u32 %v5777, %v5780
        %v5782 = vsel %vm1811, %v5774, %v5781
        %v5783 = vld [vmem:[#allocation17] sm:$0xf]
        %v5784 = vld [vmem:[#allocation17 + $0x4] sm:$0xf]
        %v5785 = vld [vmem:[#allocation17 + $0x8] sm:$0xf]
        %v5789 = vunpack.c.l.b16 %v5783
        %v5790 = vunpack.c.l.b16 %v5784
        %v5791 = vunpack.c.l.b16 %v5785
        %v5792 = vpack.c.b16 %v5790, %v5789
        %v5793 = vpack.c.b16 %v5791, %v5791
        %v5796 = vsel %vm2064, %v5557, 0
        %v5799 = vsel %vm2064, %v5572, 0
        %v5802 = vsel %vm2064, %v5587, 0
        %v5805 = vsel %vm2064, %v5602, 0
        %v5808 = vsel %vm2064, %v5617, 0
        %v5811 = vsel %vm2064, %v5632, 0
        %v5814 = vsel %vm2064, %v5647, 0
        %v5817 = vsel %vm2064, %v5662, 0
        %v5820 = vsel %vm2064, %v5677, 0
        %v5823 = vsel %vm2064, %v5692, 0
        %v5826 = vsel %vm2064, %v5707, 0
        %v5829 = vsel %vm2064, %v5722, 0
        %v5832 = vsel %vm2064, %v5737, 0
        %v5835 = vsel %vm2064, %v5752, 0
        %v5838 = vsel %vm2064, %v5767, 0
        %v5841 = vsel %vm2064, %v5782, 0
        %v5844 = vsel %vm1213, %v5793, 0
        %5846 = vmatprep.subr.bf16.mxu0 0
        %5847 = vmatpush1.bf16.msra.mxu0 %v5792
        %5848 = vmatprep.subr.bf16.mxu0 0
        %5849 = vmatpush1.bf16.msra.mxu0 %v5844
        %5850 = vmatprep.subr.bf16.mxu0 0
        %5851 = vmatpush1.bf16.msra.mxu0 0
        %5852 = vmatprep.subr.bf16.mxu0 0
        %5853 = vmatpush1.bf16.msra.mxu0 0
        %5854 = vmatprep.subr.bf16.mxu0 0
        %5855 = vmatpush1.bf16.msra.mxu0 0
        %5856 = vmatprep.subr.bf16.mxu0 0
        %5857 = vmatpush1.bf16.msra.mxu0 0
        %5858 = vmatprep.subr.bf16.mxu0 0
        %5859 = vmatpush1.bf16.msra.mxu0 0
        %5860 = vmatprep.subr.bf16.mxu0 0
        %5861 = vmatpush1.bf16.msra.mxu0 0
        %5862 = vmatprep.subr.bf16.mxu0 0
        %5863 = vmatpush1.bf16.msra.mxu0 0
        %5864 = vmatprep.subr.bf16.mxu0 0
        %5865 = vmatpush1.bf16.msra.mxu0 0
        %5866 = vmatprep.subr.bf16.mxu0 0
        %5867 = vmatpush1.bf16.msra.mxu0 0
        %5868 = vmatprep.subr.bf16.mxu0 0
        %5869 = vmatpush1.bf16.msra.mxu0 0
        %5870 = vmatprep.subr.bf16.mxu0 0
        %5871 = vmatpush1.bf16.msra.mxu0 0
        %5872 = vmatprep.subr.bf16.mxu0 0
        %5873 = vmatpush1.bf16.msra.mxu0 0
        %5874 = vmatprep.subr.bf16.mxu0 0
        %5875 = vmatpush1.bf16.msra.mxu0 0
        %5876 = vmatprep.subr.bf16.mxu0 0
        %5877 = vmatpush1.bf16.msra.mxu0 0
        %5878 = vmatprep.mubr.bf16.mxu0 0
        %5879 = vmatmul.mubr.bf16.gmra.mrb[0].mxu0 %v5796
        %v5880 = vpop.f32.mrb[0].mxu0
        %v5881 = vadd.f32 0.0, %v5880
        %v5882 = vpop.f32.mrb[0].mxu0
        %v5883 = vpop.f32.mrb[0].mxu0
        %v5884 = vadd.f32 0.0, %v5883
        %v5885 = vpop.f32.mrb[0].mxu0
        %5886 = vmatprep.mubr.bf16.mxu0 0
        %5887 = vmatmul.mubr.bf16.gmra.mrb[0].mxu0 %v5799
        %v5888 = vpop.f32.mrb[0].mxu0
        %v5889 = vadd.f32 0.0, %v5888
        %v5890 = vpop.f32.mrb[0].mxu0
        %v5891 = vpop.f32.mrb[0].mxu0
        %v5892 = vadd.f32 0.0, %v5891
        %v5893 = vpop.f32.mrb[0].mxu0
        %5894 = vmatprep.mubr.bf16.mxu0 0
        %5895 = vmatmul.mubr.bf16.gmra.mrb[0].mxu0 %v5802
        %v5896 = vpop.f32.mrb[0].mxu0
        %v5897 = vadd.f32 0.0, %v5896
        %v5898 = vpop.f32.mrb[0].mxu0
        %v5899 = vpop.f32.mrb[0].mxu0
        %v5900 = vadd.f32 0.0, %v5899
        %v5901 = vpop.f32.mrb[0].mxu0
        %5902 = vmatprep.mubr.bf16.mxu0 0
        %5903 = vmatmul.mubr.bf16.gmra.mrb[0].mxu0 %v5805
        %v5904 = vpop.f32.mrb[0].mxu0
        %v5905 = vadd.f32 0.0, %v5904
        %v5906 = vpop.f32.mrb[0].mxu0
        %v5907 = vpop.f32.mrb[0].mxu0
        %v5908 = vadd.f32 0.0, %v5907
        %v5909 = vpop.f32.mrb[0].mxu0
        %5910 = vmatprep.mubr.bf16.mxu0 0
        %5911 = vmatmul.mubr.bf16.gmra.mrb[0].mxu0 %v5808
        %v5912 = vpop.f32.mrb[0].mxu0
        %v5913 = vadd.f32 0.0, %v5912
        %v5914 = vpop.f32.mrb[0].mxu0
        %v5915 = vpop.f32.mrb[0].mxu0
        %v5916 = vadd.f32 0.0, %v5915
        %v5917 = vpop.f32.mrb[0].mxu0
        %5918 = vmatprep.mubr.bf16.mxu0 0
        %5919 = vmatmul.mubr.bf16.gmra.mrb[0].mxu0 %v5811
        %v5920 = vpop.f32.mrb[0].mxu0
        %v5921 = vadd.f32 0.0, %v5920
        %v5922 = vpop.f32.mrb[0].mxu0
        %v5923 = vpop.f32.mrb[0].mxu0
        %v5924 = vadd.f32 0.0, %v5923
        %v5925 = vpop.f32.mrb[0].mxu0
        %5926 = vmatprep.mubr.bf16.mxu0 0
        %5927 = vmatmul.mubr.bf16.gmra.mrb[0].mxu0 %v5814
        %v5928 = vpop.f32.mrb[0].mxu0
        %v5929 = vadd.f32 0.0, %v5928
        %v5930 = vpop.f32.mrb[0].mxu0
        %v5931 = vpop.f32.mrb[0].mxu0
        %v5932 = vadd.f32 0.0, %v5931
        %v5933 = vpop.f32.mrb[0].mxu0
        %5934 = vmatprep.mubr.bf16.mxu0 0
        %5935 = vmatmul.mubr.bf16.gmra.mrb[0].mxu0 %v5817
        %v5936 = vpop.f32.mrb[0].mxu0
        %v5937 = vadd.f32 0.0, %v5936
        %v5938 = vpop.f32.mrb[0].mxu0
        %v5939 = vpop.f32.mrb[0].mxu0
        %v5940 = vadd.f32 0.0, %v5939
        %v5941 = vpop.f32.mrb[0].mxu0
        %5942 = vmatprep.mubr.bf16.mxu0 0
        %5943 = vmatmul.mubr.bf16.gmra.mrb[0].mxu0 %v5820
        %v5944 = vpop.f32.mrb[0].mxu0
        %v5945 = vadd.f32 0.0, %v5944
        %v5946 = vpop.f32.mrb[0].mxu0
        %v5947 = vpop.f32.mrb[0].mxu0
        %v5948 = vadd.f32 0.0, %v5947
        %v5949 = vpop.f32.mrb[0].mxu0
        %5950 = vmatprep.mubr.bf16.mxu0 0
        %5951 = vmatmul.mubr.bf16.gmra.mrb[0].mxu0 %v5823
        %v5952 = vpop.f32.mrb[0].mxu0
        %v5953 = vadd.f32 0.0, %v5952
        %v5954 = vpop.f32.mrb[0].mxu0
        %v5955 = vpop.f32.mrb[0].mxu0
        %v5956 = vadd.f32 0.0, %v5955
        %v5957 = vpop.f32.mrb[0].mxu0
        %5958 = vmatprep.mubr.bf16.mxu0 0
        %5959 = vmatmul.mubr.bf16.gmra.mrb[0].mxu0 %v5826
        %v5960 = vpop.f32.mrb[0].mxu0
        %v5961 = vadd.f32 0.0, %v5960
        %v5962 = vpop.f32.mrb[0].mxu0
        %v5963 = vpop.f32.mrb[0].mxu0
        %v5964 = vadd.f32 0.0, %v5963
        %v5965 = vpop.f32.mrb[0].mxu0
        %5966 = vmatprep.mubr.bf16.mxu0 0
        %5967 = vmatmul.mubr.bf16.gmra.mrb[0].mxu0 %v5829
        %v5968 = vpop.f32.mrb[0].mxu0
        %v5969 = vadd.f32 0.0, %v5968
        %v5970 = vpop.f32.mrb[0].mxu0
        %v5971 = vpop.f32.mrb[0].mxu0
        %v5972 = vadd.f32 0.0, %v5971
        %v5973 = vpop.f32.mrb[0].mxu0
        %5974 = vmatprep.mubr.bf16.mxu0 0
        %5975 = vmatmul.mubr.bf16.gmra.mrb[0].mxu0 %v5832
        %v5976 = vpop.f32.mrb[0].mxu0
        %v5977 = vadd.f32 0.0, %v5976
        %v5978 = vpop.f32.mrb[0].mxu0
        %v5979 = vpop.f32.mrb[0].mxu0
        %v5980 = vadd.f32 0.0, %v5979
        %v5981 = vpop.f32.mrb[0].mxu0
        %5982 = vmatprep.mubr.bf16.mxu0 0
        %5983 = vmatmul.mubr.bf16.gmra.mrb[0].mxu0 %v5835
        %v5984 = vpop.f32.mrb[0].mxu0
        %v5985 = vadd.f32 0.0, %v5984
        %v5986 = vpop.f32.mrb[0].mxu0
        %v5987 = vpop.f32.mrb[0].mxu0
        %v5988 = vadd.f32 0.0, %v5987
        %v5989 = vpop.f32.mrb[0].mxu0
        %5990 = vmatprep.mubr.bf16.mxu0 0
        %5991 = vmatmul.mubr.bf16.gmra.mrb[0].mxu0 %v5838
        %v5992 = vpop.f32.mrb[0].mxu0
        %v5993 = vadd.f32 0.0, %v5992
        %v5994 = vpop.f32.mrb[0].mxu0
        %v5995 = vpop.f32.mrb[0].mxu0
        %v5996 = vadd.f32 0.0, %v5995
        %v5997 = vpop.f32.mrb[0].mxu0
        %5998 = vmatprep.mubr.bf16.mxu0 0
        %5999 = vmatmul.mubr.bf16.gmra.mrb[0].mxu0 %v5841
        %v6000 = vpop.f32.mrb[0].mxu0
        %v6001 = vadd.f32 0.0, %v6000
        %v6002 = vpop.f32.mrb[0].mxu0
        %v6003 = vpop.f32.mrb[0].mxu0
        %v6004 = vadd.f32 0.0, %v6003
        %v6005 = vpop.f32.mrb[0].mxu0
        %6006 = vdwg.mxu0
        %v6007 = vld [vmem:[#allocation19] sm:$0x1]
        %v6008 = vlaneseq
        %v6009 = vshrl.u32 %v6008, 7
        %v6010 = vsub.s32 0, %v6009
        %v6011 = vrot.slane %v6007, %v6010
        %v6012 = vmul.f32 %v5881, %v6011
        %v6013 = vmul.f32 %v5884, %v6011
        %v6014 = vmul.f32 %v5889, %v6011
        %v6015 = vmul.f32 %v5892, %v6011
        %v6016 = vmul.f32 %v5897, %v6011
        %v6017 = vmul.f32 %v5900, %v6011
        %v6018 = vmul.f32 %v5905, %v6011
        %v6019 = vmul.f32 %v5908, %v6011
        %v6020 = vmul.f32 %v5913, %v6011
        %v6021 = vmul.f32 %v5916, %v6011
        %v6022 = vmul.f32 %v5921, %v6011
        %v6023 = vmul.f32 %v5924, %v6011
        %v6024 = vmul.f32 %v5929, %v6011
        %v6025 = vmul.f32 %v5932, %v6011
        %v6026 = vmul.f32 %v5937, %v6011
        %v6027 = vmul.f32 %v5940, %v6011
        %v6028 = vmul.f32 %v5945, %v6011
        %v6029 = vmul.f32 %v5948, %v6011
        %v6030 = vmul.f32 %v5953, %v6011
        %v6031 = vmul.f32 %v5956, %v6011
        %v6032 = vmul.f32 %v5961, %v6011
        %v6033 = vmul.f32 %v5964, %v6011
        %v6034 = vmul.f32 %v5969, %v6011
        %v6035 = vmul.f32 %v5972, %v6011
        %v6036 = vmul.f32 %v5977, %v6011
        %v6037 = vmul.f32 %v5980, %v6011
        %v6038 = vmul.f32 %v5985, %v6011
        %v6039 = vmul.f32 %v5988, %v6011
        %v6040 = vmul.f32 %v5993, %v6011
        %v6041 = vmul.f32 %v5996, %v6011
        %v6042 = vmul.f32 %v6001, %v6011
        %v6043 = vmul.f32 %v6004, %v6011
        %v6044 = vld [vmem:[#allocation19 + $0x1] sm:$0x1]
        %v6045 = vlaneseq
        %v6046 = vshrl.u32 %v6045, 7
        %v6047 = vsub.s32 0, %v6046
        %v6048 = vrot.slane %v6044, %v6047
        %v6049 = vadd.f32 %v6012, %v6048
        %v6050 = vadd.f32 %v6013, %v6048
        %v6051 = vadd.f32 %v6014, %v6048
        %v6052 = vadd.f32 %v6015, %v6048
        %v6053 = vadd.f32 %v6016, %v6048
        %v6054 = vadd.f32 %v6017, %v6048
        %v6055 = vadd.f32 %v6018, %v6048
        %v6056 = vadd.f32 %v6019, %v6048
        %v6057 = vadd.f32 %v6020, %v6048
        %v6058 = vadd.f32 %v6021, %v6048
        %v6059 = vadd.f32 %v6022, %v6048
        %v6060 = vadd.f32 %v6023, %v6048
        %v6061 = vadd.f32 %v6024, %v6048
        %v6062 = vadd.f32 %v6025, %v6048
        %v6063 = vadd.f32 %v6026, %v6048
        %v6064 = vadd.f32 %v6027, %v6048
        %v6065 = vadd.f32 %v6028, %v6048
        %v6066 = vadd.f32 %v6029, %v6048
        %v6067 = vadd.f32 %v6030, %v6048
        %v6068 = vadd.f32 %v6031, %v6048
        %v6069 = vadd.f32 %v6032, %v6048
        %v6070 = vadd.f32 %v6033, %v6048
        %v6071 = vadd.f32 %v6034, %v6048
        %v6072 = vadd.f32 %v6035, %v6048
        %v6073 = vadd.f32 %v6036, %v6048
        %v6074 = vadd.f32 %v6037, %v6048
        %v6075 = vadd.f32 %v6038, %v6048
        %v6076 = vadd.f32 %v6039, %v6048
        %v6077 = vadd.f32 %v6040, %v6048
        %v6078 = vadd.f32 %v6041, %v6048
        %v6079 = vadd.f32 %v6042, %v6048
        %v6080 = vadd.f32 %v6043, %v6048
        %v6081 = vmax.f32 %v6049, 0.0
        %v6082 = vmax.f32 %v6050, 0.0
        %v6083 = vmax.f32 %v6051, 0.0
        %v6084 = vmax.f32 %v6052, 0.0
        %v6085 = vmax.f32 %v6053, 0.0
        %v6086 = vmax.f32 %v6054, 0.0
        %v6087 = vmax.f32 %v6055, 0.0
        %v6088 = vmax.f32 %v6056, 0.0
        %v6089 = vmax.f32 %v6057, 0.0
        %v6090 = vmax.f32 %v6058, 0.0
        %v6091 = vmax.f32 %v6059, 0.0
        %v6092 = vmax.f32 %v6060, 0.0
        %v6093 = vmax.f32 %v6061, 0.0
        %v6094 = vmax.f32 %v6062, 0.0
        %v6095 = vmax.f32 %v6063, 0.0
        %v6096 = vmax.f32 %v6064, 0.0
        %v6097 = vmax.f32 %v6065, 0.0
        %v6098 = vmax.f32 %v6066, 0.0
        %v6099 = vmax.f32 %v6067, 0.0
        %v6100 = vmax.f32 %v6068, 0.0
        %v6101 = vmax.f32 %v6069, 0.0
        %v6102 = vmax.f32 %v6070, 0.0
        %v6103 = vmax.f32 %v6071, 0.0
        %v6104 = vmax.f32 %v6072, 0.0
        %v6105 = vmax.f32 %v6073, 0.0
        %v6106 = vmax.f32 %v6074, 0.0
        %v6107 = vmax.f32 %v6075, 0.0
        %v6108 = vmax.f32 %v6076, 0.0
        %v6109 = vmax.f32 %v6077, 0.0
        %v6110 = vmax.f32 %v6078, 0.0
        %v6111 = vmax.f32 %v6079, 0.0
        %v6112 = vmax.f32 %v6080, 0.0
        %6113 = vrot.lane.b32.xlu0 %v4903, 8
        %v6114 = vpop.permute.xlu0 %6113
        %6115 = vrot.lane.b32.xlu0 %v4904, 8
        %v6116 = vpop.permute.xlu0 %6115
        %6117 = vrot.lane.b32.xlu0 %v4905, 8
        %v6118 = vpop.permute.xlu0 %6117
        %6119 = vrot.lane.b32.xlu0 %v4906, 8
        %v6120 = vpop.permute.xlu0 %6119
        %6121 = vrot.lane.b32.xlu0 %v4907, 8
        %v6122 = vpop.permute.xlu0 %6121
        %6123 = vrot.lane.b32.xlu0 %v4908, 8
        %v6124 = vpop.permute.xlu0 %6123
        %6125 = vrot.lane.b32.xlu0 %v4909, 8
        %v6126 = vpop.permute.xlu0 %6125
        %6127 = vrot.lane.b32.xlu0 %v4910, 8
        %v6128 = vpop.permute.xlu0 %6127
        %6129 = vrot.lane.b32.xlu0 %v4911, 8
        %v6130 = vpop.permute.xlu0 %6129
        %6131 = vrot.lane.b32.xlu0 %v4912, 8
        %v6132 = vpop.permute.xlu0 %6131
        %6133 = vrot.lane.b32.xlu0 %v4913, 8
        %v6134 = vpop.permute.xlu0 %6133
        %6135 = vrot.lane.b32.xlu0 %v4914, 8
        %v6136 = vpop.permute.xlu0 %6135
        %6137 = vrot.lane.b32.xlu0 %v4915, 8
        %v6138 = vpop.permute.xlu0 %6137
        %6139 = vrot.lane.b32.xlu0 %v4916, 8
        %v6140 = vpop.permute.xlu0 %6139
        %6141 = vrot.lane.b32.xlu0 %v4917, 8
        %v6142 = vpop.permute.xlu0 %6141
        %6143 = vrot.lane.b32.xlu0 %v4918, 8
        %v6144 = vpop.permute.xlu0 %6143
        %6145 = vrot.lane.b32.xlu0 %v4904, 16
        %v6146 = vpop.permute.xlu0 %6145
        %6147 = vrot.lane.b32.xlu0 %v4905, 16
        %v6148 = vpop.permute.xlu0 %6147
        %6149 = vrot.lane.b32.xlu0 %v4906, 16
        %v6150 = vpop.permute.xlu0 %6149
        %6151 = vrot.lane.b32.xlu0 %v4907, 16
        %v6152 = vpop.permute.xlu0 %6151
        %6153 = vrot.lane.b32.xlu0 %v4908, 16
        %v6154 = vpop.permute.xlu0 %6153
        %6155 = vrot.lane.b32.xlu0 %v4909, 16
        %v6156 = vpop.permute.xlu0 %6155
        %6157 = vrot.lane.b32.xlu0 %v4910, 16
        %v6158 = vpop.permute.xlu0 %6157
        %6159 = vrot.lane.b32.xlu0 %v4911, 16
        %v6160 = vpop.permute.xlu0 %6159
        %6161 = vrot.lane.b32.xlu0 %v4912, 16
        %v6162 = vpop.permute.xlu0 %6161
        %6163 = vrot.lane.b32.xlu0 %v4913, 16
        %v6164 = vpop.permute.xlu0 %6163
        %6165 = vrot.lane.b32.xlu0 %v4914, 16
        %v6166 = vpop.permute.xlu0 %6165
        %6167 = vrot.lane.b32.xlu0 %v4915, 16
        %v6168 = vpop.permute.xlu0 %6167
        %6169 = vrot.lane.b32.xlu0 %v4916, 16
        %v6170 = vpop.permute.xlu0 %6169
        %6171 = vrot.lane.b32.xlu0 %v4917, 16
        %v6172 = vpop.permute.xlu0 %6171
        %6173 = vrot.lane.b32.xlu0 %v4918, 16
        %v6174 = vpop.permute.xlu0 %6173
        %v6176 = vsel %vm1681, 0, %v6114
        %v6179 = vsel %vm1681, %v4903, %v6116
        %v6182 = vsel %vm1681, %v4904, %v6118
        %v6185 = vsel %vm1681, %v4905, %v6120
        %v6188 = vsel %vm1681, %v4906, %v6122
        %v6191 = vsel %vm1681, %v4907, %v6124
        %v6194 = vsel %vm1681, %v4908, %v6126
        %v6197 = vsel %vm1681, %v4909, %v6128
        %v6200 = vsel %vm1681, %v4910, %v6130
        %v6203 = vsel %vm1681, %v4911, %v6132
        %v6206 = vsel %vm1681, %v4912, %v6134
        %v6209 = vsel %vm1681, %v4913, %v6136
        %v6212 = vsel %vm1681, %v4914, %v6138
        %v6215 = vsel %vm1681, %v4915, %v6140
        %v6218 = vsel %vm1681, %v4916, %v6142
        %v6221 = vsel %vm1681, %v4917, %v6144
        %v6223 = vsel %vm1746, %v6176, %v6146
        %v6225 = vsel %vm1746, %v6179, %v6148
        %v6227 = vsel %vm1746, %v6182, %v6150
        %v6229 = vsel %vm1746, %v6185, %v6152
        %v6231 = vsel %vm1746, %v6188, %v6154
        %v6233 = vsel %vm1746, %v6191, %v6156
        %v6235 = vsel %vm1746, %v6194, %v6158
        %v6237 = vsel %vm1746, %v6197, %v6160
        %v6239 = vsel %vm1746, %v6200, %v6162
        %v6241 = vsel %vm1746, %v6203, %v6164
        %v6243 = vsel %vm1746, %v6206, %v6166
        %v6245 = vsel %vm1746, %v6209, %v6168
        %v6247 = vsel %vm1746, %v6212, %v6170
        %v6249 = vsel %vm1746, %v6215, %v6172
        %v6251 = vsel %vm1746, %v6218, %v6174
        %v6252 = vsel %vm1746, %v6221, %v2479
        %v6253 = vld [vmem:[#allocation20] sm:$0xf]
        %v6254 = vld [vmem:[#allocation20 + $0x4] sm:$0xf]
        %v6255 = vld [vmem:[#allocation20 + $0x8] sm:$0xf]
        %v6259 = vunpack.c.l.b16 %v6253
        %v6260 = vunpack.c.l.b16 %v6254
        %v6261 = vunpack.c.l.b16 %v6255
        %v6262 = vpack.c.b16 %v6260, %v6259
        %v6263 = vpack.c.b16 %v6261, %v6261
        %v6265 = vsel %vm2064, %v6223, 0
        %v6267 = vsel %vm2064, %v6225, 0
        %v6269 = vsel %vm2064, %v6227, 0
        %v6271 = vsel %vm2064, %v6229, 0
        %v6273 = vsel %vm2064, %v6231, 0
        %v6275 = vsel %vm2064, %v6233, 0
        %v6277 = vsel %vm2064, %v6235, 0
        %v6279 = vsel %vm2064, %v6237, 0
        %v6281 = vsel %vm2064, %v6239, 0
        %v6283 = vsel %vm2064, %v6241, 0
        %v6285 = vsel %vm2064, %v6243, 0
        %v6287 = vsel %vm2064, %v6245, 0
        %v6289 = vsel %vm2064, %v6247, 0
        %v6291 = vsel %vm2064, %v6249, 0
        %v6293 = vsel %vm2064, %v6251, 0
        %v6295 = vsel %vm2064, %v6252, 0
        %v6298 = vsel %vm1213, %v6263, 0
        %6300 = vmatprep.subr.bf16.mxu0 0
        %6301 = vmatpush1.bf16.msra.mxu0 %v6262
        %6302 = vmatprep.subr.bf16.mxu0 0
        %6303 = vmatpush1.bf16.msra.mxu0 %v6298
        %6304 = vmatprep.subr.bf16.mxu0 0
        %6305 = vmatpush1.bf16.msra.mxu0 0
        %6306 = vmatprep.subr.bf16.mxu0 0
        %6307 = vmatpush1.bf16.msra.mxu0 0
        %6308 = vmatprep.subr.bf16.mxu0 0
        %6309 = vmatpush1.bf16.msra.mxu0 0
        %6310 = vmatprep.subr.bf16.mxu0 0
        %6311 = vmatpush1.bf16.msra.mxu0 0
        %6312 = vmatprep.subr.bf16.mxu0 0
        %6313 = vmatpush1.bf16.msra.mxu0 0
        %6314 = vmatprep.subr.bf16.mxu0 0
        %6315 = vmatpush1.bf16.msra.mxu0 0
        %6316 = vmatprep.subr.bf16.mxu0 0
        %6317 = vmatpush1.bf16.msra.mxu0 0
        %6318 = vmatprep.subr.bf16.mxu0 0
        %6319 = vmatpush1.bf16.msra.mxu0 0
        %6320 = vmatprep.subr.bf16.mxu0 0
        %6321 = vmatpush1.bf16.msra.mxu0 0
        %6322 = vmatprep.subr.bf16.mxu0 0
        %6323 = vmatpush1.bf16.msra.mxu0 0
        %6324 = vmatprep.subr.bf16.mxu0 0
        %6325 = vmatpush1.bf16.msra.mxu0 0
        %6326 = vmatprep.subr.bf16.mxu0 0
        %6327 = vmatpush1.bf16.msra.mxu0 0
        %6328 = vmatprep.subr.bf16.mxu0 0
        %6329 = vmatpush1.bf16.msra.mxu0 0
        %6330 = vmatprep.subr.bf16.mxu0 0
        %6331 = vmatpush1.bf16.msra.mxu0 0
        %6332 = vmatprep.mubr.bf16.mxu0 0
        %6333 = vmatmul.mubr.bf16.gmra.mrb[0].mxu0 %v6265
        %v6334 = vpop.f32.mrb[0].mxu0
        %v6335 = vadd.f32 0.0, %v6334
        %v6336 = vpop.f32.mrb[0].mxu0
        %v6337 = vpop.f32.mrb[0].mxu0
        %v6338 = vadd.f32 0.0, %v6337
        %v6339 = vpop.f32.mrb[0].mxu0
        %6340 = vmatprep.mubr.bf16.mxu0 0
        %6341 = vmatmul.mubr.bf16.gmra.mrb[0].mxu0 %v6267
        %v6342 = vpop.f32.mrb[0].mxu0
        %v6343 = vadd.f32 0.0, %v6342
        %v6344 = vpop.f32.mrb[0].mxu0
        %v6345 = vpop.f32.mrb[0].mxu0
        %v6346 = vadd.f32 0.0, %v6345
        %v6347 = vpop.f32.mrb[0].mxu0
        %6348 = vmatprep.mubr.bf16.mxu0 0
        %6349 = vmatmul.mubr.bf16.gmra.mrb[0].mxu0 %v6269
        %v6350 = vpop.f32.mrb[0].mxu0
        %v6351 = vadd.f32 0.0, %v6350
        %v6352 = vpop.f32.mrb[0].mxu0
        %v6353 = vpop.f32.mrb[0].mxu0
        %v6354 = vadd.f32 0.0, %v6353
        %v6355 = vpop.f32.mrb[0].mxu0
        %6356 = vmatprep.mubr.bf16.mxu0 0
        %6357 = vmatmul.mubr.bf16.gmra.mrb[0].mxu0 %v6271
        %v6358 = vpop.f32.mrb[0].mxu0
        %v6359 = vadd.f32 0.0, %v6358
        %v6360 = vpop.f32.mrb[0].mxu0
        %v6361 = vpop.f32.mrb[0].mxu0
        %v6362 = vadd.f32 0.0, %v6361
        %v6363 = vpop.f32.mrb[0].mxu0
        %6364 = vmatprep.mubr.bf16.mxu0 0
        %6365 = vmatmul.mubr.bf16.gmra.mrb[0].mxu0 %v6273
        %v6366 = vpop.f32.mrb[0].mxu0
        %v6367 = vadd.f32 0.0, %v6366
        %v6368 = vpop.f32.mrb[0].mxu0
        %v6369 = vpop.f32.mrb[0].mxu0
        %v6370 = vadd.f32 0.0, %v6369
        %v6371 = vpop.f32.mrb[0].mxu0
        %6372 = vmatprep.mubr.bf16.mxu0 0
        %6373 = vmatmul.mubr.bf16.gmra.mrb[0].mxu0 %v6275
        %v6374 = vpop.f32.mrb[0].mxu0
        %v6375 = vadd.f32 0.0, %v6374
        %v6376 = vpop.f32.mrb[0].mxu0
        %v6377 = vpop.f32.mrb[0].mxu0
        %v6378 = vadd.f32 0.0, %v6377
        %v6379 = vpop.f32.mrb[0].mxu0
        %6380 = vmatprep.mubr.bf16.mxu0 0
        %6381 = vmatmul.mubr.bf16.gmra.mrb[0].mxu0 %v6277
        %v6382 = vpop.f32.mrb[0].mxu0
        %v6383 = vadd.f32 0.0, %v6382
        %v6384 = vpop.f32.mrb[0].mxu0
        %v6385 = vpop.f32.mrb[0].mxu0
        %v6386 = vadd.f32 0.0, %v6385
        %v6387 = vpop.f32.mrb[0].mxu0
        %6388 = vmatprep.mubr.bf16.mxu0 0
        %6389 = vmatmul.mubr.bf16.gmra.mrb[0].mxu0 %v6279
        %v6390 = vpop.f32.mrb[0].mxu0
        %v6391 = vadd.f32 0.0, %v6390
        %v6392 = vpop.f32.mrb[0].mxu0
        %v6393 = vpop.f32.mrb[0].mxu0
        %v6394 = vadd.f32 0.0, %v6393
        %v6395 = vpop.f32.mrb[0].mxu0
        %6396 = vmatprep.mubr.bf16.mxu0 0
        %6397 = vmatmul.mubr.bf16.gmra.mrb[0].mxu0 %v6281
        %v6398 = vpop.f32.mrb[0].mxu0
        %v6399 = vadd.f32 0.0, %v6398
        %v6400 = vpop.f32.mrb[0].mxu0
        %v6401 = vpop.f32.mrb[0].mxu0
        %v6402 = vadd.f32 0.0, %v6401
        %v6403 = vpop.f32.mrb[0].mxu0
        %6404 = vmatprep.mubr.bf16.mxu0 0
        %6405 = vmatmul.mubr.bf16.gmra.mrb[0].mxu0 %v6283
        %v6406 = vpop.f32.mrb[0].mxu0
        %v6407 = vadd.f32 0.0, %v6406
        %v6408 = vpop.f32.mrb[0].mxu0
        %v6409 = vpop.f32.mrb[0].mxu0
        %v6410 = vadd.f32 0.0, %v6409
        %v6411 = vpop.f32.mrb[0].mxu0
        %6412 = vmatprep.mubr.bf16.mxu0 0
        %6413 = vmatmul.mubr.bf16.gmra.mrb[0].mxu0 %v6285
        %v6414 = vpop.f32.mrb[0].mxu0
        %v6415 = vadd.f32 0.0, %v6414
        %v6416 = vpop.f32.mrb[0].mxu0
        %v6417 = vpop.f32.mrb[0].mxu0
        %v6418 = vadd.f32 0.0, %v6417
        %v6419 = vpop.f32.mrb[0].mxu0
        %6420 = vmatprep.mubr.bf16.mxu0 0
        %6421 = vmatmul.mubr.bf16.gmra.mrb[0].mxu0 %v6287
        %v6422 = vpop.f32.mrb[0].mxu0
        %v6423 = vadd.f32 0.0, %v6422
        %v6424 = vpop.f32.mrb[0].mxu0
        %v6425 = vpop.f32.mrb[0].mxu0
        %v6426 = vadd.f32 0.0, %v6425
        %v6427 = vpop.f32.mrb[0].mxu0
        %6428 = vmatprep.mubr.bf16.mxu0 0
        %6429 = vmatmul.mubr.bf16.gmra.mrb[0].mxu0 %v6289
        %v6430 = vpop.f32.mrb[0].mxu0
        %v6431 = vadd.f32 0.0, %v6430
        %v6432 = vpop.f32.mrb[0].mxu0
        %v6433 = vpop.f32.mrb[0].mxu0
        %v6434 = vadd.f32 0.0, %v6433
        %v6435 = vpop.f32.mrb[0].mxu0
        %6436 = vmatprep.mubr.bf16.mxu0 0
        %6437 = vmatmul.mubr.bf16.gmra.mrb[0].mxu0 %v6291
        %v6438 = vpop.f32.mrb[0].mxu0
        %v6439 = vadd.f32 0.0, %v6438
        %v6440 = vpop.f32.mrb[0].mxu0
        %v6441 = vpop.f32.mrb[0].mxu0
        %v6442 = vadd.f32 0.0, %v6441
        %v6443 = vpop.f32.mrb[0].mxu0
        %6444 = vmatprep.mubr.bf16.mxu0 0
        %6445 = vmatmul.mubr.bf16.gmra.mrb[0].mxu0 %v6293
        %v6446 = vpop.f32.mrb[0].mxu0
        %v6447 = vadd.f32 0.0, %v6446
        %v6448 = vpop.f32.mrb[0].mxu0
        %v6449 = vpop.f32.mrb[0].mxu0
        %v6450 = vadd.f32 0.0, %v6449
        %v6451 = vpop.f32.mrb[0].mxu0
        %6452 = vmatprep.mubr.bf16.mxu0 0
        %6453 = vmatmul.mubr.bf16.gmra.mrb[0].mxu0 %v6295
        %v6454 = vpop.f32.mrb[0].mxu0
        %v6455 = vadd.f32 0.0, %v6454
        %v6456 = vpop.f32.mrb[0].mxu0
        %v6457 = vpop.f32.mrb[0].mxu0
        %v6458 = vadd.f32 0.0, %v6457
        %v6459 = vpop.f32.mrb[0].mxu0
        %6460 = vdwg.mxu0
        %v6461 = vld [vmem:[#allocation22] sm:$0x1]
        %v6462 = vlaneseq
        %v6463 = vshrl.u32 %v6462, 7
        %v6464 = vsub.s32 0, %v6463
        %v6465 = vrot.slane %v6461, %v6464
        %v6466 = vmul.f32 %v6335, %v6465
        %v6467 = vmul.f32 %v6338, %v6465
        %v6468 = vmul.f32 %v6343, %v6465
        %v6469 = vmul.f32 %v6346, %v6465
        %v6470 = vmul.f32 %v6351, %v6465
        %v6471 = vmul.f32 %v6354, %v6465
        %v6472 = vmul.f32 %v6359, %v6465
        %v6473 = vmul.f32 %v6362, %v6465
        %v6474 = vmul.f32 %v6367, %v6465
        %v6475 = vmul.f32 %v6370, %v6465
        %v6476 = vmul.f32 %v6375, %v6465
        %v6477 = vmul.f32 %v6378, %v6465
        %v6478 = vmul.f32 %v6383, %v6465
        %v6479 = vmul.f32 %v6386, %v6465
        %v6480 = vmul.f32 %v6391, %v6465
        %v6481 = vmul.f32 %v6394, %v6465
        %v6482 = vmul.f32 %v6399, %v6465
        %v6483 = vmul.f32 %v6402, %v6465
        %v6484 = vmul.f32 %v6407, %v6465
        %v6485 = vmul.f32 %v6410, %v6465
        %v6486 = vmul.f32 %v6415, %v6465
        %v6487 = vmul.f32 %v6418, %v6465
        %v6488 = vmul.f32 %v6423, %v6465
        %v6489 = vmul.f32 %v6426, %v6465
        %v6490 = vmul.f32 %v6431, %v6465
        %v6491 = vmul.f32 %v6434, %v6465
        %v6492 = vmul.f32 %v6439, %v6465
        %v6493 = vmul.f32 %v6442, %v6465
        %v6494 = vmul.f32 %v6447, %v6465
        %v6495 = vmul.f32 %v6450, %v6465
        %v6496 = vmul.f32 %v6455, %v6465
        %v6497 = vmul.f32 %v6458, %v6465
        %v6498 = vld [vmem:[#allocation22 + $0x1] sm:$0x1]
        %v6499 = vlaneseq
        %v6500 = vshrl.u32 %v6499, 7
        %v6501 = vsub.s32 0, %v6500
        %v6502 = vrot.slane %v6498, %v6501
        %v6503 = vadd.f32 %v6466, %v6502
        %v6504 = vadd.f32 %v6467, %v6502
        %v6505 = vadd.f32 %v6468, %v6502
        %v6506 = vadd.f32 %v6469, %v6502
        %v6507 = vadd.f32 %v6470, %v6502
        %v6508 = vadd.f32 %v6471, %v6502
        %v6509 = vadd.f32 %v6472, %v6502
        %v6510 = vadd.f32 %v6473, %v6502
        %v6511 = vadd.f32 %v6474, %v6502
        %v6512 = vadd.f32 %v6475, %v6502
        %v6513 = vadd.f32 %v6476, %v6502
        %v6514 = vadd.f32 %v6477, %v6502
        %v6515 = vadd.f32 %v6478, %v6502
        %v6516 = vadd.f32 %v6479, %v6502
        %v6517 = vadd.f32 %v6480, %v6502
        %v6518 = vadd.f32 %v6481, %v6502
        %v6519 = vadd.f32 %v6482, %v6502
        %v6520 = vadd.f32 %v6483, %v6502
        %v6521 = vadd.f32 %v6484, %v6502
        %v6522 = vadd.f32 %v6485, %v6502
        %v6523 = vadd.f32 %v6486, %v6502
        %v6524 = vadd.f32 %v6487, %v6502
        %v6525 = vadd.f32 %v6488, %v6502
        %v6526 = vadd.f32 %v6489, %v6502
        %v6527 = vadd.f32 %v6490, %v6502
        %v6528 = vadd.f32 %v6491, %v6502
        %v6529 = vadd.f32 %v6492, %v6502
        %v6530 = vadd.f32 %v6493, %v6502
        %v6531 = vadd.f32 %v6494, %v6502
        %v6532 = vadd.f32 %v6495, %v6502
        %v6533 = vadd.f32 %v6496, %v6502
        %v6534 = vadd.f32 %v6497, %v6502
        %v6535 = vmax.f32 %v6503, 0.0
        %v6536 = vmax.f32 %v6504, 0.0
        %v6537 = vmax.f32 %v6505, 0.0
        %v6538 = vmax.f32 %v6506, 0.0
        %v6539 = vmax.f32 %v6507, 0.0
        %v6540 = vmax.f32 %v6508, 0.0
        %v6541 = vmax.f32 %v6509, 0.0
        %v6542 = vmax.f32 %v6510, 0.0
        %v6543 = vmax.f32 %v6511, 0.0
        %v6544 = vmax.f32 %v6512, 0.0
        %v6545 = vmax.f32 %v6513, 0.0
        %v6546 = vmax.f32 %v6514, 0.0
        %v6547 = vmax.f32 %v6515, 0.0
        %v6548 = vmax.f32 %v6516, 0.0
        %v6549 = vmax.f32 %v6517, 0.0
        %v6550 = vmax.f32 %v6518, 0.0
        %v6551 = vmax.f32 %v6519, 0.0
        %v6552 = vmax.f32 %v6520, 0.0
        %v6553 = vmax.f32 %v6521, 0.0
        %v6554 = vmax.f32 %v6522, 0.0
        %v6555 = vmax.f32 %v6523, 0.0
        %v6556 = vmax.f32 %v6524, 0.0
        %v6557 = vmax.f32 %v6525, 0.0
        %v6558 = vmax.f32 %v6526, 0.0
        %v6559 = vmax.f32 %v6527, 0.0
        %v6560 = vmax.f32 %v6528, 0.0
        %v6561 = vmax.f32 %v6529, 0.0
        %v6562 = vmax.f32 %v6530, 0.0
        %v6563 = vmax.f32 %v6531, 0.0
        %v6564 = vmax.f32 %v6532, 0.0
        %v6565 = vmax.f32 %v6533, 0.0
        %v6566 = vmax.f32 %v6534, 0.0
        %v6567 = vpack.c.b16 %v765, %v765
        %v6568 = vpack.c.b16 %v766, %v766
        %v6569 = vpack.c.b16 %v767, %v767
        %v6570 = vpack.c.b16 %v768, %v768
        %v6571 = vpack.c.b16 %v769, %v769
        %v6572 = vpack.c.b16 %v770, %v770
        %v6573 = vpack.c.b16 %v771, %v771
        %v6574 = vpack.c.b16 %v772, %v772
        %v6575 = vpack.c.b16 %v773, %v773
        %v6576 = vpack.c.b16 %v774, %v774
        %v6577 = vpack.c.b16 %v775, %v775
        %v6578 = vpack.c.b16 %v776, %v776
        %v6579 = vpack.c.b16 %v777, %v777
        %v6580 = vpack.c.b16 %v778, %v778
        %v6581 = vpack.c.b16 %v779, %v779
        %v6582 = vpack.c.b16 %v780, %v780
        %v6583 = vpack.c.b16 %v781, %v781
        %v6584 = vpack.c.b16 %v782, %v782
        %v6585 = vpack.c.b16 %v783, %v783
        %v6586 = vpack.c.b16 %v784, %v784
        %v6587 = vpack.c.b16 %v785, %v785
        %v6588 = vpack.c.b16 %v786, %v786
        %v6589 = vpack.c.b16 %v787, %v787
        %v6590 = vpack.c.b16 %v788, %v788
        %v6591 = vpack.c.b16 %v789, %v789
        %v6592 = vpack.c.b16 %v790, %v790
        %v6593 = vpack.c.b16 %v791, %v791
        %v6594 = vpack.c.b16 %v792, %v792
        %v6595 = vpack.c.b16 %v793, %v793
        %v6596 = vpack.c.b16 %v794, %v794
        %v6597 = vpack.c.b16 %v795, %v795
        %v6598 = vpack.c.b16 %v796, %v796
        %v6601 = vsel %vm1213, 4284677986, %v6567
        %v6604 = vsel %vm1213, 4284677986, %v6569
        %v6607 = vsel %vm1213, 4284677986, %v6571
        %v6610 = vsel %vm1213, 4284677986, %v6573
        %v6613 = vsel %vm1213, 4284677986, %v6575
        %v6616 = vsel %vm1213, 4284677986, %v6577
        %v6619 = vsel %vm1213, 4284677986, %v6579
        %v6622 = vsel %vm1213, 4284677986, %v6581
        %v6625 = vsel %vm1213, 4284677986, %v6583
        %v6628 = vsel %vm1213, 4284677986, %v6585
        %v6631 = vsel %vm1213, 4284677986, %v6587
        %v6634 = vsel %vm1213, 4284677986, %v6589
        %v6637 = vsel %vm1213, 4284677986, %v6591
        %v6640 = vsel %vm1213, 4284677986, %v6593
        %v6643 = vsel %vm1213, 4284677986, %v6595
        %v6646 = vsel %vm1213, 4284677986, %v6597
        %v6649 = vsel %vm1213, %v6568, 4284677986
        %v6652 = vsel %vm1213, %v6570, 4284677986
        %v6655 = vsel %vm1213, %v6572, 4284677986
        %v6658 = vsel %vm1213, %v6574, 4284677986
        %v6661 = vsel %vm1213, %v6576, 4284677986
        %v6664 = vsel %vm1213, %v6578, 4284677986
        %v6667 = vsel %vm1213, %v6580, 4284677986
        %v6670 = vsel %vm1213, %v6582, 4284677986
        %v6673 = vsel %vm1213, %v6584, 4284677986
        %v6676 = vsel %vm1213, %v6586, 4284677986
        %v6679 = vsel %vm1213, %v6588, 4284677986
        %v6682 = vsel %vm1213, %v6590, 4284677986
        %v6685 = vsel %vm1213, %v6592, 4284677986
        %v6688 = vsel %vm1213, %v6594, 4284677986
        %v6691 = vsel %vm1213, %v6596, 4284677986
        %v6694 = vsel %vm1213, %v6598, 4284677986
        %v6696 = vshrl.u32 %v6601, 16
        %v6698 = vshll.u32 %v6601, 16
        %v6700 = vrot.slane %v6698, 1
        %v6701 = vor.u32 %v6696, %v6700
        %v6702 = vshll.u32 %v6649, 16
        %v6704 = vrot.slane %v6702, 1
        %v6705 = vsel %vm1263, %v6701, %v6704
        %v6706 = vshrl.u32 %v6649, 16
        %v6708 = vor.u32 %v6706, %v6704
        %v6709 = vshrl.u32 %v6604, 16
        %v6711 = vshll.u32 %v6604, 16
        %v6713 = vrot.slane %v6711, 1
        %v6714 = vor.u32 %v6709, %v6713
        %v6715 = vshll.u32 %v6652, 16
        %v6717 = vrot.slane %v6715, 1
        %v6718 = vsel %vm1263, %v6714, %v6717
        %v6719 = vshrl.u32 %v6652, 16
        %v6721 = vor.u32 %v6719, %v6717
        %v6722 = vshrl.u32 %v6607, 16
        %v6724 = vshll.u32 %v6607, 16
        %v6726 = vrot.slane %v6724, 1
        %v6727 = vor.u32 %v6722, %v6726
        %v6728 = vshll.u32 %v6655, 16
        %v6730 = vrot.slane %v6728, 1
        %v6731 = vsel %vm1263, %v6727, %v6730
        %v6732 = vshrl.u32 %v6655, 16
        %v6734 = vor.u32 %v6732, %v6730
        %v6735 = vshrl.u32 %v6610, 16
        %v6737 = vshll.u32 %v6610, 16
        %v6739 = vrot.slane %v6737, 1
        %v6740 = vor.u32 %v6735, %v6739
        %v6741 = vshll.u32 %v6658, 16
        %v6743 = vrot.slane %v6741, 1
        %v6744 = vsel %vm1263, %v6740, %v6743
        %v6745 = vshrl.u32 %v6658, 16
        %v6747 = vor.u32 %v6745, %v6743
        %v6748 = vshrl.u32 %v6613, 16
        %v6750 = vshll.u32 %v6613, 16
        %v6752 = vrot.slane %v6750, 1
        %v6753 = vor.u32 %v6748, %v6752
        %v6754 = vshll.u32 %v6661, 16
        %v6756 = vrot.slane %v6754, 1
        %v6757 = vsel %vm1263, %v6753, %v6756
        %v6758 = vshrl.u32 %v6661, 16
        %v6760 = vor.u32 %v6758, %v6756
        %v6761 = vshrl.u32 %v6616, 16
        %v6763 = vshll.u32 %v6616, 16
        %v6765 = vrot.slane %v6763, 1
        %v6766 = vor.u32 %v6761, %v6765
        %v6767 = vshll.u32 %v6664, 16
        %v6769 = vrot.slane %v6767, 1
        %v6770 = vsel %vm1263, %v6766, %v6769
        %v6771 = vshrl.u32 %v6664, 16
        %v6773 = vor.u32 %v6771, %v6769
        %v6774 = vshrl.u32 %v6619, 16
        %v6776 = vshll.u32 %v6619, 16
        %v6778 = vrot.slane %v6776, 1
        %v6779 = vor.u32 %v6774, %v6778
        %v6780 = vshll.u32 %v6667, 16
        %v6782 = vrot.slane %v6780, 1
        %v6783 = vsel %vm1263, %v6779, %v6782
        %v6784 = vshrl.u32 %v6667, 16
        %v6786 = vor.u32 %v6784, %v6782
        %v6787 = vshrl.u32 %v6622, 16
        %v6789 = vshll.u32 %v6622, 16
        %v6791 = vrot.slane %v6789, 1
        %v6792 = vor.u32 %v6787, %v6791
        %v6793 = vshll.u32 %v6670, 16
        %v6795 = vrot.slane %v6793, 1
        %v6796 = vsel %vm1263, %v6792, %v6795
        %v6797 = vshrl.u32 %v6670, 16
        %v6799 = vor.u32 %v6797, %v6795
        %v6800 = vshrl.u32 %v6625, 16
        %v6802 = vshll.u32 %v6625, 16
        %v6804 = vrot.slane %v6802, 1
        %v6805 = vor.u32 %v6800, %v6804
        %v6806 = vshll.u32 %v6673, 16
        %v6808 = vrot.slane %v6806, 1
        %v6809 = vsel %vm1263, %v6805, %v6808
        %v6810 = vshrl.u32 %v6673, 16
        %v6812 = vor.u32 %v6810, %v6808
        %v6813 = vshrl.u32 %v6628, 16
        %v6815 = vshll.u32 %v6628, 16
        %v6817 = vrot.slane %v6815, 1
        %v6818 = vor.u32 %v6813, %v6817
        %v6819 = vshll.u32 %v6676, 16
        %v6821 = vrot.slane %v6819, 1
        %v6822 = vsel %vm1263, %v6818, %v6821
        %v6823 = vshrl.u32 %v6676, 16
        %v6825 = vor.u32 %v6823, %v6821
        %v6826 = vshrl.u32 %v6631, 16
        %v6828 = vshll.u32 %v6631, 16
        %v6830 = vrot.slane %v6828, 1
        %v6831 = vor.u32 %v6826, %v6830
        %v6832 = vshll.u32 %v6679, 16
        %v6834 = vrot.slane %v6832, 1
        %v6835 = vsel %vm1263, %v6831, %v6834
        %v6836 = vshrl.u32 %v6679, 16
        %v6838 = vor.u32 %v6836, %v6834
        %v6839 = vshrl.u32 %v6634, 16
        %v6841 = vshll.u32 %v6634, 16
        %v6843 = vrot.slane %v6841, 1
        %v6844 = vor.u32 %v6839, %v6843
        %v6845 = vshll.u32 %v6682, 16
        %v6847 = vrot.slane %v6845, 1
        %v6848 = vsel %vm1263, %v6844, %v6847
        %v6849 = vshrl.u32 %v6682, 16
        %v6851 = vor.u32 %v6849, %v6847
        %v6852 = vshrl.u32 %v6637, 16
        %v6854 = vshll.u32 %v6637, 16
        %v6856 = vrot.slane %v6854, 1
        %v6857 = vor.u32 %v6852, %v6856
        %v6858 = vshll.u32 %v6685, 16
        %v6860 = vrot.slane %v6858, 1
        %v6861 = vsel %vm1263, %v6857, %v6860
        %v6862 = vshrl.u32 %v6685, 16
        %v6864 = vor.u32 %v6862, %v6860
        %v6865 = vshrl.u32 %v6640, 16
        %v6867 = vshll.u32 %v6640, 16
        %v6869 = vrot.slane %v6867, 1
        %v6870 = vor.u32 %v6865, %v6869
        %v6871 = vshll.u32 %v6688, 16
        %v6873 = vrot.slane %v6871, 1
        %v6874 = vsel %vm1263, %v6870, %v6873
        %v6875 = vshrl.u32 %v6688, 16
        %v6877 = vor.u32 %v6875, %v6873
        %v6878 = vshrl.u32 %v6643, 16
        %v6880 = vshll.u32 %v6643, 16
        %v6882 = vrot.slane %v6880, 1
        %v6883 = vor.u32 %v6878, %v6882
        %v6884 = vshll.u32 %v6691, 16
        %v6886 = vrot.slane %v6884, 1
        %v6887 = vsel %vm1263, %v6883, %v6886
        %v6888 = vshrl.u32 %v6691, 16
        %v6890 = vor.u32 %v6888, %v6886
        %v6891 = vshrl.u32 %v6646, 16
        %v6893 = vshll.u32 %v6646, 16
        %v6895 = vrot.slane %v6893, 1
        %v6896 = vor.u32 %v6891, %v6895
        %v6897 = vshll.u32 %v6694, 16
        %v6899 = vrot.slane %v6897, 1
        %v6900 = vsel %vm1263, %v6896, %v6899
        %v6901 = vshrl.u32 %v6694, 16
        %v6903 = vor.u32 %v6901, %v6899
        %v6936 = vmax.bf16 %v6601, %v6705
        %v6937 = vmax.bf16 %v6649, %v6708
        %v6938 = vmax.bf16 %v6604, %v6718
        %v6939 = vmax.bf16 %v6652, %v6721
        %v6940 = vmax.bf16 %v6607, %v6731
        %v6941 = vmax.bf16 %v6655, %v6734
        %v6942 = vmax.bf16 %v6610, %v6744
        %v6943 = vmax.bf16 %v6658, %v6747
        %v6944 = vmax.bf16 %v6613, %v6757
        %v6945 = vmax.bf16 %v6661, %v6760
        %v6946 = vmax.bf16 %v6616, %v6770
        %v6947 = vmax.bf16 %v6664, %v6773
        %v6948 = vmax.bf16 %v6619, %v6783
        %v6949 = vmax.bf16 %v6667, %v6786
        %v6950 = vmax.bf16 %v6622, %v6796
        %v6951 = vmax.bf16 %v6670, %v6799
        %v6952 = vmax.bf16 %v6625, %v6809
        %v6953 = vmax.bf16 %v6673, %v6812
        %v6954 = vmax.bf16 %v6628, %v6822
        %v6955 = vmax.bf16 %v6676, %v6825
        %v6956 = vmax.bf16 %v6631, %v6835
        %v6957 = vmax.bf16 %v6679, %v6838
        %v6958 = vmax.bf16 %v6634, %v6848
        %v6959 = vmax.bf16 %v6682, %v6851
        %v6960 = vmax.bf16 %v6637, %v6861
        %v6961 = vmax.bf16 %v6685, %v6864
        %v6962 = vmax.bf16 %v6640, %v6874
        %v6963 = vmax.bf16 %v6688, %v6877
        %v6964 = vmax.bf16 %v6643, %v6887
        %v6965 = vmax.bf16 %v6691, %v6890
        %v6966 = vmax.bf16 %v6646, %v6900
        %v6967 = vmax.bf16 %v6694, %v6903
        %v7000 = vrot.slane %v6601, 1
        %v7001 = vrot.slane %v6649, 1
        %v7002 = vsel %vm1568, %v7000, %v7001
        %v7003 = vrot.slane %v6604, 1
        %v7004 = vrot.slane %v6652, 1
        %v7005 = vsel %vm1568, %v7003, %v7004
        %v7006 = vrot.slane %v6607, 1
        %v7007 = vrot.slane %v6655, 1
        %v7008 = vsel %vm1568, %v7006, %v7007
        %v7009 = vrot.slane %v6610, 1
        %v7010 = vrot.slane %v6658, 1
        %v7011 = vsel %vm1568, %v7009, %v7010
        %v7012 = vrot.slane %v6613, 1
        %v7013 = vrot.slane %v6661, 1
        %v7014 = vsel %vm1568, %v7012, %v7013
        %v7015 = vrot.slane %v6616, 1
        %v7016 = vrot.slane %v6664, 1
        %v7017 = vsel %vm1568, %v7015, %v7016
        %v7018 = vrot.slane %v6619, 1
        %v7019 = vrot.slane %v6667, 1
        %v7020 = vsel %vm1568, %v7018, %v7019
        %v7021 = vrot.slane %v6622, 1
        %v7022 = vrot.slane %v6670, 1
        %v7023 = vsel %vm1568, %v7021, %v7022
        %v7024 = vrot.slane %v6625, 1
        %v7025 = vrot.slane %v6673, 1
        %v7026 = vsel %vm1568, %v7024, %v7025
        %v7027 = vrot.slane %v6628, 1
        %v7028 = vrot.slane %v6676, 1
        %v7029 = vsel %vm1568, %v7027, %v7028
        %v7030 = vrot.slane %v6631, 1
        %v7031 = vrot.slane %v6679, 1
        %v7032 = vsel %vm1568, %v7030, %v7031
        %v7033 = vrot.slane %v6634, 1
        %v7034 = vrot.slane %v6682, 1
        %v7035 = vsel %vm1568, %v7033, %v7034
        %v7036 = vrot.slane %v6637, 1
        %v7037 = vrot.slane %v6685, 1
        %v7038 = vsel %vm1568, %v7036, %v7037
        %v7039 = vrot.slane %v6640, 1
        %v7040 = vrot.slane %v6688, 1
        %v7041 = vsel %vm1568, %v7039, %v7040
        %v7042 = vrot.slane %v6643, 1
        %v7043 = vrot.slane %v6691, 1
        %v7044 = vsel %vm1568, %v7042, %v7043
        %v7045 = vrot.slane %v6646, 1
        %v7046 = vrot.slane %v6694, 1
        %v7047 = vsel %vm1568, %v7045, %v7046
        %v7080 = vmax.bf16 %v6936, %v7002
        %v7081 = vmax.bf16 %v6937, %v7001
        %v7082 = vmax.bf16 %v6938, %v7005
        %v7083 = vmax.bf16 %v6939, %v7004
        %v7084 = vmax.bf16 %v6940, %v7008
        %v7085 = vmax.bf16 %v6941, %v7007
        %v7086 = vmax.bf16 %v6942, %v7011
        %v7087 = vmax.bf16 %v6943, %v7010
        %v7088 = vmax.bf16 %v6944, %v7014
        %v7089 = vmax.bf16 %v6945, %v7013
        %v7090 = vmax.bf16 %v6946, %v7017
        %v7091 = vmax.bf16 %v6947, %v7016
        %v7092 = vmax.bf16 %v6948, %v7020
        %v7093 = vmax.bf16 %v6949, %v7019
        %v7094 = vmax.bf16 %v6950, %v7023
        %v7095 = vmax.bf16 %v6951, %v7022
        %v7096 = vmax.bf16 %v6952, %v7026
        %v7097 = vmax.bf16 %v6953, %v7025
        %v7098 = vmax.bf16 %v6954, %v7029
        %v7099 = vmax.bf16 %v6955, %v7028
        %v7100 = vmax.bf16 %v6956, %v7032
        %v7101 = vmax.bf16 %v6957, %v7031
        %v7102 = vmax.bf16 %v6958, %v7035
        %v7103 = vmax.bf16 %v6959, %v7034
        %v7104 = vmax.bf16 %v6960, %v7038
        %v7105 = vmax.bf16 %v6961, %v7037
        %v7106 = vmax.bf16 %v6962, %v7041
        %v7107 = vmax.bf16 %v6963, %v7040
        %v7108 = vmax.bf16 %v6964, %v7044
        %v7109 = vmax.bf16 %v6965, %v7043
        %v7110 = vmax.bf16 %v6966, %v7047
        %v7111 = vmax.bf16 %v6967, %v7046
        %v7113 = vshrl.u32 %v7080, 16
        %v7115 = vrot.slane %v7113, 3
        %v7116 = vshll.u32 %v7080, 16
        %v7118 = vrot.slane %v7116, 4
        %v7119 = vor.u32 %v7115, %v7118
        %v7121 = vshrl.u32 %v7081, 16
        %v7123 = vrot.slane %v7121, 3
        %v7124 = vshll.u32 %v7081, 16
        %v7126 = vrot.slane %v7124, 4
        %v7127 = vor.u32 %v7123, %v7126
        %v7128 = vsel %vm1811, %v7119, %v7127
        %v7130 = vshrl.u32 %v7082, 16
        %v7132 = vrot.slane %v7130, 3
        %v7133 = vshll.u32 %v7082, 16
        %v7135 = vrot.slane %v7133, 4
        %v7136 = vor.u32 %v7132, %v7135
        %v7138 = vshrl.u32 %v7083, 16
        %v7140 = vrot.slane %v7138, 3
        %v7141 = vshll.u32 %v7083, 16
        %v7143 = vrot.slane %v7141, 4
        %v7144 = vor.u32 %v7140, %v7143
        %v7145 = vsel %vm1811, %v7136, %v7144
        %v7147 = vshrl.u32 %v7084, 16
        %v7149 = vrot.slane %v7147, 3
        %v7150 = vshll.u32 %v7084, 16
        %v7152 = vrot.slane %v7150, 4
        %v7153 = vor.u32 %v7149, %v7152
        %v7155 = vshrl.u32 %v7085, 16
        %v7157 = vrot.slane %v7155, 3
        %v7158 = vshll.u32 %v7085, 16
        %v7160 = vrot.slane %v7158, 4
        %v7161 = vor.u32 %v7157, %v7160
        %v7162 = vsel %vm1811, %v7153, %v7161
        %v7164 = vshrl.u32 %v7086, 16
        %v7166 = vrot.slane %v7164, 3
        %v7167 = vshll.u32 %v7086, 16
        %v7169 = vrot.slane %v7167, 4
        %v7170 = vor.u32 %v7166, %v7169
        %v7172 = vshrl.u32 %v7087, 16
        %v7174 = vrot.slane %v7172, 3
        %v7175 = vshll.u32 %v7087, 16
        %v7177 = vrot.slane %v7175, 4
        %v7178 = vor.u32 %v7174, %v7177
        %v7179 = vsel %vm1811, %v7170, %v7178
        %v7181 = vshrl.u32 %v7088, 16
        %v7183 = vrot.slane %v7181, 3
        %v7184 = vshll.u32 %v7088, 16
        %v7186 = vrot.slane %v7184, 4
        %v7187 = vor.u32 %v7183, %v7186
        %v7189 = vshrl.u32 %v7089, 16
        %v7191 = vrot.slane %v7189, 3
        %v7192 = vshll.u32 %v7089, 16
        %v7194 = vrot.slane %v7192, 4
        %v7195 = vor.u32 %v7191, %v7194
        %v7196 = vsel %vm1811, %v7187, %v7195
        %v7198 = vshrl.u32 %v7090, 16
        %v7200 = vrot.slane %v7198, 3
        %v7201 = vshll.u32 %v7090, 16
        %v7203 = vrot.slane %v7201, 4
        %v7204 = vor.u32 %v7200, %v7203
        %v7206 = vshrl.u32 %v7091, 16
        %v7208 = vrot.slane %v7206, 3
        %v7209 = vshll.u32 %v7091, 16
        %v7211 = vrot.slane %v7209, 4
        %v7212 = vor.u32 %v7208, %v7211
        %v7213 = vsel %vm1811, %v7204, %v7212
        %v7215 = vshrl.u32 %v7092, 16
        %v7217 = vrot.slane %v7215, 3
        %v7218 = vshll.u32 %v7092, 16
        %v7220 = vrot.slane %v7218, 4
        %v7221 = vor.u32 %v7217, %v7220
        %v7223 = vshrl.u32 %v7093, 16
        %v7225 = vrot.slane %v7223, 3
        %v7226 = vshll.u32 %v7093, 16
        %v7228 = vrot.slane %v7226, 4
        %v7229 = vor.u32 %v7225, %v7228
        %v7230 = vsel %vm1811, %v7221, %v7229
        %v7232 = vshrl.u32 %v7094, 16
        %v7234 = vrot.slane %v7232, 3
        %v7235 = vshll.u32 %v7094, 16
        %v7237 = vrot.slane %v7235, 4
        %v7238 = vor.u32 %v7234, %v7237
        %v7240 = vshrl.u32 %v7095, 16
        %v7242 = vrot.slane %v7240, 3
        %v7243 = vshll.u32 %v7095, 16
        %v7245 = vrot.slane %v7243, 4
        %v7246 = vor.u32 %v7242, %v7245
        %v7247 = vsel %vm1811, %v7238, %v7246
        %v7249 = vshrl.u32 %v7096, 16
        %v7251 = vrot.slane %v7249, 3
        %v7252 = vshll.u32 %v7096, 16
        %v7254 = vrot.slane %v7252, 4
        %v7255 = vor.u32 %v7251, %v7254
        %v7257 = vshrl.u32 %v7097, 16
        %v7259 = vrot.slane %v7257, 3
        %v7260 = vshll.u32 %v7097, 16
        %v7262 = vrot.slane %v7260, 4
        %v7263 = vor.u32 %v7259, %v7262
        %v7264 = vsel %vm1811, %v7255, %v7263
        %v7266 = vshrl.u32 %v7098, 16
        %v7268 = vrot.slane %v7266, 3
        %v7269 = vshll.u32 %v7098, 16
        %v7271 = vrot.slane %v7269, 4
        %v7272 = vor.u32 %v7268, %v7271
        %v7274 = vshrl.u32 %v7099, 16
        %v7276 = vrot.slane %v7274, 3
        %v7277 = vshll.u32 %v7099, 16
        %v7279 = vrot.slane %v7277, 4
        %v7280 = vor.u32 %v7276, %v7279
        %v7281 = vsel %vm1811, %v7272, %v7280
        %v7283 = vshrl.u32 %v7100, 16
        %v7285 = vrot.slane %v7283, 3
        %v7286 = vshll.u32 %v7100, 16
        %v7288 = vrot.slane %v7286, 4
        %v7289 = vor.u32 %v7285, %v7288
        %v7291 = vshrl.u32 %v7101, 16
        %v7293 = vrot.slane %v7291, 3
        %v7294 = vshll.u32 %v7101, 16
        %v7296 = vrot.slane %v7294, 4
        %v7297 = vor.u32 %v7293, %v7296
        %v7298 = vsel %vm1811, %v7289, %v7297
        %v7300 = vshrl.u32 %v7102, 16
        %v7302 = vrot.slane %v7300, 3
        %v7303 = vshll.u32 %v7102, 16
        %v7305 = vrot.slane %v7303, 4
        %v7306 = vor.u32 %v7302, %v7305
        %v7308 = vshrl.u32 %v7103, 16
        %v7310 = vrot.slane %v7308, 3
        %v7311 = vshll.u32 %v7103, 16
        %v7313 = vrot.slane %v7311, 4
        %v7314 = vor.u32 %v7310, %v7313
        %v7315 = vsel %vm1811, %v7306, %v7314
        %v7317 = vshrl.u32 %v7104, 16
        %v7319 = vrot.slane %v7317, 3
        %v7320 = vshll.u32 %v7104, 16
        %v7322 = vrot.slane %v7320, 4
        %v7323 = vor.u32 %v7319, %v7322
        %v7325 = vshrl.u32 %v7105, 16
        %v7327 = vrot.slane %v7325, 3
        %v7328 = vshll.u32 %v7105, 16
        %v7330 = vrot.slane %v7328, 4
        %v7331 = vor.u32 %v7327, %v7330
        %v7332 = vsel %vm1811, %v7323, %v7331
        %v7334 = vshrl.u32 %v7106, 16
        %v7336 = vrot.slane %v7334, 3
        %v7337 = vshll.u32 %v7106, 16
        %v7339 = vrot.slane %v7337, 4
        %v7340 = vor.u32 %v7336, %v7339
        %v7342 = vshrl.u32 %v7107, 16
        %v7344 = vrot.slane %v7342, 3
        %v7345 = vshll.u32 %v7107, 16
        %v7347 = vrot.slane %v7345, 4
        %v7348 = vor.u32 %v7344, %v7347
        %v7349 = vsel %vm1811, %v7340, %v7348
        %v7351 = vshrl.u32 %v7108, 16
        %v7353 = vrot.slane %v7351, 3
        %v7354 = vshll.u32 %v7108, 16
        %v7356 = vrot.slane %v7354, 4
        %v7357 = vor.u32 %v7353, %v7356
        %v7359 = vshrl.u32 %v7109, 16
        %v7361 = vrot.slane %v7359, 3
        %v7362 = vshll.u32 %v7109, 16
        %v7364 = vrot.slane %v7362, 4
        %v7365 = vor.u32 %v7361, %v7364
        %v7366 = vsel %vm1811, %v7357, %v7365
        %v7368 = vshrl.u32 %v7110, 16
        %v7370 = vrot.slane %v7368, 3
        %v7371 = vshll.u32 %v7110, 16
        %v7373 = vrot.slane %v7371, 4
        %v7374 = vor.u32 %v7370, %v7373
        %v7376 = vshrl.u32 %v7111, 16
        %v7378 = vrot.slane %v7376, 3
        %v7379 = vshll.u32 %v7111, 16
        %v7381 = vrot.slane %v7379, 4
        %v7382 = vor.u32 %v7378, %v7381
        %v7383 = vsel %vm1811, %v7374, %v7382
        %v7400 = vmax.bf16 %v7128, 4284677986
        %v7401 = vmax.bf16 %v7128, %v7145
        %v7402 = vmax.bf16 %v7145, %v7162
        %v7403 = vmax.bf16 %v7162, %v7179
        %v7404 = vmax.bf16 %v7179, %v7196
        %v7405 = vmax.bf16 %v7196, %v7213
        %v7406 = vmax.bf16 %v7213, %v7230
        %v7407 = vmax.bf16 %v7230, %v7247
        %v7408 = vmax.bf16 %v7247, %v7264
        %v7409 = vmax.bf16 %v7264, %v7281
        %v7410 = vmax.bf16 %v7281, %v7298
        %v7411 = vmax.bf16 %v7298, %v7315
        %v7412 = vmax.bf16 %v7315, %v7332
        %v7413 = vmax.bf16 %v7332, %v7349
        %v7414 = vmax.bf16 %v7349, %v7366
        %v7415 = vmax.bf16 %v7366, %v7383
        %v7416 = vmax.bf16 %v7400, %v7145
        %v7417 = vmax.bf16 %v7401, %v7162
        %v7418 = vmax.bf16 %v7402, %v7179
        %v7419 = vmax.bf16 %v7403, %v7196
        %v7420 = vmax.bf16 %v7404, %v7213
        %v7421 = vmax.bf16 %v7405, %v7230
        %v7422 = vmax.bf16 %v7406, %v7247
        %v7423 = vmax.bf16 %v7407, %v7264
        %v7424 = vmax.bf16 %v7408, %v7281
        %v7425 = vmax.bf16 %v7409, %v7298
        %v7426 = vmax.bf16 %v7410, %v7315
        %v7427 = vmax.bf16 %v7411, %v7332
        %v7428 = vmax.bf16 %v7412, %v7349
        %v7429 = vmax.bf16 %v7413, %v7366
        %v7430 = vmax.bf16 %v7414, %v7383
        %v7431 = vmax.bf16 %v7415, 4284677986
        %v7432 = vld [vmem:[#allocation23] sm:$0x3]
        %v7434 = vsel %vm813, %v7416, 0
        %v7437 = vsel %vm813, %v7417, 0
        %v7440 = vsel %vm813, %v7418, 0
        %v7443 = vsel %vm813, %v7419, 0
        %v7446 = vsel %vm813, %v7420, 0
        %v7449 = vsel %vm813, %v7421, 0
        %v7452 = vsel %vm813, %v7422, 0
        %v7455 = vsel %vm813, %v7423, 0
        %v7458 = vsel %vm813, %v7424, 0
        %v7461 = vsel %vm813, %v7425, 0
        %v7464 = vsel %vm813, %v7426, 0
        %v7467 = vsel %vm813, %v7427, 0
        %v7470 = vsel %vm813, %v7428, 0
        %v7473 = vsel %vm813, %v7429, 0
        %v7476 = vsel %vm813, %v7430, 0
        %v7479 = vsel %vm813, %v7431, 0
        %v7482 = vsel %vm862, %v7432, 0
        %7484 = vmatprep.subr.bf16.mxu0 0
        %7485 = vmatpush1.bf16.msra.mxu0 %v7482
        %7486 = vmatprep.subr.bf16.mxu0 0
        %7487 = vmatpush1.bf16.msra.mxu0 0
        %7488 = vmatprep.subr.bf16.mxu0 0
        %7489 = vmatpush1.bf16.msra.mxu0 0
        %7490 = vmatprep.subr.bf16.mxu0 0
        %7491 = vmatpush1.bf16.msra.mxu0 0
        %7492 = vmatprep.subr.bf16.mxu0 0
        %7493 = vmatpush1.bf16.msra.mxu0 0
        %7494 = vmatprep.subr.bf16.mxu0 0
        %7495 = vmatpush1.bf16.msra.mxu0 0
        %7496 = vmatprep.subr.bf16.mxu0 0
        %7497 = vmatpush1.bf16.msra.mxu0 0
        %7498 = vmatprep.subr.bf16.mxu0 0
        %7499 = vmatpush1.bf16.msra.mxu0 0
        %7500 = vmatprep.subr.bf16.mxu0 0
        %7501 = vmatpush1.bf16.msra.mxu0 0
        %7502 = vmatprep.subr.bf16.mxu0 0
        %7503 = vmatpush1.bf16.msra.mxu0 0
        %7504 = vmatprep.subr.bf16.mxu0 0
        %7505 = vmatpush1.bf16.msra.mxu0 0
        %7506 = vmatprep.subr.bf16.mxu0 0
        %7507 = vmatpush1.bf16.msra.mxu0 0
        %7508 = vmatprep.subr.bf16.mxu0 0
        %7509 = vmatpush1.bf16.msra.mxu0 0
        %7510 = vmatprep.subr.bf16.mxu0 0
        %7511 = vmatpush1.bf16.msra.mxu0 0
        %7512 = vmatprep.subr.bf16.mxu0 0
        %7513 = vmatpush1.bf16.msra.mxu0 0
        %7514 = vmatprep.subr.bf16.mxu0 0
        %7515 = vmatpush1.bf16.msra.mxu0 0
        %7516 = vmatprep.mubr.bf16.mxu0 0
        %7517 = vmatmul.mubr.bf16.gmra.mrb[0].mxu0 %v7434
        %v7518 = vpop.f32.mrb[0].mxu0
        %v7519 = vadd.f32 0.0, %v7518
        %v7520 = vpop.f32.mrb[0].mxu0
        %v7521 = vpop.f32.mrb[0].mxu0
        %v7522 = vadd.f32 0.0, %v7521
        %v7523 = vpop.f32.mrb[0].mxu0
        %7524 = vmatprep.mubr.bf16.mxu0 0
        %7525 = vmatmul.mubr.bf16.gmra.mrb[0].mxu0 %v7437
        %v7526 = vpop.f32.mrb[0].mxu0
        %v7527 = vadd.f32 0.0, %v7526
        %v7528 = vpop.f32.mrb[0].mxu0
        %v7529 = vpop.f32.mrb[0].mxu0
        %v7530 = vadd.f32 0.0, %v7529
        %v7531 = vpop.f32.mrb[0].mxu0
        %7532 = vmatprep.mubr.bf16.mxu0 0
        %7533 = vmatmul.mubr.bf16.gmra.mrb[0].mxu0 %v7440
        %v7534 = vpop.f32.mrb[0].mxu0
        %v7535 = vadd.f32 0.0, %v7534
        %v7536 = vpop.f32.mrb[0].mxu0
        %v7537 = vpop.f32.mrb[0].mxu0
        %v7538 = vadd.f32 0.0, %v7537
        %v7539 = vpop.f32.mrb[0].mxu0
        %7540 = vmatprep.mubr.bf16.mxu0 0
        %7541 = vmatmul.mubr.bf16.gmra.mrb[0].mxu0 %v7443
        %v7542 = vpop.f32.mrb[0].mxu0
        %v7543 = vadd.f32 0.0, %v7542
        %v7544 = vpop.f32.mrb[0].mxu0
        %v7545 = vpop.f32.mrb[0].mxu0
        %v7546 = vadd.f32 0.0, %v7545
        %v7547 = vpop.f32.mrb[0].mxu0
        %7548 = vmatprep.mubr.bf16.mxu0 0
        %7549 = vmatmul.mubr.bf16.gmra.mrb[0].mxu0 %v7446
        %v7550 = vpop.f32.mrb[0].mxu0
        %v7551 = vadd.f32 0.0, %v7550
        %v7552 = vpop.f32.mrb[0].mxu0
        %v7553 = vpop.f32.mrb[0].mxu0
        %v7554 = vadd.f32 0.0, %v7553
        %v7555 = vpop.f32.mrb[0].mxu0
        %7556 = vmatprep.mubr.bf16.mxu0 0
        %7557 = vmatmul.mubr.bf16.gmra.mrb[0].mxu0 %v7449
        %v7558 = vpop.f32.mrb[0].mxu0
        %v7559 = vadd.f32 0.0, %v7558
        %v7560 = vpop.f32.mrb[0].mxu0
        %v7561 = vpop.f32.mrb[0].mxu0
        %v7562 = vadd.f32 0.0, %v7561
        %v7563 = vpop.f32.mrb[0].mxu0
        %7564 = vmatprep.mubr.bf16.mxu0 0
        %7565 = vmatmul.mubr.bf16.gmra.mrb[0].mxu0 %v7452
        %v7566 = vpop.f32.mrb[0].mxu0
        %v7567 = vadd.f32 0.0, %v7566
        %v7568 = vpop.f32.mrb[0].mxu0
        %v7569 = vpop.f32.mrb[0].mxu0
        %v7570 = vadd.f32 0.0, %v7569
        %v7571 = vpop.f32.mrb[0].mxu0
        %7572 = vmatprep.mubr.bf16.mxu0 0
        %7573 = vmatmul.mubr.bf16.gmra.mrb[0].mxu0 %v7455
        %v7574 = vpop.f32.mrb[0].mxu0
        %v7575 = vadd.f32 0.0, %v7574
        %v7576 = vpop.f32.mrb[0].mxu0
        %v7577 = vpop.f32.mrb[0].mxu0
        %v7578 = vadd.f32 0.0, %v7577
        %v7579 = vpop.f32.mrb[0].mxu0
        %7580 = vmatprep.mubr.bf16.mxu0 0
        %7581 = vmatmul.mubr.bf16.gmra.mrb[0].mxu0 %v7458
        %v7582 = vpop.f32.mrb[0].mxu0
        %v7583 = vadd.f32 0.0, %v7582
        %v7584 = vpop.f32.mrb[0].mxu0
        %v7585 = vpop.f32.mrb[0].mxu0
        %v7586 = vadd.f32 0.0, %v7585
        %v7587 = vpop.f32.mrb[0].mxu0
        %7588 = vmatprep.mubr.bf16.mxu0 0
        %7589 = vmatmul.mubr.bf16.gmra.mrb[0].mxu0 %v7461
        %v7590 = vpop.f32.mrb[0].mxu0
        %v7591 = vadd.f32 0.0, %v7590
        %v7592 = vpop.f32.mrb[0].mxu0
        %v7593 = vpop.f32.mrb[0].mxu0
        %v7594 = vadd.f32 0.0, %v7593
        %v7595 = vpop.f32.mrb[0].mxu0
        %7596 = vmatprep.mubr.bf16.mxu0 0
        %7597 = vmatmul.mubr.bf16.gmra.mrb[0].mxu0 %v7464
        %v7598 = vpop.f32.mrb[0].mxu0
        %v7599 = vadd.f32 0.0, %v7598
        %v7600 = vpop.f32.mrb[0].mxu0
        %v7601 = vpop.f32.mrb[0].mxu0
        %v7602 = vadd.f32 0.0, %v7601
        %v7603 = vpop.f32.mrb[0].mxu0
        %7604 = vmatprep.mubr.bf16.mxu0 0
        %7605 = vmatmul.mubr.bf16.gmra.mrb[0].mxu0 %v7467
        %v7606 = vpop.f32.mrb[0].mxu0
        %v7607 = vadd.f32 0.0, %v7606
        %v7608 = vpop.f32.mrb[0].mxu0
        %v7609 = vpop.f32.mrb[0].mxu0
        %v7610 = vadd.f32 0.0, %v7609
        %v7611 = vpop.f32.mrb[0].mxu0
        %7612 = vmatprep.mubr.bf16.mxu0 0
        %7613 = vmatmul.mubr.bf16.gmra.mrb[0].mxu0 %v7470
        %v7614 = vpop.f32.mrb[0].mxu0
        %v7615 = vadd.f32 0.0, %v7614
        %v7616 = vpop.f32.mrb[0].mxu0
        %v7617 = vpop.f32.mrb[0].mxu0
        %v7618 = vadd.f32 0.0, %v7617
        %v7619 = vpop.f32.mrb[0].mxu0
        %7620 = vmatprep.mubr.bf16.mxu0 0
        %7621 = vmatmul.mubr.bf16.gmra.mrb[0].mxu0 %v7473
        %v7622 = vpop.f32.mrb[0].mxu0
        %v7623 = vadd.f32 0.0, %v7622
        %v7624 = vpop.f32.mrb[0].mxu0
        %v7625 = vpop.f32.mrb[0].mxu0
        %v7626 = vadd.f32 0.0, %v7625
        %v7627 = vpop.f32.mrb[0].mxu0
        %7628 = vmatprep.mubr.bf16.mxu0 0
        %7629 = vmatmul.mubr.bf16.gmra.mrb[0].mxu0 %v7476
        %v7630 = vpop.f32.mrb[0].mxu0
        %v7631 = vadd.f32 0.0, %v7630
        %v7632 = vpop.f32.mrb[0].mxu0
        %v7633 = vpop.f32.mrb[0].mxu0
        %v7634 = vadd.f32 0.0, %v7633
        %v7635 = vpop.f32.mrb[0].mxu0
        %7636 = vmatprep.mubr.bf16.mxu0 0
        %7637 = vmatmul.mubr.bf16.gmra.mrb[0].mxu0 %v7479
        %v7638 = vpop.f32.mrb[0].mxu0
        %v7639 = vadd.f32 0.0, %v7638
        %v7640 = vpop.f32.mrb[0].mxu0
        %v7641 = vpop.f32.mrb[0].mxu0
        %v7642 = vadd.f32 0.0, %v7641
        %v7643 = vpop.f32.mrb[0].mxu0
        %7644 = vdwg.mxu0
        %v7645 = vld [vmem:[#allocation25] sm:$0x1]
        %v7646 = vlaneseq
        %v7647 = vshrl.u32 %v7646, 7
        %v7648 = vsub.s32 0, %v7647
        %v7649 = vrot.slane %v7645, %v7648
        %v7650 = vmul.f32 %v7519, %v7649
        %v7651 = vmul.f32 %v7522, %v7649
        %v7652 = vmul.f32 %v7527, %v7649
        %v7653 = vmul.f32 %v7530, %v7649
        %v7654 = vmul.f32 %v7535, %v7649
        %v7655 = vmul.f32 %v7538, %v7649
        %v7656 = vmul.f32 %v7543, %v7649
        %v7657 = vmul.f32 %v7546, %v7649
        %v7658 = vmul.f32 %v7551, %v7649
        %v7659 = vmul.f32 %v7554, %v7649
        %v7660 = vmul.f32 %v7559, %v7649
        %v7661 = vmul.f32 %v7562, %v7649
        %v7662 = vmul.f32 %v7567, %v7649
        %v7663 = vmul.f32 %v7570, %v7649
        %v7664 = vmul.f32 %v7575, %v7649
        %v7665 = vmul.f32 %v7578, %v7649
        %v7666 = vmul.f32 %v7583, %v7649
        %v7667 = vmul.f32 %v7586, %v7649
        %v7668 = vmul.f32 %v7591, %v7649
        %v7669 = vmul.f32 %v7594, %v7649
        %v7670 = vmul.f32 %v7599, %v7649
        %v7671 = vmul.f32 %v7602, %v7649
        %v7672 = vmul.f32 %v7607, %v7649
        %v7673 = vmul.f32 %v7610, %v7649
        %v7674 = vmul.f32 %v7615, %v7649
        %v7675 = vmul.f32 %v7618, %v7649
        %v7676 = vmul.f32 %v7623, %v7649
        %v7677 = vmul.f32 %v7626, %v7649
        %v7678 = vmul.f32 %v7631, %v7649
        %v7679 = vmul.f32 %v7634, %v7649
        %v7680 = vmul.f32 %v7639, %v7649
        %v7681 = vmul.f32 %v7642, %v7649
        %v7682 = vld [vmem:[#allocation25 + $0x1] sm:$0x1]
        %v7683 = vlaneseq
        %v7684 = vshrl.u32 %v7683, 7
        %v7685 = vsub.s32 0, %v7684
        %v7686 = vrot.slane %v7682, %v7685
        %v7687 = vadd.f32 %v7650, %v7686
        %v7688 = vadd.f32 %v7651, %v7686
        %v7689 = vadd.f32 %v7652, %v7686
        %v7690 = vadd.f32 %v7653, %v7686
        %v7691 = vadd.f32 %v7654, %v7686
        %v7692 = vadd.f32 %v7655, %v7686
        %v7693 = vadd.f32 %v7656, %v7686
        %v7694 = vadd.f32 %v7657, %v7686
        %v7695 = vadd.f32 %v7658, %v7686
        %v7696 = vadd.f32 %v7659, %v7686
        %v7697 = vadd.f32 %v7660, %v7686
        %v7698 = vadd.f32 %v7661, %v7686
        %v7699 = vadd.f32 %v7662, %v7686
        %v7700 = vadd.f32 %v7663, %v7686
        %v7701 = vadd.f32 %v7664, %v7686
        %v7702 = vadd.f32 %v7665, %v7686
        %v7703 = vadd.f32 %v7666, %v7686
        %v7704 = vadd.f32 %v7667, %v7686
        %v7705 = vadd.f32 %v7668, %v7686
        %v7706 = vadd.f32 %v7669, %v7686
        %v7707 = vadd.f32 %v7670, %v7686
        %v7708 = vadd.f32 %v7671, %v7686
        %v7709 = vadd.f32 %v7672, %v7686
        %v7710 = vadd.f32 %v7673, %v7686
        %v7711 = vadd.f32 %v7674, %v7686
        %v7712 = vadd.f32 %v7675, %v7686
        %v7713 = vadd.f32 %v7676, %v7686
        %v7714 = vadd.f32 %v7677, %v7686
        %v7715 = vadd.f32 %v7678, %v7686
        %v7716 = vadd.f32 %v7679, %v7686
        %v7717 = vadd.f32 %v7680, %v7686
        %v7718 = vadd.f32 %v7681, %v7686
        %v7719 = vmax.f32 %v7687, 0.0
        %v7720 = vmax.f32 %v7688, 0.0
        %v7721 = vmax.f32 %v7689, 0.0
        %v7722 = vmax.f32 %v7690, 0.0
        %v7723 = vmax.f32 %v7691, 0.0
        %v7724 = vmax.f32 %v7692, 0.0
        %v7725 = vmax.f32 %v7693, 0.0
        %v7726 = vmax.f32 %v7694, 0.0
        %v7727 = vmax.f32 %v7695, 0.0
        %v7728 = vmax.f32 %v7696, 0.0
        %v7729 = vmax.f32 %v7697, 0.0
        %v7730 = vmax.f32 %v7698, 0.0
        %v7731 = vmax.f32 %v7699, 0.0
        %v7732 = vmax.f32 %v7700, 0.0
        %v7733 = vmax.f32 %v7701, 0.0
        %v7734 = vmax.f32 %v7702, 0.0
        %v7735 = vmax.f32 %v7703, 0.0
        %v7736 = vmax.f32 %v7704, 0.0
        %v7737 = vmax.f32 %v7705, 0.0
        %v7738 = vmax.f32 %v7706, 0.0
        %v7739 = vmax.f32 %v7707, 0.0
        %v7740 = vmax.f32 %v7708, 0.0
        %v7741 = vmax.f32 %v7709, 0.0
        %v7742 = vmax.f32 %v7710, 0.0
        %v7743 = vmax.f32 %v7711, 0.0
        %v7744 = vmax.f32 %v7712, 0.0
        %v7745 = vmax.f32 %v7713, 0.0
        %v7746 = vmax.f32 %v7714, 0.0
        %v7747 = vmax.f32 %v7715, 0.0
        %v7748 = vmax.f32 %v7716, 0.0
        %v7749 = vmax.f32 %v7717, 0.0
        %v7750 = vmax.f32 %v7718, 0.0
        %7783 = vrot.lane.b32.xlu0 %v2351, 8
        %v7784 = vpop.permute.xlu0 %7783
        %7785 = vrot.lane.b32.xlu0 %v2352, 8
        %v7786 = vpop.permute.xlu0 %7785
        %7787 = vrot.lane.b32.xlu0 %v2353, 8
        %v7788 = vpop.permute.xlu0 %7787
        %7789 = vrot.lane.b32.xlu0 %v2354, 8
        %v7790 = vpop.permute.xlu0 %7789
        %7791 = vrot.lane.b32.xlu0 %v2355, 8
        %v7792 = vpop.permute.xlu0 %7791
        %7793 = vrot.lane.b32.xlu0 %v2356, 8
        %v7794 = vpop.permute.xlu0 %7793
        %7795 = vrot.lane.b32.xlu0 %v2357, 8
        %v7796 = vpop.permute.xlu0 %7795
        %7797 = vrot.lane.b32.xlu0 %v2358, 8
        %v7798 = vpop.permute.xlu0 %7797
        %7799 = vrot.lane.b32.xlu0 %v2359, 8
        %v7800 = vpop.permute.xlu0 %7799
        %7801 = vrot.lane.b32.xlu0 %v2360, 8
        %v7802 = vpop.permute.xlu0 %7801
        %7803 = vrot.lane.b32.xlu0 %v2361, 8
        %v7804 = vpop.permute.xlu0 %7803
        %7805 = vrot.lane.b32.xlu0 %v2362, 8
        %v7806 = vpop.permute.xlu0 %7805
        %7807 = vrot.lane.b32.xlu0 %v2363, 8
        %v7808 = vpop.permute.xlu0 %7807
        %7809 = vrot.lane.b32.xlu0 %v2364, 8
        %v7810 = vpop.permute.xlu0 %7809
        %7811 = vrot.lane.b32.xlu0 %v2365, 8
        %v7812 = vpop.permute.xlu0 %7811
        %7813 = vrot.lane.b32.xlu0 %v2366, 8
        %v7814 = vpop.permute.xlu0 %7813
        %7815 = vrot.lane.b32.xlu0 %v2367, 8
        %v7816 = vpop.permute.xlu0 %7815
        %7817 = vrot.lane.b32.xlu0 %v2368, 8
        %v7818 = vpop.permute.xlu0 %7817
        %7819 = vrot.lane.b32.xlu0 %v2369, 8
        %v7820 = vpop.permute.xlu0 %7819
        %7821 = vrot.lane.b32.xlu0 %v2370, 8
        %v7822 = vpop.permute.xlu0 %7821
        %7823 = vrot.lane.b32.xlu0 %v2371, 8
        %v7824 = vpop.permute.xlu0 %7823
        %7825 = vrot.lane.b32.xlu0 %v2372, 8
        %v7826 = vpop.permute.xlu0 %7825
        %7827 = vrot.lane.b32.xlu0 %v2373, 8
        %v7828 = vpop.permute.xlu0 %7827
        %7829 = vrot.lane.b32.xlu0 %v2374, 8
        %v7830 = vpop.permute.xlu0 %7829
        %7831 = vrot.lane.b32.xlu0 %v2375, 8
        %v7832 = vpop.permute.xlu0 %7831
        %7833 = vrot.lane.b32.xlu0 %v2376, 8
        %v7834 = vpop.permute.xlu0 %7833
        %7835 = vrot.lane.b32.xlu0 %v2377, 8
        %v7836 = vpop.permute.xlu0 %7835
        %7837 = vrot.lane.b32.xlu0 %v2378, 8
        %v7838 = vpop.permute.xlu0 %7837
        %7839 = vrot.lane.b32.xlu0 %v2379, 8
        %v7840 = vpop.permute.xlu0 %7839
        %7841 = vrot.lane.b32.xlu0 %v2380, 8
        %v7842 = vpop.permute.xlu0 %7841
        %7843 = vrot.lane.b32.xlu0 %v2381, 8
        %v7844 = vpop.permute.xlu0 %7843
        %7845 = vrot.lane.b32.xlu0 %v2382, 8
        %v7846 = vpop.permute.xlu0 %7845
        %7911 = vrot.lane.b32.xlu0 %v2841, 16
        %v7912 = vpop.permute.xlu0 %7911
        %7913 = vrot.lane.b32.xlu0 %v2842, 16
        %v7914 = vpop.permute.xlu0 %7913
        %7915 = vrot.lane.b32.xlu0 %v2843, 16
        %v7916 = vpop.permute.xlu0 %7915
        %7917 = vrot.lane.b32.xlu0 %v2844, 16
        %v7918 = vpop.permute.xlu0 %7917
        %7919 = vrot.lane.b32.xlu0 %v2845, 16
        %v7920 = vpop.permute.xlu0 %7919
        %7921 = vrot.lane.b32.xlu0 %v2846, 16
        %v7922 = vpop.permute.xlu0 %7921
        %7923 = vrot.lane.b32.xlu0 %v2847, 16
        %v7924 = vpop.permute.xlu0 %7923
        %7925 = vrot.lane.b32.xlu0 %v2848, 16
        %v7926 = vpop.permute.xlu0 %7925
        %7927 = vrot.lane.b32.xlu0 %v2849, 16
        %v7928 = vpop.permute.xlu0 %7927
        %7929 = vrot.lane.b32.xlu0 %v2850, 16
        %v7930 = vpop.permute.xlu0 %7929
        %7931 = vrot.lane.b32.xlu0 %v2851, 16
        %v7932 = vpop.permute.xlu0 %7931
        %7933 = vrot.lane.b32.xlu0 %v2852, 16
        %v7934 = vpop.permute.xlu0 %7933
        %7935 = vrot.lane.b32.xlu0 %v2853, 16
        %v7936 = vpop.permute.xlu0 %7935
        %7937 = vrot.lane.b32.xlu0 %v2854, 16
        %v7938 = vpop.permute.xlu0 %7937
        %7939 = vrot.lane.b32.xlu0 %v2855, 16
        %v7940 = vpop.permute.xlu0 %7939
        %7941 = vrot.lane.b32.xlu0 %v2856, 16
        %v7942 = vpop.permute.xlu0 %7941
        %7943 = vrot.lane.b32.xlu0 %v2857, 16
        %v7944 = vpop.permute.xlu0 %7943
        %7945 = vrot.lane.b32.xlu0 %v2858, 16
        %v7946 = vpop.permute.xlu0 %7945
        %7947 = vrot.lane.b32.xlu0 %v2859, 16
        %v7948 = vpop.permute.xlu0 %7947
        %7949 = vrot.lane.b32.xlu0 %v2860, 16
        %v7950 = vpop.permute.xlu0 %7949
        %7951 = vrot.lane.b32.xlu0 %v2861, 16
        %v7952 = vpop.permute.xlu0 %7951
        %7953 = vrot.lane.b32.xlu0 %v2862, 16
        %v7954 = vpop.permute.xlu0 %7953
        %7955 = vrot.lane.b32.xlu0 %v2863, 16
        %v7956 = vpop.permute.xlu0 %7955
        %7957 = vrot.lane.b32.xlu0 %v2864, 16
        %v7958 = vpop.permute.xlu0 %7957
        %7959 = vrot.lane.b32.xlu0 %v2865, 16
        %v7960 = vpop.permute.xlu0 %7959
        %7961 = vrot.lane.b32.xlu0 %v2866, 16
        %v7962 = vpop.permute.xlu0 %7961
        %7963 = vrot.lane.b32.xlu0 %v2867, 16
        %v7964 = vpop.permute.xlu0 %7963
        %7965 = vrot.lane.b32.xlu0 %v2868, 16
        %v7966 = vpop.permute.xlu0 %7965
        %7967 = vrot.lane.b32.xlu0 %v2869, 16
        %v7968 = vpop.permute.xlu0 %7967
        %7969 = vrot.lane.b32.xlu0 %v2870, 16
        %v7970 = vpop.permute.xlu0 %7969
        %7971 = vrot.lane.b32.xlu0 %v2871, 16
        %v7972 = vpop.permute.xlu0 %7971
        %7973 = vrot.lane.b32.xlu0 %v2872, 16
        %v7974 = vpop.permute.xlu0 %7973
        %8039 = vrot.lane.b32.xlu0 %v6081, 24
        %v8040 = vpop.permute.xlu0 %8039
        %8041 = vrot.lane.b32.xlu0 %v6082, 24
        %v8042 = vpop.permute.xlu0 %8041
        %8043 = vrot.lane.b32.xlu0 %v6083, 24
        %v8044 = vpop.permute.xlu0 %8043
        %8045 = vrot.lane.b32.xlu0 %v6084, 24
        %v8046 = vpop.permute.xlu0 %8045
        %8047 = vrot.lane.b32.xlu0 %v6085, 24
        %v8048 = vpop.permute.xlu0 %8047
        %8049 = vrot.lane.b32.xlu0 %v6086, 24
        %v8050 = vpop.permute.xlu0 %8049
        %8051 = vrot.lane.b32.xlu0 %v6087, 24
        %v8052 = vpop.permute.xlu0 %8051
        %8053 = vrot.lane.b32.xlu0 %v6088, 24
        %v8054 = vpop.permute.xlu0 %8053
        %8055 = vrot.lane.b32.xlu0 %v6089, 24
        %v8056 = vpop.permute.xlu0 %8055
        %8057 = vrot.lane.b32.xlu0 %v6090, 24
        %v8058 = vpop.permute.xlu0 %8057
        %8059 = vrot.lane.b32.xlu0 %v6091, 24
        %v8060 = vpop.permute.xlu0 %8059
        %8061 = vrot.lane.b32.xlu0 %v6092, 24
        %v8062 = vpop.permute.xlu0 %8061
        %8063 = vrot.lane.b32.xlu0 %v6093, 24
        %v8064 = vpop.permute.xlu0 %8063
        %8065 = vrot.lane.b32.xlu0 %v6094, 24
        %v8066 = vpop.permute.xlu0 %8065
        %8067 = vrot.lane.b32.xlu0 %v6095, 24
        %v8068 = vpop.permute.xlu0 %8067
        %8069 = vrot.lane.b32.xlu0 %v6096, 24
        %v8070 = vpop.permute.xlu0 %8069
        %8071 = vrot.lane.b32.xlu0 %v6097, 24
        %v8072 = vpop.permute.xlu0 %8071
        %8073 = vrot.lane.b32.xlu0 %v6098, 24
        %v8074 = vpop.permute.xlu0 %8073
        %8075 = vrot.lane.b32.xlu0 %v6099, 24
        %v8076 = vpop.permute.xlu0 %8075
        %8077 = vrot.lane.b32.xlu0 %v6100, 24
        %v8078 = vpop.permute.xlu0 %8077
        %8079 = vrot.lane.b32.xlu0 %v6101, 24
        %v8080 = vpop.permute.xlu0 %8079
        %8081 = vrot.lane.b32.xlu0 %v6102, 24
        %v8082 = vpop.permute.xlu0 %8081
        %8083 = vrot.lane.b32.xlu0 %v6103, 24
        %v8084 = vpop.permute.xlu0 %8083
        %8085 = vrot.lane.b32.xlu0 %v6104, 24
        %v8086 = vpop.permute.xlu0 %8085
        %8087 = vrot.lane.b32.xlu0 %v6105, 24
        %v8088 = vpop.permute.xlu0 %8087
        %8089 = vrot.lane.b32.xlu0 %v6106, 24
        %v8090 = vpop.permute.xlu0 %8089
        %8091 = vrot.lane.b32.xlu0 %v6107, 24
        %v8092 = vpop.permute.xlu0 %8091
        %8093 = vrot.lane.b32.xlu0 %v6108, 24
        %v8094 = vpop.permute.xlu0 %8093
        %8095 = vrot.lane.b32.xlu0 %v6109, 24
        %v8096 = vpop.permute.xlu0 %8095
        %8097 = vrot.lane.b32.xlu0 %v6110, 24
        %v8098 = vpop.permute.xlu0 %8097
        %8099 = vrot.lane.b32.xlu0 %v6111, 24
        %v8100 = vpop.permute.xlu0 %8099
        %8101 = vrot.lane.b32.xlu0 %v6112, 24
        %v8102 = vpop.permute.xlu0 %8101
        %8167 = vrot.lane.b32.xlu0 %v6535, 32
        %v8168 = vpop.permute.xlu0 %8167
        %8169 = vrot.lane.b32.xlu0 %v6536, 32
        %v8170 = vpop.permute.xlu0 %8169
        %8171 = vrot.lane.b32.xlu0 %v6537, 32
        %v8172 = vpop.permute.xlu0 %8171
        %8173 = vrot.lane.b32.xlu0 %v6538, 32
        %v8174 = vpop.permute.xlu0 %8173
        %8175 = vrot.lane.b32.xlu0 %v6539, 32
        %v8176 = vpop.permute.xlu0 %8175
        %8177 = vrot.lane.b32.xlu0 %v6540, 32
        %v8178 = vpop.permute.xlu0 %8177
        %8179 = vrot.lane.b32.xlu0 %v6541, 32
        %v8180 = vpop.permute.xlu0 %8179
        %8181 = vrot.lane.b32.xlu0 %v6542, 32
        %v8182 = vpop.permute.xlu0 %8181
        %8183 = vrot.lane.b32.xlu0 %v6543, 32
        %v8184 = vpop.permute.xlu0 %8183
        %8185 = vrot.lane.b32.xlu0 %v6544, 32
        %v8186 = vpop.permute.xlu0 %8185
        %8187 = vrot.lane.b32.xlu0 %v6545, 32
        %v8188 = vpop.permute.xlu0 %8187
        %8189 = vrot.lane.b32.xlu0 %v6546, 32
        %v8190 = vpop.permute.xlu0 %8189
        %8191 = vrot.lane.b32.xlu0 %v6547, 32
        %v8192 = vpop.permute.xlu0 %8191
        %8193 = vrot.lane.b32.xlu0 %v6548, 32
        %v8194 = vpop.permute.xlu0 %8193
        %8195 = vrot.lane.b32.xlu0 %v6549, 32
        %v8196 = vpop.permute.xlu0 %8195
        %8197 = vrot.lane.b32.xlu0 %v6550, 32
        %v8198 = vpop.permute.xlu0 %8197
        %8199 = vrot.lane.b32.xlu0 %v6551, 32
        %v8200 = vpop.permute.xlu0 %8199
        %8201 = vrot.lane.b32.xlu0 %v6552, 32
        %v8202 = vpop.permute.xlu0 %8201
        %8203 = vrot.lane.b32.xlu0 %v6553, 32
        %v8204 = vpop.permute.xlu0 %8203
        %8205 = vrot.lane.b32.xlu0 %v6554, 32
        %v8206 = vpop.permute.xlu0 %8205
        %8207 = vrot.lane.b32.xlu0 %v6555, 32
        %v8208 = vpop.permute.xlu0 %8207
        %8209 = vrot.lane.b32.xlu0 %v6556, 32
        %v8210 = vpop.permute.xlu0 %8209
        %8211 = vrot.lane.b32.xlu0 %v6557, 32
        %v8212 = vpop.permute.xlu0 %8211
        %8213 = vrot.lane.b32.xlu0 %v6558, 32
        %v8214 = vpop.permute.xlu0 %8213
        %8215 = vrot.lane.b32.xlu0 %v6559, 32
        %v8216 = vpop.permute.xlu0 %8215
        %8217 = vrot.lane.b32.xlu0 %v6560, 32
        %v8218 = vpop.permute.xlu0 %8217
        %8219 = vrot.lane.b32.xlu0 %v6561, 32
        %v8220 = vpop.permute.xlu0 %8219
        %8221 = vrot.lane.b32.xlu0 %v6562, 32
        %v8222 = vpop.permute.xlu0 %8221
        %8223 = vrot.lane.b32.xlu0 %v6563, 32
        %v8224 = vpop.permute.xlu0 %8223
        %8225 = vrot.lane.b32.xlu0 %v6564, 32
        %v8226 = vpop.permute.xlu0 %8225
        %8227 = vrot.lane.b32.xlu0 %v6565, 32
        %v8228 = vpop.permute.xlu0 %8227
        %8229 = vrot.lane.b32.xlu0 %v6566, 32
        %v8230 = vpop.permute.xlu0 %8229
        %8295 = vrot.lane.b32.xlu0 %v7719, 40
        %v8296 = vpop.permute.xlu0 %8295
        %8297 = vrot.lane.b32.xlu0 %v7720, 40
        %v8298 = vpop.permute.xlu0 %8297
        %8299 = vrot.lane.b32.xlu0 %v7721, 40
        %v8300 = vpop.permute.xlu0 %8299
        %8301 = vrot.lane.b32.xlu0 %v7722, 40
        %v8302 = vpop.permute.xlu0 %8301
        %8303 = vrot.lane.b32.xlu0 %v7723, 40
        %v8304 = vpop.permute.xlu0 %8303
        %8305 = vrot.lane.b32.xlu0 %v7724, 40
        %v8306 = vpop.permute.xlu0 %8305
        %8307 = vrot.lane.b32.xlu0 %v7725, 40
        %v8308 = vpop.permute.xlu0 %8307
        %8309 = vrot.lane.b32.xlu0 %v7726, 40
        %v8310 = vpop.permute.xlu0 %8309
        %8311 = vrot.lane.b32.xlu0 %v7727, 40
        %v8312 = vpop.permute.xlu0 %8311
        %8313 = vrot.lane.b32.xlu0 %v7728, 40
        %v8314 = vpop.permute.xlu0 %8313
        %8315 = vrot.lane.b32.xlu0 %v7729, 40
        %v8316 = vpop.permute.xlu0 %8315
        %8317 = vrot.lane.b32.xlu0 %v7730, 40
        %v8318 = vpop.permute.xlu0 %8317
        %8319 = vrot.lane.b32.xlu0 %v7731, 40
        %v8320 = vpop.permute.xlu0 %8319
        %8321 = vrot.lane.b32.xlu0 %v7732, 40
        %v8322 = vpop.permute.xlu0 %8321
        %8323 = vrot.lane.b32.xlu0 %v7733, 40
        %v8324 = vpop.permute.xlu0 %8323
        %8325 = vrot.lane.b32.xlu0 %v7734, 40
        %v8326 = vpop.permute.xlu0 %8325
        %8327 = vrot.lane.b32.xlu0 %v7735, 40
        %v8328 = vpop.permute.xlu0 %8327
        %8329 = vrot.lane.b32.xlu0 %v7736, 40
        %v8330 = vpop.permute.xlu0 %8329
        %8331 = vrot.lane.b32.xlu0 %v7737, 40
        %v8332 = vpop.permute.xlu0 %8331
        %8333 = vrot.lane.b32.xlu0 %v7738, 40
        %v8334 = vpop.permute.xlu0 %8333
        %8335 = vrot.lane.b32.xlu0 %v7739, 40
        %v8336 = vpop.permute.xlu0 %8335
        %8337 = vrot.lane.b32.xlu0 %v7740, 40
        %v8338 = vpop.permute.xlu0 %8337
        %8339 = vrot.lane.b32.xlu0 %v7741, 40
        %v8340 = vpop.permute.xlu0 %8339
        %8341 = vrot.lane.b32.xlu0 %v7742, 40
        %v8342 = vpop.permute.xlu0 %8341
        %8343 = vrot.lane.b32.xlu0 %v7743, 40
        %v8344 = vpop.permute.xlu0 %8343
        %8345 = vrot.lane.b32.xlu0 %v7744, 40
        %v8346 = vpop.permute.xlu0 %8345
        %8347 = vrot.lane.b32.xlu0 %v7745, 40
        %v8348 = vpop.permute.xlu0 %8347
        %8349 = vrot.lane.b32.xlu0 %v7746, 40
        %v8350 = vpop.permute.xlu0 %8349
        %8351 = vrot.lane.b32.xlu0 %v7747, 40
        %v8352 = vpop.permute.xlu0 %8351
        %8353 = vrot.lane.b32.xlu0 %v7748, 40
        %v8354 = vpop.permute.xlu0 %8353
        %8355 = vrot.lane.b32.xlu0 %v7749, 40
        %v8356 = vpop.permute.xlu0 %8355
        %8357 = vrot.lane.b32.xlu0 %v7750, 40
        %v8358 = vpop.permute.xlu0 %8357
        %v8391 = vsel %vm1681, %v1101, %v7784
        %v8392 = vsel %vm1681, %v1102, %v7786
        %v8393 = vsel %vm1681, %v1103, %v7788
        %v8394 = vsel %vm1681, %v1104, %v7790
        %v8395 = vsel %vm1681, %v1105, %v7792
        %v8396 = vsel %vm1681, %v1106, %v7794
        %v8397 = vsel %vm1681, %v1107, %v7796
        %v8398 = vsel %vm1681, %v1108, %v7798
        %v8399 = vsel %vm1681, %v1109, %v7800
        %v8400 = vsel %vm1681, %v1110, %v7802
        %v8401 = vsel %vm1681, %v1111, %v7804
        %v8402 = vsel %vm1681, %v1112, %v7806
        %v8403 = vsel %vm1681, %v1113, %v7808
        %v8404 = vsel %vm1681, %v1114, %v7810
        %v8405 = vsel %vm1681, %v1115, %v7812
        %v8406 = vsel %vm1681, %v1116, %v7814
        %v8407 = vsel %vm1681, %v1117, %v7816
        %v8408 = vsel %vm1681, %v1118, %v7818
        %v8409 = vsel %vm1681, %v1119, %v7820
        %v8410 = vsel %vm1681, %v1120, %v7822
        %v8411 = vsel %vm1681, %v1121, %v7824
        %v8412 = vsel %vm1681, %v1122, %v7826
        %v8413 = vsel %vm1681, %v1123, %v7828
        %v8414 = vsel %vm1681, %v1124, %v7830
        %v8415 = vsel %vm1681, %v1125, %v7832
        %v8416 = vsel %vm1681, %v1126, %v7834
        %v8417 = vsel %vm1681, %v1127, %v7836
        %v8418 = vsel %vm1681, %v1128, %v7838
        %v8419 = vsel %vm1681, %v1129, %v7840
        %v8420 = vsel %vm1681, %v1130, %v7842
        %v8421 = vsel %vm1681, %v1131, %v7844
        %v8422 = vsel %vm1681, %v1132, %v7846
        %v8423 = vsel %vm1746, %v8391, %v7912
        %v8424 = vsel %vm1746, %v8392, %v7914
        %v8425 = vsel %vm1746, %v8393, %v7916
        %v8426 = vsel %vm1746, %v8394, %v7918
        %v8427 = vsel %vm1746, %v8395, %v7920
        %v8428 = vsel %vm1746, %v8396, %v7922
        %v8429 = vsel %vm1746, %v8397, %v7924
        %v8430 = vsel %vm1746, %v8398, %v7926
        %v8431 = vsel %vm1746, %v8399, %v7928
        %v8432 = vsel %vm1746, %v8400, %v7930
        %v8433 = vsel %vm1746, %v8401, %v7932
        %v8434 = vsel %vm1746, %v8402, %v7934
        %v8435 = vsel %vm1746, %v8403, %v7936
        %v8436 = vsel %vm1746, %v8404, %v7938
        %v8437 = vsel %vm1746, %v8405, %v7940
        %v8438 = vsel %vm1746, %v8406, %v7942
        %v8439 = vsel %vm1746, %v8407, %v7944
        %v8440 = vsel %vm1746, %v8408, %v7946
        %v8441 = vsel %vm1746, %v8409, %v7948
        %v8442 = vsel %vm1746, %v8410, %v7950
        %v8443 = vsel %vm1746, %v8411, %v7952
        %v8444 = vsel %vm1746, %v8412, %v7954
        %v8445 = vsel %vm1746, %v8413, %v7956
        %v8446 = vsel %vm1746, %v8414, %v7958
        %v8447 = vsel %vm1746, %v8415, %v7960
        %v8448 = vsel %vm1746, %v8416, %v7962
        %v8449 = vsel %vm1746, %v8417, %v7964
        %v8450 = vsel %vm1746, %v8418, %v7966
        %v8451 = vsel %vm1746, %v8419, %v7968
        %v8452 = vsel %vm1746, %v8420, %v7970
        %v8453 = vsel %vm1746, %v8421, %v7972
        %v8454 = vsel %vm1746, %v8422, %v7974
        %v8455 = vsel %vm2064, %v8423, %v8040
        %v8456 = vsel %vm2064, %v8424, %v8042
        %v8457 = vsel %vm2064, %v8425, %v8044
        %v8458 = vsel %vm2064, %v8426, %v8046
        %v8459 = vsel %vm2064, %v8427, %v8048
        %v8460 = vsel %vm2064, %v8428, %v8050
        %v8461 = vsel %vm2064, %v8429, %v8052
        %v8462 = vsel %vm2064, %v8430, %v8054
        %v8463 = vsel %vm2064, %v8431, %v8056
        %v8464 = vsel %vm2064, %v8432, %v8058
        %v8465 = vsel %vm2064, %v8433, %v8060
        %v8466 = vsel %vm2064, %v8434, %v8062
        %v8467 = vsel %vm2064, %v8435, %v8064
        %v8468 = vsel %vm2064, %v8436, %v8066
        %v8469 = vsel %vm2064, %v8437, %v8068
        %v8470 = vsel %vm2064, %v8438, %v8070
        %v8471 = vsel %vm2064, %v8439, %v8072
        %v8472 = vsel %vm2064, %v8440, %v8074
        %v8473 = vsel %vm2064, %v8441, %v8076
        %v8474 = vsel %vm2064, %v8442, %v8078
        %v8475 = vsel %vm2064, %v8443, %v8080
        %v8476 = vsel %vm2064, %v8444, %v8082
        %v8477 = vsel %vm2064, %v8445, %v8084
        %v8478 = vsel %vm2064, %v8446, %v8086
        %v8479 = vsel %vm2064, %v8447, %v8088
        %v8480 = vsel %vm2064, %v8448, %v8090
        %v8481 = vsel %vm2064, %v8449, %v8092
        %v8482 = vsel %vm2064, %v8450, %v8094
        %v8483 = vsel %vm2064, %v8451, %v8096
        %v8484 = vsel %vm2064, %v8452, %v8098
        %v8485 = vsel %vm2064, %v8453, %v8100
        %v8486 = vsel %vm2064, %v8454, %v8102
        %v8487 = vsel %vm3983, %v8455, %v8168
        %v8488 = vsel %vm3983, %v8456, %v8170
        %v8489 = vsel %vm3983, %v8457, %v8172
        %v8490 = vsel %vm3983, %v8458, %v8174
        %v8491 = vsel %vm3983, %v8459, %v8176
        %v8492 = vsel %vm3983, %v8460, %v8178
        %v8493 = vsel %vm3983, %v8461, %v8180
        %v8494 = vsel %vm3983, %v8462, %v8182
        %v8495 = vsel %vm3983, %v8463, %v8184
        %v8496 = vsel %vm3983, %v8464, %v8186
        %v8497 = vsel %vm3983, %v8465, %v8188
        %v8498 = vsel %vm3983, %v8466, %v8190
        %v8499 = vsel %vm3983, %v8467, %v8192
        %v8500 = vsel %vm3983, %v8468, %v8194
        %v8501 = vsel %vm3983, %v8469, %v8196
        %v8502 = vsel %vm3983, %v8470, %v8198
        %v8503 = vsel %vm3983, %v8471, %v8200
        %v8504 = vsel %vm3983, %v8472, %v8202
        %v8505 = vsel %vm3983, %v8473, %v8204
        %v8506 = vsel %vm3983, %v8474, %v8206
        %v8507 = vsel %vm3983, %v8475, %v8208
        %v8508 = vsel %vm3983, %v8476, %v8210
        %v8509 = vsel %vm3983, %v8477, %v8212
        %v8510 = vsel %vm3983, %v8478, %v8214
        %v8511 = vsel %vm3983, %v8479, %v8216
        %v8512 = vsel %vm3983, %v8480, %v8218
        %v8513 = vsel %vm3983, %v8481, %v8220
        %v8514 = vsel %vm3983, %v8482, %v8222
        %v8515 = vsel %vm3983, %v8483, %v8224
        %v8516 = vsel %vm3983, %v8484, %v8226
        %v8517 = vsel %vm3983, %v8485, %v8228
        %v8518 = vsel %vm3983, %v8486, %v8230
        %v8519 = vsel %vm4048, %v8487, %v8296
        %v8520 = vsel %vm4048, %v8488, %v8298
        %v8521 = vsel %vm4048, %v8489, %v8300
        %v8522 = vsel %vm4048, %v8490, %v8302
        %v8523 = vsel %vm4048, %v8491, %v8304
        %v8524 = vsel %vm4048, %v8492, %v8306
        %v8525 = vsel %vm4048, %v8493, %v8308
        %v8526 = vsel %vm4048, %v8494, %v8310
        %v8527 = vsel %vm4048, %v8495, %v8312
        %v8528 = vsel %vm4048, %v8496, %v8314
        %v8529 = vsel %vm4048, %v8497, %v8316
        %v8530 = vsel %vm4048, %v8498, %v8318
        %v8531 = vsel %vm4048, %v8499, %v8320
        %v8532 = vsel %vm4048, %v8500, %v8322
        %v8533 = vsel %vm4048, %v8501, %v8324
        %v8534 = vsel %vm4048, %v8502, %v8326
        %v8535 = vsel %vm4048, %v8503, %v8328
        %v8536 = vsel %vm4048, %v8504, %v8330
        %v8537 = vsel %vm4048, %v8505, %v8332
        %v8538 = vsel %vm4048, %v8506, %v8334
        %v8539 = vsel %vm4048, %v8507, %v8336
        %v8540 = vsel %vm4048, %v8508, %v8338
        %v8541 = vsel %vm4048, %v8509, %v8340
        %v8542 = vsel %vm4048, %v8510, %v8342
        %v8543 = vsel %vm4048, %v8511, %v8344
        %v8544 = vsel %vm4048, %v8512, %v8346
        %v8545 = vsel %vm4048, %v8513, %v8348
        %v8546 = vsel %vm4048, %v8514, %v8350
        %v8547 = vsel %vm4048, %v8515, %v8352
        %v8548 = vsel %vm4048, %v8516, %v8354
        %v8549 = vsel %vm4048, %v8517, %v8356
        %v8550 = vsel %vm4048, %v8518, %v8358
        %8551 = vst.msk [vmem:[%s697] sm:$0xff] %vm4113, %v8519
        %8552 = vst.msk [vmem:[%s697 + $0x8] sm:$0xff] %vm4113, %v8520
        %8553 = vst.msk [vmem:[%s697 + $0x10] sm:$0xff] %vm4113, %v8521
        %8554 = vst.msk [vmem:[%s697 + $0x18] sm:$0xff] %vm4113, %v8522
        %8555 = vst.msk [vmem:[%s697 + $0x20] sm:$0xff] %vm4113, %v8523
        %8556 = vst.msk [vmem:[%s697 + $0x28] sm:$0xff] %vm4113, %v8524
        %8557 = vst.msk [vmem:[%s697 + $0x30] sm:$0xff] %vm4113, %v8525
        %8558 = vst.msk [vmem:[%s697 + $0x38] sm:$0xff] %vm4113, %v8526
        %8559 = vst.msk [vmem:[%s697 + $0x40] sm:$0xff] %vm4113, %v8527
        %8560 = vst.msk [vmem:[%s697 + $0x48] sm:$0xff] %vm4113, %v8528
        %8561 = vst.msk [vmem:[%s697 + $0x50] sm:$0xff] %vm4113, %v8529
        %8562 = vst.msk [vmem:[%s697 + $0x58] sm:$0xff] %vm4113, %v8530
        %8563 = vst.msk [vmem:[%s697 + $0x60] sm:$0xff] %vm4113, %v8531
        %8564 = vst.msk [vmem:[%s697 + $0x68] sm:$0xff] %vm4113, %v8532
        %8565 = vst.msk [vmem:[%s697 + $0x70] sm:$0xff] %vm4113, %v8533
        %8566 = vst.msk [vmem:[%s697 + $0x78] sm:$0xff] %vm4113, %v8534
        %8567 = vst.msk [vmem:[%s697 + $0x80] sm:$0xff] %vm4113, %v8535
        %8568 = vst.msk [vmem:[%s697 + $0x88] sm:$0xff] %vm4113, %v8536
        %8569 = vst.msk [vmem:[%s697 + $0x90] sm:$0xff] %vm4113, %v8537
        %8570 = vst.msk [vmem:[%s697 + $0x98] sm:$0xff] %vm4113, %v8538
        %8571 = vst.msk [vmem:[%s697 + $0xa0] sm:$0xff] %vm4113, %v8539
        %8572 = vst.msk [vmem:[%s697 + $0xa8] sm:$0xff] %vm4113, %v8540
        %8573 = vst.msk [vmem:[%s697 + $0xb0] sm:$0xff] %vm4113, %v8541
        %8574 = vst.msk [vmem:[%s697 + $0xb8] sm:$0xff] %vm4113, %v8542
        %8575 = vst.msk [vmem:[%s697 + $0xc0] sm:$0xff] %vm4113, %v8543
        %8576 = vst.msk [vmem:[%s697 + $0xc8] sm:$0xff] %vm4113, %v8544
        %8577 = vst.msk [vmem:[%s697 + $0xd0] sm:$0xff] %vm4113, %v8545
        %8578 = vst.msk [vmem:[%s697 + $0xd8] sm:$0xff] %vm4113, %v8546
        %8579 = vst.msk [vmem:[%s697 + $0xe0] sm:$0xff] %vm4113, %v8547
        %8580 = vst.msk [vmem:[%s697 + $0xe8] sm:$0xff] %vm4113, %v8548
        %8581 = vst.msk [vmem:[%s697 + $0xf0] sm:$0xff] %vm4113, %v8549
        %8582 = vst.msk [vmem:[%s697 + $0xf8] sm:$0xff] %vm4113, %v8550
        %s8583 = sand.u32 %s367, 1
        %s8584 = scalar_lea.sflag [#allocation4], %s8583
        %s8585 = sand.u32 %s367, 1
        %s8586 = smul.addr %s8585, 256
        %s8587 = scalar_lea.vmem [#allocation26], %s8586
        // Predicated region
        $region141: #{tpu_custom_call.1} parent=79 // pred_check
          %p8588 = pneg %p377
        $region142: #{tpu_custom_call.1} parent=79 // pred_check_branch
          %8590 = sbr.rel (%p8588) target = $region144
        $region143: #{tpu_custom_call.1} parent=79 // pred_region
          %s8592 = ssub.s32 4096, 4096
          %8593 = vsyncadd %s8584, %s8592
          %s8594 = smul.addr %s39, 32
          %s8595 = smul.addr %s8594, 128
          %s8596 = scalar_lea.hbm %s15, %s8595
          %s8597 = sshll.u32 %s8587, 4
          %s8598 = int_to_ptr.vmem [resolvable:$true] %s8597
          %8603 = dma.vmem_to_hbm [thread:$0]  %s8598, 4096, %s8596, %s8584, 128, 128, 8
        $region144: #{tpu_custom_call.1} parent=79 // pred_fallthru
          _
      $region80: #{tpu_custom_call.1} parent=5 // pred_fallthru
        _
      %p8604 = scmp.le.s32.totalorder 2, %s34
      // Predicated region
      $region145: #{tpu_custom_call.1} parent=5 // pred_check
        %p8605 = pneg %p8604
      $region146: #{tpu_custom_call.1} parent=5 // pred_check_branch
        %8607 = sbr.rel (%p8605) target = $region148
      $region147: #{tpu_custom_call.1} parent=5 // pred_region
        %s8608 = ssub.s32 %s34, 2
        // Predicated region
        $region149: #{tpu_custom_call.1} parent=147 // pred_check
          %p8609 = pneg %p383
        $region150: #{tpu_custom_call.1} parent=147 // pred_check_branch
          %8611 = sbr.rel (%p8609) target = $region152
        $region151: #{tpu_custom_call.1} parent=147 // pred_region
          %s8612 = sand.u32 %s368, 1
          %s8613 = scalar_lea.sflag [#allocation4], %s8612
          %s8614 = sand.u32 %s368, 1
          %s8615 = smul.addr %s8614, 256
          %s8616 = scalar_lea.vmem [#allocation26], %s8615
          %8617 = dma.done %s8613, 4096
        $region152: #{tpu_custom_call.1} parent=147 // pred_fallthru
          _
      $region148: #{tpu_custom_call.1} parent=5 // pred_fallthru
        _
    $region6: #{tpu_custom_call.1} parent=1 // loop_footer
      %s38 = sadd.s32 1, %s34
    $region7: #{tpu_custom_call.1} parent=1 // loop_footer_branch
      %33 = sbr.rel target = $region3
    $region8: #{tpu_custom_call.1} parent=1 // loop_exit
      _
    %8618 = vsyncpa [#allocation3], 1
    %s8619 = scalar_lea.sflag [#allocation3], 1
    %8620 = vsyncpa %s8619, 1
    %8621 = vsyncpa [#allocation6], 1
    %8622 = vsyncpa [#allocation9], 1
    %8623 = vsyncpa [#allocation12], 1
    %8624 = vsyncpa [#allocation15], 1
    %8625 = vsyncpa [#allocation18], 1
    %8626 = vsyncpa [#allocation21], 1
    %8627 = vsyncpa [#allocation24], 1
    %8628 = vsyncpa [#allocation4], 1
    %s8629 = scalar_lea.sflag [#allocation4], 1
    %8630 = vsyncpa %s8629, 1

</llo_original>
